<compile_context>
chip_gen: v5e
topology: v5e:2x2
jax: 0.10.0
libtpu: 0.0.40
codegen_flags: <defaults>
</compile_context>

<pallas_src>
import functools

import jax
import jax.numpy as jnp
from jax.experimental import pallas as pl
from jax.experimental.pallas import tpu as pltpu

IMAGE_DIM = 128
INSTR_DIM = 128
ACTION_DIM = 7
BN_EPS = 1e-5
VMEM_LIMIT = 32 * 1024 * 1024  # plenty of headroom on v5e/v6e/v7x; model is ~4 MB total


# ----------------------------- Pallas kernels -----------------------------

def _bn_relu(z, gamma, beta):
    """Training-mode BatchNorm over all rows of this block (= one encode call's
    batch*spatial) + ReLU.  Row reductions done as MXU matmuls with a ones vector."""
    m = z.shape[0]
    ones = jnp.ones((1, m), jnp.float32)
    mean = jnp.dot(ones, z, preferred_element_type=jnp.float32) * (1.0 / m)
    d = z - mean
    var = jnp.dot(ones, d * d, preferred_element_type=jnp.float32) * (1.0 / m)
    return jnp.maximum(d * jax.lax.rsqrt(var + BN_EPS) * gamma + beta, 0.0)


def _conv_bn_relu_kernel(pat_ref, w_ref, b_ref, g_ref, be_ref, o_ref):
    """im2col-conv matmul + bias + BN + ReLU, one observation (grid half) per step."""
    z = jnp.dot(pat_ref[...], w_ref[...], preferred_element_type=jnp.float32) + b_ref[...]
    o_ref[...] = _bn_relu(z, g_ref[...], be_ref[...])


def _film_conv_bn_relu_kernel(pat_ref, w_ref, b_ref, y_ref, fw_ref, fb_ref,
                              g_ref, be_ref, o_ref, *, bo, spatial, pool):
    """FiLM controller second half: conv2 + (weight(y), bias(y)) fused into one matmul
    + per-pixel modulation + BN2 + ReLU (+ final 2x2 film_pool when `pool`)."""
    cout = w_ref.shape[1]
    z = jnp.dot(pat_ref[...], w_ref[...], preferred_element_type=jnp.float32) + b_ref[...]

    y = y_ref[0]                                                       # [bo, D]
    wb = jnp.dot(y, fw_ref[...], preferred_element_type=jnp.float32) + fb_ref[...]
    mod_w = wb[:, :cout]                                               # FiLM "weight" head
    mod_b = wb[:, cout:]                                               # FiLM "bias" head
    # expand per-batch modulators to per-row (rows are ordered (b, h, w))
    rep_w = jnp.concatenate(
        [mod_w[b:b + 1] for b in range(bo) for _ in range(spatial)], axis=0)
    rep_b = jnp.concatenate(
        [mod_b[b:b + 1] for b in range(bo) for _ in range(spatial)], axis=0)

    out = _bn_relu(z * rep_w + rep_b, g_ref[...], be_ref[...])         # [bo*spatial, cout]

    if pool:
        # final film_pool (2x2 map -> 1x1) + trailing ReLU folded in.
        pooled = []
        for b in range(bo):
            m = out[b * spatial:b * spatial + 1]
            for k in range(1, spatial):
                m = jnp.maximum(m, out[b * spatial + k:b * spatial + k + 1])
            pooled.append(m)
        o_ref[0] = jnp.maximum(jnp.concatenate(pooled, axis=0), 0.0)   # [bo, cout]
    else:
        o_ref[...] = out


def _gru_kernel(emb_ref, wih_ref, bih_ref, whh_ref, bhh_ref, tgt_ref, o_ref):
    """Full GRU for one observation group: input projection + unrolled recurrence,
    emits only the hidden state at t == lengths-1 (PyTorch gate order r, z, n)."""
    bo, seq, _ = emb_ref.shape
    h_dim = whh_ref.shape[0]
    wih = wih_ref[...]
    bih = bih_ref[...]
    whh = whh_ref[...]
    bhh = bhh_ref[...]
    tgt = tgt_ref[0]                                   # [bo, H], lane-broadcast final index

    h = jnp.zeros((bo, h_dim), jnp.float32)
    out = jnp.zeros((bo, h_dim), jnp.float32)
    for t in range(seq):                               # fully unrolled (L is small & static)
        xt = emb_ref[:, t, :]                          # [bo, D]
        gx = jnp.dot(xt, wih, preferred_element_type=jnp.float32) + bih
        gh = jnp.dot(h, whh, preferred_element_type=jnp.float32) + bhh
        r = 1.0 / (1.0 + jnp.exp(-(gx[:, :h_dim] + gh[:, :h_dim])))
        z = 1.0 / (1.0 + jnp.exp(-(gx[:, h_dim:2 * h_dim] + gh[:, h_dim:2 * h_dim])))
        n = jnp.tanh(gx[:, 2 * h_dim:] + r * gh[:, 2 * h_dim:])
        h = (1.0 - z) * n + z * h
        out = jnp.where(tgt == float(t), h, out)
    o_ref[0] = out


def _heads_kernel(phi1_ref, phi2_ref, oh_ref,
                  i1w_ref, i1b_ref, i2w_ref, i2b_ref,
                  f1w_ref, f1b_ref, f2w_ref, f2b_ref,
                  act_ref, pred_ref):
    """Inverse + forward FC heads fused; concats expressed as split matmuls."""
    phi1 = phi1_ref[...]
    phi2 = phi2_ref[...]

    i1w = i1w_ref[...]
    x_inv = (jnp.dot(phi1, i1w[:IMAGE_DIM], preferred_element_type=jnp.float32)
             + jnp.dot(phi2, i1w[IMAGE_DIM:], preferred_element_type=jnp.float32)
             + i1b_ref[...])
    act_ref[...] = (jnp.dot(x_inv, i2w_ref[...], preferred_element_type=jnp.float32)
                    + i2b_ref[...])

    f1w = f1w_ref[...]
    x_fwd = (jnp.dot(phi1, f1w[:IMAGE_DIM], preferred_element_type=jnp.float32)
             + jnp.dot(oh_ref[...], f1w[IMAGE_DIM:], preferred_element_type=jnp.float32)
             + f1b_ref[...])
    pred_ref[...] = (jnp.dot(x_fwd, f2w_ref[...], preferred_element_type=jnp.float32)
                     + f2b_ref[...])


# ----------------------------- pallas_call wrappers -----------------------------

_GROUPS = 2  # obs1 / obs2


def conv_bn_relu(pat, w, b, gamma, beta):
    m, k = pat.shape
    n = w.shape[1]
    mh = m // _GROUPS
    return pl.pallas_call(
        _conv_bn_relu_kernel,
        out_shape=jax.ShapeDtypeStruct((m, n), jnp.float32),
        grid=(_GROUPS,),
        in_specs=[pl.BlockSpec((mh, k), lambda h: (h, 0)),
                  pl.BlockSpec((k, n), lambda h: (0, 0)),
                  pl.BlockSpec((1, n), lambda h: (0, 0)),
                  pl.BlockSpec((1, n), lambda h: (0, 0)),
                  pl.BlockSpec((1, n), lambda h: (0, 0))],
        out_specs=pl.BlockSpec((mh, n), lambda h: (h, 0)),
        compiler_params=pltpu.CompilerParams(
            dimension_semantics=("parallel",), vmem_limit_bytes=VMEM_LIMIT),
    )(pat, w, b, gamma, beta)


def film_conv_bn_relu(pat, w, b, y_gbd, film_w, film_b, gamma, beta, *, spatial, pool):
    m, k = pat.shape
    n = w.shape[1]
    mh = m // _GROUPS
    bo = y_gbd.shape[1]
    d = y_gbd.shape[2]
    kern = functools.partial(_film_conv_bn_relu_kernel, bo=bo, spatial=spatial, pool=pool)
    if pool:
        out_shape = jax.ShapeDtypeStruct((_GROUPS, bo, n), jnp.float32)
        out_spec = pl.BlockSpec((1, bo, n), lambda h: (h, 0, 0))
    else:
        out_shape = jax.ShapeDtypeStruct((m, n), jnp.float32)
        out_spec = pl.BlockSpec((mh, n), lambda h: (h, 0))
    return pl.pallas_call(
        kern,
        out_shape=out_shape,
        grid=(_GROUPS,),
        in_specs=[pl.BlockSpec((mh, k), lambda h: (h, 0)),
                  pl.BlockSpec((k, n), lambda h: (0, 0)),
                  pl.BlockSpec((1, n), lambda h: (0, 0)),
                  pl.BlockSpec((1, bo, d), lambda h: (h, 0, 0)),
                  pl.BlockSpec((d, 2 * n), lambda h: (0, 0)),
                  pl.BlockSpec((1, 2 * n), lambda h: (0, 0)),
                  pl.BlockSpec((1, n), lambda h: (0, 0)),
                  pl.BlockSpec((1, n), lambda h: (0, 0))],
        out_specs=out_spec,
        compiler_params=pltpu.CompilerParams(
            dimension_semantics=("parallel",), vmem_limit_bytes=VMEM_LIMIT),
    )(pat, w, b, y_gbd, film_w, film_b, gamma, beta)


def gru_final_state(emb, tgt_gbd, wih_t, bih, whh_t, bhh):
    btot, seq, d = emb.shape
    bo = btot // _GROUPS
    hdim = whh_t.shape[0]
    g3 = 3 * hdim
    return pl.pallas_call(
        _gru_kernel,
        out_shape=jax.ShapeDtypeStruct((_GROUPS, bo, hdim), jnp.float32),
        grid=(_GROUPS,),
        in_specs=[pl.BlockSpec((bo, seq, d), lambda h: (h, 0, 0)),
                  pl.BlockSpec((d, g3), lambda h: (0, 0)),
                  pl.BlockSpec((1, g3), lambda h: (0, 0)),
                  pl.BlockSpec((hdim, g3), lambda h: (0, 0)),
                  pl.BlockSpec((1, g3), lambda h: (0, 0)),
                  pl.BlockSpec((1, bo, hdim), lambda h: (h, 0, 0))],
        out_specs=pl.BlockSpec((1, bo, hdim), lambda h: (h, 0, 0)),
        compiler_params=pltpu.CompilerParams(
            dimension_semantics=("parallel",), vmem_limit_bytes=VMEM_LIMIT),
    )(emb, wih_t, bih, whh_t, bhh, tgt_gbd)


def heads(phi1, phi2, onehot, p):
    bo = phi1.shape[0]
    return pl.pallas_call(
        _heads_kernel,
        out_shape=(jax.ShapeDtypeStruct((bo, ACTION_DIM), jnp.float32),
                   jax.ShapeDtypeStruct((bo, IMAGE_DIM), jnp.float32)),
    )(phi1, phi2, onehot,
      p["inv1_w"], p["inv1_b"], p["inv2_w"], p["inv2_b"],
      p["fwd1_w"], p["fwd1_b"], p["fwd2_w"], p["fwd2_b"])


# ----------------------------- JAX glue ops --------------------------------

def im2col(x_nhwc, ksize, pad):
    b, h, w, c = x_nhwc.shape
    kh, kw = ksize
    xp = jnp.pad(x_nhwc, ((0, 0), (pad, pad), (pad, pad), (0, 0)))
    ho = h + 2 * pad - kh + 1
    wo = w + 2 * pad - kw + 1
    cols = [xp[:, i:i + ho, j:j + wo, :] for i in range(kh) for j in range(kw)]
    pat = jnp.concatenate(cols, axis=-1)                 # [B, Ho, Wo, KH*KW*C]
    return pat.reshape(b * ho * wo, kh * kw * c), (ho, wo)


def maxpool2(x_nhwc):
    b, h, w, c = x_nhwc.shape
    return x_nhwc.reshape(b, h // 2, 2, w // 2, 2, c).max(axis=(2, 4))


# ----------------------------- model forward --------------------------------

def encode_pair(images, instrs, p):
    """Encode obs1 and obs2 in one batched pass.
    images: [2*B, 7, 7, 3] NHWC, instrs: [2*B, L].  Returns phi [2, B, 128]
    (group 0 = obs1, group 1 = obs2); BN batch stats are per group, matching two
    separate encode() calls of the PyTorch module in training mode."""
    btot = images.shape[0]
    bo = btot // _GROUPS
    seq = instrs.shape[1]

    # ---- instruction path: one GRU kernel that emits only the final valid state ----
    lengths = jnp.sum((instrs != 0).astype(jnp.int32), axis=1)
    # matches out[range(B), lengths - 1]: an all-padding row (-1) picks the last step.
    tgt = jnp.where(lengths > 0, lengths - 1, seq - 1).astype(jnp.float32)
    tgt_gbd = jnp.broadcast_to(tgt.reshape(_GROUPS, bo, 1), (_GROUPS, bo, INSTR_DIM))
    emb = jnp.take(p["emb"], instrs, axis=0)             # [2B, L, D]  (XLA gather glue)
    instr_emb = gru_final_state(emb, tgt_gbd, p["gru_wih_t"], p["gru_bih"],
                                p["gru_whh_t"], p["gru_bhh"])          # [2, B, D]

    # ---- image path: fused conv+bias+BN+ReLU kernels, im2col/pool as XLA glue ----
    pat, (ho, wo) = im2col(images, (2, 2), 1)                           # 7x7 -> 8x8
    x = conv_bn_relu(pat, p["ic_conv1_w"], p["ic_conv1_b"],
                     p["ic_bn1_g"], p["ic_bn1_b"]).reshape(btot, ho, wo, IMAGE_DIM)
    x = maxpool2(x)                                                     # -> 4x4

    pat, (ho, wo) = im2col(x, (3, 3), 1)
    x = conv_bn_relu(pat, p["ic_conv2_w"], p["ic_conv2_b"],
                     p["ic_bn2_g"], p["ic_bn2_b"]).reshape(btot, ho, wo, IMAGE_DIM)
    x = maxpool2(x)                                                     # -> 2x2
    hw = x.shape[1] * x.shape[2]                                        # 4 spatial positions

    # FiLM controller 0
    f0 = p["film0"]
    pat, (ho, wo) = im2col(x, (3, 3), 1)
    h = conv_bn_relu(pat, f0["conv1_w"], f0["conv1_b"],
                     f0["bn1_g"], f0["bn1_b"]).reshape(btot, ho, wo, IMAGE_DIM)
    pat, _ = im2col(h, (3, 3), 1)
    x = film_conv_bn_relu(pat, f0["conv2_w"], f0["conv2_b"], instr_emb,
                          f0["film_w"], f0["film_b"], f0["bn2_g"], f0["bn2_b"],
                          spatial=hw, pool=False).reshape(btot, ho, wo, IMAGE_DIM)

    # FiLM controller 1 (+ final 2x2 film_pool fused into the kernel epilogue)
    f1 = p["film1"]
    pat, _ = im2col(x, (3, 3), 1)
    h = conv_bn_relu(pat, f1["conv1_w"], f1["conv1_b"],
                     f1["bn1_g"], f1["bn1_b"]).reshape(btot, ho, wo, IMAGE_DIM)
    pat, _ = im2col(h, (3, 3), 1)
    phi = film_conv_bn_relu(pat, f1["conv2_w"], f1["conv2_b"], instr_emb,
                            f1["film_w"], f1["film_b"], f1["bn2_g"], f1["bn2_b"],
                            spatial=hw, pool=True)                      # [2, B, 128]
    return phi


def state_action_predictor(p, obs1_image, obs1_instr, obs2_image, obs2_instr, action):
    images = jnp.concatenate([obs1_image, obs2_image], axis=0)
    instrs = jnp.concatenate([obs1_instr, obs2_instr], axis=0)
    phi = encode_pair(images, instrs, p)                 # [2, B, 128]
    phi1 = phi[0]
    phi2 = phi[1]
    onehot = jax.nn.one_hot(action, ACTION_DIM, dtype=jnp.float32)
    actions_pred, phi2_pred = heads(phi1, phi2, onehot, p)
    return phi2_pred, actions_pred, phi1, phi2


# ----------------------------- parameter init ------------------------------

def init_params(key, vocab):
    ks = iter(jax.random.split(key, 64))

    def nrm(shape, scale):
        return scale * jax.random.normal(next(ks), shape, dtype=jnp.float32)

    def lin(din, dout):
        # mimics initialize_parameters: normal weights, unit-norm rows, zero bias
        w = nrm((din, dout), 1.0)
        w = w / jnp.sqrt(jnp.sum(w * w, axis=0, keepdims=True))
        return w, jnp.zeros((1, dout), jnp.float32)

    def conv(kh, kw, cin, cout):
        fan = kh * kw * cin
        return nrm((kh * kw * cin, cout), 1.0 / float(fan) ** 0.5), \
               jnp.zeros((1, cout), jnp.float32)

    def bn(c):
        return jnp.ones((1, c), jnp.float32), jnp.zeros((1, c), jnp.float32)

    p = {}
    p["emb"] = nrm((vocab, INSTR_DIM), 1.0)
    s = 1.0 / float(INSTR_DIM) ** 0.5
    p["gru_wih_t"] = nrm((INSTR_DIM, 3 * INSTR_DIM), s)
    p["gru_bih"] = jnp.zeros((1, 3 * INSTR_DIM), jnp.float32)
    p["gru_whh_t"] = nrm((INSTR_DIM, 3 * INSTR_DIM), s)
    p["gru_bhh"] = jnp.zeros((1, 3 * INSTR_DIM), jnp.float32)

    p["ic_conv1_w"], p["ic_conv1_b"] = conv(2, 2, 3, IMAGE_DIM)
    p["ic_bn1_g"], p["ic_bn1_b"] = bn(IMAGE_DIM)
    p["ic_conv2_w"], p["ic_conv2_b"] = conv(3, 3, IMAGE_DIM, IMAGE_DIM)
    p["ic_bn2_g"], p["ic_bn2_b"] = bn(IMAGE_DIM)

    def film(out_feats):
        d = {}
        d["conv1_w"], d["conv1_b"] = conv(3, 3, IMAGE_DIM, 128)
        d["bn1_g"], d["bn1_b"] = bn(128)
        d["conv2_w"], d["conv2_b"] = conv(3, 3, 128, out_feats)
        d["bn2_g"], d["bn2_b"] = bn(out_feats)
        w_w, w_b = lin(INSTR_DIM, out_feats)              # FiLM "weight" Linear
        b_w, b_b = lin(INSTR_DIM, out_feats)              # FiLM "bias" Linear
        d["film_w"] = jnp.concatenate([w_w, b_w], axis=1)  # [D, 2*out], fused FiLM matmul
        d["film_b"] = jnp.concatenate([w_b, b_b], axis=1)  # [1, 2*out]
        return d

    p["film0"] = film(128)
    p["film1"] = film(IMAGE_DIM)

    p["inv1_w"], p["inv1_b"] = lin(2 * IMAGE_DIM, 256)
    p["inv2_w"], p["inv2_b"] = lin(256, ACTION_DIM)
    p["fwd1_w"], p["fwd1_b"] = lin(IMAGE_DIM + ACTION_DIM, 256)
    p["fwd2_w"], p["fwd2_b"] = lin(256, IMAGE_DIM)
    return p


# ------------------------------------ main ----------------------------------

if __name__ == "__main__":
    key = jax.random.PRNGKey(0)
    kp, k1, k2 = jax.random.split(key, 3)

    VOCAB = 16
    B, H, W, C = 2, 7, 7, 3    # BabyAI 7x7x3 observation -> phi of size 128
    L = 8

    params = init_params(kp, VOCAB)

    obs1_image = jax.random.uniform(k1, (B, H, W, C), jnp.float32, 0.0, 6.0)
    obs2_image = jax.random.uniform(k2, (B, H, W, C), jnp.float32, 0.0, 6.0)
    # nonzero prefix = valid tokens, trailing zeros = padding
    obs1_instr = jnp.array([[3, 5, 2, 7, 1, 4, 6, 2],
                            [2, 9, 4, 1, 0, 0, 0, 0]], dtype=jnp.int32)
    obs2_instr = jnp.array([[1, 2, 3, 4, 5, 0, 0, 0],
                            [6, 7, 8, 9, 10, 11, 12, 13]], dtype=jnp.int32)
    action = jnp.array([2, 5], dtype=jnp.int32)

    fwd = jax.jit(state_action_predictor)
    phi2_pred, actions_pred, phi1, phi2 = fwd(
        params, obs1_image, obs1_instr, obs2_image, obs2_instr, action)
    jax.block_until_ready((phi2_pred, actions_pred, phi1, phi2))

    assert phi2_pred.shape == (B, IMAGE_DIM)
    assert actions_pred.shape == (B, ACTION_DIM)
    assert phi1.shape == (B, IMAGE_DIM)
    assert phi2.shape == (B, IMAGE_DIM)
    print("KERNEL_OK")
</pallas_src>

<mosaic_0001>
module attributes {stable_mosaic.version = 11 : i64} {
  func.func @_conv_bn_relu_kernel(%arg0: i32, %arg1: memref<128x12xf32, #tpu.memory_space<vmem>>, %arg2: memref<12x128xf32, #tpu.memory_space<vmem>>, %arg3: memref<1x128xf32, #tpu.memory_space<vmem>>, %arg4: memref<1x128xf32, #tpu.memory_space<vmem>>, %arg5: memref<1x128xf32, #tpu.memory_space<vmem>>, %arg6: memref<128x128xf32, #tpu.memory_space<vmem>>) attributes {dimension_semantics = [#tpu.dimension_semantics<parallel>], iteration_bounds = array<i64: 2>, scalar_prefetch = 0 : i64, scratch_operands = 0 : i64, tpu.core_type = #tpu.core_type<tc>, window_params = [{transform_indices = @transform_0, window_bounds = array<i64: 128, 12>}, {pipeline_mode = #tpu.pipeline_mode<synchronous>, transform_indices = @transform_1, window_bounds = array<i64: 12, 128>}, {pipeline_mode = #tpu.pipeline_mode<synchronous>, transform_indices = @transform_2, window_bounds = array<i64: 1, 128>}, {pipeline_mode = #tpu.pipeline_mode<synchronous>, transform_indices = @transform_3, window_bounds = array<i64: 1, 128>}, {pipeline_mode = #tpu.pipeline_mode<synchronous>, transform_indices = @transform_4, window_bounds = array<i64: 1, 128>}, {transform_indices = @transform_5, window_bounds = array<i64: 128, 128>}]} {
    %c0 = arith.constant 0 : index
    %c0_0 = arith.constant 0 : index
    %0 = vector.load %arg1[%c0, %c0_0] : memref<128x12xf32, #tpu.memory_space<vmem>>, vector<128x12xf32>
    %c0_1 = arith.constant 0 : index
    %c0_2 = arith.constant 0 : index
    %1 = vector.load %arg2[%c0_1, %c0_2] : memref<12x128xf32, #tpu.memory_space<vmem>>, vector<12x128xf32>
    %cst = arith.constant dense<0.000000e+00> : vector<128x128xf32>
    %2 = tpu.matmul %0, %1, %cst {dimension_numbers = #tpu.dot_dimension_numbers<[1], [0], [0], [1], [0, 0, 1, 1], [], []>} : vector<128x12xf32>, vector<12x128xf32>, vector<128x128xf32> -> vector<128x128xf32>
    %c0_3 = arith.constant 0 : index
    %c0_4 = arith.constant 0 : index
    %3 = vector.load %arg3[%c0_3, %c0_4] : memref<1x128xf32, #tpu.memory_space<vmem>>, vector<1x128xf32>
    %4 = vector.broadcast %3 : vector<1x128xf32> to vector<128x128xf32>
    %5 = arith.addf %2, %4 : vector<128x128xf32>
    %c0_5 = arith.constant 0 : index
    %c0_6 = arith.constant 0 : index
    %6 = vector.load %arg4[%c0_5, %c0_6] : memref<1x128xf32, #tpu.memory_space<vmem>>, vector<1x128xf32>
    %c0_7 = arith.constant 0 : index
    %c0_8 = arith.constant 0 : index
    %7 = vector.load %arg5[%c0_7, %c0_8] : memref<1x128xf32, #tpu.memory_space<vmem>>, vector<1x128xf32>
    %cst_9 = arith.constant 1.000000e+00 : f32
    %8 = vector.broadcast %cst_9 : f32 to vector<1x128xf32>
    %cst_10 = arith.constant dense<0.000000e+00> : vector<1x128xf32>
    %9 = tpu.matmul %8, %5, %cst_10 {dimension_numbers = #tpu.dot_dimension_numbers<[1], [0], [0], [1], [0, 0, 1, 1], [], []>} : vector<1x128xf32>, vector<128x128xf32>, vector<1x128xf32> -> vector<1x128xf32>
    %cst_11 = arith.constant 7.812500e-03 : f32
    %10 = vector.broadcast %cst_11 : f32 to vector<1x128xf32>
    %11 = arith.mulf %9, %10 : vector<1x128xf32>
    %12 = vector.broadcast %11 : vector<1x128xf32> to vector<128x128xf32>
    %13 = arith.subf %5, %12 : vector<128x128xf32>
    %14 = arith.mulf %13, %13 : vector<128x128xf32>
    %cst_12 = arith.constant dense<0.000000e+00> : vector<1x128xf32>
    %15 = tpu.matmul %8, %14, %cst_12 {dimension_numbers = #tpu.dot_dimension_numbers<[1], [0], [0], [1], [0, 0, 1, 1], [], []>} : vector<1x128xf32>, vector<128x128xf32>, vector<1x128xf32> -> vector<1x128xf32>
    %cst_13 = arith.constant 7.812500e-03 : f32
    %16 = vector.broadcast %cst_13 : f32 to vector<1x128xf32>
    %17 = arith.mulf %15, %16 : vector<1x128xf32>
    %cst_14 = arith.constant 9.99999974E-6 : f32
    %18 = vector.broadcast %cst_14 : f32 to vector<1x128xf32>
    %19 = arith.addf %17, %18 : vector<1x128xf32>
    %20 = math.rsqrt %19 : vector<1x128xf32>
    %21 = vector.broadcast %20 : vector<1x128xf32> to vector<128x128xf32>
    %22 = arith.mulf %13, %21 : vector<128x128xf32>
    %23 = vector.broadcast %6 : vector<1x128xf32> to vector<128x128xf32>
    %24 = arith.mulf %22, %23 : vector<128x128xf32>
    %25 = vector.broadcast %7 : vector<1x128xf32> to vector<128x128xf32>
    %26 = arith.addf %24, %25 : vector<128x128xf32>
    %cst_15 = arith.constant 0.000000e+00 : f32
    %27 = vector.broadcast %cst_15 : f32 to vector<128x128xf32>
    %28 = arith.maximumf %26, %27 : vector<128x128xf32>
    %c0_16 = arith.constant 0 : index
    %c0_17 = arith.constant 0 : index
    %29 = vector.load %arg6[%c0_16, %c0_17] : memref<128x128xf32, #tpu.memory_space<vmem>>, vector<128x128xf32>
    tpu.vector_store %arg6[%c0_16, %c0_17], %28 {strides = array<i32>} : memref<128x128xf32, #tpu.memory_space<vmem>>, vector<128x128xf32>,
    return
  }
  func.func @transform_0(%arg0: i32) -> (i32, i32) {
    %c0_i32 = arith.constant 0 : i32
    %c0_i32_0 = arith.constant 0 : i32
    return %arg0, %c0_i32 : i32, i32
  }
  func.func @transform_1(%arg0: i32) -> (i32, i32) {
    %c0_i32 = arith.constant 0 : i32
    %c0_i32_0 = arith.constant 0 : i32
    %c0_i32_1 = arith.constant 0 : i32
    return %c0_i32, %c0_i32_0 : i32, i32
  }
  func.func @transform_2(%arg0: i32) -> (i32, i32) {
    %c0_i32 = arith.constant 0 : i32
    %c0_i32_0 = arith.constant 0 : i32
    %c0_i32_1 = arith.constant 0 : i32
    return %c0_i32, %c0_i32_0 : i32, i32
  }
  func.func @transform_3(%arg0: i32) -> (i32, i32) {
    %c0_i32 = arith.constant 0 : i32
    %c0_i32_0 = arith.constant 0 : i32
    %c0_i32_1 = arith.constant 0 : i32
    return %c0_i32, %c0_i32_0 : i32, i32
  }
  func.func @transform_4(%arg0: i32) -> (i32, i32) {
    %c0_i32 = arith.constant 0 : i32
    %c0_i32_0 = arith.constant 0 : i32
    %c0_i32_1 = arith.constant 0 : i32
    return %c0_i32, %c0_i32_0 : i32, i32
  }
  func.func @transform_5(%arg0: i32) -> (i32, i32) {
    %c0_i32 = arith.constant 0 : i32
    %c0_i32_0 = arith.constant 0 : i32
    return %arg0, %c0_i32 : i32, i32
  }
}

module attributes {stable_mosaic.version = 11 : i64} {
  func.func @_conv_bn_relu_kernel(%arg0: i32, %arg1: memref<32x1152xf32, #tpu.memory_space<vmem>>, %arg2: memref<1152x128xf32, #tpu.memory_space<vmem>>, %arg3: memref<1x128xf32, #tpu.memory_space<vmem>>, %arg4: memref<1x128xf32, #tpu.memory_space<vmem>>, %arg5: memref<1x128xf32, #tpu.memory_space<vmem>>, %arg6: memref<32x128xf32, #tpu.memory_space<vmem>>) attributes {dimension_semantics = [#tpu.dimension_semantics<parallel>], iteration_bounds = array<i64: 2>, scalar_prefetch = 0 : i64, scratch_operands = 0 : i64, tpu.core_type = #tpu.core_type<tc>, window_params = [{transform_indices = @transform_0, window_bounds = array<i64: 32, 1152>}, {pipeline_mode = #tpu.pipeline_mode<synchronous>, transform_indices = @transform_1, window_bounds = array<i64: 1152, 128>}, {pipeline_mode = #tpu.pipeline_mode<synchronous>, transform_indices = @transform_2, window_bounds = array<i64: 1, 128>}, {pipeline_mode = #tpu.pipeline_mode<synchronous>, transform_indices = @transform_3, window_bounds = array<i64: 1, 128>}, {pipeline_mode = #tpu.pipeline_mode<synchronous>, transform_indices = @transform_4, window_bounds = array<i64: 1, 128>}, {transform_indices = @transform_5, window_bounds = array<i64: 32, 128>}]} {
    %c0 = arith.constant 0 : index
    %c0_0 = arith.constant 0 : index
    %0 = vector.load %arg1[%c0, %c0_0] : memref<32x1152xf32, #tpu.memory_space<vmem>>, vector<32x1152xf32>
    %c0_1 = arith.constant 0 : index
    %c0_2 = arith.constant 0 : index
    %1 = vector.load %arg2[%c0_1, %c0_2] : memref<1152x128xf32, #tpu.memory_space<vmem>>, vector<1152x128xf32>
    %cst = arith.constant dense<0.000000e+00> : vector<32x128xf32>
    %2 = tpu.matmul %0, %1, %cst {dimension_numbers = #tpu.dot_dimension_numbers<[1], [0], [0], [1], [0, 0, 1, 1], [], []>} : vector<32x1152xf32>, vector<1152x128xf32>, vector<32x128xf32> -> vector<32x128xf32>
    %c0_3 = arith.constant 0 : index
    %c0_4 = arith.constant 0 : index
    %3 = vector.load %arg3[%c0_3, %c0_4] : memref<1x128xf32, #tpu.memory_space<vmem>>, vector<1x128xf32>
    %4 = vector.broadcast %3 : vector<1x128xf32> to vector<32x128xf32>
    %5 = arith.addf %2, %4 : vector<32x128xf32>
    %c0_5 = arith.constant 0 : index
    %c0_6 = arith.constant 0 : index
    %6 = vector.load %arg4[%c0_5, %c0_6] : memref<1x128xf32, #tpu.memory_space<vmem>>, vector<1x128xf32>
    %c0_7 = arith.constant 0 : index
    %c0_8 = arith.constant 0 : index
    %7 = vector.load %arg5[%c0_7, %c0_8] : memref<1x128xf32, #tpu.memory_space<vmem>>, vector<1x128xf32>
    %cst_9 = arith.constant 1.000000e+00 : f32
    %8 = vector.broadcast %cst_9 : f32 to vector<1x32xf32>
    %cst_10 = arith.constant dense<0.000000e+00> : vector<1x128xf32>
    %9 = tpu.matmul %8, %5, %cst_10 {dimension_numbers = #tpu.dot_dimension_numbers<[1], [0], [0], [1], [0, 0, 1, 1], [], []>} : vector<1x32xf32>, vector<32x128xf32>, vector<1x128xf32> -> vector<1x128xf32>
    %cst_11 = arith.constant 3.125000e-02 : f32
    %10 = vector.broadcast %cst_11 : f32 to vector<1x128xf32>
    %11 = arith.mulf %9, %10 : vector<1x128xf32>
    %12 = vector.broadcast %11 : vector<1x128xf32> to vector<32x128xf32>
    %13 = arith.subf %5, %12 : vector<32x128xf32>
    %14 = arith.mulf %13, %13 : vector<32x128xf32>
    %cst_12 = arith.constant dense<0.000000e+00> : vector<1x128xf32>
    %15 = tpu.matmul %8, %14, %cst_12 {dimension_numbers = #tpu.dot_dimension_numbers<[1], [0], [0], [1], [0, 0, 1, 1], [], []>} : vector<1x32xf32>, vector<32x128xf32>, vector<1x128xf32> -> vector<1x128xf32>
    %cst_13 = arith.constant 3.125000e-02 : f32
    %16 = vector.broadcast %cst_13 : f32 to vector<1x128xf32>
    %17 = arith.mulf %15, %16 : vector<1x128xf32>
    %cst_14 = arith.constant 9.99999974E-6 : f32
    %18 = vector.broadcast %cst_14 : f32 to vector<1x128xf32>
    %19 = arith.addf %17, %18 : vector<1x128xf32>
    %20 = math.rsqrt %19 : vector<1x128xf32>
    %21 = vector.broadcast %20 : vector<1x128xf32> to vector<32x128xf32>
    %22 = arith.mulf %13, %21 : vector<32x128xf32>
    %23 = vector.broadcast %6 : vector<1x128xf32> to vector<32x128xf32>
    %24 = arith.mulf %22, %23 : vector<32x128xf32>
    %25 = vector.broadcast %7 : vector<1x128xf32> to vector<32x128xf32>
    %26 = arith.addf %24, %25 : vector<32x128xf32>
    %cst_15 = arith.constant 0.000000e+00 : f32
    %27 = vector.broadcast %cst_15 : f32 to vector<32x128xf32>
    %28 = arith.maximumf %26, %27 : vector<32x128xf32>
    %c0_16 = arith.constant 0 : index
    %c0_17 = arith.constant 0 : index
    %29 = vector.load %arg6[%c0_16, %c0_17] : memref<32x128xf32, #tpu.memory_space<vmem>>, vector<32x128xf32>
    tpu.vector_store %arg6[%c0_16, %c0_17], %28 {strides = array<i32>} : memref<32x128xf32, #tpu.memory_space<vmem>>, vector<32x128xf32>,
    return
  }
  func.func @transform_0(%arg0: i32) -> (i32, i32) {
    %c0_i32 = arith.constant 0 : i32
    %c0_i32_0 = arith.constant 0 : i32
    return %arg0, %c0_i32 : i32, i32
  }
  func.func @transform_1(%arg0: i32) -> (i32, i32) {
    %c0_i32 = arith.constant 0 : i32
    %c0_i32_0 = arith.constant 0 : i32
    %c0_i32_1 = arith.constant 0 : i32
    return %c0_i32, %c0_i32_0 : i32, i32
  }
  func.func @transform_2(%arg0: i32) -> (i32, i32) {
    %c0_i32 = arith.constant 0 : i32
    %c0_i32_0 = arith.constant 0 : i32
    %c0_i32_1 = arith.constant 0 : i32
    return %c0_i32, %c0_i32_0 : i32, i32
  }
  func.func @transform_3(%arg0: i32) -> (i32, i32) {
    %c0_i32 = arith.constant 0 : i32
    %c0_i32_0 = arith.constant 0 : i32
    %c0_i32_1 = arith.constant 0 : i32
    return %c0_i32, %c0_i32_0 : i32, i32
  }
  func.func @transform_4(%arg0: i32) -> (i32, i32) {
    %c0_i32 = arith.constant 0 : i32
    %c0_i32_0 = arith.constant 0 : i32
    %c0_i32_1 = arith.constant 0 : i32
    return %c0_i32, %c0_i32_0 : i32, i32
  }
  func.func @transform_5(%arg0: i32) -> (i32, i32) {
    %c0_i32 = arith.constant 0 : i32
    %c0_i32_0 = arith.constant 0 : i32
    return %arg0, %c0_i32 : i32, i32
  }
}

module attributes {stable_mosaic.version = 11 : i64} {
  func.func @_conv_bn_relu_kernel(%arg0: i32, %arg1: memref<8x1152xf32, #tpu.memory_space<vmem>>, %arg2: memref<1152x128xf32, #tpu.memory_space<vmem>>, %arg3: memref<1x128xf32, #tpu.memory_space<vmem>>, %arg4: memref<1x128xf32, #tpu.memory_space<vmem>>, %arg5: memref<1x128xf32, #tpu.memory_space<vmem>>, %arg6: memref<8x128xf32, #tpu.memory_space<vmem>>) attributes {dimension_semantics = [#tpu.dimension_semantics<parallel>], iteration_bounds = array<i64: 2>, scalar_prefetch = 0 : i64, scratch_operands = 0 : i64, tpu.core_type = #tpu.core_type<tc>, window_params = [{transform_indices = @transform_0, window_bounds = array<i64: 8, 1152>}, {pipeline_mode = #tpu.pipeline_mode<synchronous>, transform_indices = @transform_1, window_bounds = array<i64: 1152, 128>}, {pipeline_mode = #tpu.pipeline_mode<synchronous>, transform_indices = @transform_2, window_bounds = array<i64: 1, 128>}, {pipeline_mode = #tpu.pipeline_mode<synchronous>, transform_indices = @transform_3, window_bounds = array<i64: 1, 128>}, {pipeline_mode = #tpu.pipeline_mode<synchronous>, transform_indices = @transform_4, window_bounds = array<i64: 1, 128>}, {transform_indices = @transform_5, window_bounds = array<i64: 8, 128>}]} {
    %c0 = arith.constant 0 : index
    %c0_0 = arith.constant 0 : index
    %0 = vector.load %arg1[%c0, %c0_0] : memref<8x1152xf32, #tpu.memory_space<vmem>>, vector<8x1152xf32>
    %c0_1 = arith.constant 0 : index
    %c0_2 = arith.constant 0 : index
    %1 = vector.load %arg2[%c0_1, %c0_2] : memref<1152x128xf32, #tpu.memory_space<vmem>>, vector<1152x128xf32>
    %cst = arith.constant dense<0.000000e+00> : vector<8x128xf32>
    %2 = tpu.matmul %0, %1, %cst {dimension_numbers = #tpu.dot_dimension_numbers<[1], [0], [0], [1], [0, 0, 1, 1], [], []>} : vector<8x1152xf32>, vector<1152x128xf32>, vector<8x128xf32> -> vector<8x128xf32>
    %c0_3 = arith.constant 0 : index
    %c0_4 = arith.constant 0 : index
    %3 = vector.load %arg3[%c0_3, %c0_4] : memref<1x128xf32, #tpu.memory_space<vmem>>, vector<1x128xf32>
    %4 = vector.broadcast %3 : vector<1x128xf32> to vector<8x128xf32>
    %5 = arith.addf %2, %4 : vector<8x128xf32>
    %c0_5 = arith.constant 0 : index
    %c0_6 = arith.constant 0 : index
    %6 = vector.load %arg4[%c0_5, %c0_6] : memref<1x128xf32, #tpu.memory_space<vmem>>, vector<1x128xf32>
    %c0_7 = arith.constant 0 : index
    %c0_8 = arith.constant 0 : index
    %7 = vector.load %arg5[%c0_7, %c0_8] : memref<1x128xf32, #tpu.memory_space<vmem>>, vector<1x128xf32>
    %cst_9 = arith.constant 1.000000e+00 : f32
    %8 = vector.broadcast %cst_9 : f32 to vector<1x8xf32>
    %cst_10 = arith.constant dense<0.000000e+00> : vector<1x128xf32>
    %9 = tpu.matmul %8, %5, %cst_10 {dimension_numbers = #tpu.dot_dimension_numbers<[1], [0], [0], [1], [0, 0, 1, 1], [], []>} : vector<1x8xf32>, vector<8x128xf32>, vector<1x128xf32> -> vector<1x128xf32>
    %cst_11 = arith.constant 1.250000e-01 : f32
    %10 = vector.broadcast %cst_11 : f32 to vector<1x128xf32>
    %11 = arith.mulf %9, %10 : vector<1x128xf32>
    %12 = vector.broadcast %11 : vector<1x128xf32> to vector<8x128xf32>
    %13 = arith.subf %5, %12 : vector<8x128xf32>
    %14 = arith.mulf %13, %13 : vector<8x128xf32>
    %cst_12 = arith.constant dense<0.000000e+00> : vector<1x128xf32>
    %15 = tpu.matmul %8, %14, %cst_12 {dimension_numbers = #tpu.dot_dimension_numbers<[1], [0], [0], [1], [0, 0, 1, 1], [], []>} : vector<1x8xf32>, vector<8x128xf32>, vector<1x128xf32> -> vector<1x128xf32>
    %cst_13 = arith.constant 1.250000e-01 : f32
    %16 = vector.broadcast %cst_13 : f32 to vector<1x128xf32>
    %17 = arith.mulf %15, %16 : vector<1x128xf32>
    %cst_14 = arith.constant 9.99999974E-6 : f32
    %18 = vector.broadcast %cst_14 : f32 to vector<1x128xf32>
    %19 = arith.addf %17, %18 : vector<1x128xf32>
    %20 = math.rsqrt %19 : vector<1x128xf32>
    %21 = vector.broadcast %20 : vector<1x128xf32> to vector<8x128xf32>
    %22 = arith.mulf %13, %21 : vector<8x128xf32>
    %23 = vector.broadcast %6 : vector<1x128xf32> to vector<8x128xf32>
    %24 = arith.mulf %22, %23 : vector<8x128xf32>
    %25 = vector.broadcast %7 : vector<1x128xf32> to vector<8x128xf32>
    %26 = arith.addf %24, %25 : vector<8x128xf32>
    %cst_15 = arith.constant 0.000000e+00 : f32
    %27 = vector.broadcast %cst_15 : f32 to vector<8x128xf32>
    %28 = arith.maximumf %26, %27 : vector<8x128xf32>
    %c0_16 = arith.constant 0 : index
    %c0_17 = arith.constant 0 : index
    %29 = vector.load %arg6[%c0_16, %c0_17] : memref<8x128xf32, #tpu.memory_space<vmem>>, vector<8x128xf32>
    tpu.vector_store %arg6[%c0_16, %c0_17], %28 {strides = array<i32>} : memref<8x128xf32, #tpu.memory_space<vmem>>, vector<8x128xf32>,
    return
  }
  func.func @transform_0(%arg0: i32) -> (i32, i32) {
    %c0_i32 = arith.constant 0 : i32
    %c0_i32_0 = arith.constant 0 : i32
    return %arg0, %c0_i32 : i32, i32
  }
  func.func @transform_1(%arg0: i32) -> (i32, i32) {
    %c0_i32 = arith.constant 0 : i32
    %c0_i32_0 = arith.constant 0 : i32
    %c0_i32_1 = arith.constant 0 : i32
    return %c0_i32, %c0_i32_0 : i32, i32
  }
  func.func @transform_2(%arg0: i32) -> (i32, i32) {
    %c0_i32 = arith.constant 0 : i32
    %c0_i32_0 = arith.constant 0 : i32
    %c0_i32_1 = arith.constant 0 : i32
    return %c0_i32, %c0_i32_0 : i32, i32
  }
  func.func @transform_3(%arg0: i32) -> (i32, i32) {
    %c0_i32 = arith.constant 0 : i32
    %c0_i32_0 = arith.constant 0 : i32
    %c0_i32_1 = arith.constant 0 : i32
    return %c0_i32, %c0_i32_0 : i32, i32
  }
  func.func @transform_4(%arg0: i32) -> (i32, i32) {
    %c0_i32 = arith.constant 0 : i32
    %c0_i32_0 = arith.constant 0 : i32
    %c0_i32_1 = arith.constant 0 : i32
    return %c0_i32, %c0_i32_0 : i32, i32
  }
  func.func @transform_5(%arg0: i32) -> (i32, i32) {
    %c0_i32 = arith.constant 0 : i32
    %c0_i32_0 = arith.constant 0 : i32
    return %arg0, %c0_i32 : i32, i32
  }
}

module attributes {stable_mosaic.version = 11 : i64} {
  func.func @_film_conv_bn_relu_kernel(%arg0: i32, %arg1: memref<8x1152xf32, #tpu.memory_space<vmem>>, %arg2: memref<1152x128xf32, #tpu.memory_space<vmem>>, %arg3: memref<1x128xf32, #tpu.memory_space<vmem>>, %arg4: memref<1x2x128xf32, #tpu.memory_space<vmem>>, %arg5: memref<128x256xf32, #tpu.memory_space<vmem>>, %arg6: memref<1x256xf32, #tpu.memory_space<vmem>>, %arg7: memref<1x128xf32, #tpu.memory_space<vmem>>, %arg8: memref<1x128xf32, #tpu.memory_space<vmem>>, %arg9: memref<8x128xf32, #tpu.memory_space<vmem>>) attributes {dimension_semantics = [#tpu.dimension_semantics<parallel>], iteration_bounds = array<i64: 2>, scalar_prefetch = 0 : i64, scratch_operands = 0 : i64, tpu.core_type = #tpu.core_type<tc>, window_params = [{transform_indices = @transform_0, window_bounds = array<i64: 8, 1152>}, {pipeline_mode = #tpu.pipeline_mode<synchronous>, transform_indices = @transform_1, window_bounds = array<i64: 1152, 128>}, {pipeline_mode = #tpu.pipeline_mode<synchronous>, transform_indices = @transform_2, window_bounds = array<i64: 1, 128>}, {transform_indices = @transform_3, window_bounds = array<i64: 1, 2, 128>}, {pipeline_mode = #tpu.pipeline_mode<synchronous>, transform_indices = @transform_4, window_bounds = array<i64: 128, 256>}, {pipeline_mode = #tpu.pipeline_mode<synchronous>, transform_indices = @transform_5, window_bounds = array<i64: 1, 256>}, {pipeline_mode = #tpu.pipeline_mode<synchronous>, transform_indices = @transform_6, window_bounds = array<i64: 1, 128>}, {pipeline_mode = #tpu.pipeline_mode<synchronous>, transform_indices = @transform_7, window_bounds = array<i64: 1, 128>}, {transform_indices = @transform_8, window_bounds = array<i64: 8, 128>}]} {
    %c0 = arith.constant 0 : index
    %c0_0 = arith.constant 0 : index
    %0 = vector.load %arg1[%c0, %c0_0] : memref<8x1152xf32, #tpu.memory_space<vmem>>, vector<8x1152xf32>
    %c0_1 = arith.constant 0 : index
    %c0_2 = arith.constant 0 : index
    %1 = vector.load %arg2[%c0_1, %c0_2] : memref<1152x128xf32, #tpu.memory_space<vmem>>, vector<1152x128xf32>
    %cst = arith.constant dense<0.000000e+00> : vector<8x128xf32>
    %2 = tpu.matmul %0, %1, %cst {dimension_numbers = #tpu.dot_dimension_numbers<[1], [0], [0], [1], [0, 0, 1, 1], [], []>} : vector<8x1152xf32>, vector<1152x128xf32>, vector<8x128xf32> -> vector<8x128xf32>
    %c0_3 = arith.constant 0 : index
    %c0_4 = arith.constant 0 : index
    %3 = vector.load %arg3[%c0_3, %c0_4] : memref<1x128xf32, #tpu.memory_space<vmem>>, vector<1x128xf32>
    %4 = vector.broadcast %3 : vector<1x128xf32> to vector<8x128xf32>
    %5 = arith.addf %2, %4 : vector<8x128xf32>
    %c0_5 = arith.constant 0 : index
    %c0_6 = arith.constant 0 : index
    %c0_7 = arith.constant 0 : index
    %6 = vector.load %arg4[%c0_5, %c0_6, %c0_7] : memref<1x2x128xf32, #tpu.memory_space<vmem>>, vector<1x2x128xf32>
    %7 = vector.shape_cast %6 : vector<1x2x128xf32> to vector<2x128xf32>
    %c0_8 = arith.constant 0 : index
    %c0_9 = arith.constant 0 : index
    %8 = vector.load %arg5[%c0_8, %c0_9] : memref<128x256xf32, #tpu.memory_space<vmem>>, vector<128x256xf32>
    %cst_10 = arith.constant dense<0.000000e+00> : vector<2x256xf32>
    %9 = tpu.matmul %7, %8, %cst_10 {dimension_numbers = #tpu.dot_dimension_numbers<[1], [0], [0], [1], [0, 0, 1, 1], [], []>} : vector<2x128xf32>, vector<128x256xf32>, vector<2x256xf32> -> vector<2x256xf32>
    %c0_11 = arith.constant 0 : index
    %c0_12 = arith.constant 0 : index
    %10 = vector.load %arg6[%c0_11, %c0_12] : memref<1x256xf32, #tpu.memory_space<vmem>>, vector<1x256xf32>
    %11 = vector.broadcast %10 : vector<1x256xf32> to vector<2x256xf32>
    %12 = arith.addf %9, %11 : vector<2x256xf32>
    %13 = vector.extract_strided_slice %12 {offsets = [0, 0], sizes = [2, 128], strides = [1, 1]} : vector<2x256xf32> to vector<2x128xf32>
    %14 = vector.extract_strided_slice %12 {offsets = [0, 128], sizes = [2, 128], strides = [1, 1]} : vector<2x256xf32> to vector<2x128xf32>
    %15 = vector.extract_strided_slice %13 {offsets = [0, 0], sizes = [1, 128], strides = [1, 1]} : vector<2x128xf32> to vector<1x128xf32>
    %16 = vector.extract_strided_slice %13 {offsets = [0, 0], sizes = [1, 128], strides = [1, 1]} : vector<2x128xf32> to vector<1x128xf32>
    %17 = vector.extract_strided_slice %13 {offsets = [0, 0], sizes = [1, 128], strides = [1, 1]} : vector<2x128xf32> to vector<1x128xf32>
    %18 = vector.extract_strided_slice %13 {offsets = [0, 0], sizes = [1, 128], strides = [1, 1]} : vector<2x128xf32> to vector<1x128xf32>
    %19 = vector.extract_strided_slice %13 {offsets = [1, 0], sizes = [1, 128], strides = [1, 1]} : vector<2x128xf32> to vector<1x128xf32>
    %20 = vector.extract_strided_slice %13 {offsets = [1, 0], sizes = [1, 128], strides = [1, 1]} : vector<2x128xf32> to vector<1x128xf32>
    %21 = vector.extract_strided_slice %13 {offsets = [1, 0], sizes = [1, 128], strides = [1, 1]} : vector<2x128xf32> to vector<1x128xf32>
    %22 = vector.extract_strided_slice %13 {offsets = [1, 0], sizes = [1, 128], strides = [1, 1]} : vector<2x128xf32> to vector<1x128xf32>
    %23 = tpu.concatenate %15, %16, %17, %18, %19, %20, %21, %22 in 0 : vector<1x128xf32>, vector<1x128xf32>, vector<1x128xf32>, vector<1x128xf32>, vector<1x128xf32>, vector<1x128xf32>, vector<1x128xf32>, vector<1x128xf32> -> vector<8x128xf32>
    %24 = vector.extract_strided_slice %14 {offsets = [0, 0], sizes = [1, 128], strides = [1, 1]} : vector<2x128xf32> to vector<1x128xf32>
    %25 = vector.extract_strided_slice %14 {offsets = [0, 0], sizes = [1, 128], strides = [1, 1]} : vector<2x128xf32> to vector<1x128xf32>
    %26 = vector.extract_strided_slice %14 {offsets = [0, 0], sizes = [1, 128], strides = [1, 1]} : vector<2x128xf32> to vector<1x128xf32>
    %27 = vector.extract_strided_slice %14 {offsets = [0, 0], sizes = [1, 128], strides = [1, 1]} : vector<2x128xf32> to vector<1x128xf32>
    %28 = vector.extract_strided_slice %14 {offsets = [1, 0], sizes = [1, 128], strides = [1, 1]} : vector<2x128xf32> to vector<1x128xf32>
    %29 = vector.extract_strided_slice %14 {offsets = [1, 0], sizes = [1, 128], strides = [1, 1]} : vector<2x128xf32> to vector<1x128xf32>
    %30 = vector.extract_strided_slice %14 {offsets = [1, 0], sizes = [1, 128], strides = [1, 1]} : vector<2x128xf32> to vector<1x128xf32>
    %31 = vector.extract_strided_slice %14 {offsets = [1, 0], sizes = [1, 128], strides = [1, 1]} : vector<2x128xf32> to vector<1x128xf32>
    %32 = tpu.concatenate %24, %25, %26, %27, %28, %29, %30, %31 in 0 : vector<1x128xf32>, vector<1x128xf32>, vector<1x128xf32>, vector<1x128xf32>, vector<1x128xf32>, vector<1x128xf32>, vector<1x128xf32>, vector<1x128xf32> -> vector<8x128xf32>
    %33 = arith.mulf %5, %23 : vector<8x128xf32>
    %34 = arith.addf %33, %32 : vector<8x128xf32>
    %c0_13 = arith.constant 0 : index
    %c0_14 = arith.constant 0 : index
    %35 = vector.load %arg7[%c0_13, %c0_14] : memref<1x128xf32, #tpu.memory_space<vmem>>, vector<1x128xf32>
    %c0_15 = arith.constant 0 : index
    %c0_16 = arith.constant 0 : index
    %36 = vector.load %arg8[%c0_15, %c0_16] : memref<1x128xf32, #tpu.memory_space<vmem>>, vector<1x128xf32>
    %cst_17 = arith.constant 1.000000e+00 : f32
    %37 = vector.broadcast %cst_17 : f32 to vector<1x8xf32>
    %cst_18 = arith.constant dense<0.000000e+00> : vector<1x128xf32>
    %38 = tpu.matmul %37, %34, %cst_18 {dimension_numbers = #tpu.dot_dimension_numbers<[1], [0], [0], [1], [0, 0, 1, 1], [], []>} : vector<1x8xf32>, vector<8x128xf32>, vector<1x128xf32> -> vector<1x128xf32>
    %cst_19 = arith.constant 1.250000e-01 : f32
    %39 = vector.broadcast %cst_19 : f32 to vector<1x128xf32>
    %40 = arith.mulf %38, %39 : vector<1x128xf32>
    %41 = vector.broadcast %40 : vector<1x128xf32> to vector<8x128xf32>
    %42 = arith.subf %34, %41 : vector<8x128xf32>
    %43 = arith.mulf %42, %42 : vector<8x128xf32>
    %cst_20 = arith.constant dense<0.000000e+00> : vector<1x128xf32>
    %44 = tpu.matmul %37, %43, %cst_20 {dimension_numbers = #tpu.dot_dimension_numbers<[1], [0], [0], [1], [0, 0, 1, 1], [], []>} : vector<1x8xf32>, vector<8x128xf32>, vector<1x128xf32> -> vector<1x128xf32>
    %cst_21 = arith.constant 1.250000e-01 : f32
    %45 = vector.broadcast %cst_21 : f32 to vector<1x128xf32>
    %46 = arith.mulf %44, %45 : vector<1x128xf32>
    %cst_22 = arith.constant 9.99999974E-6 : f32
    %47 = vector.broadcast %cst_22 : f32 to vector<1x128xf32>
    %48 = arith.addf %46, %47 : vector<1x128xf32>
    %49 = math.rsqrt %48 : vector<1x128xf32>
    %50 = vector.broadcast %49 : vector<1x128xf32> to vector<8x128xf32>
    %51 = arith.mulf %42, %50 : vector<8x128xf32>
    %52 = vector.broadcast %35 : vector<1x128xf32> to vector<8x128xf32>
    %53 = arith.mulf %51, %52 : vector<8x128xf32>
    %54 = vector.broadcast %36 : vector<1x128xf32> to vector<8x128xf32>
    %55 = arith.addf %53, %54 : vector<8x128xf32>
    %cst_23 = arith.constant 0.000000e+00 : f32
    %56 = vector.broadcast %cst_23 : f32 to vector<8x128xf32>
    %57 = arith.maximumf %55, %56 : vector<8x128xf32>
    %c0_24 = arith.constant 0 : index
    %c0_25 = arith.constant 0 : index
    %58 = vector.load %arg9[%c0_24, %c0_25] : memref<8x128xf32, #tpu.memory_space<vmem>>, vector<8x128xf32>
    tpu.vector_store %arg9[%c0_24, %c0_25], %57 {strides = array<i32>} : memref<8x128xf32, #tpu.memory_space<vmem>>, vector<8x128xf32>,
    return
  }
  func.func @transform_0(%arg0: i32) -> (i32, i32) {
    %c0_i32 = arith.constant 0 : i32
    %c0_i32_0 = arith.constant 0 : i32
    return %arg0, %c0_i32 : i32, i32
  }
  func.func @transform_1(%arg0: i32) -> (i32, i32) {
    %c0_i32 = arith.constant 0 : i32
    %c0_i32_0 = arith.constant 0 : i32
    %c0_i32_1 = arith.constant 0 : i32
    return %c0_i32, %c0_i32_0 : i32, i32
  }
  func.func @transform_2(%arg0: i32) -> (i32, i32) {
    %c0_i32 = arith.constant 0 : i32
    %c0_i32_0 = arith.constant 0 : i32
    %c0_i32_1 = arith.constant 0 : i32
    return %c0_i32, %c0_i32_0 : i32, i32
  }
  func.func @transform_3(%arg0: i32) -> (i32, i32, i32) {
    %c0_i32 = arith.constant 0 : i32
    %c0_i32_0 = arith.constant 0 : i32
    %c0_i32_1 = arith.constant 0 : i32
    return %arg0, %c0_i32, %c0_i32_0 : i32, i32, i32
  }
  func.func @transform_4(%arg0: i32) -> (i32, i32) {
    %c0_i32 = arith.constant 0 : i32
    %c0_i32_0 = arith.constant 0 : i32
    %c0_i32_1 = arith.constant 0 : i32
    return %c0_i32, %c0_i32_0 : i32, i32
  }
  func.func @transform_5(%arg0: i32) -> (i32, i32) {
    %c0_i32 = arith.constant 0 : i32
    %c0_i32_0 = arith.constant 0 : i32
    %c0_i32_1 = arith.constant 0 : i32
    return %c0_i32, %c0_i32_0 : i32, i32
  }
  func.func @transform_6(%arg0: i32) -> (i32, i32) {
    %c0_i32 = arith.constant 0 : i32
    %c0_i32_0 = arith.constant 0 : i32
    %c0_i32_1 = arith.constant 0 : i32
    return %c0_i32, %c0_i32_0 : i32, i32
  }
  func.func @transform_7(%arg0: i32) -> (i32, i32) {
    %c0_i32 = arith.constant 0 : i32
    %c0_i32_0 = arith.constant 0 : i32
    %c0_i32_1 = arith.constant 0 : i32
    return %c0_i32, %c0_i32_0 : i32, i32
  }
  func.func @transform_8(%arg0: i32) -> (i32, i32) {
    %c0_i32 = arith.constant 0 : i32
    %c0_i32_0 = arith.constant 0 : i32
    return %arg0, %c0_i32 : i32, i32
  }
}

module attributes {stable_mosaic.version = 11 : i64} {
  func.func @_film_conv_bn_relu_kernel(%arg0: i32, %arg1: memref<8x1152xf32, #tpu.memory_space<vmem>>, %arg2: memref<1152x128xf32, #tpu.memory_space<vmem>>, %arg3: memref<1x128xf32, #tpu.memory_space<vmem>>, %arg4: memref<1x2x128xf32, #tpu.memory_space<vmem>>, %arg5: memref<128x256xf32, #tpu.memory_space<vmem>>, %arg6: memref<1x256xf32, #tpu.memory_space<vmem>>, %arg7: memref<1x128xf32, #tpu.memory_space<vmem>>, %arg8: memref<1x128xf32, #tpu.memory_space<vmem>>, %arg9: memref<1x2x128xf32, #tpu.memory_space<vmem>>) attributes {dimension_semantics = [#tpu.dimension_semantics<parallel>], iteration_bounds = array<i64: 2>, scalar_prefetch = 0 : i64, scratch_operands = 0 : i64, tpu.core_type = #tpu.core_type<tc>, window_params = [{transform_indices = @transform_0, window_bounds = array<i64: 8, 1152>}, {pipeline_mode = #tpu.pipeline_mode<synchronous>, transform_indices = @transform_1, window_bounds = array<i64: 1152, 128>}, {pipeline_mode = #tpu.pipeline_mode<synchronous>, transform_indices = @transform_2, window_bounds = array<i64: 1, 128>}, {transform_indices = @transform_3, window_bounds = array<i64: 1, 2, 128>}, {pipeline_mode = #tpu.pipeline_mode<synchronous>, transform_indices = @transform_4, window_bounds = array<i64: 128, 256>}, {pipeline_mode = #tpu.pipeline_mode<synchronous>, transform_indices = @transform_5, window_bounds = array<i64: 1, 256>}, {pipeline_mode = #tpu.pipeline_mode<synchronous>, transform_indices = @transform_6, window_bounds = array<i64: 1, 128>}, {pipeline_mode = #tpu.pipeline_mode<synchronous>, transform_indices = @transform_7, window_bounds = array<i64: 1, 128>}, {transform_indices = @transform_8, window_bounds = array<i64: 1, 2, 128>}]} {
    %c0 = arith.constant 0 : index
    %c0_0 = arith.constant 0 : index
    %0 = vector.load %arg1[%c0, %c0_0] : memref<8x1152xf32, #tpu.memory_space<vmem>>, vector<8x1152xf32>
    %c0_1 = arith.constant 0 : index
    %c0_2 = arith.constant 0 : index
    %1 = vector.load %arg2[%c0_1, %c0_2] : memref<1152x128xf32, #tpu.memory_space<vmem>>, vector<1152x128xf32>
    %cst = arith.constant dense<0.000000e+00> : vector<8x128xf32>
    %2 = tpu.matmul %0, %1, %cst {dimension_numbers = #tpu.dot_dimension_numbers<[1], [0], [0], [1], [0, 0, 1, 1], [], []>} : vector<8x1152xf32>, vector<1152x128xf32>, vector<8x128xf32> -> vector<8x128xf32>
    %c0_3 = arith.constant 0 : index
    %c0_4 = arith.constant 0 : index
    %3 = vector.load %arg3[%c0_3, %c0_4] : memref<1x128xf32, #tpu.memory_space<vmem>>, vector<1x128xf32>
    %4 = vector.broadcast %3 : vector<1x128xf32> to vector<8x128xf32>
    %5 = arith.addf %2, %4 : vector<8x128xf32>
    %c0_5 = arith.constant 0 : index
    %c0_6 = arith.constant 0 : index
    %c0_7 = arith.constant 0 : index
    %6 = vector.load %arg4[%c0_5, %c0_6, %c0_7] : memref<1x2x128xf32, #tpu.memory_space<vmem>>, vector<1x2x128xf32>
    %7 = vector.shape_cast %6 : vector<1x2x128xf32> to vector<2x128xf32>
    %c0_8 = arith.constant 0 : index
    %c0_9 = arith.constant 0 : index
    %8 = vector.load %arg5[%c0_8, %c0_9] : memref<128x256xf32, #tpu.memory_space<vmem>>, vector<128x256xf32>
    %cst_10 = arith.constant dense<0.000000e+00> : vector<2x256xf32>
    %9 = tpu.matmul %7, %8, %cst_10 {dimension_numbers = #tpu.dot_dimension_numbers<[1], [0], [0], [1], [0, 0, 1, 1], [], []>} : vector<2x128xf32>, vector<128x256xf32>, vector<2x256xf32> -> vector<2x256xf32>
    %c0_11 = arith.constant 0 : index
    %c0_12 = arith.constant 0 : index
    %10 = vector.load %arg6[%c0_11, %c0_12] : memref<1x256xf32, #tpu.memory_space<vmem>>, vector<1x256xf32>
    %11 = vector.broadcast %10 : vector<1x256xf32> to vector<2x256xf32>
    %12 = arith.addf %9, %11 : vector<2x256xf32>
    %13 = vector.extract_strided_slice %12 {offsets = [0, 0], sizes = [2, 128], strides = [1, 1]} : vector<2x256xf32> to vector<2x128xf32>
    %14 = vector.extract_strided_slice %12 {offsets = [0, 128], sizes = [2, 128], strides = [1, 1]} : vector<2x256xf32> to vector<2x128xf32>
    %15 = vector.extract_strided_slice %13 {offsets = [0, 0], sizes = [1, 128], strides = [1, 1]} : vector<2x128xf32> to vector<1x128xf32>
    %16 = vector.extract_strided_slice %13 {offsets = [0, 0], sizes = [1, 128], strides = [1, 1]} : vector<2x128xf32> to vector<1x128xf32>
    %17 = vector.extract_strided_slice %13 {offsets = [0, 0], sizes = [1, 128], strides = [1, 1]} : vector<2x128xf32> to vector<1x128xf32>
    %18 = vector.extract_strided_slice %13 {offsets = [0, 0], sizes = [1, 128], strides = [1, 1]} : vector<2x128xf32> to vector<1x128xf32>
    %19 = vector.extract_strided_slice %13 {offsets = [1, 0], sizes = [1, 128], strides = [1, 1]} : vector<2x128xf32> to vector<1x128xf32>
    %20 = vector.extract_strided_slice %13 {offsets = [1, 0], sizes = [1, 128], strides = [1, 1]} : vector<2x128xf32> to vector<1x128xf32>
    %21 = vector.extract_strided_slice %13 {offsets = [1, 0], sizes = [1, 128], strides = [1, 1]} : vector<2x128xf32> to vector<1x128xf32>
    %22 = vector.extract_strided_slice %13 {offsets = [1, 0], sizes = [1, 128], strides = [1, 1]} : vector<2x128xf32> to vector<1x128xf32>
    %23 = tpu.concatenate %15, %16, %17, %18, %19, %20, %21, %22 in 0 : vector<1x128xf32>, vector<1x128xf32>, vector<1x128xf32>, vector<1x128xf32>, vector<1x128xf32>, vector<1x128xf32>, vector<1x128xf32>, vector<1x128xf32> -> vector<8x128xf32>
    %24 = vector.extract_strided_slice %14 {offsets = [0, 0], sizes = [1, 128], strides = [1, 1]} : vector<2x128xf32> to vector<1x128xf32>
    %25 = vector.extract_strided_slice %14 {offsets = [0, 0], sizes = [1, 128], strides = [1, 1]} : vector<2x128xf32> to vector<1x128xf32>
    %26 = vector.extract_strided_slice %14 {offsets = [0, 0], sizes = [1, 128], strides = [1, 1]} : vector<2x128xf32> to vector<1x128xf32>
    %27 = vector.extract_strided_slice %14 {offsets = [0, 0], sizes = [1, 128], strides = [1, 1]} : vector<2x128xf32> to vector<1x128xf32>
    %28 = vector.extract_strided_slice %14 {offsets = [1, 0], sizes = [1, 128], strides = [1, 1]} : vector<2x128xf32> to vector<1x128xf32>
    %29 = vector.extract_strided_slice %14 {offsets = [1, 0], sizes = [1, 128], strides = [1, 1]} : vector<2x128xf32> to vector<1x128xf32>
    %30 = vector.extract_strided_slice %14 {offsets = [1, 0], sizes = [1, 128], strides = [1, 1]} : vector<2x128xf32> to vector<1x128xf32>
    %31 = vector.extract_strided_slice %14 {offsets = [1, 0], sizes = [1, 128], strides = [1, 1]} : vector<2x128xf32> to vector<1x128xf32>
    %32 = tpu.concatenate %24, %25, %26, %27, %28, %29, %30, %31 in 0 : vector<1x128xf32>, vector<1x128xf32>, vector<1x128xf32>, vector<1x128xf32>, vector<1x128xf32>, vector<1x128xf32>, vector<1x128xf32>, vector<1x128xf32> -> vector<8x128xf32>
    %33 = arith.mulf %5, %23 : vector<8x128xf32>
    %34 = arith.addf %33, %32 : vector<8x128xf32>
    %c0_13 = arith.constant 0 : index
    %c0_14 = arith.constant 0 : index
    %35 = vector.load %arg7[%c0_13, %c0_14] : memref<1x128xf32, #tpu.memory_space<vmem>>, vector<1x128xf32>
    %c0_15 = arith.constant 0 : index
    %c0_16 = arith.constant 0 : index
    %36 = vector.load %arg8[%c0_15, %c0_16] : memref<1x128xf32, #tpu.memory_space<vmem>>, vector<1x128xf32>
    %cst_17 = arith.constant 1.000000e+00 : f32
    %37 = vector.broadcast %cst_17 : f32 to vector<1x8xf32>
    %cst_18 = arith.constant dense<0.000000e+00> : vector<1x128xf32>
    %38 = tpu.matmul %37, %34, %cst_18 {dimension_numbers = #tpu.dot_dimension_numbers<[1], [0], [0], [1], [0, 0, 1, 1], [], []>} : vector<1x8xf32>, vector<8x128xf32>, vector<1x128xf32> -> vector<1x128xf32>
    %cst_19 = arith.constant 1.250000e-01 : f32
    %39 = vector.broadcast %cst_19 : f32 to vector<1x128xf32>
    %40 = arith.mulf %38, %39 : vector<1x128xf32>
    %41 = vector.broadcast %40 : vector<1x128xf32> to vector<8x128xf32>
    %42 = arith.subf %34, %41 : vector<8x128xf32>
    %43 = arith.mulf %42, %42 : vector<8x128xf32>
    %cst_20 = arith.constant dense<0.000000e+00> : vector<1x128xf32>
    %44 = tpu.matmul %37, %43, %cst_20 {dimension_numbers = #tpu.dot_dimension_numbers<[1], [0], [0], [1], [0, 0, 1, 1], [], []>} : vector<1x8xf32>, vector<8x128xf32>, vector<1x128xf32> -> vector<1x128xf32>
    %cst_21 = arith.constant 1.250000e-01 : f32
    %45 = vector.broadcast %cst_21 : f32 to vector<1x128xf32>
    %46 = arith.mulf %44, %45 : vector<1x128xf32>
    %cst_22 = arith.constant 9.99999974E-6 : f32
    %47 = vector.broadcast %cst_22 : f32 to vector<1x128xf32>
    %48 = arith.addf %46, %47 : vector<1x128xf32>
    %49 = math.rsqrt %48 : vector<1x128xf32>
    %50 = vector.broadcast %49 : vector<1x128xf32> to vector<8x128xf32>
    %51 = arith.mulf %42, %50 : vector<8x128xf32>
    %52 = vector.broadcast %35 : vector<1x128xf32> to vector<8x128xf32>
    %53 = arith.mulf %51, %52 : vector<8x128xf32>
    %54 = vector.broadcast %36 : vector<1x128xf32> to vector<8x128xf32>
    %55 = arith.addf %53, %54 : vector<8x128xf32>
    %cst_23 = arith.constant 0.000000e+00 : f32
    %56 = vector.broadcast %cst_23 : f32 to vector<8x128xf32>
    %57 = arith.maximumf %55, %56 : vector<8x128xf32>
    %58 = vector.extract_strided_slice %57 {offsets = [0, 0], sizes = [1, 128], strides = [1, 1]} : vector<8x128xf32> to vector<1x128xf32>
    %59 = vector.extract_strided_slice %57 {offsets = [1, 0], sizes = [1, 128], strides = [1, 1]} : vector<8x128xf32> to vector<1x128xf32>
    %60 = arith.maximumf %58, %59 : vector<1x128xf32>
    %61 = vector.extract_strided_slice %57 {offsets = [2, 0], sizes = [1, 128], strides = [1, 1]} : vector<8x128xf32> to vector<1x128xf32>
    %62 = arith.maximumf %60, %61 : vector<1x128xf32>
    %63 = vector.extract_strided_slice %57 {offsets = [3, 0], sizes = [1, 128], strides = [1, 1]} : vector<8x128xf32> to vector<1x128xf32>
    %64 = arith.maximumf %62, %63 : vector<1x128xf32>
    %65 = vector.extract_strided_slice %57 {offsets = [4, 0], sizes = [1, 128], strides = [1, 1]} : vector<8x128xf32> to vector<1x128xf32>
    %66 = vector.extract_strided_slice %57 {offsets = [5, 0], sizes = [1, 128], strides = [1, 1]} : vector<8x128xf32> to vector<1x128xf32>
    %67 = arith.maximumf %65, %66 : vector<1x128xf32>
    %68 = vector.extract_strided_slice %57 {offsets = [6, 0], sizes = [1, 128], strides = [1, 1]} : vector<8x128xf32> to vector<1x128xf32>
    %69 = arith.maximumf %67, %68 : vector<1x128xf32>
    %70 = vector.extract_strided_slice %57 {offsets = [7, 0], sizes = [1, 128], strides = [1, 1]} : vector<8x128xf32> to vector<1x128xf32>
    %71 = arith.maximumf %69, %70 : vector<1x128xf32>
    %72 = tpu.concatenate %64, %71 in 0 : vector<1x128xf32>, vector<1x128xf32> -> vector<2x128xf32>
    %cst_24 = arith.constant 0.000000e+00 : f32
    %73 = vector.broadcast %cst_24 : f32 to vector<2x128xf32>
    %74 = arith.maximumf %72, %73 : vector<2x128xf32>
    %c0_25 = arith.constant 0 : index
    %c0_26 = arith.constant 0 : index
    %c0_27 = arith.constant 0 : index
    %75 = vector.load %arg9[%c0_25, %c0_26, %c0_27] : memref<1x2x128xf32, #tpu.memory_space<vmem>>, vector<1x2x128xf32>
    %76 = vector.shape_cast %75 : vector<1x2x128xf32> to vector<2x128xf32>
    %77 = vector.shape_cast %74 : vector<2x128xf32> to vector<1x2x128xf32>
    tpu.vector_store %arg9[%c0_25, %c0_26, %c0_27], %77 {strides = array<i32>} : memref<1x2x128xf32, #tpu.memory_space<vmem>>, vector<1x2x128xf32>,
    return
  }
  func.func @transform_0(%arg0: i32) -> (i32, i32) {
    %c0_i32 = arith.constant 0 : i32
    %c0_i32_0 = arith.constant 0 : i32
    return %arg0, %c0_i32 : i32, i32
  }
  func.func @transform_1(%arg0: i32) -> (i32, i32) {
    %c0_i32 = arith.constant 0 : i32
    %c0_i32_0 = arith.constant 0 : i32
    %c0_i32_1 = arith.constant 0 : i32
    return %c0_i32, %c0_i32_0 : i32, i32
  }
  func.func @transform_2(%arg0: i32) -> (i32, i32) {
    %c0_i32 = arith.constant 0 : i32
    %c0_i32_0 = arith.constant 0 : i32
    %c0_i32_1 = arith.constant 0 : i32
    return %c0_i32, %c0_i32_0 : i32, i32
  }
  func.func @transform_3(%arg0: i32) -> (i32, i32, i32) {
    %c0_i32 = arith.constant 0 : i32
    %c0_i32_0 = arith.constant 0 : i32
    %c0_i32_1 = arith.constant 0 : i32
    return %arg0, %c0_i32, %c0_i32_0 : i32, i32, i32
  }
  func.func @transform_4(%arg0: i32) -> (i32, i32) {
    %c0_i32 = arith.constant 0 : i32
    %c0_i32_0 = arith.constant 0 : i32
    %c0_i32_1 = arith.constant 0 : i32
    return %c0_i32, %c0_i32_0 : i32, i32
  }
  func.func @transform_5(%arg0: i32) -> (i32, i32) {
    %c0_i32 = arith.constant 0 : i32
    %c0_i32_0 = arith.constant 0 : i32
    %c0_i32_1 = arith.constant 0 : i32
    return %c0_i32, %c0_i32_0 : i32, i32
  }
  func.func @transform_6(%arg0: i32) -> (i32, i32) {
    %c0_i32 = arith.constant 0 : i32
    %c0_i32_0 = arith.constant 0 : i32
    %c0_i32_1 = arith.constant 0 : i32
    return %c0_i32, %c0_i32_0 : i32, i32
  }
  func.func @transform_7(%arg0: i32) -> (i32, i32) {
    %c0_i32 = arith.constant 0 : i32
    %c0_i32_0 = arith.constant 0 : i32
    %c0_i32_1 = arith.constant 0 : i32
    return %c0_i32, %c0_i32_0 : i32, i32
  }
  func.func @transform_8(%arg0: i32) -> (i32, i32, i32) {
    %c0_i32 = arith.constant 0 : i32
    %c0_i32_0 = arith.constant 0 : i32
    %c0_i32_1 = arith.constant 0 : i32
    return %arg0, %c0_i32, %c0_i32_0 : i32, i32, i32
  }
}

module attributes {stable_mosaic.version = 11 : i64} {
  func.func @_gru_kernel(%arg0: i32, %arg1: memref<2x8x128xf32, #tpu.memory_space<vmem>>, %arg2: memref<128x384xf32, #tpu.memory_space<vmem>>, %arg3: memref<1x384xf32, #tpu.memory_space<vmem>>, %arg4: memref<128x384xf32, #tpu.memory_space<vmem>>, %arg5: memref<1x384xf32, #tpu.memory_space<vmem>>, %arg6: memref<1x2x128xf32, #tpu.memory_space<vmem>>, %arg7: memref<1x2x128xf32, #tpu.memory_space<vmem>>) attributes {dimension_semantics = [#tpu.dimension_semantics<parallel>], iteration_bounds = array<i64: 2>, scalar_prefetch = 0 : i64, scratch_operands = 0 : i64, tpu.core_type = #tpu.core_type<tc>, window_params = [{transform_indices = @transform_0, window_bounds = array<i64: 2, 8, 128>}, {pipeline_mode = #tpu.pipeline_mode<synchronous>, transform_indices = @transform_1, window_bounds = array<i64: 128, 384>}, {pipeline_mode = #tpu.pipeline_mode<synchronous>, transform_indices = @transform_2, window_bounds = array<i64: 1, 384>}, {pipeline_mode = #tpu.pipeline_mode<synchronous>, transform_indices = @transform_3, window_bounds = array<i64: 128, 384>}, {pipeline_mode = #tpu.pipeline_mode<synchronous>, transform_indices = @transform_4, window_bounds = array<i64: 1, 384>}, {transform_indices = @transform_5, window_bounds = array<i64: 1, 2, 128>}, {transform_indices = @transform_6, window_bounds = array<i64: 1, 2, 128>}]} {
    %c0 = arith.constant 0 : index
    %c0_0 = arith.constant 0 : index
    %0 = vector.load %arg2[%c0, %c0_0] : memref<128x384xf32, #tpu.memory_space<vmem>>, vector<128x384xf32>
    %c0_1 = arith.constant 0 : index
    %c0_2 = arith.constant 0 : index
    %1 = vector.load %arg3[%c0_1, %c0_2] : memref<1x384xf32, #tpu.memory_space<vmem>>, vector<1x384xf32>
    %c0_3 = arith.constant 0 : index
    %c0_4 = arith.constant 0 : index
    %2 = vector.load %arg4[%c0_3, %c0_4] : memref<128x384xf32, #tpu.memory_space<vmem>>, vector<128x384xf32>
    %c0_5 = arith.constant 0 : index
    %c0_6 = arith.constant 0 : index
    %3 = vector.load %arg5[%c0_5, %c0_6] : memref<1x384xf32, #tpu.memory_space<vmem>>, vector<1x384xf32>
    %c0_7 = arith.constant 0 : index
    %c0_8 = arith.constant 0 : index
    %c0_9 = arith.constant 0 : index
    %4 = vector.load %arg6[%c0_7, %c0_8, %c0_9] : memref<1x2x128xf32, #tpu.memory_space<vmem>>, vector<1x2x128xf32>
    %5 = vector.shape_cast %4 : vector<1x2x128xf32> to vector<2x128xf32>
    %cst = arith.constant 0.000000e+00 : f32
    %6 = vector.broadcast %cst : f32 to vector<2x128xf32>
    %cst_10 = arith.constant 0.000000e+00 : f32
    %7 = vector.broadcast %cst_10 : f32 to vector<2x128xf32>
    %c0_11 = arith.constant 0 : index
    %c0_12 = arith.constant 0 : index
    %c0_13 = arith.constant 0 : index
    %8 = vector.load %arg1[%c0_11, %c0_12, %c0_13] : memref<2x8x128xf32, #tpu.memory_space<vmem>>, vector<2x1x128xf32>
    %9 = vector.shape_cast %8 : vector<2x1x128xf32> to vector<2x128xf32>
    %cst_14 = arith.constant dense<0.000000e+00> : vector<2x384xf32>
    %10 = tpu.matmul %9, %0, %cst_14 {dimension_numbers = #tpu.dot_dimension_numbers<[1], [0], [0], [1], [0, 0, 1, 1], [], []>} : vector<2x128xf32>, vector<128x384xf32>, vector<2x384xf32> -> vector<2x384xf32>
    %11 = vector.broadcast %1 : vector<1x384xf32> to vector<2x384xf32>
    %12 = arith.addf %10, %11 : vector<2x384xf32>
    %cst_15 = arith.constant dense<0.000000e+00> : vector<2x384xf32>
    %13 = tpu.matmul %6, %2, %cst_15 {dimension_numbers = #tpu.dot_dimension_numbers<[1], [0], [0], [1], [0, 0, 1, 1], [], []>} : vector<2x128xf32>, vector<128x384xf32>, vector<2x384xf32> -> vector<2x384xf32>
    %14 = vector.broadcast %3 : vector<1x384xf32> to vector<2x384xf32>
    %15 = arith.addf %13, %14 : vector<2x384xf32>
    %16 = vector.extract_strided_slice %12 {offsets = [0, 0], sizes = [2, 128], strides = [1, 1]} : vector<2x384xf32> to vector<2x128xf32>
    %17 = vector.extract_strided_slice %15 {offsets = [0, 0], sizes = [2, 128], strides = [1, 1]} : vector<2x384xf32> to vector<2x128xf32>
    %18 = arith.addf %16, %17 : vector<2x128xf32>
    %cst_16 = arith.constant 0.000000e+00 : f32
    %19 = vector.broadcast %cst_16 : f32 to vector<2x128xf32>
    %20 = arith.subf %19, %18 : vector<2x128xf32>
    %21 = math.exp %20 : vector<2x128xf32>
    %cst_17 = arith.constant 1.000000e+00 : f32
    %22 = vector.broadcast %cst_17 : f32 to vector<2x128xf32>
    %23 = arith.addf %22, %21 : vector<2x128xf32>
    %cst_18 = arith.constant 1.000000e+00 : f32
    %24 = vector.broadcast %cst_18 : f32 to vector<2x128xf32>
    %25 = arith.divf %24, %23 : vector<2x128xf32>
    %26 = vector.extract_strided_slice %12 {offsets = [0, 128], sizes = [2, 128], strides = [1, 1]} : vector<2x384xf32> to vector<2x128xf32>
    %27 = vector.extract_strided_slice %15 {offsets = [0, 128], sizes = [2, 128], strides = [1, 1]} : vector<2x384xf32> to vector<2x128xf32>
    %28 = arith.addf %26, %27 : vector<2x128xf32>
    %cst_19 = arith.constant 0.000000e+00 : f32
    %29 = vector.broadcast %cst_19 : f32 to vector<2x128xf32>
    %30 = arith.subf %29, %28 : vector<2x128xf32>
    %31 = math.exp %30 : vector<2x128xf32>
    %cst_20 = arith.constant 1.000000e+00 : f32
    %32 = vector.broadcast %cst_20 : f32 to vector<2x128xf32>
    %33 = arith.addf %32, %31 : vector<2x128xf32>
    %cst_21 = arith.constant 1.000000e+00 : f32
    %34 = vector.broadcast %cst_21 : f32 to vector<2x128xf32>
    %35 = arith.divf %34, %33 : vector<2x128xf32>
    %36 = vector.extract_strided_slice %12 {offsets = [0, 256], sizes = [2, 128], strides = [1, 1]} : vector<2x384xf32> to vector<2x128xf32>
    %37 = vector.extract_strided_slice %15 {offsets = [0, 256], sizes = [2, 128], strides = [1, 1]} : vector<2x384xf32> to vector<2x128xf32>
    %38 = arith.mulf %25, %37 : vector<2x128xf32>
    %39 = arith.addf %36, %38 : vector<2x128xf32>
    %40 = math.tanh %39 : vector<2x128xf32>
    %cst_22 = arith.constant 1.000000e+00 : f32
    %41 = vector.broadcast %cst_22 : f32 to vector<2x128xf32>
    %42 = arith.subf %41, %35 : vector<2x128xf32>
    %43 = arith.mulf %42, %40 : vector<2x128xf32>
    %44 = arith.mulf %35, %6 : vector<2x128xf32>
    %45 = arith.addf %43, %44 : vector<2x128xf32>
    %cst_23 = arith.constant 0.000000e+00 : f32
    %46 = vector.broadcast %cst_23 : f32 to vector<2x128xf32>
    %47 = arith.cmpf oeq, %5, %46 : vector<2x128xf32>
    %48 = arith.select %47, %45, %7 : vector<2x128xi1>, vector<2x128xf32>
    %c0_24 = arith.constant 0 : index
    %c1 = arith.constant 1 : index
    %c0_25 = arith.constant 0 : index
    %49 = vector.load %arg1[%c0_24, %c1, %c0_25] : memref<2x8x128xf32, #tpu.memory_space<vmem>>, vector<2x1x128xf32>
    %50 = vector.shape_cast %49 : vector<2x1x128xf32> to vector<2x128xf32>
    %cst_26 = arith.constant dense<0.000000e+00> : vector<2x384xf32>
    %51 = tpu.matmul %50, %0, %cst_26 {dimension_numbers = #tpu.dot_dimension_numbers<[1], [0], [0], [1], [0, 0, 1, 1], [], []>} : vector<2x128xf32>, vector<128x384xf32>, vector<2x384xf32> -> vector<2x384xf32>
    %52 = vector.broadcast %1 : vector<1x384xf32> to vector<2x384xf32>
    %53 = arith.addf %51, %52 : vector<2x384xf32>
    %cst_27 = arith.constant dense<0.000000e+00> : vector<2x384xf32>
    %54 = tpu.matmul %45, %2, %cst_27 {dimension_numbers = #tpu.dot_dimension_numbers<[1], [0], [0], [1], [0, 0, 1, 1], [], []>} : vector<2x128xf32>, vector<128x384xf32>, vector<2x384xf32> -> vector<2x384xf32>
    %55 = vector.broadcast %3 : vector<1x384xf32> to vector<2x384xf32>
    %56 = arith.addf %54, %55 : vector<2x384xf32>
    %57 = vector.extract_strided_slice %53 {offsets = [0, 0], sizes = [2, 128], strides = [1, 1]} : vector<2x384xf32> to vector<2x128xf32>
    %58 = vector.extract_strided_slice %56 {offsets = [0, 0], sizes = [2, 128], strides = [1, 1]} : vector<2x384xf32> to vector<2x128xf32>
    %59 = arith.addf %57, %58 : vector<2x128xf32>
    %cst_28 = arith.constant 0.000000e+00 : f32
    %60 = vector.broadcast %cst_28 : f32 to vector<2x128xf32>
    %61 = arith.subf %60, %59 : vector<2x128xf32>
    %62 = math.exp %61 : vector<2x128xf32>
    %cst_29 = arith.constant 1.000000e+00 : f32
    %63 = vector.broadcast %cst_29 : f32 to vector<2x128xf32>
    %64 = arith.addf %63, %62 : vector<2x128xf32>
    %cst_30 = arith.constant 1.000000e+00 : f32
    %65 = vector.broadcast %cst_30 : f32 to vector<2x128xf32>
    %66 = arith.divf %65, %64 : vector<2x128xf32>
    %67 = vector.extract_strided_slice %53 {offsets = [0, 128], sizes = [2, 128], strides = [1, 1]} : vector<2x384xf32> to vector<2x128xf32>
    %68 = vector.extract_strided_slice %56 {offsets = [0, 128], sizes = [2, 128], strides = [1, 1]} : vector<2x384xf32> to vector<2x128xf32>
    %69 = arith.addf %67, %68 : vector<2x128xf32>
    %cst_31 = arith.constant 0.000000e+00 : f32
    %70 = vector.broadcast %cst_31 : f32 to vector<2x128xf32>
    %71 = arith.subf %70, %69 : vector<2x128xf32>
    %72 = math.exp %71 : vector<2x128xf32>
    %cst_32 = arith.constant 1.000000e+00 : f32
    %73 = vector.broadcast %cst_32 : f32 to vector<2x128xf32>
    %74 = arith.addf %73, %72 : vector<2x128xf32>
    %cst_33 = arith.constant 1.000000e+00 : f32
    %75 = vector.broadcast %cst_33 : f32 to vector<2x128xf32>
    %76 = arith.divf %75, %74 : vector<2x128xf32>
    %77 = vector.extract_strided_slice %53 {offsets = [0, 256], sizes = [2, 128], strides = [1, 1]} : vector<2x384xf32> to vector<2x128xf32>
    %78 = vector.extract_strided_slice %56 {offsets = [0, 256], sizes = [2, 128], strides = [1, 1]} : vector<2x384xf32> to vector<2x128xf32>
    %79 = arith.mulf %66, %78 : vector<2x128xf32>
    %80 = arith.addf %77, %79 : vector<2x128xf32>
    %81 = math.tanh %80 : vector<2x128xf32>
    %cst_34 = arith.constant 1.000000e+00 : f32
    %82 = vector.broadcast %cst_34 : f32 to vector<2x128xf32>
    %83 = arith.subf %82, %76 : vector<2x128xf32>
    %84 = arith.mulf %83, %81 : vector<2x128xf32>
    %85 = arith.mulf %76, %45 : vector<2x128xf32>
    %86 = arith.addf %84, %85 : vector<2x128xf32>
    %cst_35 = arith.constant 1.000000e+00 : f32
    %87 = vector.broadcast %cst_35 : f32 to vector<2x128xf32>
    %88 = arith.cmpf oeq, %5, %87 : vector<2x128xf32>
    %89 = arith.select %88, %86, %48 : vector<2x128xi1>, vector<2x128xf32>
    %c0_36 = arith.constant 0 : index
    %c2 = arith.constant 2 : index
    %c0_37 = arith.constant 0 : index
    %90 = vector.load %arg1[%c0_36, %c2, %c0_37] : memref<2x8x128xf32, #tpu.memory_space<vmem>>, vector<2x1x128xf32>
    %91 = vector.shape_cast %90 : vector<2x1x128xf32> to vector<2x128xf32>
    %cst_38 = arith.constant dense<0.000000e+00> : vector<2x384xf32>
    %92 = tpu.matmul %91, %0, %cst_38 {dimension_numbers = #tpu.dot_dimension_numbers<[1], [0], [0], [1], [0, 0, 1, 1], [], []>} : vector<2x128xf32>, vector<128x384xf32>, vector<2x384xf32> -> vector<2x384xf32>
    %93 = vector.broadcast %1 : vector<1x384xf32> to vector<2x384xf32>
    %94 = arith.addf %92, %93 : vector<2x384xf32>
    %cst_39 = arith.constant dense<0.000000e+00> : vector<2x384xf32>
    %95 = tpu.matmul %86, %2, %cst_39 {dimension_numbers = #tpu.dot_dimension_numbers<[1], [0], [0], [1], [0, 0, 1, 1], [], []>} : vector<2x128xf32>, vector<128x384xf32>, vector<2x384xf32> -> vector<2x384xf32>
    %96 = vector.broadcast %3 : vector<1x384xf32> to vector<2x384xf32>
    %97 = arith.addf %95, %96 : vector<2x384xf32>
    %98 = vector.extract_strided_slice %94 {offsets = [0, 0], sizes = [2, 128], strides = [1, 1]} : vector<2x384xf32> to vector<2x128xf32>
    %99 = vector.extract_strided_slice %97 {offsets = [0, 0], sizes = [2, 128], strides = [1, 1]} : vector<2x384xf32> to vector<2x128xf32>
    %100 = arith.addf %98, %99 : vector<2x128xf32>
    %cst_40 = arith.constant 0.000000e+00 : f32
    %101 = vector.broadcast %cst_40 : f32 to vector<2x128xf32>
    %102 = arith.subf %101, %100 : vector<2x128xf32>
    %103 = math.exp %102 : vector<2x128xf32>
    %cst_41 = arith.constant 1.000000e+00 : f32
    %104 = vector.broadcast %cst_41 : f32 to vector<2x128xf32>
    %105 = arith.addf %104, %103 : vector<2x128xf32>
    %cst_42 = arith.constant 1.000000e+00 : f32
    %106 = vector.broadcast %cst_42 : f32 to vector<2x128xf32>
    %107 = arith.divf %106, %105 : vector<2x128xf32>
    %108 = vector.extract_strided_slice %94 {offsets = [0, 128], sizes = [2, 128], strides = [1, 1]} : vector<2x384xf32> to vector<2x128xf32>
    %109 = vector.extract_strided_slice %97 {offsets = [0, 128], sizes = [2, 128], strides = [1, 1]} : vector<2x384xf32> to vector<2x128xf32>
    %110 = arith.addf %108, %109 : vector<2x128xf32>
    %cst_43 = arith.constant 0.000000e+00 : f32
    %111 = vector.broadcast %cst_43 : f32 to vector<2x128xf32>
    %112 = arith.subf %111, %110 : vector<2x128xf32>
    %113 = math.exp %112 : vector<2x128xf32>
    %cst_44 = arith.constant 1.000000e+00 : f32
    %114 = vector.broadcast %cst_44 : f32 to vector<2x128xf32>
    %115 = arith.addf %114, %113 : vector<2x128xf32>
    %cst_45 = arith.constant 1.000000e+00 : f32
    %116 = vector.broadcast %cst_45 : f32 to vector<2x128xf32>
    %117 = arith.divf %116, %115 : vector<2x128xf32>
    %118 = vector.extract_strided_slice %94 {offsets = [0, 256], sizes = [2, 128], strides = [1, 1]} : vector<2x384xf32> to vector<2x128xf32>
    %119 = vector.extract_strided_slice %97 {offsets = [0, 256], sizes = [2, 128], strides = [1, 1]} : vector<2x384xf32> to vector<2x128xf32>
    %120 = arith.mulf %107, %119 : vector<2x128xf32>
    %121 = arith.addf %118, %120 : vector<2x128xf32>
    %122 = math.tanh %121 : vector<2x128xf32>
    %cst_46 = arith.constant 1.000000e+00 : f32
    %123 = vector.broadcast %cst_46 : f32 to vector<2x128xf32>
    %124 = arith.subf %123, %117 : vector<2x128xf32>
    %125 = arith.mulf %124, %122 : vector<2x128xf32>
    %126 = arith.mulf %117, %86 : vector<2x128xf32>
    %127 = arith.addf %125, %126 : vector<2x128xf32>
    %cst_47 = arith.constant 2.000000e+00 : f32
    %128 = vector.broadcast %cst_47 : f32 to vector<2x128xf32>
    %129 = arith.cmpf oeq, %5, %128 : vector<2x128xf32>
    %130 = arith.select %129, %127, %89 : vector<2x128xi1>, vector<2x128xf32>
    %c0_48 = arith.constant 0 : index
    %c3 = arith.constant 3 : index
    %c0_49 = arith.constant 0 : index
    %131 = vector.load %arg1[%c0_48, %c3, %c0_49] : memref<2x8x128xf32, #tpu.memory_space<vmem>>, vector<2x1x128xf32>
    %132 = vector.shape_cast %131 : vector<2x1x128xf32> to vector<2x128xf32>
    %cst_50 = arith.constant dense<0.000000e+00> : vector<2x384xf32>
    %133 = tpu.matmul %132, %0, %cst_50 {dimension_numbers = #tpu.dot_dimension_numbers<[1], [0], [0], [1], [0, 0, 1, 1], [], []>} : vector<2x128xf32>, vector<128x384xf32>, vector<2x384xf32> -> vector<2x384xf32>
    %134 = vector.broadcast %1 : vector<1x384xf32> to vector<2x384xf32>
    %135 = arith.addf %133, %134 : vector<2x384xf32>
    %cst_51 = arith.constant dense<0.000000e+00> : vector<2x384xf32>
    %136 = tpu.matmul %127, %2, %cst_51 {dimension_numbers = #tpu.dot_dimension_numbers<[1], [0], [0], [1], [0, 0, 1, 1], [], []>} : vector<2x128xf32>, vector<128x384xf32>, vector<2x384xf32> -> vector<2x384xf32>
    %137 = vector.broadcast %3 : vector<1x384xf32> to vector<2x384xf32>
    %138 = arith.addf %136, %137 : vector<2x384xf32>
    %139 = vector.extract_strided_slice %135 {offsets = [0, 0], sizes = [2, 128], strides = [1, 1]} : vector<2x384xf32> to vector<2x128xf32>
    %140 = vector.extract_strided_slice %138 {offsets = [0, 0], sizes = [2, 128], strides = [1, 1]} : vector<2x384xf32> to vector<2x128xf32>
    %141 = arith.addf %139, %140 : vector<2x128xf32>
    %cst_52 = arith.constant 0.000000e+00 : f32
    %142 = vector.broadcast %cst_52 : f32 to vector<2x128xf32>
    %143 = arith.subf %142, %141 : vector<2x128xf32>
    %144 = math.exp %143 : vector<2x128xf32>
    %cst_53 = arith.constant 1.000000e+00 : f32
    %145 = vector.broadcast %cst_53 : f32 to vector<2x128xf32>
    %146 = arith.addf %145, %144 : vector<2x128xf32>
    %cst_54 = arith.constant 1.000000e+00 : f32
    %147 = vector.broadcast %cst_54 : f32 to vector<2x128xf32>
    %148 = arith.divf %147, %146 : vector<2x128xf32>
    %149 = vector.extract_strided_slice %135 {offsets = [0, 128], sizes = [2, 128], strides = [1, 1]} : vector<2x384xf32> to vector<2x128xf32>
    %150 = vector.extract_strided_slice %138 {offsets = [0, 128], sizes = [2, 128], strides = [1, 1]} : vector<2x384xf32> to vector<2x128xf32>
    %151 = arith.addf %149, %150 : vector<2x128xf32>
    %cst_55 = arith.constant 0.000000e+00 : f32
    %152 = vector.broadcast %cst_55 : f32 to vector<2x128xf32>
    %153 = arith.subf %152, %151 : vector<2x128xf32>
    %154 = math.exp %153 : vector<2x128xf32>
    %cst_56 = arith.constant 1.000000e+00 : f32
    %155 = vector.broadcast %cst_56 : f32 to vector<2x128xf32>
    %156 = arith.addf %155, %154 : vector<2x128xf32>
    %cst_57 = arith.constant 1.000000e+00 : f32
    %157 = vector.broadcast %cst_57 : f32 to vector<2x128xf32>
    %158 = arith.divf %157, %156 : vector<2x128xf32>
    %159 = vector.extract_strided_slice %135 {offsets = [0, 256], sizes = [2, 128], strides = [1, 1]} : vector<2x384xf32> to vector<2x128xf32>
    %160 = vector.extract_strided_slice %138 {offsets = [0, 256], sizes = [2, 128], strides = [1, 1]} : vector<2x384xf32> to vector<2x128xf32>
    %161 = arith.mulf %148, %160 : vector<2x128xf32>
    %162 = arith.addf %159, %161 : vector<2x128xf32>
    %163 = math.tanh %162 : vector<2x128xf32>
    %cst_58 = arith.constant 1.000000e+00 : f32
    %164 = vector.broadcast %cst_58 : f32 to vector<2x128xf32>
    %165 = arith.subf %164, %158 : vector<2x128xf32>
    %166 = arith.mulf %165, %163 : vector<2x128xf32>
    %167 = arith.mulf %158, %127 : vector<2x128xf32>
    %168 = arith.addf %166, %167 : vector<2x128xf32>
    %cst_59 = arith.constant 3.000000e+00 : f32
    %169 = vector.broadcast %cst_59 : f32 to vector<2x128xf32>
    %170 = arith.cmpf oeq, %5, %169 : vector<2x128xf32>
    %171 = arith.select %170, %168, %130 : vector<2x128xi1>, vector<2x128xf32>
    %c0_60 = arith.constant 0 : index
    %c4 = arith.constant 4 : index
    %c0_61 = arith.constant 0 : index
    %172 = vector.load %arg1[%c0_60, %c4, %c0_61] : memref<2x8x128xf32, #tpu.memory_space<vmem>>, vector<2x1x128xf32>
    %173 = vector.shape_cast %172 : vector<2x1x128xf32> to vector<2x128xf32>
    %cst_62 = arith.constant dense<0.000000e+00> : vector<2x384xf32>
    %174 = tpu.matmul %173, %0, %cst_62 {dimension_numbers = #tpu.dot_dimension_numbers<[1], [0], [0], [1], [0, 0, 1, 1], [], []>} : vector<2x128xf32>, vector<128x384xf32>, vector<2x384xf32> -> vector<2x384xf32>
    %175 = vector.broadcast %1 : vector<1x384xf32> to vector<2x384xf32>
    %176 = arith.addf %174, %175 : vector<2x384xf32>
    %cst_63 = arith.constant dense<0.000000e+00> : vector<2x384xf32>
    %177 = tpu.matmul %168, %2, %cst_63 {dimension_numbers = #tpu.dot_dimension_numbers<[1], [0], [0], [1], [0, 0, 1, 1], [], []>} : vector<2x128xf32>, vector<128x384xf32>, vector<2x384xf32> -> vector<2x384xf32>
    %178 = vector.broadcast %3 : vector<1x384xf32> to vector<2x384xf32>
    %179 = arith.addf %177, %178 : vector<2x384xf32>
    %180 = vector.extract_strided_slice %176 {offsets = [0, 0], sizes = [2, 128], strides = [1, 1]} : vector<2x384xf32> to vector<2x128xf32>
    %181 = vector.extract_strided_slice %179 {offsets = [0, 0], sizes = [2, 128], strides = [1, 1]} : vector<2x384xf32> to vector<2x128xf32>
    %182 = arith.addf %180, %181 : vector<2x128xf32>
    %cst_64 = arith.constant 0.000000e+00 : f32
    %183 = vector.broadcast %cst_64 : f32 to vector<2x128xf32>
    %184 = arith.subf %183, %182 : vector<2x128xf32>
    %185 = math.exp %184 : vector<2x128xf32>
    %cst_65 = arith.constant 1.000000e+00 : f32
    %186 = vector.broadcast %cst_65 : f32 to vector<2x128xf32>
    %187 = arith.addf %186, %185 : vector<2x128xf32>
    %cst_66 = arith.constant 1.000000e+00 : f32
    %188 = vector.broadcast %cst_66 : f32 to vector<2x128xf32>
    %189 = arith.divf %188, %187 : vector<2x128xf32>
    %190 = vector.extract_strided_slice %176 {offsets = [0, 128], sizes = [2, 128], strides = [1, 1]} : vector<2x384xf32> to vector<2x128xf32>
    %191 = vector.extract_strided_slice %179 {offsets = [0, 128], sizes = [2, 128], strides = [1, 1]} : vector<2x384xf32> to vector<2x128xf32>
    %192 = arith.addf %190, %191 : vector<2x128xf32>
    %cst_67 = arith.constant 0.000000e+00 : f32
    %193 = vector.broadcast %cst_67 : f32 to vector<2x128xf32>
    %194 = arith.subf %193, %192 : vector<2x128xf32>
    %195 = math.exp %194 : vector<2x128xf32>
    %cst_68 = arith.constant 1.000000e+00 : f32
    %196 = vector.broadcast %cst_68 : f32 to vector<2x128xf32>
    %197 = arith.addf %196, %195 : vector<2x128xf32>
    %cst_69 = arith.constant 1.000000e+00 : f32
    %198 = vector.broadcast %cst_69 : f32 to vector<2x128xf32>
    %199 = arith.divf %198, %197 : vector<2x128xf32>
    %200 = vector.extract_strided_slice %176 {offsets = [0, 256], sizes = [2, 128], strides = [1, 1]} : vector<2x384xf32> to vector<2x128xf32>
    %201 = vector.extract_strided_slice %179 {offsets = [0, 256], sizes = [2, 128], strides = [1, 1]} : vector<2x384xf32> to vector<2x128xf32>
    %202 = arith.mulf %189, %201 : vector<2x128xf32>
    %203 = arith.addf %200, %202 : vector<2x128xf32>
    %204 = math.tanh %203 : vector<2x128xf32>
    %cst_70 = arith.constant 1.000000e+00 : f32
    %205 = vector.broadcast %cst_70 : f32 to vector<2x128xf32>
    %206 = arith.subf %205, %199 : vector<2x128xf32>
    %207 = arith.mulf %206, %204 : vector<2x128xf32>
    %208 = arith.mulf %199, %168 : vector<2x128xf32>
    %209 = arith.addf %207, %208 : vector<2x128xf32>
    %cst_71 = arith.constant 4.000000e+00 : f32
    %210 = vector.broadcast %cst_71 : f32 to vector<2x128xf32>
    %211 = arith.cmpf oeq, %5, %210 : vector<2x128xf32>
    %212 = arith.select %211, %209, %171 : vector<2x128xi1>, vector<2x128xf32>
    %c0_72 = arith.constant 0 : index
    %c5 = arith.constant 5 : index
    %c0_73 = arith.constant 0 : index
    %213 = vector.load %arg1[%c0_72, %c5, %c0_73] : memref<2x8x128xf32, #tpu.memory_space<vmem>>, vector<2x1x128xf32>
    %214 = vector.shape_cast %213 : vector<2x1x128xf32> to vector<2x128xf32>
    %cst_74 = arith.constant dense<0.000000e+00> : vector<2x384xf32>
    %215 = tpu.matmul %214, %0, %cst_74 {dimension_numbers = #tpu.dot_dimension_numbers<[1], [0], [0], [1], [0, 0, 1, 1], [], []>} : vector<2x128xf32>, vector<128x384xf32>, vector<2x384xf32> -> vector<2x384xf32>
    %216 = vector.broadcast %1 : vector<1x384xf32> to vector<2x384xf32>
    %217 = arith.addf %215, %216 : vector<2x384xf32>
    %cst_75 = arith.constant dense<0.000000e+00> : vector<2x384xf32>
    %218 = tpu.matmul %209, %2, %cst_75 {dimension_numbers = #tpu.dot_dimension_numbers<[1], [0], [0], [1], [0, 0, 1, 1], [], []>} : vector<2x128xf32>, vector<128x384xf32>, vector<2x384xf32> -> vector<2x384xf32>
    %219 = vector.broadcast %3 : vector<1x384xf32> to vector<2x384xf32>
    %220 = arith.addf %218, %219 : vector<2x384xf32>
    %221 = vector.extract_strided_slice %217 {offsets = [0, 0], sizes = [2, 128], strides = [1, 1]} : vector<2x384xf32> to vector<2x128xf32>
    %222 = vector.extract_strided_slice %220 {offsets = [0, 0], sizes = [2, 128], strides = [1, 1]} : vector<2x384xf32> to vector<2x128xf32>
    %223 = arith.addf %221, %222 : vector<2x128xf32>
    %cst_76 = arith.constant 0.000000e+00 : f32
    %224 = vector.broadcast %cst_76 : f32 to vector<2x128xf32>
    %225 = arith.subf %224, %223 : vector<2x128xf32>
    %226 = math.exp %225 : vector<2x128xf32>
    %cst_77 = arith.constant 1.000000e+00 : f32
    %227 = vector.broadcast %cst_77 : f32 to vector<2x128xf32>
    %228 = arith.addf %227, %226 : vector<2x128xf32>
    %cst_78 = arith.constant 1.000000e+00 : f32
    %229 = vector.broadcast %cst_78 : f32 to vector<2x128xf32>
    %230 = arith.divf %229, %228 : vector<2x128xf32>
    %231 = vector.extract_strided_slice %217 {offsets = [0, 128], sizes = [2, 128], strides = [1, 1]} : vector<2x384xf32> to vector<2x128xf32>
    %232 = vector.extract_strided_slice %220 {offsets = [0, 128], sizes = [2, 128], strides = [1, 1]} : vector<2x384xf32> to vector<2x128xf32>
    %233 = arith.addf %231, %232 : vector<2x128xf32>
    %cst_79 = arith.constant 0.000000e+00 : f32
    %234 = vector.broadcast %cst_79 : f32 to vector<2x128xf32>
    %235 = arith.subf %234, %233 : vector<2x128xf32>
    %236 = math.exp %235 : vector<2x128xf32>
    %cst_80 = arith.constant 1.000000e+00 : f32
    %237 = vector.broadcast %cst_80 : f32 to vector<2x128xf32>
    %238 = arith.addf %237, %236 : vector<2x128xf32>
    %cst_81 = arith.constant 1.000000e+00 : f32
    %239 = vector.broadcast %cst_81 : f32 to vector<2x128xf32>
    %240 = arith.divf %239, %238 : vector<2x128xf32>
    %241 = vector.extract_strided_slice %217 {offsets = [0, 256], sizes = [2, 128], strides = [1, 1]} : vector<2x384xf32> to vector<2x128xf32>
    %242 = vector.extract_strided_slice %220 {offsets = [0, 256], sizes = [2, 128], strides = [1, 1]} : vector<2x384xf32> to vector<2x128xf32>
    %243 = arith.mulf %230, %242 : vector<2x128xf32>
    %244 = arith.addf %241, %243 : vector<2x128xf32>
    %245 = math.tanh %244 : vector<2x128xf32>
    %cst_82 = arith.constant 1.000000e+00 : f32
    %246 = vector.broadcast %cst_82 : f32 to vector<2x128xf32>
    %247 = arith.subf %246, %240 : vector<2x128xf32>
    %248 = arith.mulf %247, %245 : vector<2x128xf32>
    %249 = arith.mulf %240, %209 : vector<2x128xf32>
    %250 = arith.addf %248, %249 : vector<2x128xf32>
    %cst_83 = arith.constant 5.000000e+00 : f32
    %251 = vector.broadcast %cst_83 : f32 to vector<2x128xf32>
    %252 = arith.cmpf oeq, %5, %251 : vector<2x128xf32>
    %253 = arith.select %252, %250, %212 : vector<2x128xi1>, vector<2x128xf32>
    %c0_84 = arith.constant 0 : index
    %c6 = arith.constant 6 : index
    %c0_85 = arith.constant 0 : index
    %254 = vector.load %arg1[%c0_84, %c6, %c0_85] : memref<2x8x128xf32, #tpu.memory_space<vmem>>, vector<2x1x128xf32>
    %255 = vector.shape_cast %254 : vector<2x1x128xf32> to vector<2x128xf32>
    %cst_86 = arith.constant dense<0.000000e+00> : vector<2x384xf32>
    %256 = tpu.matmul %255, %0, %cst_86 {dimension_numbers = #tpu.dot_dimension_numbers<[1], [0], [0], [1], [0, 0, 1, 1], [], []>} : vector<2x128xf32>, vector<128x384xf32>, vector<2x384xf32> -> vector<2x384xf32>
    %257 = vector.broadcast %1 : vector<1x384xf32> to vector<2x384xf32>
    %258 = arith.addf %256, %257 : vector<2x384xf32>
    %cst_87 = arith.constant dense<0.000000e+00> : vector<2x384xf32>
    %259 = tpu.matmul %250, %2, %cst_87 {dimension_numbers = #tpu.dot_dimension_numbers<[1], [0], [0], [1], [0, 0, 1, 1], [], []>} : vector<2x128xf32>, vector<128x384xf32>, vector<2x384xf32> -> vector<2x384xf32>
    %260 = vector.broadcast %3 : vector<1x384xf32> to vector<2x384xf32>
    %261 = arith.addf %259, %260 : vector<2x384xf32>
    %262 = vector.extract_strided_slice %258 {offsets = [0, 0], sizes = [2, 128], strides = [1, 1]} : vector<2x384xf32> to vector<2x128xf32>
    %263 = vector.extract_strided_slice %261 {offsets = [0, 0], sizes = [2, 128], strides = [1, 1]} : vector<2x384xf32> to vector<2x128xf32>
    %264 = arith.addf %262, %263 : vector<2x128xf32>
    %cst_88 = arith.constant 0.000000e+00 : f32
    %265 = vector.broadcast %cst_88 : f32 to vector<2x128xf32>
    %266 = arith.subf %265, %264 : vector<2x128xf32>
    %267 = math.exp %266 : vector<2x128xf32>
    %cst_89 = arith.constant 1.000000e+00 : f32
    %268 = vector.broadcast %cst_89 : f32 to vector<2x128xf32>
    %269 = arith.addf %268, %267 : vector<2x128xf32>
    %cst_90 = arith.constant 1.000000e+00 : f32
    %270 = vector.broadcast %cst_90 : f32 to vector<2x128xf32>
    %271 = arith.divf %270, %269 : vector<2x128xf32>
    %272 = vector.extract_strided_slice %258 {offsets = [0, 128], sizes = [2, 128], strides = [1, 1]} : vector<2x384xf32> to vector<2x128xf32>
    %273 = vector.extract_strided_slice %261 {offsets = [0, 128], sizes = [2, 128], strides = [1, 1]} : vector<2x384xf32> to vector<2x128xf32>
    %274 = arith.addf %272, %273 : vector<2x128xf32>
    %cst_91 = arith.constant 0.000000e+00 : f32
    %275 = vector.broadcast %cst_91 : f32 to vector<2x128xf32>
    %276 = arith.subf %275, %274 : vector<2x128xf32>
    %277 = math.exp %276 : vector<2x128xf32>
    %cst_92 = arith.constant 1.000000e+00 : f32
    %278 = vector.broadcast %cst_92 : f32 to vector<2x128xf32>
    %279 = arith.addf %278, %277 : vector<2x128xf32>
    %cst_93 = arith.constant 1.000000e+00 : f32
    %280 = vector.broadcast %cst_93 : f32 to vector<2x128xf32>
    %281 = arith.divf %280, %279 : vector<2x128xf32>
    %282 = vector.extract_strided_slice %258 {offsets = [0, 256], sizes = [2, 128], strides = [1, 1]} : vector<2x384xf32> to vector<2x128xf32>
    %283 = vector.extract_strided_slice %261 {offsets = [0, 256], sizes = [2, 128], strides = [1, 1]} : vector<2x384xf32> to vector<2x128xf32>
    %284 = arith.mulf %271, %283 : vector<2x128xf32>
    %285 = arith.addf %282, %284 : vector<2x128xf32>
    %286 = math.tanh %285 : vector<2x128xf32>
    %cst_94 = arith.constant 1.000000e+00 : f32
    %287 = vector.broadcast %cst_94 : f32 to vector<2x128xf32>
    %288 = arith.subf %287, %281 : vector<2x128xf32>
    %289 = arith.mulf %288, %286 : vector<2x128xf32>
    %290 = arith.mulf %281, %250 : vector<2x128xf32>
    %291 = arith.addf %289, %290 : vector<2x128xf32>
    %cst_95 = arith.constant 6.000000e+00 : f32
    %292 = vector.broadcast %cst_95 : f32 to vector<2x128xf32>
    %293 = arith.cmpf oeq, %5, %292 : vector<2x128xf32>
    %294 = arith.select %293, %291, %253 : vector<2x128xi1>, vector<2x128xf32>
    %c0_96 = arith.constant 0 : index
    %c7 = arith.constant 7 : index
    %c0_97 = arith.constant 0 : index
    %295 = vector.load %arg1[%c0_96, %c7, %c0_97] : memref<2x8x128xf32, #tpu.memory_space<vmem>>, vector<2x1x128xf32>
    %296 = vector.shape_cast %295 : vector<2x1x128xf32> to vector<2x128xf32>
    %cst_98 = arith.constant dense<0.000000e+00> : vector<2x384xf32>
    %297 = tpu.matmul %296, %0, %cst_98 {dimension_numbers = #tpu.dot_dimension_numbers<[1], [0], [0], [1], [0, 0, 1, 1], [], []>} : vector<2x128xf32>, vector<128x384xf32>, vector<2x384xf32> -> vector<2x384xf32>
    %298 = vector.broadcast %1 : vector<1x384xf32> to vector<2x384xf32>
    %299 = arith.addf %297, %298 : vector<2x384xf32>
    %cst_99 = arith.constant dense<0.000000e+00> : vector<2x384xf32>
    %300 = tpu.matmul %291, %2, %cst_99 {dimension_numbers = #tpu.dot_dimension_numbers<[1], [0], [0], [1], [0, 0, 1, 1], [], []>} : vector<2x128xf32>, vector<128x384xf32>, vector<2x384xf32> -> vector<2x384xf32>
    %301 = vector.broadcast %3 : vector<1x384xf32> to vector<2x384xf32>
    %302 = arith.addf %300, %301 : vector<2x384xf32>
    %303 = vector.extract_strided_slice %299 {offsets = [0, 0], sizes = [2, 128], strides = [1, 1]} : vector<2x384xf32> to vector<2x128xf32>
    %304 = vector.extract_strided_slice %302 {offsets = [0, 0], sizes = [2, 128], strides = [1, 1]} : vector<2x384xf32> to vector<2x128xf32>
    %305 = arith.addf %303, %304 : vector<2x128xf32>
    %cst_100 = arith.constant 0.000000e+00 : f32
    %306 = vector.broadcast %cst_100 : f32 to vector<2x128xf32>
    %307 = arith.subf %306, %305 : vector<2x128xf32>
    %308 = math.exp %307 : vector<2x128xf32>
    %cst_101 = arith.constant 1.000000e+00 : f32
    %309 = vector.broadcast %cst_101 : f32 to vector<2x128xf32>
    %310 = arith.addf %309, %308 : vector<2x128xf32>
    %cst_102 = arith.constant 1.000000e+00 : f32
    %311 = vector.broadcast %cst_102 : f32 to vector<2x128xf32>
    %312 = arith.divf %311, %310 : vector<2x128xf32>
    %313 = vector.extract_strided_slice %299 {offsets = [0, 128], sizes = [2, 128], strides = [1, 1]} : vector<2x384xf32> to vector<2x128xf32>
    %314 = vector.extract_strided_slice %302 {offsets = [0, 128], sizes = [2, 128], strides = [1, 1]} : vector<2x384xf32> to vector<2x128xf32>
    %315 = arith.addf %313, %314 : vector<2x128xf32>
    %cst_103 = arith.constant 0.000000e+00 : f32
    %316 = vector.broadcast %cst_103 : f32 to vector<2x128xf32>
    %317 = arith.subf %316, %315 : vector<2x128xf32>
    %318 = math.exp %317 : vector<2x128xf32>
    %cst_104 = arith.constant 1.000000e+00 : f32
    %319 = vector.broadcast %cst_104 : f32 to vector<2x128xf32>
    %320 = arith.addf %319, %318 : vector<2x128xf32>
    %cst_105 = arith.constant 1.000000e+00 : f32
    %321 = vector.broadcast %cst_105 : f32 to vector<2x128xf32>
    %322 = arith.divf %321, %320 : vector<2x128xf32>
    %323 = vector.extract_strided_slice %299 {offsets = [0, 256], sizes = [2, 128], strides = [1, 1]} : vector<2x384xf32> to vector<2x128xf32>
    %324 = vector.extract_strided_slice %302 {offsets = [0, 256], sizes = [2, 128], strides = [1, 1]} : vector<2x384xf32> to vector<2x128xf32>
    %325 = arith.mulf %312, %324 : vector<2x128xf32>
    %326 = arith.addf %323, %325 : vector<2x128xf32>
    %327 = math.tanh %326 : vector<2x128xf32>
    %cst_106 = arith.constant 1.000000e+00 : f32
    %328 = vector.broadcast %cst_106 : f32 to vector<2x128xf32>
    %329 = arith.subf %328, %322 : vector<2x128xf32>
    %330 = arith.mulf %329, %327 : vector<2x128xf32>
    %331 = arith.mulf %322, %291 : vector<2x128xf32>
    %332 = arith.addf %330, %331 : vector<2x128xf32>
    %cst_107 = arith.constant 7.000000e+00 : f32
    %333 = vector.broadcast %cst_107 : f32 to vector<2x128xf32>
    %334 = arith.cmpf oeq, %5, %333 : vector<2x128xf32>
    %335 = arith.select %334, %332, %294 : vector<2x128xi1>, vector<2x128xf32>
    %c0_108 = arith.constant 0 : index
    %c0_109 = arith.constant 0 : index
    %c0_110 = arith.constant 0 : index
    %336 = vector.load %arg7[%c0_108, %c0_109, %c0_110] : memref<1x2x128xf32, #tpu.memory_space<vmem>>, vector<1x2x128xf32>
    %337 = vector.shape_cast %336 : vector<1x2x128xf32> to vector<2x128xf32>
    %338 = vector.shape_cast %335 : vector<2x128xf32> to vector<1x2x128xf32>
    tpu.vector_store %arg7[%c0_108, %c0_109, %c0_110], %338 {strides = array<i32>} : memref<1x2x128xf32, #tpu.memory_space<vmem>>, vector<1x2x128xf32>,
    return
  }
  func.func @transform_0(%arg0: i32) -> (i32, i32, i32) {
    %c0_i32 = arith.constant 0 : i32
    %c0_i32_0 = arith.constant 0 : i32
    %c0_i32_1 = arith.constant 0 : i32
    return %arg0, %c0_i32, %c0_i32_0 : i32, i32, i32
  }
  func.func @transform_1(%arg0: i32) -> (i32, i32) {
    %c0_i32 = arith.constant 0 : i32
    %c0_i32_0 = arith.constant 0 : i32
    %c0_i32_1 = arith.constant 0 : i32
    return %c0_i32, %c0_i32_0 : i32, i32
  }
  func.func @transform_2(%arg0: i32) -> (i32, i32) {
    %c0_i32 = arith.constant 0 : i32
    %c0_i32_0 = arith.constant 0 : i32
    %c0_i32_1 = arith.constant 0 : i32
    return %c0_i32, %c0_i32_0 : i32, i32
  }
  func.func @transform_3(%arg0: i32) -> (i32, i32) {
    %c0_i32 = arith.constant 0 : i32
    %c0_i32_0 = arith.constant 0 : i32
    %c0_i32_1 = arith.constant 0 : i32
    return %c0_i32, %c0_i32_0 : i32, i32
  }
  func.func @transform_4(%arg0: i32) -> (i32, i32) {
    %c0_i32 = arith.constant 0 : i32
    %c0_i32_0 = arith.constant 0 : i32
    %c0_i32_1 = arith.constant 0 : i32
    return %c0_i32, %c0_i32_0 : i32, i32
  }
  func.func @transform_5(%arg0: i32) -> (i32, i32, i32) {
    %c0_i32 = arith.constant 0 : i32
    %c0_i32_0 = arith.constant 0 : i32
    %c0_i32_1 = arith.constant 0 : i32
    return %arg0, %c0_i32, %c0_i32_0 : i32, i32, i32
  }
  func.func @transform_6(%arg0: i32) -> (i32, i32, i32) {
    %c0_i32 = arith.constant 0 : i32
    %c0_i32_0 = arith.constant 0 : i32
    %c0_i32_1 = arith.constant 0 : i32
    return %arg0, %c0_i32, %c0_i32_0 : i32, i32, i32
  }
}

module attributes {stable_mosaic.version = 11 : i64} {
  func.func @_heads_kernel(%arg0: memref<2x128xf32, #tpu.memory_space<vmem>>, %arg1: memref<2x128xf32, #tpu.memory_space<vmem>>, %arg2: memref<2x7xf32, #tpu.memory_space<vmem>>, %arg3: memref<256x256xf32, #tpu.memory_space<vmem>>, %arg4: memref<1x256xf32, #tpu.memory_space<vmem>>, %arg5: memref<256x7xf32, #tpu.memory_space<vmem>>, %arg6: memref<1x7xf32, #tpu.memory_space<vmem>>, %arg7: memref<135x256xf32, #tpu.memory_space<vmem>>, %arg8: memref<1x256xf32, #tpu.memory_space<vmem>>, %arg9: memref<256x128xf32, #tpu.memory_space<vmem>>, %arg10: memref<1x128xf32, #tpu.memory_space<vmem>>, %arg11: memref<2x7xf32, #tpu.memory_space<vmem>>, %arg12: memref<2x128xf32, #tpu.memory_space<vmem>>) attributes {dimension_semantics = [], scalar_prefetch = 0 : i64, scratch_operands = 0 : i64, tpu.core_type = #tpu.core_type<tc>} {
    %c0 = arith.constant 0 : index
    %c0_0 = arith.constant 0 : index
    %0 = vector.load %arg0[%c0, %c0_0] : memref<2x128xf32, #tpu.memory_space<vmem>>, vector<2x128xf32>
    %c0_1 = arith.constant 0 : index
    %c0_2 = arith.constant 0 : index
    %1 = vector.load %arg1[%c0_1, %c0_2] : memref<2x128xf32, #tpu.memory_space<vmem>>, vector<2x128xf32>
    %c0_3 = arith.constant 0 : index
    %c0_4 = arith.constant 0 : index
    %2 = vector.load %arg3[%c0_3, %c0_4] : memref<256x256xf32, #tpu.memory_space<vmem>>, vector<256x256xf32>
    %3 = vector.extract_strided_slice %2 {offsets = [0, 0], sizes = [128, 256], strides = [1, 1]} : vector<256x256xf32> to vector<128x256xf32>
    %cst = arith.constant dense<0.000000e+00> : vector<2x256xf32>
    %4 = tpu.matmul %0, %3, %cst {dimension_numbers = #tpu.dot_dimension_numbers<[1], [0], [0], [1], [0, 0, 1, 1], [], []>} : vector<2x128xf32>, vector<128x256xf32>, vector<2x256xf32> -> vector<2x256xf32>
    %5 = vector.extract_strided_slice %2 {offsets = [128, 0], sizes = [128, 256], strides = [1, 1]} : vector<256x256xf32> to vector<128x256xf32>
    %cst_5 = arith.constant dense<0.000000e+00> : vector<2x256xf32>
    %6 = tpu.matmul %1, %5, %cst_5 {dimension_numbers = #tpu.dot_dimension_numbers<[1], [0], [0], [1], [0, 0, 1, 1], [], []>} : vector<2x128xf32>, vector<128x256xf32>, vector<2x256xf32> -> vector<2x256xf32>
    %7 = arith.addf %4, %6 : vector<2x256xf32>
    %c0_6 = arith.constant 0 : index
    %c0_7 = arith.constant 0 : index
    %8 = vector.load %arg4[%c0_6, %c0_7] : memref<1x256xf32, #tpu.memory_space<vmem>>, vector<1x256xf32>
    %9 = vector.broadcast %8 : vector<1x256xf32> to vector<2x256xf32>
    %10 = arith.addf %7, %9 : vector<2x256xf32>
    %c0_8 = arith.constant 0 : index
    %c0_9 = arith.constant 0 : index
    %11 = vector.load %arg5[%c0_8, %c0_9] : memref<256x7xf32, #tpu.memory_space<vmem>>, vector<256x7xf32>
    %cst_10 = arith.constant dense<0.000000e+00> : vector<2x7xf32>
    %12 = tpu.matmul %10, %11, %cst_10 {dimension_numbers = #tpu.dot_dimension_numbers<[1], [0], [0], [1], [0, 0, 1, 1], [], []>} : vector<2x256xf32>, vector<256x7xf32>, vector<2x7xf32> -> vector<2x7xf32>
    %c0_11 = arith.constant 0 : index
    %c0_12 = arith.constant 0 : index
    %13 = vector.load %arg6[%c0_11, %c0_12] : memref<1x7xf32, #tpu.memory_space<vmem>>, vector<1x7xf32>
    %14 = vector.broadcast %13 : vector<1x7xf32> to vector<2x7xf32>
    %15 = arith.addf %12, %14 : vector<2x7xf32>
    %c0_13 = arith.constant 0 : index
    %c0_14 = arith.constant 0 : index
    %16 = vector.load %arg11[%c0_13, %c0_14] : memref<2x7xf32, #tpu.memory_space<vmem>>, vector<2x7xf32>
    tpu.vector_store %arg11[%c0_13, %c0_14], %15 {strides = array<i32>} : memref<2x7xf32, #tpu.memory_space<vmem>>, vector<2x7xf32>,
    %c0_15 = arith.constant 0 : index
    %c0_16 = arith.constant 0 : index
    %17 = vector.load %arg7[%c0_15, %c0_16] : memref<135x256xf32, #tpu.memory_space<vmem>>, vector<135x256xf32>
    %18 = vector.extract_strided_slice %17 {offsets = [0, 0], sizes = [128, 256], strides = [1, 1]} : vector<135x256xf32> to vector<128x256xf32>
    %cst_17 = arith.constant dense<0.000000e+00> : vector<2x256xf32>
    %19 = tpu.matmul %0, %18, %cst_17 {dimension_numbers = #tpu.dot_dimension_numbers<[1], [0], [0], [1], [0, 0, 1, 1], [], []>} : vector<2x128xf32>, vector<128x256xf32>, vector<2x256xf32> -> vector<2x256xf32>
    %c0_18 = arith.constant 0 : index
    %c0_19 = arith.constant 0 : index
    %20 = vector.load %arg2[%c0_18, %c0_19] : memref<2x7xf32, #tpu.memory_space<vmem>>, vector<2x7xf32>
    %21 = vector.extract_strided_slice %17 {offsets = [128, 0], sizes = [7, 256], strides = [1, 1]} : vector<135x256xf32> to vector<7x256xf32>
    %cst_20 = arith.constant dense<0.000000e+00> : vector<2x256xf32>
    %22 = tpu.matmul %20, %21, %cst_20 {dimension_numbers = #tpu.dot_dimension_numbers<[1], [0], [0], [1], [0, 0, 1, 1], [], []>} : vector<2x7xf32>, vector<7x256xf32>, vector<2x256xf32> -> vector<2x256xf32>
    %23 = arith.addf %19, %22 : vector<2x256xf32>
    %c0_21 = arith.constant 0 : index
    %c0_22 = arith.constant 0 : index
    %24 = vector.load %arg8[%c0_21, %c0_22] : memref<1x256xf32, #tpu.memory_space<vmem>>, vector<1x256xf32>
    %25 = vector.broadcast %24 : vector<1x256xf32> to vector<2x256xf32>
    %26 = arith.addf %23, %25 : vector<2x256xf32>
    %c0_23 = arith.constant 0 : index
    %c0_24 = arith.constant 0 : index
    %27 = vector.load %arg9[%c0_23, %c0_24] : memref<256x128xf32, #tpu.memory_space<vmem>>, vector<256x128xf32>
    %cst_25 = arith.constant dense<0.000000e+00> : vector<2x128xf32>
    %28 = tpu.matmul %26, %27, %cst_25 {dimension_numbers = #tpu.dot_dimension_numbers<[1], [0], [0], [1], [0, 0, 1, 1], [], []>} : vector<2x256xf32>, vector<256x128xf32>, vector<2x128xf32> -> vector<2x128xf32>
    %c0_26 = arith.constant 0 : index
    %c0_27 = arith.constant 0 : index
    %29 = vector.load %arg10[%c0_26, %c0_27] : memref<1x128xf32, #tpu.memory_space<vmem>>, vector<1x128xf32>
    %30 = vector.broadcast %29 : vector<1x128xf32> to vector<2x128xf32>
    %31 = arith.addf %28, %30 : vector<2x128xf32>
    %c0_28 = arith.constant 0 : index
    %c0_29 = arith.constant 0 : index
    %32 = vector.load %arg12[%c0_28, %c0_29] : memref<2x128xf32, #tpu.memory_space<vmem>>, vector<2x128xf32>
    tpu.vector_store %arg12[%c0_28, %c0_29], %31 {strides = array<i32>} : memref<2x128xf32, #tpu.memory_space<vmem>>, vector<2x128xf32>,
    return
  }
}

</mosaic_0001>

<llo_original>
// kernel: state_action_predictor.9
$region0: #{state_action_predictor.9}
  #allocation0 [shape = 'u32[]', space=smem, size = 0x4, offset = 0x4, fixed_abs, tag = 'smem constant byte address 0x4 - core index']
  #allocation1 [shape = 'u32[72,128]{1,0:T(1,128)}', space=vmem, size = 0x9000, scoped, tag = 'internal scratch']
  %s0 = inlined_call_operand.vmem [shape: f32[256,12], index: 0, kind: input, shape index: {}]
  %s1 = inlined_call_operand.vmem [shape: f32[12,128], index: 1, kind: input, shape index: {}]
  %s2 = inlined_call_operand.vmem [shape: f32[1,128], index: 2, kind: input, shape index: {}]
  %s3 = inlined_call_operand.vmem [shape: f32[1,128], index: 3, kind: input, shape index: {}]
  %s4 = inlined_call_operand.vmem [shape: f32[1,128], index: 4, kind: input, shape index: {}]
  %s5 = inlined_call_operand.vmem [shape: f32[256,128], index: 5, kind: output, shape index: {}]
  %s6 = sld [smem:[#allocation0]]
  $region53: #{state_action_predictor.9} parent=0
    _
  %s8 = ssub.s32 1, %s6
  %s9 = scalar_select 0, %s8, %s6
  loop: start=0, step=1, limit=4
  $region2: #{state_action_predictor.9} parent=0 // loop_pre_header
    _
  $region3: #{state_action_predictor.9} parent=0 // loop_header
    %s11 = sphi 0, %s15
    %p12 = scmp.ge.s32.totalorder %s11, 4
    %s21 = sphi 0, %s23
    %s24 = sphi 0, %s21
    %s25 = sphi 0, %s24
    %s41 = sphi 0, %s25
    %s45 = sphi 0, %s45
    %s47 = sphi 0, %s45
    %s48 = sphi 0, %s47
    %s62 = sphi 0, %s48
    %s66 = sphi 0, %s66
    %s68 = sphi 0, %s66
    %s69 = sphi 0, %s68
    %s83 = sphi 0, %s69
    %s87 = sphi 0, %s87
    %s89 = sphi 0, %s87
    %s90 = sphi 0, %s89
    %s104 = sphi 0, %s90
    %s108 = sphi 0, %s108
    %s110 = sphi 0, %s108
    %s111 = sphi 0, %s110
    %s125 = sphi 0, %s111
    %s131 = sphi 0, %s133
    %s134 = sphi 0, %s131
    %s135 = sphi 0, %s134
    %s151 = sphi 0, %s135
  $region4: #{state_action_predictor.9} parent=0 // loop_header_branch
    %14 = sbr.rel (%p12) target = $region8
  $region5: #{state_action_predictor.9} parent=0 // loop_body
    %s16 = ssub.s32 %s11, 1
    %s17 = ssub.s32 %s11, 2
    %s18 = sadd.s32 %s11, 1
    %s19 = ssub.s32 %s11, %s18
    %p20 = scmp.eq.s32.totalorder %s19, 0
    %s22 = sadd.s32 %s21, 1
    %s23 = scalar_select %p20, %s21, %s22
    %p26 = pneg %p20
    %p27 = scmp.eq.s32.totalorder %s11, 1
    %p28 = por %p26, %p27
    %p29 = scmp.ne.s32.totalorder %s21, %s24
    %p30 = scmp.eq.s32.totalorder %s11, 0
    %p31 = por %p29, %p30
    %p32 = scmp.ne.s32.totalorder %s21, %s24
    %p33 = scmp.eq.s32.totalorder %s16, 1
    %p34 = por %p32, %p33
    %p35 = scmp.ne.s32.totalorder %s24, %s25
    %p36 = scmp.eq.s32.totalorder %s16, 0
    %p37 = por %p35, %p36
    %p38 = scmp.ne.s32.totalorder %s24, %s25
    %p39 = scmp.eq.s32.totalorder %s17, 1
    %p40 = por %p38, %p39
    %p42 = scmp.ne.s32.totalorder %s25, %s41
    %p43 = scmp.eq.s32.totalorder %s17, 0
    %p44 = por %p42, %p43
    %s46 = sadd.s32 %s45, 1
    %p49 = scmp.eq.s32.totalorder %s11, 1
    %p50 = scmp.ne.s32.totalorder %s45, %s47
    %p51 = scmp.eq.s32.totalorder %s11, 0
    %p52 = por %p50, %p51
    %p53 = scmp.ne.s32.totalorder %s45, %s47
    %p54 = scmp.eq.s32.totalorder %s16, 1
    %p55 = por %p53, %p54
    %p56 = scmp.ne.s32.totalorder %s47, %s48
    %p57 = scmp.eq.s32.totalorder %s16, 0
    %p58 = por %p56, %p57
    %p59 = scmp.ne.s32.totalorder %s47, %s48
    %p60 = scmp.eq.s32.totalorder %s17, 1
    %p61 = por %p59, %p60
    %p63 = scmp.ne.s32.totalorder %s48, %s62
    %p64 = scmp.eq.s32.totalorder %s17, 0
    %p65 = por %p63, %p64
    %s67 = sadd.s32 %s66, 1
    %p70 = scmp.eq.s32.totalorder %s11, 1
    %p71 = scmp.ne.s32.totalorder %s66, %s68
    %p72 = scmp.eq.s32.totalorder %s11, 0
    %p73 = por %p71, %p72
    %p74 = scmp.ne.s32.totalorder %s66, %s68
    %p75 = scmp.eq.s32.totalorder %s16, 1
    %p76 = por %p74, %p75
    %p77 = scmp.ne.s32.totalorder %s68, %s69
    %p78 = scmp.eq.s32.totalorder %s16, 0
    %p79 = por %p77, %p78
    %p80 = scmp.ne.s32.totalorder %s68, %s69
    %p81 = scmp.eq.s32.totalorder %s17, 1
    %p82 = por %p80, %p81
    %p84 = scmp.ne.s32.totalorder %s69, %s83
    %p85 = scmp.eq.s32.totalorder %s17, 0
    %p86 = por %p84, %p85
    %s88 = sadd.s32 %s87, 1
    %p91 = scmp.eq.s32.totalorder %s11, 1
    %p92 = scmp.ne.s32.totalorder %s87, %s89
    %p93 = scmp.eq.s32.totalorder %s11, 0
    %p94 = por %p92, %p93
    %p95 = scmp.ne.s32.totalorder %s87, %s89
    %p96 = scmp.eq.s32.totalorder %s16, 1
    %p97 = por %p95, %p96
    %p98 = scmp.ne.s32.totalorder %s89, %s90
    %p99 = scmp.eq.s32.totalorder %s16, 0
    %p100 = por %p98, %p99
    %p101 = scmp.ne.s32.totalorder %s89, %s90
    %p102 = scmp.eq.s32.totalorder %s17, 1
    %p103 = por %p101, %p102
    %p105 = scmp.ne.s32.totalorder %s90, %s104
    %p106 = scmp.eq.s32.totalorder %s17, 0
    %p107 = por %p105, %p106
    %s109 = sadd.s32 %s108, 1
    %p112 = scmp.eq.s32.totalorder %s11, 1
    %p113 = scmp.ne.s32.totalorder %s108, %s110
    %p114 = scmp.eq.s32.totalorder %s11, 0
    %p115 = por %p113, %p114
    %p116 = scmp.ne.s32.totalorder %s108, %s110
    %p117 = scmp.eq.s32.totalorder %s16, 1
    %p118 = por %p116, %p117
    %p119 = scmp.ne.s32.totalorder %s110, %s111
    %p120 = scmp.eq.s32.totalorder %s16, 0
    %p121 = por %p119, %p120
    %p122 = scmp.ne.s32.totalorder %s110, %s111
    %p123 = scmp.eq.s32.totalorder %s17, 1
    %p124 = por %p122, %p123
    %p126 = scmp.ne.s32.totalorder %s111, %s125
    %p127 = scmp.eq.s32.totalorder %s17, 0
    %p128 = por %p126, %p127
    %s129 = ssub.s32 %s11, %s18
    %p130 = scmp.eq.s32.totalorder %s129, 0
    %s132 = sadd.s32 %s131, 1
    %s133 = scalar_select %p130, %s131, %s132
    %p136 = pneg %p130
    %p137 = scmp.eq.s32.totalorder %s11, 1
    %p138 = por %p136, %p137
    %p139 = scmp.ne.s32.totalorder %s131, %s134
    %p140 = scmp.eq.s32.totalorder %s11, 0
    %p141 = por %p139, %p140
    %p142 = scmp.ne.s32.totalorder %s131, %s134
    %p143 = scmp.eq.s32.totalorder %s16, 1
    %p144 = por %p142, %p143
    %p145 = scmp.ne.s32.totalorder %s134, %s135
    %p146 = scmp.eq.s32.totalorder %s16, 0
    %p147 = por %p145, %p146
    %p148 = scmp.ne.s32.totalorder %s134, %s135
    %p149 = scmp.eq.s32.totalorder %s17, 1
    %p150 = por %p148, %p149
    %p152 = scmp.ne.s32.totalorder %s135, %s151
    %p153 = scmp.eq.s32.totalorder %s17, 0
    %p154 = por %p152, %p153
    %p155 = scmp.le.s32.totalorder 1, %s11
    %p156 = scmp.lt.s32.totalorder %s11, 3
    %p157 = pnand %p155, %p156
    %p158 = pneg %p157
    // Predicated region
    $region9: #{state_action_predictor.9} parent=5 // pred_check
      _
    $region10: #{state_action_predictor.9} parent=5 // pred_check_branch
      %160 = sbr.rel (%p157) target = $region12
    $region11: #{state_action_predictor.9} parent=5 // pred_region
      %s161 = ssub.s32 %s11, 1
      // Predicated region
      $region13: #{state_action_predictor.9} parent=11 // pred_check
        %p162 = pneg %p58
      $region14: #{state_action_predictor.9} parent=11 // pred_check_branch
        %164 = sbr.rel (%p162) target = $region16
      $region15: #{state_action_predictor.9} parent=11 // pred_region
        _
      $region16: #{state_action_predictor.9} parent=11 // pred_fallthru
        _
      // Predicated region
      $region17: #{state_action_predictor.9} parent=11 // pred_check
        %p165 = pneg %p79
      $region18: #{state_action_predictor.9} parent=11 // pred_check_branch
        %167 = sbr.rel (%p165) target = $region20
      $region19: #{state_action_predictor.9} parent=11 // pred_region
        _
      $region20: #{state_action_predictor.9} parent=11 // pred_fallthru
        _
      // Predicated region
      $region21: #{state_action_predictor.9} parent=11 // pred_check
        %p168 = pneg %p100
      $region22: #{state_action_predictor.9} parent=11 // pred_check_branch
        %170 = sbr.rel (%p168) target = $region24
      $region23: #{state_action_predictor.9} parent=11 // pred_region
        _
      $region24: #{state_action_predictor.9} parent=11 // pred_fallthru
        _
      // Predicated region
      $region25: #{state_action_predictor.9} parent=11 // pred_check
        %p171 = pneg %p121
      $region26: #{state_action_predictor.9} parent=11 // pred_check_branch
        %173 = sbr.rel (%p171) target = $region28
      $region27: #{state_action_predictor.9} parent=11 // pred_region
        _
      $region28: #{state_action_predictor.9} parent=11 // pred_fallthru
        _
    $region12: #{state_action_predictor.9} parent=5 // pred_fallthru
      _
    %p174 = scmp.lt.s32.totalorder %s11, 2
    // Predicated region
    $region29: #{state_action_predictor.9} parent=5 // pred_check
      %p175 = pneg %p174
    $region30: #{state_action_predictor.9} parent=5 // pred_check_branch
      %177 = sbr.rel (%p175) target = $region32
    $region31: #{state_action_predictor.9} parent=5 // pred_region
      // Predicated region
      $region33: #{state_action_predictor.9} parent=31 // pred_check
        %p178 = pneg %p31
      $region34: #{state_action_predictor.9} parent=31 // pred_check_branch
        %180 = sbr.rel (%p178) target = $region36
      $region35: #{state_action_predictor.9} parent=31 // pred_region
        %s181 = smul.u32 16, %s11
        %p182 = scmp.lt.s32.totalorder %s181, 31
        %s183 = scalar_select %p182, %s181, 31
        %s184 = smul.addr %s183, 8
        %s185 = scalar_lea.vmem %s0, %s184
        %s186 = smul.u32 16, %s11
      $region36: #{state_action_predictor.9} parent=31 // pred_fallthru
        _
    $region32: #{state_action_predictor.9} parent=5 // pred_fallthru
      _
    %p187 = scmp.le.s32.totalorder 1, %s11
    %p188 = scmp.lt.s32.totalorder %s11, 3
    %p189 = pnand %p187, %p188
    %p190 = pneg %p189
    // Predicated region
    $region37: #{state_action_predictor.9} parent=5 // pred_check
      _
    $region38: #{state_action_predictor.9} parent=5 // pred_check_branch
      %192 = sbr.rel (%p189) target = $region40
    $region39: #{state_action_predictor.9} parent=5 // pred_region
      %s193 = ssub.s32 %s11, 1
      %s194 = smul.u32 16, %s16
      %p195 = scmp.lt.s32.totalorder %s194, 31
      %s196 = scalar_select %p195, %s194, 31
      %s197 = smul.addr %s196, 8
      %s198 = scalar_lea.vmem %s0, %s197
      %p199 = pneg %p37
      %p200 = pneg %p34
      %p201 = pneg %p58
      %p202 = pneg %p55
      %p203 = pneg %p79
      %p204 = pneg %p76
      %p205 = pneg %p100
      %p206 = pneg %p97
      %p207 = pneg %p121
      %p208 = pneg %p118
      %p209 = pneg %p147
      %p210 = pneg %p144
      %s211 = smul.u32 16, %s16
      %p212 = scmp.lt.s32.totalorder %s211, 31
      %s213 = scalar_select %p212, %s211, 31
      %s214 = smul.addr %s213, 8
      %s215 = scalar_lea.vmem %s5, %s214
      %s216 = smul.u32 16, %s16
      %p217 = scmp.lt.s32.totalorder %s216, 31
      %s218 = scalar_select %p217, %s216, 31
      %s219 = smul.addr %s218, 8
      %s220 = scalar_lea.vmem %s0, %s219
      %s221 = smul.u32 16, %s16
      %s222 = smul.u32 16, %s16
      %p223 = scmp.lt.s32.totalorder %s222, 31
      %s224 = scalar_select %p223, %s222, 31
      %s225 = smul.addr %s224, 8
      %s226 = scalar_lea.vmem %s5, %s225
      %s227 = smul.u32 16, %s16
      %v228 = vld [vmem:[%s220] sm:$0xff]
      %v229 = vld [vmem:[%s220 + $0x8] sm:$0xff]
      %v230 = vld [vmem:[%s220 + $0x10] sm:$0xff]
      %v231 = vld [vmem:[%s220 + $0x18] sm:$0xff]
      %v232 = vld [vmem:[%s220 + $0x20] sm:$0xff]
      %v233 = vld [vmem:[%s220 + $0x28] sm:$0xff]
      %v234 = vld [vmem:[%s220 + $0x30] sm:$0xff]
      %v235 = vld [vmem:[%s220 + $0x38] sm:$0xff]
      %v236 = vld [vmem:[%s220 + $0x40] sm:$0xff]
      %v237 = vld [vmem:[%s220 + $0x48] sm:$0xff]
      %v238 = vld [vmem:[%s220 + $0x50] sm:$0xff]
      %v239 = vld [vmem:[%s220 + $0x58] sm:$0xff]
      %v240 = vld [vmem:[%s220 + $0x60] sm:$0xff]
      %v241 = vld [vmem:[%s220 + $0x68] sm:$0xff]
      %v242 = vld [vmem:[%s220 + $0x70] sm:$0xff]
      %v243 = vld [vmem:[%s220 + $0x78] sm:$0xff]
      %v244 = vld [vmem:[%s1] sm:$0xff]
      %v245 = vld [vmem:[%s1 + $0x8] sm:$0xf]
      %v246 = vld [vmem:[%s2] sm:$0x1]
      %v248 = vperm.slane %v246, 0
      %vm250 = vcmask 97280
      %v252 = vsel %vm250, %v228, 0
      %v255 = vsel %vm250, %v229, 0
      %v258 = vsel %vm250, %v230, 0
      %v261 = vsel %vm250, %v231, 0
      %v264 = vsel %vm250, %v232, 0
      %v267 = vsel %vm250, %v233, 0
      %v270 = vsel %vm250, %v234, 0
      %v273 = vsel %vm250, %v235, 0
      %v276 = vsel %vm250, %v236, 0
      %v279 = vsel %vm250, %v237, 0
      %v282 = vsel %vm250, %v238, 0
      %v285 = vsel %vm250, %v239, 0
      %v288 = vsel %vm250, %v240, 0
      %v291 = vsel %vm250, %v241, 0
      %v294 = vsel %vm250, %v242, 0
      %v297 = vsel %vm250, %v243, 0
      %vm299 = vcmask 1043456
      %v301 = vsel %vm299, %v245, 0
      %303 = vmatpush.msra.mxu0 0.0
      %304 = vmatpush.msra.mxu0 0.0
      %305 = vmatpush.msra.mxu0 0.0
      %306 = vmatpush.msra.mxu0 0.0
      %307 = vmatpush.msra.mxu0 0.0
      %308 = vmatpush.msra.mxu0 0.0
      %309 = vmatpush.msra.mxu0 0.0
      %310 = vmatpush.msra.mxu0 0.0
      %311 = vmatpush.msra.mxu0 0.0
      %312 = vmatpush.msra.mxu0 0.0
      %313 = vmatpush.msra.mxu0 0.0
      %314 = vmatpush.msra.mxu0 0.0
      %315 = vmatpush.msra.mxu0 0.0
      %316 = vmatpush.msra.mxu0 0.0
      %317 = vmatpush.msra.mxu0 %v301
      %318 = vmatpush.msra.mxu0 %v244
      %319 = vmatmul.f32.gmra.mxu0 %v252
      %v320 = vpop.f32.mrf.mxu0
      %v321 = vadd.f32 %v248, %v320
      %322 = vmatmul.f32.gmra.mxu0 %v255
      %v323 = vpop.f32.mrf.mxu0
      %v324 = vadd.f32 %v248, %v323
      %325 = vmatmul.f32.gmra.mxu0 %v258
      %v326 = vpop.f32.mrf.mxu0
      %v327 = vadd.f32 %v248, %v326
      %328 = vmatmul.f32.gmra.mxu0 %v261
      %v329 = vpop.f32.mrf.mxu0
      %v330 = vadd.f32 %v248, %v329
      %331 = vmatmul.f32.gmra.mxu0 %v264
      %v332 = vpop.f32.mrf.mxu0
      %v333 = vadd.f32 %v248, %v332
      %334 = vmatmul.f32.gmra.mxu0 %v267
      %v335 = vpop.f32.mrf.mxu0
      %v336 = vadd.f32 %v248, %v335
      %337 = vmatmul.f32.gmra.mxu0 %v270
      %v338 = vpop.f32.mrf.mxu0
      %v339 = vadd.f32 %v248, %v338
      %340 = vmatmul.f32.gmra.mxu0 %v273
      %v341 = vpop.f32.mrf.mxu0
      %v342 = vadd.f32 %v248, %v341
      %343 = vmatmul.f32.gmra.mxu0 %v276
      %v344 = vpop.f32.mrf.mxu0
      %v345 = vadd.f32 %v248, %v344
      %346 = vmatmul.f32.gmra.mxu0 %v279
      %v347 = vpop.f32.mrf.mxu0
      %v348 = vadd.f32 %v248, %v347
      %349 = vmatmul.f32.gmra.mxu0 %v282
      %v350 = vpop.f32.mrf.mxu0
      %v351 = vadd.f32 %v248, %v350
      %352 = vmatmul.f32.gmra.mxu0 %v285
      %v353 = vpop.f32.mrf.mxu0
      %v354 = vadd.f32 %v248, %v353
      %355 = vmatmul.f32.gmra.mxu0 %v288
      %v356 = vpop.f32.mrf.mxu0
      %v357 = vadd.f32 %v248, %v356
      %358 = vmatmul.f32.gmra.mxu0 %v291
      %v359 = vpop.f32.mrf.mxu0
      %v360 = vadd.f32 %v248, %v359
      %361 = vmatmul.f32.gmra.mxu0 %v294
      %v362 = vpop.f32.mrf.mxu0
      %v363 = vadd.f32 %v248, %v362
      %364 = vmatmul.f32.gmra.mxu0 %v297
      %v365 = vpop.f32.mrf.mxu0
      %v366 = vadd.f32 %v248, %v365
      %367 = vdwg.mxu0
      %v368 = vld [vmem:[%s3] sm:$0x1]
      %v369 = vld [vmem:[%s4] sm:$0x1]
      %370 = vmatpush.msra.mxu0 %v366
      %371 = vmatpush.msra.mxu0 %v363
      %372 = vmatpush.msra.mxu0 %v360
      %373 = vmatpush.msra.mxu0 %v357
      %374 = vmatpush.msra.mxu0 %v354
      %375 = vmatpush.msra.mxu0 %v351
      %376 = vmatpush.msra.mxu0 %v348
      %377 = vmatpush.msra.mxu0 %v345
      %378 = vmatpush.msra.mxu0 %v342
      %379 = vmatpush.msra.mxu0 %v339
      %380 = vmatpush.msra.mxu0 %v336
      %381 = vmatpush.msra.mxu0 %v333
      %382 = vmatpush.msra.mxu0 %v330
      %383 = vmatpush.msra.mxu0 %v327
      %384 = vmatpush.msra.mxu0 %v324
      %385 = vmatpush.msra.mxu0 %v321
      %386 = vmatmul.f32.gmra.mxu0 1.0
      %v387 = vpop.f32.mrf.mxu0
      %v388 = vadd.f32 0.0, %v387
      %389 = vdwg.mxu0
      %v390 = vmul.f32 %v388, 0.0078125
      %v391 = vperm.slane %v390, 0
      %v392 = vsub.f32 %v321, %v391
      %v393 = vsub.f32 %v324, %v391
      %v394 = vsub.f32 %v327, %v391
      %v395 = vsub.f32 %v330, %v391
      %v396 = vsub.f32 %v333, %v391
      %v397 = vsub.f32 %v336, %v391
      %v398 = vsub.f32 %v339, %v391
      %v399 = vsub.f32 %v342, %v391
      %v400 = vsub.f32 %v345, %v391
      %v401 = vsub.f32 %v348, %v391
      %v402 = vsub.f32 %v351, %v391
      %v403 = vsub.f32 %v354, %v391
      %v404 = vsub.f32 %v357, %v391
      %v405 = vsub.f32 %v360, %v391
      %v406 = vsub.f32 %v363, %v391
      %v407 = vsub.f32 %v366, %v391
      %v408 = vmul.f32 %v392, %v392
      %v409 = vmul.f32 %v393, %v393
      %v410 = vmul.f32 %v394, %v394
      %v411 = vmul.f32 %v395, %v395
      %v412 = vmul.f32 %v396, %v396
      %v413 = vmul.f32 %v397, %v397
      %v414 = vmul.f32 %v398, %v398
      %v415 = vmul.f32 %v399, %v399
      %v416 = vmul.f32 %v400, %v400
      %v417 = vmul.f32 %v401, %v401
      %v418 = vmul.f32 %v402, %v402
      %v419 = vmul.f32 %v403, %v403
      %v420 = vmul.f32 %v404, %v404
      %v421 = vmul.f32 %v405, %v405
      %v422 = vmul.f32 %v406, %v406
      %v423 = vmul.f32 %v407, %v407
      %424 = vmatpush.msra.mxu0 %v423
      %425 = vmatpush.msra.mxu0 %v422
      %426 = vmatpush.msra.mxu0 %v421
      %427 = vmatpush.msra.mxu0 %v420
      %428 = vmatpush.msra.mxu0 %v419
      %429 = vmatpush.msra.mxu0 %v418
      %430 = vmatpush.msra.mxu0 %v417
      %431 = vmatpush.msra.mxu0 %v416
      %432 = vmatpush.msra.mxu0 %v415
      %433 = vmatpush.msra.mxu0 %v414
      %434 = vmatpush.msra.mxu0 %v413
      %435 = vmatpush.msra.mxu0 %v412
      %436 = vmatpush.msra.mxu0 %v411
      %437 = vmatpush.msra.mxu0 %v410
      %438 = vmatpush.msra.mxu0 %v409
      %439 = vmatpush.msra.mxu0 %v408
      %440 = vmatmul.f32.gmra.mxu0 1.0
      %v441 = vpop.f32.mrf.mxu0
      %v442 = vadd.f32 0.0, %v441
      %443 = vdwg.mxu0
      %v444 = vmul.f32 %v442, 0.0078125
      %v445 = vadd.f32 %v444, 1e-05
      %v446 = vrsqrt.pop %v445
      %v447 = vmul.f32 %v446, %v445
      %v448 = vmul.f32 %v447, %v446
      %v449 = vmul.f32 0.5, %v448
      %v450 = vsub.f32 1.5, %v449
      %v451 = vmul.f32 %v446, %v450
      %vm452 = vweird.f32 %v445
      %vm453 = vweird.f32 %v446
      %vm454 = vmor %vm452, %vm453
      %v455 = vsel %vm454, %v446, %v451
      %v456 = vperm.slane %v455, 0
      %v457 = vmul.f32 %v392, %v456
      %v458 = vmul.f32 %v393, %v456
      %v459 = vmul.f32 %v394, %v456
      %v460 = vmul.f32 %v395, %v456
      %v461 = vmul.f32 %v396, %v456
      %v462 = vmul.f32 %v397, %v456
      %v463 = vmul.f32 %v398, %v456
      %v464 = vmul.f32 %v399, %v456
      %v465 = vmul.f32 %v400, %v456
      %v466 = vmul.f32 %v401, %v456
      %v467 = vmul.f32 %v402, %v456
      %v468 = vmul.f32 %v403, %v456
      %v469 = vmul.f32 %v404, %v456
      %v470 = vmul.f32 %v405, %v456
      %v471 = vmul.f32 %v406, %v456
      %v472 = vmul.f32 %v407, %v456
      %v474 = vperm.slane %v368, 0
      %v476 = vmul.f32 %v457, %v474
      %v477 = vmul.f32 %v458, %v474
      %v478 = vmul.f32 %v459, %v474
      %v479 = vmul.f32 %v460, %v474
      %v480 = vmul.f32 %v461, %v474
      %v481 = vmul.f32 %v462, %v474
      %v482 = vmul.f32 %v463, %v474
      %v483 = vmul.f32 %v464, %v474
      %v484 = vmul.f32 %v465, %v474
      %v485 = vmul.f32 %v466, %v474
      %v486 = vmul.f32 %v467, %v474
      %v487 = vmul.f32 %v468, %v474
      %v488 = vmul.f32 %v469, %v474
      %v489 = vmul.f32 %v470, %v474
      %v490 = vmul.f32 %v471, %v474
      %v491 = vmul.f32 %v472, %v474
      %v493 = vperm.slane %v369, 0
      %v495 = vadd.f32 %v476, %v493
      %v496 = vadd.f32 %v477, %v493
      %v497 = vadd.f32 %v478, %v493
      %v498 = vadd.f32 %v479, %v493
      %v499 = vadd.f32 %v480, %v493
      %v500 = vadd.f32 %v481, %v493
      %v501 = vadd.f32 %v482, %v493
      %v502 = vadd.f32 %v483, %v493
      %v503 = vadd.f32 %v484, %v493
      %v504 = vadd.f32 %v485, %v493
      %v505 = vadd.f32 %v486, %v493
      %v506 = vadd.f32 %v487, %v493
      %v507 = vadd.f32 %v488, %v493
      %v508 = vadd.f32 %v489, %v493
      %v509 = vadd.f32 %v490, %v493
      %v510 = vadd.f32 %v491, %v493
      %v511 = vmax.f32 %v495, 0.0
      %v512 = vmax.f32 %v496, 0.0
      %v513 = vmax.f32 %v497, 0.0
      %v514 = vmax.f32 %v498, 0.0
      %v515 = vmax.f32 %v499, 0.0
      %v516 = vmax.f32 %v500, 0.0
      %v517 = vmax.f32 %v501, 0.0
      %v518 = vmax.f32 %v502, 0.0
      %v519 = vmax.f32 %v503, 0.0
      %v520 = vmax.f32 %v504, 0.0
      %v521 = vmax.f32 %v505, 0.0
      %v522 = vmax.f32 %v506, 0.0
      %v523 = vmax.f32 %v507, 0.0
      %v524 = vmax.f32 %v508, 0.0
      %v525 = vmax.f32 %v509, 0.0
      %v526 = vmax.f32 %v510, 0.0
      %527 = vst [vmem:[%s226] sm:$0xff] %v511
      %528 = vst [vmem:[%s226 + $0x8] sm:$0xff] %v512
      %529 = vst [vmem:[%s226 + $0x10] sm:$0xff] %v513
      %530 = vst [vmem:[%s226 + $0x18] sm:$0xff] %v514
      %531 = vst [vmem:[%s226 + $0x20] sm:$0xff] %v515
      %532 = vst [vmem:[%s226 + $0x28] sm:$0xff] %v516
      %533 = vst [vmem:[%s226 + $0x30] sm:$0xff] %v517
      %534 = vst [vmem:[%s226 + $0x38] sm:$0xff] %v518
      %535 = vst [vmem:[%s226 + $0x40] sm:$0xff] %v519
      %536 = vst [vmem:[%s226 + $0x48] sm:$0xff] %v520
      %537 = vst [vmem:[%s226 + $0x50] sm:$0xff] %v521
      %538 = vst [vmem:[%s226 + $0x58] sm:$0xff] %v522
      %539 = vst [vmem:[%s226 + $0x60] sm:$0xff] %v523
      %540 = vst [vmem:[%s226 + $0x68] sm:$0xff] %v524
      %541 = vst [vmem:[%s226 + $0x70] sm:$0xff] %v525
      %542 = vst [vmem:[%s226 + $0x78] sm:$0xff] %v526
      %s543 = smul.u32 16, %s16
      %p544 = scmp.lt.s32.totalorder %s543, 31
      %s545 = scalar_select %p544, %s543, 31
      %s546 = smul.addr %s545, 8
      %s547 = scalar_lea.vmem %s5, %s546
      // Predicated region
      $region41: #{state_action_predictor.9} parent=39 // pred_check
        %p548 = pneg %p144
      $region42: #{state_action_predictor.9} parent=39 // pred_check_branch
        %550 = sbr.rel (%p548) target = $region44
      $region43: #{state_action_predictor.9} parent=39 // pred_region
        %s551 = smul.u32 16, %s16
      $region44: #{state_action_predictor.9} parent=39 // pred_fallthru
        _
    $region40: #{state_action_predictor.9} parent=5 // pred_fallthru
      _
    %p552 = scmp.le.s32.totalorder 2, %s11
    // Predicated region
    $region45: #{state_action_predictor.9} parent=5 // pred_check
      %p553 = pneg %p552
    $region46: #{state_action_predictor.9} parent=5 // pred_check_branch
      %555 = sbr.rel (%p553) target = $region48
    $region47: #{state_action_predictor.9} parent=5 // pred_region
      %s556 = ssub.s32 %s11, 2
      // Predicated region
      $region49: #{state_action_predictor.9} parent=47 // pred_check
        %p557 = pneg %p150
      $region50: #{state_action_predictor.9} parent=47 // pred_check_branch
        %559 = sbr.rel (%p557) target = $region52
      $region51: #{state_action_predictor.9} parent=47 // pred_region
        %s560 = smul.u32 16, %s17
        %p561 = scmp.lt.s32.totalorder %s560, 31
        %s562 = scalar_select %p561, %s560, 31
        %s563 = smul.addr %s562, 8
        %s564 = scalar_lea.vmem %s5, %s563
      $region52: #{state_action_predictor.9} parent=47 // pred_fallthru
        _
    $region48: #{state_action_predictor.9} parent=5 // pred_fallthru
      _
  $region6: #{state_action_predictor.9} parent=0 // loop_footer
    %s15 = sadd.s32 1, %s11
  $region7: #{state_action_predictor.9} parent=0 // loop_footer_branch
    %10 = sbr.rel target = $region3
  $region8: #{state_action_predictor.9} parent=0 // loop_exit
    _

// kernel: state_action_predictor.10
$region0: #{state_action_predictor.10}
  #allocation0 [shape = 'u32[]', space=smem, size = 0x4, offset = 0x4, fixed_abs, tag = 'smem constant byte address 0x4 - core index']
  #allocation1 [shape = 'u32[72,128]{1,0:T(1,128)}', space=vmem, size = 0x9000, scoped, tag = 'internal scratch']
  %s0 = inlined_call_operand.vmem [shape: f32[64,1152], index: 0, kind: input, shape index: {}]
  %s1 = inlined_call_operand.vmem [shape: f32[1152,128], index: 1, kind: input, shape index: {}]
  %s2 = inlined_call_operand.vmem [shape: f32[1,128], index: 2, kind: input, shape index: {}]
  %s3 = inlined_call_operand.vmem [shape: f32[1,128], index: 3, kind: input, shape index: {}]
  %s4 = inlined_call_operand.vmem [shape: f32[1,128], index: 4, kind: input, shape index: {}]
  %s5 = inlined_call_operand.vmem [shape: f32[64,128], index: 5, kind: output, shape index: {}]
  %s6 = sld [smem:[#allocation0]]
  $region53: #{state_action_predictor.10} parent=0
    _
  %s8 = ssub.s32 1, %s6
  %s9 = scalar_select 0, %s8, %s6
  loop: start=0, step=1, limit=4
  $region2: #{state_action_predictor.10} parent=0 // loop_pre_header
    _
  $region3: #{state_action_predictor.10} parent=0 // loop_header
    %s11 = sphi 0, %s15
    %p12 = scmp.ge.s32.totalorder %s11, 4
    %s21 = sphi 0, %s23
    %s24 = sphi 0, %s21
    %s25 = sphi 0, %s24
    %s41 = sphi 0, %s25
    %s45 = sphi 0, %s45
    %s47 = sphi 0, %s45
    %s48 = sphi 0, %s47
    %s62 = sphi 0, %s48
    %s66 = sphi 0, %s66
    %s68 = sphi 0, %s66
    %s69 = sphi 0, %s68
    %s83 = sphi 0, %s69
    %s87 = sphi 0, %s87
    %s89 = sphi 0, %s87
    %s90 = sphi 0, %s89
    %s104 = sphi 0, %s90
    %s108 = sphi 0, %s108
    %s110 = sphi 0, %s108
    %s111 = sphi 0, %s110
    %s125 = sphi 0, %s111
    %s131 = sphi 0, %s133
    %s134 = sphi 0, %s131
    %s135 = sphi 0, %s134
    %s151 = sphi 0, %s135
  $region4: #{state_action_predictor.10} parent=0 // loop_header_branch
    %14 = sbr.rel (%p12) target = $region8
  $region5: #{state_action_predictor.10} parent=0 // loop_body
    %s16 = ssub.s32 %s11, 1
    %s17 = ssub.s32 %s11, 2
    %s18 = sadd.s32 %s11, 1
    %s19 = ssub.s32 %s11, %s18
    %p20 = scmp.eq.s32.totalorder %s19, 0
    %s22 = sadd.s32 %s21, 1
    %s23 = scalar_select %p20, %s21, %s22
    %p26 = pneg %p20
    %p27 = scmp.eq.s32.totalorder %s11, 1
    %p28 = por %p26, %p27
    %p29 = scmp.ne.s32.totalorder %s21, %s24
    %p30 = scmp.eq.s32.totalorder %s11, 0
    %p31 = por %p29, %p30
    %p32 = scmp.ne.s32.totalorder %s21, %s24
    %p33 = scmp.eq.s32.totalorder %s16, 1
    %p34 = por %p32, %p33
    %p35 = scmp.ne.s32.totalorder %s24, %s25
    %p36 = scmp.eq.s32.totalorder %s16, 0
    %p37 = por %p35, %p36
    %p38 = scmp.ne.s32.totalorder %s24, %s25
    %p39 = scmp.eq.s32.totalorder %s17, 1
    %p40 = por %p38, %p39
    %p42 = scmp.ne.s32.totalorder %s25, %s41
    %p43 = scmp.eq.s32.totalorder %s17, 0
    %p44 = por %p42, %p43
    %s46 = sadd.s32 %s45, 1
    %p49 = scmp.eq.s32.totalorder %s11, 1
    %p50 = scmp.ne.s32.totalorder %s45, %s47
    %p51 = scmp.eq.s32.totalorder %s11, 0
    %p52 = por %p50, %p51
    %p53 = scmp.ne.s32.totalorder %s45, %s47
    %p54 = scmp.eq.s32.totalorder %s16, 1
    %p55 = por %p53, %p54
    %p56 = scmp.ne.s32.totalorder %s47, %s48
    %p57 = scmp.eq.s32.totalorder %s16, 0
    %p58 = por %p56, %p57
    %p59 = scmp.ne.s32.totalorder %s47, %s48
    %p60 = scmp.eq.s32.totalorder %s17, 1
    %p61 = por %p59, %p60
    %p63 = scmp.ne.s32.totalorder %s48, %s62
    %p64 = scmp.eq.s32.totalorder %s17, 0
    %p65 = por %p63, %p64
    %s67 = sadd.s32 %s66, 1
    %p70 = scmp.eq.s32.totalorder %s11, 1
    %p71 = scmp.ne.s32.totalorder %s66, %s68
    %p72 = scmp.eq.s32.totalorder %s11, 0
    %p73 = por %p71, %p72
    %p74 = scmp.ne.s32.totalorder %s66, %s68
    %p75 = scmp.eq.s32.totalorder %s16, 1
    %p76 = por %p74, %p75
    %p77 = scmp.ne.s32.totalorder %s68, %s69
    %p78 = scmp.eq.s32.totalorder %s16, 0
    %p79 = por %p77, %p78
    %p80 = scmp.ne.s32.totalorder %s68, %s69
    %p81 = scmp.eq.s32.totalorder %s17, 1
    %p82 = por %p80, %p81
    %p84 = scmp.ne.s32.totalorder %s69, %s83
    %p85 = scmp.eq.s32.totalorder %s17, 0
    %p86 = por %p84, %p85
    %s88 = sadd.s32 %s87, 1
    %p91 = scmp.eq.s32.totalorder %s11, 1
    %p92 = scmp.ne.s32.totalorder %s87, %s89
    %p93 = scmp.eq.s32.totalorder %s11, 0
    %p94 = por %p92, %p93
    %p95 = scmp.ne.s32.totalorder %s87, %s89
    %p96 = scmp.eq.s32.totalorder %s16, 1
    %p97 = por %p95, %p96
    %p98 = scmp.ne.s32.totalorder %s89, %s90
    %p99 = scmp.eq.s32.totalorder %s16, 0
    %p100 = por %p98, %p99
    %p101 = scmp.ne.s32.totalorder %s89, %s90
    %p102 = scmp.eq.s32.totalorder %s17, 1
    %p103 = por %p101, %p102
    %p105 = scmp.ne.s32.totalorder %s90, %s104
    %p106 = scmp.eq.s32.totalorder %s17, 0
    %p107 = por %p105, %p106
    %s109 = sadd.s32 %s108, 1
    %p112 = scmp.eq.s32.totalorder %s11, 1
    %p113 = scmp.ne.s32.totalorder %s108, %s110
    %p114 = scmp.eq.s32.totalorder %s11, 0
    %p115 = por %p113, %p114
    %p116 = scmp.ne.s32.totalorder %s108, %s110
    %p117 = scmp.eq.s32.totalorder %s16, 1
    %p118 = por %p116, %p117
    %p119 = scmp.ne.s32.totalorder %s110, %s111
    %p120 = scmp.eq.s32.totalorder %s16, 0
    %p121 = por %p119, %p120
    %p122 = scmp.ne.s32.totalorder %s110, %s111
    %p123 = scmp.eq.s32.totalorder %s17, 1
    %p124 = por %p122, %p123
    %p126 = scmp.ne.s32.totalorder %s111, %s125
    %p127 = scmp.eq.s32.totalorder %s17, 0
    %p128 = por %p126, %p127
    %s129 = ssub.s32 %s11, %s18
    %p130 = scmp.eq.s32.totalorder %s129, 0
    %s132 = sadd.s32 %s131, 1
    %s133 = scalar_select %p130, %s131, %s132
    %p136 = pneg %p130
    %p137 = scmp.eq.s32.totalorder %s11, 1
    %p138 = por %p136, %p137
    %p139 = scmp.ne.s32.totalorder %s131, %s134
    %p140 = scmp.eq.s32.totalorder %s11, 0
    %p141 = por %p139, %p140
    %p142 = scmp.ne.s32.totalorder %s131, %s134
    %p143 = scmp.eq.s32.totalorder %s16, 1
    %p144 = por %p142, %p143
    %p145 = scmp.ne.s32.totalorder %s134, %s135
    %p146 = scmp.eq.s32.totalorder %s16, 0
    %p147 = por %p145, %p146
    %p148 = scmp.ne.s32.totalorder %s134, %s135
    %p149 = scmp.eq.s32.totalorder %s17, 1
    %p150 = por %p148, %p149
    %p152 = scmp.ne.s32.totalorder %s135, %s151
    %p153 = scmp.eq.s32.totalorder %s17, 0
    %p154 = por %p152, %p153
    %p155 = scmp.le.s32.totalorder 1, %s11
    %p156 = scmp.lt.s32.totalorder %s11, 3
    %p157 = pnand %p155, %p156
    %p158 = pneg %p157
    // Predicated region
    $region9: #{state_action_predictor.10} parent=5 // pred_check
      _
    $region10: #{state_action_predictor.10} parent=5 // pred_check_branch
      %160 = sbr.rel (%p157) target = $region12
    $region11: #{state_action_predictor.10} parent=5 // pred_region
      %s161 = ssub.s32 %s11, 1
      // Predicated region
      $region13: #{state_action_predictor.10} parent=11 // pred_check
        %p162 = pneg %p58
      $region14: #{state_action_predictor.10} parent=11 // pred_check_branch
        %164 = sbr.rel (%p162) target = $region16
      $region15: #{state_action_predictor.10} parent=11 // pred_region
        _
      $region16: #{state_action_predictor.10} parent=11 // pred_fallthru
        _
      // Predicated region
      $region17: #{state_action_predictor.10} parent=11 // pred_check
        %p165 = pneg %p79
      $region18: #{state_action_predictor.10} parent=11 // pred_check_branch
        %167 = sbr.rel (%p165) target = $region20
      $region19: #{state_action_predictor.10} parent=11 // pred_region
        _
      $region20: #{state_action_predictor.10} parent=11 // pred_fallthru
        _
      // Predicated region
      $region21: #{state_action_predictor.10} parent=11 // pred_check
        %p168 = pneg %p100
      $region22: #{state_action_predictor.10} parent=11 // pred_check_branch
        %170 = sbr.rel (%p168) target = $region24
      $region23: #{state_action_predictor.10} parent=11 // pred_region
        _
      $region24: #{state_action_predictor.10} parent=11 // pred_fallthru
        _
      // Predicated region
      $region25: #{state_action_predictor.10} parent=11 // pred_check
        %p171 = pneg %p121
      $region26: #{state_action_predictor.10} parent=11 // pred_check_branch
        %173 = sbr.rel (%p171) target = $region28
      $region27: #{state_action_predictor.10} parent=11 // pred_region
        _
      $region28: #{state_action_predictor.10} parent=11 // pred_fallthru
        _
    $region12: #{state_action_predictor.10} parent=5 // pred_fallthru
      _
    %p174 = scmp.lt.s32.totalorder %s11, 2
    // Predicated region
    $region29: #{state_action_predictor.10} parent=5 // pred_check
      %p175 = pneg %p174
    $region30: #{state_action_predictor.10} parent=5 // pred_check_branch
      %177 = sbr.rel (%p175) target = $region32
    $region31: #{state_action_predictor.10} parent=5 // pred_region
      // Predicated region
      $region33: #{state_action_predictor.10} parent=31 // pred_check
        %p178 = pneg %p31
      $region34: #{state_action_predictor.10} parent=31 // pred_check_branch
        %180 = sbr.rel (%p178) target = $region36
      $region35: #{state_action_predictor.10} parent=31 // pred_region
        %s181 = smul.u32 4, %s11
        %p182 = scmp.lt.s32.totalorder %s181, 7
        %s183 = scalar_select %p182, %s181, 7
        %s184 = smul.addr %s183, 9
        %s185 = smul.addr %s184, 8
        %s186 = scalar_lea.vmem %s0, %s185
        %s187 = smul.u32 4, %s11
      $region36: #{state_action_predictor.10} parent=31 // pred_fallthru
        _
    $region32: #{state_action_predictor.10} parent=5 // pred_fallthru
      _
    %p188 = scmp.le.s32.totalorder 1, %s11
    %p189 = scmp.lt.s32.totalorder %s11, 3
    %p190 = pnand %p188, %p189
    %p191 = pneg %p190
    // Predicated region
    $region37: #{state_action_predictor.10} parent=5 // pred_check
      _
    $region38: #{state_action_predictor.10} parent=5 // pred_check_branch
      %193 = sbr.rel (%p190) target = $region40
    $region39: #{state_action_predictor.10} parent=5 // pred_region
      %s194 = ssub.s32 %s11, 1
      %s195 = smul.u32 4, %s16
      %p196 = scmp.lt.s32.totalorder %s195, 7
      %s197 = scalar_select %p196, %s195, 7
      %s198 = smul.addr %s197, 9
      %s199 = smul.addr %s198, 8
      %s200 = scalar_lea.vmem %s0, %s199
      %p201 = pneg %p37
      %p202 = pneg %p34
      %p203 = pneg %p58
      %p204 = pneg %p55
      %p205 = pneg %p79
      %p206 = pneg %p76
      %p207 = pneg %p100
      %p208 = pneg %p97
      %p209 = pneg %p121
      %p210 = pneg %p118
      %p211 = pneg %p147
      %p212 = pneg %p144
      %s213 = smul.u32 4, %s16
      %p214 = scmp.lt.s32.totalorder %s213, 7
      %s215 = scalar_select %p214, %s213, 7
      %s216 = smul.addr %s215, 8
      %s217 = scalar_lea.vmem %s5, %s216
      %s218 = smul.u32 4, %s16
      %p219 = scmp.lt.s32.totalorder %s218, 7
      %s220 = scalar_select %p219, %s218, 7
      %s221 = smul.addr %s220, 9
      %s222 = smul.addr %s221, 8
      %s223 = scalar_lea.vmem %s0, %s222
      %s224 = smul.u32 4, %s16
      %s225 = smul.u32 4, %s16
      %p226 = scmp.lt.s32.totalorder %s225, 7
      %s227 = scalar_select %p226, %s225, 7
      %s228 = smul.addr %s227, 8
      %s229 = scalar_lea.vmem %s5, %s228
      %s230 = smul.u32 4, %s16
      %v231 = vld [vmem:[%s223] sm:$0xff]
      %v232 = vld [vmem:[%s223 + $0x8] sm:$0xff]
      %v233 = vld [vmem:[%s223 + $0x10] sm:$0xff]
      %v234 = vld [vmem:[%s223 + $0x18] sm:$0xff]
      %v235 = vld [vmem:[%s223 + $0x20] sm:$0xff]
      %v236 = vld [vmem:[%s223 + $0x28] sm:$0xff]
      %v237 = vld [vmem:[%s223 + $0x30] sm:$0xff]
      %v238 = vld [vmem:[%s223 + $0x38] sm:$0xff]
      %v239 = vld [vmem:[%s223 + $0x40] sm:$0xff]
      %v240 = vld [vmem:[%s223 + $0x48] sm:$0xff]
      %v241 = vld [vmem:[%s223 + $0x50] sm:$0xff]
      %v242 = vld [vmem:[%s223 + $0x58] sm:$0xff]
      %v243 = vld [vmem:[%s223 + $0x60] sm:$0xff]
      %v244 = vld [vmem:[%s223 + $0x68] sm:$0xff]
      %v245 = vld [vmem:[%s223 + $0x70] sm:$0xff]
      %v246 = vld [vmem:[%s223 + $0x78] sm:$0xff]
      %v247 = vld [vmem:[%s223 + $0x80] sm:$0xff]
      %v248 = vld [vmem:[%s223 + $0x88] sm:$0xff]
      %v249 = vld [vmem:[%s223 + $0x90] sm:$0xff]
      %v250 = vld [vmem:[%s223 + $0x98] sm:$0xff]
      %v251 = vld [vmem:[%s223 + $0xa0] sm:$0xff]
      %v252 = vld [vmem:[%s223 + $0xa8] sm:$0xff]
      %v253 = vld [vmem:[%s223 + $0xb0] sm:$0xff]
      %v254 = vld [vmem:[%s223 + $0xb8] sm:$0xff]
      %v255 = vld [vmem:[%s223 + $0xc0] sm:$0xff]
      %v256 = vld [vmem:[%s223 + $0xc8] sm:$0xff]
      %v257 = vld [vmem:[%s223 + $0xd0] sm:$0xff]
      %v258 = vld [vmem:[%s223 + $0xd8] sm:$0xff]
      %v259 = vld [vmem:[%s223 + $0xe0] sm:$0xff]
      %v260 = vld [vmem:[%s223 + $0xe8] sm:$0xff]
      %v261 = vld [vmem:[%s223 + $0xf0] sm:$0xff]
      %v262 = vld [vmem:[%s223 + $0xf8] sm:$0xff]
      %v263 = vld [vmem:[%s223 + $0x100] sm:$0xff]
      %v264 = vld [vmem:[%s223 + $0x108] sm:$0xff]
      %v265 = vld [vmem:[%s223 + $0x110] sm:$0xff]
      %v266 = vld [vmem:[%s223 + $0x118] sm:$0xff]
      %v267 = vld [vmem:[%s1] sm:$0xff]
      %v268 = vld [vmem:[%s1 + $0x8] sm:$0xff]
      %v269 = vld [vmem:[%s1 + $0x10] sm:$0xff]
      %v270 = vld [vmem:[%s1 + $0x18] sm:$0xff]
      %v271 = vld [vmem:[%s1 + $0x20] sm:$0xff]
      %v272 = vld [vmem:[%s1 + $0x28] sm:$0xff]
      %v273 = vld [vmem:[%s1 + $0x30] sm:$0xff]
      %v274 = vld [vmem:[%s1 + $0x38] sm:$0xff]
      %v275 = vld [vmem:[%s1 + $0x40] sm:$0xff]
      %v276 = vld [vmem:[%s1 + $0x48] sm:$0xff]
      %v277 = vld [vmem:[%s1 + $0x50] sm:$0xff]
      %v278 = vld [vmem:[%s1 + $0x58] sm:$0xff]
      %v279 = vld [vmem:[%s1 + $0x60] sm:$0xff]
      %v280 = vld [vmem:[%s1 + $0x68] sm:$0xff]
      %v281 = vld [vmem:[%s1 + $0x70] sm:$0xff]
      %v282 = vld [vmem:[%s1 + $0x78] sm:$0xff]
      %v283 = vld [vmem:[%s1 + $0x80] sm:$0xff]
      %v284 = vld [vmem:[%s1 + $0x88] sm:$0xff]
      %v285 = vld [vmem:[%s1 + $0x90] sm:$0xff]
      %v286 = vld [vmem:[%s1 + $0x98] sm:$0xff]
      %v287 = vld [vmem:[%s1 + $0xa0] sm:$0xff]
      %v288 = vld [vmem:[%s1 + $0xa8] sm:$0xff]
      %v289 = vld [vmem:[%s1 + $0xb0] sm:$0xff]
      %v290 = vld [vmem:[%s1 + $0xb8] sm:$0xff]
      %v291 = vld [vmem:[%s1 + $0xc0] sm:$0xff]
      %v292 = vld [vmem:[%s1 + $0xc8] sm:$0xff]
      %v293 = vld [vmem:[%s1 + $0xd0] sm:$0xff]
      %v294 = vld [vmem:[%s1 + $0xd8] sm:$0xff]
      %v295 = vld [vmem:[%s1 + $0xe0] sm:$0xff]
      %v296 = vld [vmem:[%s1 + $0xe8] sm:$0xff]
      %v297 = vld [vmem:[%s1 + $0xf0] sm:$0xff]
      %v298 = vld [vmem:[%s1 + $0xf8] sm:$0xff]
      %v299 = vld [vmem:[%s1 + $0x100] sm:$0xff]
      %v300 = vld [vmem:[%s1 + $0x108] sm:$0xff]
      %v301 = vld [vmem:[%s1 + $0x110] sm:$0xff]
      %v302 = vld [vmem:[%s1 + $0x118] sm:$0xff]
      %v303 = vld [vmem:[%s1 + $0x120] sm:$0xff]
      %v304 = vld [vmem:[%s1 + $0x128] sm:$0xff]
      %v305 = vld [vmem:[%s1 + $0x130] sm:$0xff]
      %v306 = vld [vmem:[%s1 + $0x138] sm:$0xff]
      %v307 = vld [vmem:[%s1 + $0x140] sm:$0xff]
      %v308 = vld [vmem:[%s1 + $0x148] sm:$0xff]
      %v309 = vld [vmem:[%s1 + $0x150] sm:$0xff]
      %v310 = vld [vmem:[%s1 + $0x158] sm:$0xff]
      %v311 = vld [vmem:[%s1 + $0x160] sm:$0xff]
      %v312 = vld [vmem:[%s1 + $0x168] sm:$0xff]
      %v313 = vld [vmem:[%s1 + $0x170] sm:$0xff]
      %v314 = vld [vmem:[%s1 + $0x178] sm:$0xff]
      %v315 = vld [vmem:[%s1 + $0x180] sm:$0xff]
      %v316 = vld [vmem:[%s1 + $0x188] sm:$0xff]
      %v317 = vld [vmem:[%s1 + $0x190] sm:$0xff]
      %v318 = vld [vmem:[%s1 + $0x198] sm:$0xff]
      %v319 = vld [vmem:[%s1 + $0x1a0] sm:$0xff]
      %v320 = vld [vmem:[%s1 + $0x1a8] sm:$0xff]
      %v321 = vld [vmem:[%s1 + $0x1b0] sm:$0xff]
      %v322 = vld [vmem:[%s1 + $0x1b8] sm:$0xff]
      %v323 = vld [vmem:[%s1 + $0x1c0] sm:$0xff]
      %v324 = vld [vmem:[%s1 + $0x1c8] sm:$0xff]
      %v325 = vld [vmem:[%s1 + $0x1d0] sm:$0xff]
      %v326 = vld [vmem:[%s1 + $0x1d8] sm:$0xff]
      %v327 = vld [vmem:[%s1 + $0x1e0] sm:$0xff]
      %v328 = vld [vmem:[%s1 + $0x1e8] sm:$0xff]
      %v329 = vld [vmem:[%s1 + $0x1f0] sm:$0xff]
      %v330 = vld [vmem:[%s1 + $0x1f8] sm:$0xff]
      %v331 = vld [vmem:[%s1 + $0x200] sm:$0xff]
      %v332 = vld [vmem:[%s1 + $0x208] sm:$0xff]
      %v333 = vld [vmem:[%s1 + $0x210] sm:$0xff]
      %v334 = vld [vmem:[%s1 + $0x218] sm:$0xff]
      %v335 = vld [vmem:[%s1 + $0x220] sm:$0xff]
      %v336 = vld [vmem:[%s1 + $0x228] sm:$0xff]
      %v337 = vld [vmem:[%s1 + $0x230] sm:$0xff]
      %v338 = vld [vmem:[%s1 + $0x238] sm:$0xff]
      %v339 = vld [vmem:[%s1 + $0x240] sm:$0xff]
      %v340 = vld [vmem:[%s1 + $0x248] sm:$0xff]
      %v341 = vld [vmem:[%s1 + $0x250] sm:$0xff]
      %v342 = vld [vmem:[%s1 + $0x258] sm:$0xff]
      %v343 = vld [vmem:[%s1 + $0x260] sm:$0xff]
      %v344 = vld [vmem:[%s1 + $0x268] sm:$0xff]
      %v345 = vld [vmem:[%s1 + $0x270] sm:$0xff]
      %v346 = vld [vmem:[%s1 + $0x278] sm:$0xff]
      %v347 = vld [vmem:[%s1 + $0x280] sm:$0xff]
      %v348 = vld [vmem:[%s1 + $0x288] sm:$0xff]
      %v349 = vld [vmem:[%s1 + $0x290] sm:$0xff]
      %v350 = vld [vmem:[%s1 + $0x298] sm:$0xff]
      %v351 = vld [vmem:[%s1 + $0x2a0] sm:$0xff]
      %v352 = vld [vmem:[%s1 + $0x2a8] sm:$0xff]
      %v353 = vld [vmem:[%s1 + $0x2b0] sm:$0xff]
      %v354 = vld [vmem:[%s1 + $0x2b8] sm:$0xff]
      %v355 = vld [vmem:[%s1 + $0x2c0] sm:$0xff]
      %v356 = vld [vmem:[%s1 + $0x2c8] sm:$0xff]
      %v357 = vld [vmem:[%s1 + $0x2d0] sm:$0xff]
      %v358 = vld [vmem:[%s1 + $0x2d8] sm:$0xff]
      %v359 = vld [vmem:[%s1 + $0x2e0] sm:$0xff]
      %v360 = vld [vmem:[%s1 + $0x2e8] sm:$0xff]
      %v361 = vld [vmem:[%s1 + $0x2f0] sm:$0xff]
      %v362 = vld [vmem:[%s1 + $0x2f8] sm:$0xff]
      %v363 = vld [vmem:[%s1 + $0x300] sm:$0xff]
      %v364 = vld [vmem:[%s1 + $0x308] sm:$0xff]
      %v365 = vld [vmem:[%s1 + $0x310] sm:$0xff]
      %v366 = vld [vmem:[%s1 + $0x318] sm:$0xff]
      %v367 = vld [vmem:[%s1 + $0x320] sm:$0xff]
      %v368 = vld [vmem:[%s1 + $0x328] sm:$0xff]
      %v369 = vld [vmem:[%s1 + $0x330] sm:$0xff]
      %v370 = vld [vmem:[%s1 + $0x338] sm:$0xff]
      %v371 = vld [vmem:[%s1 + $0x340] sm:$0xff]
      %v372 = vld [vmem:[%s1 + $0x348] sm:$0xff]
      %v373 = vld [vmem:[%s1 + $0x350] sm:$0xff]
      %v374 = vld [vmem:[%s1 + $0x358] sm:$0xff]
      %v375 = vld [vmem:[%s1 + $0x360] sm:$0xff]
      %v376 = vld [vmem:[%s1 + $0x368] sm:$0xff]
      %v377 = vld [vmem:[%s1 + $0x370] sm:$0xff]
      %v378 = vld [vmem:[%s1 + $0x378] sm:$0xff]
      %v379 = vld [vmem:[%s1 + $0x380] sm:$0xff]
      %v380 = vld [vmem:[%s1 + $0x388] sm:$0xff]
      %v381 = vld [vmem:[%s1 + $0x390] sm:$0xff]
      %v382 = vld [vmem:[%s1 + $0x398] sm:$0xff]
      %v383 = vld [vmem:[%s1 + $0x3a0] sm:$0xff]
      %v384 = vld [vmem:[%s1 + $0x3a8] sm:$0xff]
      %v385 = vld [vmem:[%s1 + $0x3b0] sm:$0xff]
      %v386 = vld [vmem:[%s1 + $0x3b8] sm:$0xff]
      %v387 = vld [vmem:[%s1 + $0x3c0] sm:$0xff]
      %v388 = vld [vmem:[%s1 + $0x3c8] sm:$0xff]
      %v389 = vld [vmem:[%s1 + $0x3d0] sm:$0xff]
      %v390 = vld [vmem:[%s1 + $0x3d8] sm:$0xff]
      %v391 = vld [vmem:[%s1 + $0x3e0] sm:$0xff]
      %v392 = vld [vmem:[%s1 + $0x3e8] sm:$0xff]
      %v393 = vld [vmem:[%s1 + $0x3f0] sm:$0xff]
      %v394 = vld [vmem:[%s1 + $0x3f8] sm:$0xff]
      %v395 = vld [vmem:[%s1 + $0x400] sm:$0xff]
      %v396 = vld [vmem:[%s1 + $0x408] sm:$0xff]
      %v397 = vld [vmem:[%s1 + $0x410] sm:$0xff]
      %v398 = vld [vmem:[%s1 + $0x418] sm:$0xff]
      %v399 = vld [vmem:[%s1 + $0x420] sm:$0xff]
      %v400 = vld [vmem:[%s1 + $0x428] sm:$0xff]
      %v401 = vld [vmem:[%s1 + $0x430] sm:$0xff]
      %v402 = vld [vmem:[%s1 + $0x438] sm:$0xff]
      %v403 = vld [vmem:[%s1 + $0x440] sm:$0xff]
      %v404 = vld [vmem:[%s1 + $0x448] sm:$0xff]
      %v405 = vld [vmem:[%s1 + $0x450] sm:$0xff]
      %v406 = vld [vmem:[%s1 + $0x458] sm:$0xff]
      %v407 = vld [vmem:[%s1 + $0x460] sm:$0xff]
      %v408 = vld [vmem:[%s1 + $0x468] sm:$0xff]
      %v409 = vld [vmem:[%s1 + $0x470] sm:$0xff]
      %v410 = vld [vmem:[%s1 + $0x478] sm:$0xff]
      %v411 = vld [vmem:[%s2] sm:$0x1]
      %v413 = vperm.slane %v411, 0
      %415 = vmatpush.msra.mxu0 %v282
      %416 = vmatpush.msra.mxu0 %v281
      %417 = vmatpush.msra.mxu0 %v280
      %418 = vmatpush.msra.mxu0 %v279
      %419 = vmatpush.msra.mxu0 %v278
      %420 = vmatpush.msra.mxu0 %v277
      %421 = vmatpush.msra.mxu0 %v276
      %422 = vmatpush.msra.mxu0 %v275
      %423 = vmatpush.msra.mxu0 %v274
      %424 = vmatpush.msra.mxu0 %v273
      %425 = vmatpush.msra.mxu0 %v272
      %426 = vmatpush.msra.mxu0 %v271
      %427 = vmatpush.msra.mxu0 %v270
      %428 = vmatpush.msra.mxu0 %v269
      %429 = vmatpush.msra.mxu0 %v268
      %430 = vmatpush.msra.mxu0 %v267
      %431 = vmatmul.f32.gmra.mxu0 %v231
      %v432 = vpop.f32.mrf.mxu0
      %v433 = vadd.f32 %v413, %v432
      %434 = vmatmul.f32.gmra.mxu0 %v240
      %v435 = vpop.f32.mrf.mxu0
      %v436 = vadd.f32 %v413, %v435
      %437 = vmatmul.f32.gmra.mxu0 %v249
      %v438 = vpop.f32.mrf.mxu0
      %v439 = vadd.f32 %v413, %v438
      %440 = vmatmul.f32.gmra.mxu0 %v258
      %v441 = vpop.f32.mrf.mxu0
      %v442 = vadd.f32 %v413, %v441
      %443 = vdwg.mxu0
      %444 = vmatpush.msra.mxu0 %v298
      %445 = vmatpush.msra.mxu0 %v297
      %446 = vmatpush.msra.mxu0 %v296
      %447 = vmatpush.msra.mxu0 %v295
      %448 = vmatpush.msra.mxu0 %v294
      %449 = vmatpush.msra.mxu0 %v293
      %450 = vmatpush.msra.mxu0 %v292
      %451 = vmatpush.msra.mxu0 %v291
      %452 = vmatpush.msra.mxu0 %v290
      %453 = vmatpush.msra.mxu0 %v289
      %454 = vmatpush.msra.mxu0 %v288
      %455 = vmatpush.msra.mxu0 %v287
      %456 = vmatpush.msra.mxu0 %v286
      %457 = vmatpush.msra.mxu0 %v285
      %458 = vmatpush.msra.mxu0 %v284
      %459 = vmatpush.msra.mxu0 %v283
      %460 = vmatmul.f32.gmra.mxu0 %v232
      %v461 = vpop.f32.mrf.mxu0
      %v462 = vadd.f32 %v433, %v461
      %463 = vmatmul.f32.gmra.mxu0 %v241
      %v464 = vpop.f32.mrf.mxu0
      %v465 = vadd.f32 %v436, %v464
      %466 = vmatmul.f32.gmra.mxu0 %v250
      %v467 = vpop.f32.mrf.mxu0
      %v468 = vadd.f32 %v439, %v467
      %469 = vmatmul.f32.gmra.mxu0 %v259
      %v470 = vpop.f32.mrf.mxu0
      %v471 = vadd.f32 %v442, %v470
      %472 = vdwg.mxu0
      %473 = vmatpush.msra.mxu0 %v314
      %474 = vmatpush.msra.mxu0 %v313
      %475 = vmatpush.msra.mxu0 %v312
      %476 = vmatpush.msra.mxu0 %v311
      %477 = vmatpush.msra.mxu0 %v310
      %478 = vmatpush.msra.mxu0 %v309
      %479 = vmatpush.msra.mxu0 %v308
      %480 = vmatpush.msra.mxu0 %v307
      %481 = vmatpush.msra.mxu0 %v306
      %482 = vmatpush.msra.mxu0 %v305
      %483 = vmatpush.msra.mxu0 %v304
      %484 = vmatpush.msra.mxu0 %v303
      %485 = vmatpush.msra.mxu0 %v302
      %486 = vmatpush.msra.mxu0 %v301
      %487 = vmatpush.msra.mxu0 %v300
      %488 = vmatpush.msra.mxu0 %v299
      %489 = vmatmul.f32.gmra.mxu0 %v233
      %v490 = vpop.f32.mrf.mxu0
      %v491 = vadd.f32 %v462, %v490
      %492 = vmatmul.f32.gmra.mxu0 %v242
      %v493 = vpop.f32.mrf.mxu0
      %v494 = vadd.f32 %v465, %v493
      %495 = vmatmul.f32.gmra.mxu0 %v251
      %v496 = vpop.f32.mrf.mxu0
      %v497 = vadd.f32 %v468, %v496
      %498 = vmatmul.f32.gmra.mxu0 %v260
      %v499 = vpop.f32.mrf.mxu0
      %v500 = vadd.f32 %v471, %v499
      %501 = vdwg.mxu0
      %502 = vmatpush.msra.mxu0 %v330
      %503 = vmatpush.msra.mxu0 %v329
      %504 = vmatpush.msra.mxu0 %v328
      %505 = vmatpush.msra.mxu0 %v327
      %506 = vmatpush.msra.mxu0 %v326
      %507 = vmatpush.msra.mxu0 %v325
      %508 = vmatpush.msra.mxu0 %v324
      %509 = vmatpush.msra.mxu0 %v323
      %510 = vmatpush.msra.mxu0 %v322
      %511 = vmatpush.msra.mxu0 %v321
      %512 = vmatpush.msra.mxu0 %v320
      %513 = vmatpush.msra.mxu0 %v319
      %514 = vmatpush.msra.mxu0 %v318
      %515 = vmatpush.msra.mxu0 %v317
      %516 = vmatpush.msra.mxu0 %v316
      %517 = vmatpush.msra.mxu0 %v315
      %518 = vmatmul.f32.gmra.mxu0 %v234
      %v519 = vpop.f32.mrf.mxu0
      %v520 = vadd.f32 %v491, %v519
      %521 = vmatmul.f32.gmra.mxu0 %v243
      %v522 = vpop.f32.mrf.mxu0
      %v523 = vadd.f32 %v494, %v522
      %524 = vmatmul.f32.gmra.mxu0 %v252
      %v525 = vpop.f32.mrf.mxu0
      %v526 = vadd.f32 %v497, %v525
      %527 = vmatmul.f32.gmra.mxu0 %v261
      %v528 = vpop.f32.mrf.mxu0
      %v529 = vadd.f32 %v500, %v528
      %530 = vdwg.mxu0
      %531 = vmatpush.msra.mxu0 %v346
      %532 = vmatpush.msra.mxu0 %v345
      %533 = vmatpush.msra.mxu0 %v344
      %534 = vmatpush.msra.mxu0 %v343
      %535 = vmatpush.msra.mxu0 %v342
      %536 = vmatpush.msra.mxu0 %v341
      %537 = vmatpush.msra.mxu0 %v340
      %538 = vmatpush.msra.mxu0 %v339
      %539 = vmatpush.msra.mxu0 %v338
      %540 = vmatpush.msra.mxu0 %v337
      %541 = vmatpush.msra.mxu0 %v336
      %542 = vmatpush.msra.mxu0 %v335
      %543 = vmatpush.msra.mxu0 %v334
      %544 = vmatpush.msra.mxu0 %v333
      %545 = vmatpush.msra.mxu0 %v332
      %546 = vmatpush.msra.mxu0 %v331
      %547 = vmatmul.f32.gmra.mxu0 %v235
      %v548 = vpop.f32.mrf.mxu0
      %v549 = vadd.f32 %v520, %v548
      %550 = vmatmul.f32.gmra.mxu0 %v244
      %v551 = vpop.f32.mrf.mxu0
      %v552 = vadd.f32 %v523, %v551
      %553 = vmatmul.f32.gmra.mxu0 %v253
      %v554 = vpop.f32.mrf.mxu0
      %v555 = vadd.f32 %v526, %v554
      %556 = vmatmul.f32.gmra.mxu0 %v262
      %v557 = vpop.f32.mrf.mxu0
      %v558 = vadd.f32 %v529, %v557
      %559 = vdwg.mxu0
      %560 = vmatpush.msra.mxu0 %v362
      %561 = vmatpush.msra.mxu0 %v361
      %562 = vmatpush.msra.mxu0 %v360
      %563 = vmatpush.msra.mxu0 %v359
      %564 = vmatpush.msra.mxu0 %v358
      %565 = vmatpush.msra.mxu0 %v357
      %566 = vmatpush.msra.mxu0 %v356
      %567 = vmatpush.msra.mxu0 %v355
      %568 = vmatpush.msra.mxu0 %v354
      %569 = vmatpush.msra.mxu0 %v353
      %570 = vmatpush.msra.mxu0 %v352
      %571 = vmatpush.msra.mxu0 %v351
      %572 = vmatpush.msra.mxu0 %v350
      %573 = vmatpush.msra.mxu0 %v349
      %574 = vmatpush.msra.mxu0 %v348
      %575 = vmatpush.msra.mxu0 %v347
      %576 = vmatmul.f32.gmra.mxu0 %v236
      %v577 = vpop.f32.mrf.mxu0
      %v578 = vadd.f32 %v549, %v577
      %579 = vmatmul.f32.gmra.mxu0 %v245
      %v580 = vpop.f32.mrf.mxu0
      %v581 = vadd.f32 %v552, %v580
      %582 = vmatmul.f32.gmra.mxu0 %v254
      %v583 = vpop.f32.mrf.mxu0
      %v584 = vadd.f32 %v555, %v583
      %585 = vmatmul.f32.gmra.mxu0 %v263
      %v586 = vpop.f32.mrf.mxu0
      %v587 = vadd.f32 %v558, %v586
      %588 = vdwg.mxu0
      %589 = vmatpush.msra.mxu0 %v378
      %590 = vmatpush.msra.mxu0 %v377
      %591 = vmatpush.msra.mxu0 %v376
      %592 = vmatpush.msra.mxu0 %v375
      %593 = vmatpush.msra.mxu0 %v374
      %594 = vmatpush.msra.mxu0 %v373
      %595 = vmatpush.msra.mxu0 %v372
      %596 = vmatpush.msra.mxu0 %v371
      %597 = vmatpush.msra.mxu0 %v370
      %598 = vmatpush.msra.mxu0 %v369
      %599 = vmatpush.msra.mxu0 %v368
      %600 = vmatpush.msra.mxu0 %v367
      %601 = vmatpush.msra.mxu0 %v366
      %602 = vmatpush.msra.mxu0 %v365
      %603 = vmatpush.msra.mxu0 %v364
      %604 = vmatpush.msra.mxu0 %v363
      %605 = vmatmul.f32.gmra.mxu0 %v237
      %v606 = vpop.f32.mrf.mxu0
      %v607 = vadd.f32 %v578, %v606
      %608 = vmatmul.f32.gmra.mxu0 %v246
      %v609 = vpop.f32.mrf.mxu0
      %v610 = vadd.f32 %v581, %v609
      %611 = vmatmul.f32.gmra.mxu0 %v255
      %v612 = vpop.f32.mrf.mxu0
      %v613 = vadd.f32 %v584, %v612
      %614 = vmatmul.f32.gmra.mxu0 %v264
      %v615 = vpop.f32.mrf.mxu0
      %v616 = vadd.f32 %v587, %v615
      %617 = vdwg.mxu0
      %618 = vmatpush.msra.mxu0 %v394
      %619 = vmatpush.msra.mxu0 %v393
      %620 = vmatpush.msra.mxu0 %v392
      %621 = vmatpush.msra.mxu0 %v391
      %622 = vmatpush.msra.mxu0 %v390
      %623 = vmatpush.msra.mxu0 %v389
      %624 = vmatpush.msra.mxu0 %v388
      %625 = vmatpush.msra.mxu0 %v387
      %626 = vmatpush.msra.mxu0 %v386
      %627 = vmatpush.msra.mxu0 %v385
      %628 = vmatpush.msra.mxu0 %v384
      %629 = vmatpush.msra.mxu0 %v383
      %630 = vmatpush.msra.mxu0 %v382
      %631 = vmatpush.msra.mxu0 %v381
      %632 = vmatpush.msra.mxu0 %v380
      %633 = vmatpush.msra.mxu0 %v379
      %634 = vmatmul.f32.gmra.mxu0 %v238
      %v635 = vpop.f32.mrf.mxu0
      %v636 = vadd.f32 %v607, %v635
      %637 = vmatmul.f32.gmra.mxu0 %v247
      %v638 = vpop.f32.mrf.mxu0
      %v639 = vadd.f32 %v610, %v638
      %640 = vmatmul.f32.gmra.mxu0 %v256
      %v641 = vpop.f32.mrf.mxu0
      %v642 = vadd.f32 %v613, %v641
      %643 = vmatmul.f32.gmra.mxu0 %v265
      %v644 = vpop.f32.mrf.mxu0
      %v645 = vadd.f32 %v616, %v644
      %646 = vdwg.mxu0
      %647 = vmatpush.msra.mxu0 %v410
      %648 = vmatpush.msra.mxu0 %v409
      %649 = vmatpush.msra.mxu0 %v408
      %650 = vmatpush.msra.mxu0 %v407
      %651 = vmatpush.msra.mxu0 %v406
      %652 = vmatpush.msra.mxu0 %v405
      %653 = vmatpush.msra.mxu0 %v404
      %654 = vmatpush.msra.mxu0 %v403
      %655 = vmatpush.msra.mxu0 %v402
      %656 = vmatpush.msra.mxu0 %v401
      %657 = vmatpush.msra.mxu0 %v400
      %658 = vmatpush.msra.mxu0 %v399
      %659 = vmatpush.msra.mxu0 %v398
      %660 = vmatpush.msra.mxu0 %v397
      %661 = vmatpush.msra.mxu0 %v396
      %662 = vmatpush.msra.mxu0 %v395
      %663 = vmatmul.f32.gmra.mxu0 %v239
      %v664 = vpop.f32.mrf.mxu0
      %v665 = vadd.f32 %v636, %v664
      %666 = vmatmul.f32.gmra.mxu0 %v248
      %v667 = vpop.f32.mrf.mxu0
      %v668 = vadd.f32 %v639, %v667
      %669 = vmatmul.f32.gmra.mxu0 %v257
      %v670 = vpop.f32.mrf.mxu0
      %v671 = vadd.f32 %v642, %v670
      %672 = vmatmul.f32.gmra.mxu0 %v266
      %v673 = vpop.f32.mrf.mxu0
      %v674 = vadd.f32 %v645, %v673
      %675 = vdwg.mxu0
      %v676 = vld [vmem:[%s3] sm:$0x1]
      %v677 = vld [vmem:[%s4] sm:$0x1]
      %vm678 = vcmask 261120
      %v680 = vsel %vm678, 1.0, 0
      %682 = vmatpush.msra.mxu0 0.0
      %683 = vmatpush.msra.mxu0 0.0
      %684 = vmatpush.msra.mxu0 0.0
      %685 = vmatpush.msra.mxu0 0.0
      %686 = vmatpush.msra.mxu0 0.0
      %687 = vmatpush.msra.mxu0 0.0
      %688 = vmatpush.msra.mxu0 0.0
      %689 = vmatpush.msra.mxu0 0.0
      %690 = vmatpush.msra.mxu0 0.0
      %691 = vmatpush.msra.mxu0 0.0
      %692 = vmatpush.msra.mxu0 0.0
      %693 = vmatpush.msra.mxu0 0.0
      %694 = vmatpush.msra.mxu0 %v674
      %695 = vmatpush.msra.mxu0 %v671
      %696 = vmatpush.msra.mxu0 %v668
      %697 = vmatpush.msra.mxu0 %v665
      %698 = vmatmul.f32.gmra.mxu0 %v680
      %v699 = vpop.f32.mrf.mxu0
      %v700 = vadd.f32 0.0, %v699
      %701 = vdwg.mxu0
      %v702 = vmul.f32 %v700, 0.03125
      %v703 = vperm.slane %v702, 0
      %v704 = vsub.f32 %v665, %v703
      %v705 = vsub.f32 %v668, %v703
      %v706 = vsub.f32 %v671, %v703
      %v707 = vsub.f32 %v674, %v703
      %v708 = vmul.f32 %v704, %v704
      %v709 = vmul.f32 %v705, %v705
      %v710 = vmul.f32 %v706, %v706
      %v711 = vmul.f32 %v707, %v707
      %712 = vmatpush.msra.mxu0 0.0
      %713 = vmatpush.msra.mxu0 0.0
      %714 = vmatpush.msra.mxu0 0.0
      %715 = vmatpush.msra.mxu0 0.0
      %716 = vmatpush.msra.mxu0 0.0
      %717 = vmatpush.msra.mxu0 0.0
      %718 = vmatpush.msra.mxu0 0.0
      %719 = vmatpush.msra.mxu0 0.0
      %720 = vmatpush.msra.mxu0 0.0
      %721 = vmatpush.msra.mxu0 0.0
      %722 = vmatpush.msra.mxu0 0.0
      %723 = vmatpush.msra.mxu0 0.0
      %724 = vmatpush.msra.mxu0 %v711
      %725 = vmatpush.msra.mxu0 %v710
      %726 = vmatpush.msra.mxu0 %v709
      %727 = vmatpush.msra.mxu0 %v708
      %728 = vmatmul.f32.gmra.mxu0 %v680
      %v729 = vpop.f32.mrf.mxu0
      %v730 = vadd.f32 0.0, %v729
      %731 = vdwg.mxu0
      %v732 = vmul.f32 %v730, 0.03125
      %v733 = vadd.f32 %v732, 1e-05
      %v734 = vrsqrt.pop %v733
      %v735 = vmul.f32 %v734, %v733
      %v736 = vmul.f32 %v735, %v734
      %v737 = vmul.f32 0.5, %v736
      %v738 = vsub.f32 1.5, %v737
      %v739 = vmul.f32 %v734, %v738
      %vm740 = vweird.f32 %v733
      %vm741 = vweird.f32 %v734
      %vm742 = vmor %vm740, %vm741
      %v743 = vsel %vm742, %v734, %v739
      %v744 = vperm.slane %v743, 0
      %v745 = vmul.f32 %v704, %v744
      %v746 = vmul.f32 %v705, %v744
      %v747 = vmul.f32 %v706, %v744
      %v748 = vmul.f32 %v707, %v744
      %v750 = vperm.slane %v676, 0
      %v752 = vmul.f32 %v745, %v750
      %v753 = vmul.f32 %v746, %v750
      %v754 = vmul.f32 %v747, %v750
      %v755 = vmul.f32 %v748, %v750
      %v757 = vperm.slane %v677, 0
      %v759 = vadd.f32 %v752, %v757
      %v760 = vadd.f32 %v753, %v757
      %v761 = vadd.f32 %v754, %v757
      %v762 = vadd.f32 %v755, %v757
      %v763 = vmax.f32 %v759, 0.0
      %v764 = vmax.f32 %v760, 0.0
      %v765 = vmax.f32 %v761, 0.0
      %v766 = vmax.f32 %v762, 0.0
      %767 = vst [vmem:[%s229] sm:$0xff] %v763
      %768 = vst [vmem:[%s229 + $0x8] sm:$0xff] %v764
      %769 = vst [vmem:[%s229 + $0x10] sm:$0xff] %v765
      %770 = vst [vmem:[%s229 + $0x18] sm:$0xff] %v766
      %s771 = smul.u32 4, %s16
      %p772 = scmp.lt.s32.totalorder %s771, 7
      %s773 = scalar_select %p772, %s771, 7
      %s774 = smul.addr %s773, 8
      %s775 = scalar_lea.vmem %s5, %s774
      // Predicated region
      $region41: #{state_action_predictor.10} parent=39 // pred_check
        %p776 = pneg %p144
      $region42: #{state_action_predictor.10} parent=39 // pred_check_branch
        %778 = sbr.rel (%p776) target = $region44
      $region43: #{state_action_predictor.10} parent=39 // pred_region
        %s779 = smul.u32 4, %s16
      $region44: #{state_action_predictor.10} parent=39 // pred_fallthru
        _
    $region40: #{state_action_predictor.10} parent=5 // pred_fallthru
      _
    %p780 = scmp.le.s32.totalorder 2, %s11
    // Predicated region
    $region45: #{state_action_predictor.10} parent=5 // pred_check
      %p781 = pneg %p780
    $region46: #{state_action_predictor.10} parent=5 // pred_check_branch
      %783 = sbr.rel (%p781) target = $region48
    $region47: #{state_action_predictor.10} parent=5 // pred_region
      %s784 = ssub.s32 %s11, 2
      // Predicated region
      $region49: #{state_action_predictor.10} parent=47 // pred_check
        %p785 = pneg %p150
      $region50: #{state_action_predictor.10} parent=47 // pred_check_branch
        %787 = sbr.rel (%p785) target = $region52
      $region51: #{state_action_predictor.10} parent=47 // pred_region
        %s788 = smul.u32 4, %s17
        %p789 = scmp.lt.s32.totalorder %s788, 7
        %s790 = scalar_select %p789, %s788, 7
        %s791 = smul.addr %s790, 8
        %s792 = scalar_lea.vmem %s5, %s791
      $region52: #{state_action_predictor.10} parent=47 // pred_fallthru
        _
    $region48: #{state_action_predictor.10} parent=5 // pred_fallthru
      _
  $region6: #{state_action_predictor.10} parent=0 // loop_footer
    %s15 = sadd.s32 1, %s11
  $region7: #{state_action_predictor.10} parent=0 // loop_footer_branch
    %10 = sbr.rel target = $region3
  $region8: #{state_action_predictor.10} parent=0 // loop_exit
    _

// kernel: state_action_predictor.11
$region0: #{state_action_predictor.11}
  #allocation0 [shape = 'u32[]', space=smem, size = 0x4, offset = 0x4, fixed_abs, tag = 'smem constant byte address 0x4 - core index']
  #allocation1 [shape = 'u32[72,128]{1,0:T(1,128)}', space=vmem, size = 0x9000, scoped, tag = 'internal scratch']
  %s0 = inlined_call_operand.vmem [shape: f32[16,1152], index: 0, kind: input, shape index: {}]
  %s1 = inlined_call_operand.vmem [shape: f32[1152,128], index: 1, kind: input, shape index: {}]
  %s2 = inlined_call_operand.vmem [shape: f32[1,128], index: 2, kind: input, shape index: {}]
  %s3 = inlined_call_operand.vmem [shape: f32[1,128], index: 3, kind: input, shape index: {}]
  %s4 = inlined_call_operand.vmem [shape: f32[1,128], index: 4, kind: input, shape index: {}]
  %s5 = inlined_call_operand.vmem [shape: f32[16,128], index: 5, kind: output, shape index: {}]
  %s6 = sld [smem:[#allocation0]]
  $region53: #{state_action_predictor.11} parent=0
    _
  %s8 = ssub.s32 1, %s6
  %s9 = scalar_select 0, %s8, %s6
  loop: start=0, step=1, limit=4
  $region2: #{state_action_predictor.11} parent=0 // loop_pre_header
    _
  $region3: #{state_action_predictor.11} parent=0 // loop_header
    %s11 = sphi 0, %s15
    %p12 = scmp.ge.s32.totalorder %s11, 4
    %s21 = sphi 0, %s23
    %s24 = sphi 0, %s21
    %s25 = sphi 0, %s24
    %s41 = sphi 0, %s25
    %s45 = sphi 0, %s45
    %s47 = sphi 0, %s45
    %s48 = sphi 0, %s47
    %s62 = sphi 0, %s48
    %s66 = sphi 0, %s66
    %s68 = sphi 0, %s66
    %s69 = sphi 0, %s68
    %s83 = sphi 0, %s69
    %s87 = sphi 0, %s87
    %s89 = sphi 0, %s87
    %s90 = sphi 0, %s89
    %s104 = sphi 0, %s90
    %s108 = sphi 0, %s108
    %s110 = sphi 0, %s108
    %s111 = sphi 0, %s110
    %s125 = sphi 0, %s111
    %s131 = sphi 0, %s133
    %s134 = sphi 0, %s131
    %s135 = sphi 0, %s134
    %s151 = sphi 0, %s135
  $region4: #{state_action_predictor.11} parent=0 // loop_header_branch
    %14 = sbr.rel (%p12) target = $region8
  $region5: #{state_action_predictor.11} parent=0 // loop_body
    %s16 = ssub.s32 %s11, 1
    %s17 = ssub.s32 %s11, 2
    %s18 = sadd.s32 %s11, 1
    %s19 = ssub.s32 %s11, %s18
    %p20 = scmp.eq.s32.totalorder %s19, 0
    %s22 = sadd.s32 %s21, 1
    %s23 = scalar_select %p20, %s21, %s22
    %p26 = pneg %p20
    %p27 = scmp.eq.s32.totalorder %s11, 1
    %p28 = por %p26, %p27
    %p29 = scmp.ne.s32.totalorder %s21, %s24
    %p30 = scmp.eq.s32.totalorder %s11, 0
    %p31 = por %p29, %p30
    %p32 = scmp.ne.s32.totalorder %s21, %s24
    %p33 = scmp.eq.s32.totalorder %s16, 1
    %p34 = por %p32, %p33
    %p35 = scmp.ne.s32.totalorder %s24, %s25
    %p36 = scmp.eq.s32.totalorder %s16, 0
    %p37 = por %p35, %p36
    %p38 = scmp.ne.s32.totalorder %s24, %s25
    %p39 = scmp.eq.s32.totalorder %s17, 1
    %p40 = por %p38, %p39
    %p42 = scmp.ne.s32.totalorder %s25, %s41
    %p43 = scmp.eq.s32.totalorder %s17, 0
    %p44 = por %p42, %p43
    %s46 = sadd.s32 %s45, 1
    %p49 = scmp.eq.s32.totalorder %s11, 1
    %p50 = scmp.ne.s32.totalorder %s45, %s47
    %p51 = scmp.eq.s32.totalorder %s11, 0
    %p52 = por %p50, %p51
    %p53 = scmp.ne.s32.totalorder %s45, %s47
    %p54 = scmp.eq.s32.totalorder %s16, 1
    %p55 = por %p53, %p54
    %p56 = scmp.ne.s32.totalorder %s47, %s48
    %p57 = scmp.eq.s32.totalorder %s16, 0
    %p58 = por %p56, %p57
    %p59 = scmp.ne.s32.totalorder %s47, %s48
    %p60 = scmp.eq.s32.totalorder %s17, 1
    %p61 = por %p59, %p60
    %p63 = scmp.ne.s32.totalorder %s48, %s62
    %p64 = scmp.eq.s32.totalorder %s17, 0
    %p65 = por %p63, %p64
    %s67 = sadd.s32 %s66, 1
    %p70 = scmp.eq.s32.totalorder %s11, 1
    %p71 = scmp.ne.s32.totalorder %s66, %s68
    %p72 = scmp.eq.s32.totalorder %s11, 0
    %p73 = por %p71, %p72
    %p74 = scmp.ne.s32.totalorder %s66, %s68
    %p75 = scmp.eq.s32.totalorder %s16, 1
    %p76 = por %p74, %p75
    %p77 = scmp.ne.s32.totalorder %s68, %s69
    %p78 = scmp.eq.s32.totalorder %s16, 0
    %p79 = por %p77, %p78
    %p80 = scmp.ne.s32.totalorder %s68, %s69
    %p81 = scmp.eq.s32.totalorder %s17, 1
    %p82 = por %p80, %p81
    %p84 = scmp.ne.s32.totalorder %s69, %s83
    %p85 = scmp.eq.s32.totalorder %s17, 0
    %p86 = por %p84, %p85
    %s88 = sadd.s32 %s87, 1
    %p91 = scmp.eq.s32.totalorder %s11, 1
    %p92 = scmp.ne.s32.totalorder %s87, %s89
    %p93 = scmp.eq.s32.totalorder %s11, 0
    %p94 = por %p92, %p93
    %p95 = scmp.ne.s32.totalorder %s87, %s89
    %p96 = scmp.eq.s32.totalorder %s16, 1
    %p97 = por %p95, %p96
    %p98 = scmp.ne.s32.totalorder %s89, %s90
    %p99 = scmp.eq.s32.totalorder %s16, 0
    %p100 = por %p98, %p99
    %p101 = scmp.ne.s32.totalorder %s89, %s90
    %p102 = scmp.eq.s32.totalorder %s17, 1
    %p103 = por %p101, %p102
    %p105 = scmp.ne.s32.totalorder %s90, %s104
    %p106 = scmp.eq.s32.totalorder %s17, 0
    %p107 = por %p105, %p106
    %s109 = sadd.s32 %s108, 1
    %p112 = scmp.eq.s32.totalorder %s11, 1
    %p113 = scmp.ne.s32.totalorder %s108, %s110
    %p114 = scmp.eq.s32.totalorder %s11, 0
    %p115 = por %p113, %p114
    %p116 = scmp.ne.s32.totalorder %s108, %s110
    %p117 = scmp.eq.s32.totalorder %s16, 1
    %p118 = por %p116, %p117
    %p119 = scmp.ne.s32.totalorder %s110, %s111
    %p120 = scmp.eq.s32.totalorder %s16, 0
    %p121 = por %p119, %p120
    %p122 = scmp.ne.s32.totalorder %s110, %s111
    %p123 = scmp.eq.s32.totalorder %s17, 1
    %p124 = por %p122, %p123
    %p126 = scmp.ne.s32.totalorder %s111, %s125
    %p127 = scmp.eq.s32.totalorder %s17, 0
    %p128 = por %p126, %p127
    %s129 = ssub.s32 %s11, %s18
    %p130 = scmp.eq.s32.totalorder %s129, 0
    %s132 = sadd.s32 %s131, 1
    %s133 = scalar_select %p130, %s131, %s132
    %p136 = pneg %p130
    %p137 = scmp.eq.s32.totalorder %s11, 1
    %p138 = por %p136, %p137
    %p139 = scmp.ne.s32.totalorder %s131, %s134
    %p140 = scmp.eq.s32.totalorder %s11, 0
    %p141 = por %p139, %p140
    %p142 = scmp.ne.s32.totalorder %s131, %s134
    %p143 = scmp.eq.s32.totalorder %s16, 1
    %p144 = por %p142, %p143
    %p145 = scmp.ne.s32.totalorder %s134, %s135
    %p146 = scmp.eq.s32.totalorder %s16, 0
    %p147 = por %p145, %p146
    %p148 = scmp.ne.s32.totalorder %s134, %s135
    %p149 = scmp.eq.s32.totalorder %s17, 1
    %p150 = por %p148, %p149
    %p152 = scmp.ne.s32.totalorder %s135, %s151
    %p153 = scmp.eq.s32.totalorder %s17, 0
    %p154 = por %p152, %p153
    %p155 = scmp.le.s32.totalorder 1, %s11
    %p156 = scmp.lt.s32.totalorder %s11, 3
    %p157 = pnand %p155, %p156
    %p158 = pneg %p157
    // Predicated region
    $region9: #{state_action_predictor.11} parent=5 // pred_check
      _
    $region10: #{state_action_predictor.11} parent=5 // pred_check_branch
      %160 = sbr.rel (%p157) target = $region12
    $region11: #{state_action_predictor.11} parent=5 // pred_region
      %s161 = ssub.s32 %s11, 1
      // Predicated region
      $region13: #{state_action_predictor.11} parent=11 // pred_check
        %p162 = pneg %p58
      $region14: #{state_action_predictor.11} parent=11 // pred_check_branch
        %164 = sbr.rel (%p162) target = $region16
      $region15: #{state_action_predictor.11} parent=11 // pred_region
        _
      $region16: #{state_action_predictor.11} parent=11 // pred_fallthru
        _
      // Predicated region
      $region17: #{state_action_predictor.11} parent=11 // pred_check
        %p165 = pneg %p79
      $region18: #{state_action_predictor.11} parent=11 // pred_check_branch
        %167 = sbr.rel (%p165) target = $region20
      $region19: #{state_action_predictor.11} parent=11 // pred_region
        _
      $region20: #{state_action_predictor.11} parent=11 // pred_fallthru
        _
      // Predicated region
      $region21: #{state_action_predictor.11} parent=11 // pred_check
        %p168 = pneg %p100
      $region22: #{state_action_predictor.11} parent=11 // pred_check_branch
        %170 = sbr.rel (%p168) target = $region24
      $region23: #{state_action_predictor.11} parent=11 // pred_region
        _
      $region24: #{state_action_predictor.11} parent=11 // pred_fallthru
        _
      // Predicated region
      $region25: #{state_action_predictor.11} parent=11 // pred_check
        %p171 = pneg %p121
      $region26: #{state_action_predictor.11} parent=11 // pred_check_branch
        %173 = sbr.rel (%p171) target = $region28
      $region27: #{state_action_predictor.11} parent=11 // pred_region
        _
      $region28: #{state_action_predictor.11} parent=11 // pred_fallthru
        _
    $region12: #{state_action_predictor.11} parent=5 // pred_fallthru
      _
    %p174 = scmp.lt.s32.totalorder %s11, 2
    // Predicated region
    $region29: #{state_action_predictor.11} parent=5 // pred_check
      %p175 = pneg %p174
    $region30: #{state_action_predictor.11} parent=5 // pred_check_branch
      %177 = sbr.rel (%p175) target = $region32
    $region31: #{state_action_predictor.11} parent=5 // pred_region
      // Predicated region
      $region33: #{state_action_predictor.11} parent=31 // pred_check
        %p178 = pneg %p31
      $region34: #{state_action_predictor.11} parent=31 // pred_check_branch
        %180 = sbr.rel (%p178) target = $region36
      $region35: #{state_action_predictor.11} parent=31 // pred_region
        %p181 = scmp.lt.s32.totalorder %s11, 1
        %s182 = scalar_select %p181, %s11, 1
        %s183 = smul.addr %s182, 9
        %s184 = smul.addr %s183, 8
        %s185 = scalar_lea.vmem %s0, %s184
      $region36: #{state_action_predictor.11} parent=31 // pred_fallthru
        _
    $region32: #{state_action_predictor.11} parent=5 // pred_fallthru
      _
    %p186 = scmp.le.s32.totalorder 1, %s11
    %p187 = scmp.lt.s32.totalorder %s11, 3
    %p188 = pnand %p186, %p187
    %p189 = pneg %p188
    // Predicated region
    $region37: #{state_action_predictor.11} parent=5 // pred_check
      _
    $region38: #{state_action_predictor.11} parent=5 // pred_check_branch
      %191 = sbr.rel (%p188) target = $region40
    $region39: #{state_action_predictor.11} parent=5 // pred_region
      %s192 = ssub.s32 %s11, 1
      %p193 = scmp.lt.s32.totalorder %s16, 1
      %s194 = scalar_select %p193, %s16, 1
      %s195 = smul.addr %s194, 9
      %s196 = smul.addr %s195, 8
      %s197 = scalar_lea.vmem %s0, %s196
      %p198 = pneg %p37
      %p199 = pneg %p34
      %p200 = pneg %p58
      %p201 = pneg %p55
      %p202 = pneg %p79
      %p203 = pneg %p76
      %p204 = pneg %p100
      %p205 = pneg %p97
      %p206 = pneg %p121
      %p207 = pneg %p118
      %p208 = pneg %p147
      %p209 = pneg %p144
      %p210 = scmp.lt.s32.totalorder %s16, 1
      %s211 = scalar_select %p210, %s16, 1
      %s212 = smul.addr %s211, 8
      %s213 = scalar_lea.vmem %s5, %s212
      %p214 = scmp.lt.s32.totalorder %s16, 1
      %s215 = scalar_select %p214, %s16, 1
      %s216 = smul.addr %s215, 9
      %s217 = smul.addr %s216, 8
      %s218 = scalar_lea.vmem %s0, %s217
      %p219 = scmp.lt.s32.totalorder %s16, 1
      %s220 = scalar_select %p219, %s16, 1
      %s221 = smul.addr %s220, 8
      %s222 = scalar_lea.vmem %s5, %s221
      %v223 = vld [vmem:[%s218] sm:$0xff]
      %v224 = vld [vmem:[%s218 + $0x8] sm:$0xff]
      %v225 = vld [vmem:[%s218 + $0x10] sm:$0xff]
      %v226 = vld [vmem:[%s218 + $0x18] sm:$0xff]
      %v227 = vld [vmem:[%s218 + $0x20] sm:$0xff]
      %v228 = vld [vmem:[%s218 + $0x28] sm:$0xff]
      %v229 = vld [vmem:[%s218 + $0x30] sm:$0xff]
      %v230 = vld [vmem:[%s218 + $0x38] sm:$0xff]
      %v231 = vld [vmem:[%s218 + $0x40] sm:$0xff]
      %v232 = vld [vmem:[%s1] sm:$0xff]
      %v233 = vld [vmem:[%s1 + $0x8] sm:$0xff]
      %v234 = vld [vmem:[%s1 + $0x10] sm:$0xff]
      %v235 = vld [vmem:[%s1 + $0x18] sm:$0xff]
      %v236 = vld [vmem:[%s1 + $0x20] sm:$0xff]
      %v237 = vld [vmem:[%s1 + $0x28] sm:$0xff]
      %v238 = vld [vmem:[%s1 + $0x30] sm:$0xff]
      %v239 = vld [vmem:[%s1 + $0x38] sm:$0xff]
      %v240 = vld [vmem:[%s1 + $0x40] sm:$0xff]
      %v241 = vld [vmem:[%s1 + $0x48] sm:$0xff]
      %v242 = vld [vmem:[%s1 + $0x50] sm:$0xff]
      %v243 = vld [vmem:[%s1 + $0x58] sm:$0xff]
      %v244 = vld [vmem:[%s1 + $0x60] sm:$0xff]
      %v245 = vld [vmem:[%s1 + $0x68] sm:$0xff]
      %v246 = vld [vmem:[%s1 + $0x70] sm:$0xff]
      %v247 = vld [vmem:[%s1 + $0x78] sm:$0xff]
      %v248 = vld [vmem:[%s1 + $0x80] sm:$0xff]
      %v249 = vld [vmem:[%s1 + $0x88] sm:$0xff]
      %v250 = vld [vmem:[%s1 + $0x90] sm:$0xff]
      %v251 = vld [vmem:[%s1 + $0x98] sm:$0xff]
      %v252 = vld [vmem:[%s1 + $0xa0] sm:$0xff]
      %v253 = vld [vmem:[%s1 + $0xa8] sm:$0xff]
      %v254 = vld [vmem:[%s1 + $0xb0] sm:$0xff]
      %v255 = vld [vmem:[%s1 + $0xb8] sm:$0xff]
      %v256 = vld [vmem:[%s1 + $0xc0] sm:$0xff]
      %v257 = vld [vmem:[%s1 + $0xc8] sm:$0xff]
      %v258 = vld [vmem:[%s1 + $0xd0] sm:$0xff]
      %v259 = vld [vmem:[%s1 + $0xd8] sm:$0xff]
      %v260 = vld [vmem:[%s1 + $0xe0] sm:$0xff]
      %v261 = vld [vmem:[%s1 + $0xe8] sm:$0xff]
      %v262 = vld [vmem:[%s1 + $0xf0] sm:$0xff]
      %v263 = vld [vmem:[%s1 + $0xf8] sm:$0xff]
      %v264 = vld [vmem:[%s1 + $0x100] sm:$0xff]
      %v265 = vld [vmem:[%s1 + $0x108] sm:$0xff]
      %v266 = vld [vmem:[%s1 + $0x110] sm:$0xff]
      %v267 = vld [vmem:[%s1 + $0x118] sm:$0xff]
      %v268 = vld [vmem:[%s1 + $0x120] sm:$0xff]
      %v269 = vld [vmem:[%s1 + $0x128] sm:$0xff]
      %v270 = vld [vmem:[%s1 + $0x130] sm:$0xff]
      %v271 = vld [vmem:[%s1 + $0x138] sm:$0xff]
      %v272 = vld [vmem:[%s1 + $0x140] sm:$0xff]
      %v273 = vld [vmem:[%s1 + $0x148] sm:$0xff]
      %v274 = vld [vmem:[%s1 + $0x150] sm:$0xff]
      %v275 = vld [vmem:[%s1 + $0x158] sm:$0xff]
      %v276 = vld [vmem:[%s1 + $0x160] sm:$0xff]
      %v277 = vld [vmem:[%s1 + $0x168] sm:$0xff]
      %v278 = vld [vmem:[%s1 + $0x170] sm:$0xff]
      %v279 = vld [vmem:[%s1 + $0x178] sm:$0xff]
      %v280 = vld [vmem:[%s1 + $0x180] sm:$0xff]
      %v281 = vld [vmem:[%s1 + $0x188] sm:$0xff]
      %v282 = vld [vmem:[%s1 + $0x190] sm:$0xff]
      %v283 = vld [vmem:[%s1 + $0x198] sm:$0xff]
      %v284 = vld [vmem:[%s1 + $0x1a0] sm:$0xff]
      %v285 = vld [vmem:[%s1 + $0x1a8] sm:$0xff]
      %v286 = vld [vmem:[%s1 + $0x1b0] sm:$0xff]
      %v287 = vld [vmem:[%s1 + $0x1b8] sm:$0xff]
      %v288 = vld [vmem:[%s1 + $0x1c0] sm:$0xff]
      %v289 = vld [vmem:[%s1 + $0x1c8] sm:$0xff]
      %v290 = vld [vmem:[%s1 + $0x1d0] sm:$0xff]
      %v291 = vld [vmem:[%s1 + $0x1d8] sm:$0xff]
      %v292 = vld [vmem:[%s1 + $0x1e0] sm:$0xff]
      %v293 = vld [vmem:[%s1 + $0x1e8] sm:$0xff]
      %v294 = vld [vmem:[%s1 + $0x1f0] sm:$0xff]
      %v295 = vld [vmem:[%s1 + $0x1f8] sm:$0xff]
      %v296 = vld [vmem:[%s1 + $0x200] sm:$0xff]
      %v297 = vld [vmem:[%s1 + $0x208] sm:$0xff]
      %v298 = vld [vmem:[%s1 + $0x210] sm:$0xff]
      %v299 = vld [vmem:[%s1 + $0x218] sm:$0xff]
      %v300 = vld [vmem:[%s1 + $0x220] sm:$0xff]
      %v301 = vld [vmem:[%s1 + $0x228] sm:$0xff]
      %v302 = vld [vmem:[%s1 + $0x230] sm:$0xff]
      %v303 = vld [vmem:[%s1 + $0x238] sm:$0xff]
      %v304 = vld [vmem:[%s1 + $0x240] sm:$0xff]
      %v305 = vld [vmem:[%s1 + $0x248] sm:$0xff]
      %v306 = vld [vmem:[%s1 + $0x250] sm:$0xff]
      %v307 = vld [vmem:[%s1 + $0x258] sm:$0xff]
      %v308 = vld [vmem:[%s1 + $0x260] sm:$0xff]
      %v309 = vld [vmem:[%s1 + $0x268] sm:$0xff]
      %v310 = vld [vmem:[%s1 + $0x270] sm:$0xff]
      %v311 = vld [vmem:[%s1 + $0x278] sm:$0xff]
      %v312 = vld [vmem:[%s1 + $0x280] sm:$0xff]
      %v313 = vld [vmem:[%s1 + $0x288] sm:$0xff]
      %v314 = vld [vmem:[%s1 + $0x290] sm:$0xff]
      %v315 = vld [vmem:[%s1 + $0x298] sm:$0xff]
      %v316 = vld [vmem:[%s1 + $0x2a0] sm:$0xff]
      %v317 = vld [vmem:[%s1 + $0x2a8] sm:$0xff]
      %v318 = vld [vmem:[%s1 + $0x2b0] sm:$0xff]
      %v319 = vld [vmem:[%s1 + $0x2b8] sm:$0xff]
      %v320 = vld [vmem:[%s1 + $0x2c0] sm:$0xff]
      %v321 = vld [vmem:[%s1 + $0x2c8] sm:$0xff]
      %v322 = vld [vmem:[%s1 + $0x2d0] sm:$0xff]
      %v323 = vld [vmem:[%s1 + $0x2d8] sm:$0xff]
      %v324 = vld [vmem:[%s1 + $0x2e0] sm:$0xff]
      %v325 = vld [vmem:[%s1 + $0x2e8] sm:$0xff]
      %v326 = vld [vmem:[%s1 + $0x2f0] sm:$0xff]
      %v327 = vld [vmem:[%s1 + $0x2f8] sm:$0xff]
      %v328 = vld [vmem:[%s1 + $0x300] sm:$0xff]
      %v329 = vld [vmem:[%s1 + $0x308] sm:$0xff]
      %v330 = vld [vmem:[%s1 + $0x310] sm:$0xff]
      %v331 = vld [vmem:[%s1 + $0x318] sm:$0xff]
      %v332 = vld [vmem:[%s1 + $0x320] sm:$0xff]
      %v333 = vld [vmem:[%s1 + $0x328] sm:$0xff]
      %v334 = vld [vmem:[%s1 + $0x330] sm:$0xff]
      %v335 = vld [vmem:[%s1 + $0x338] sm:$0xff]
      %v336 = vld [vmem:[%s1 + $0x340] sm:$0xff]
      %v337 = vld [vmem:[%s1 + $0x348] sm:$0xff]
      %v338 = vld [vmem:[%s1 + $0x350] sm:$0xff]
      %v339 = vld [vmem:[%s1 + $0x358] sm:$0xff]
      %v340 = vld [vmem:[%s1 + $0x360] sm:$0xff]
      %v341 = vld [vmem:[%s1 + $0x368] sm:$0xff]
      %v342 = vld [vmem:[%s1 + $0x370] sm:$0xff]
      %v343 = vld [vmem:[%s1 + $0x378] sm:$0xff]
      %v344 = vld [vmem:[%s1 + $0x380] sm:$0xff]
      %v345 = vld [vmem:[%s1 + $0x388] sm:$0xff]
      %v346 = vld [vmem:[%s1 + $0x390] sm:$0xff]
      %v347 = vld [vmem:[%s1 + $0x398] sm:$0xff]
      %v348 = vld [vmem:[%s1 + $0x3a0] sm:$0xff]
      %v349 = vld [vmem:[%s1 + $0x3a8] sm:$0xff]
      %v350 = vld [vmem:[%s1 + $0x3b0] sm:$0xff]
      %v351 = vld [vmem:[%s1 + $0x3b8] sm:$0xff]
      %v352 = vld [vmem:[%s1 + $0x3c0] sm:$0xff]
      %v353 = vld [vmem:[%s1 + $0x3c8] sm:$0xff]
      %v354 = vld [vmem:[%s1 + $0x3d0] sm:$0xff]
      %v355 = vld [vmem:[%s1 + $0x3d8] sm:$0xff]
      %v356 = vld [vmem:[%s1 + $0x3e0] sm:$0xff]
      %v357 = vld [vmem:[%s1 + $0x3e8] sm:$0xff]
      %v358 = vld [vmem:[%s1 + $0x3f0] sm:$0xff]
      %v359 = vld [vmem:[%s1 + $0x3f8] sm:$0xff]
      %v360 = vld [vmem:[%s1 + $0x400] sm:$0xff]
      %v361 = vld [vmem:[%s1 + $0x408] sm:$0xff]
      %v362 = vld [vmem:[%s1 + $0x410] sm:$0xff]
      %v363 = vld [vmem:[%s1 + $0x418] sm:$0xff]
      %v364 = vld [vmem:[%s1 + $0x420] sm:$0xff]
      %v365 = vld [vmem:[%s1 + $0x428] sm:$0xff]
      %v366 = vld [vmem:[%s1 + $0x430] sm:$0xff]
      %v367 = vld [vmem:[%s1 + $0x438] sm:$0xff]
      %v368 = vld [vmem:[%s1 + $0x440] sm:$0xff]
      %v369 = vld [vmem:[%s1 + $0x448] sm:$0xff]
      %v370 = vld [vmem:[%s1 + $0x450] sm:$0xff]
      %v371 = vld [vmem:[%s1 + $0x458] sm:$0xff]
      %v372 = vld [vmem:[%s1 + $0x460] sm:$0xff]
      %v373 = vld [vmem:[%s1 + $0x468] sm:$0xff]
      %v374 = vld [vmem:[%s1 + $0x470] sm:$0xff]
      %v375 = vld [vmem:[%s1 + $0x478] sm:$0xff]
      %v376 = vld [vmem:[%s2] sm:$0x1]
      %v378 = vperm.slane %v376, 0
      %380 = vmatpush.msra.mxu0 %v247
      %381 = vmatpush.msra.mxu0 %v246
      %382 = vmatpush.msra.mxu0 %v245
      %383 = vmatpush.msra.mxu0 %v244
      %384 = vmatpush.msra.mxu0 %v243
      %385 = vmatpush.msra.mxu0 %v242
      %386 = vmatpush.msra.mxu0 %v241
      %387 = vmatpush.msra.mxu0 %v240
      %388 = vmatpush.msra.mxu0 %v239
      %389 = vmatpush.msra.mxu0 %v238
      %390 = vmatpush.msra.mxu0 %v237
      %391 = vmatpush.msra.mxu0 %v236
      %392 = vmatpush.msra.mxu0 %v235
      %393 = vmatpush.msra.mxu0 %v234
      %394 = vmatpush.msra.mxu0 %v233
      %395 = vmatpush.msra.mxu0 %v232
      %396 = vmatmul.f32.gmra.mxu0 %v223
      %v397 = vpop.f32.mrf.mxu0
      %v398 = vadd.f32 %v378, %v397
      %399 = vdwg.mxu0
      %400 = vmatpush.msra.mxu0 %v263
      %401 = vmatpush.msra.mxu0 %v262
      %402 = vmatpush.msra.mxu0 %v261
      %403 = vmatpush.msra.mxu0 %v260
      %404 = vmatpush.msra.mxu0 %v259
      %405 = vmatpush.msra.mxu0 %v258
      %406 = vmatpush.msra.mxu0 %v257
      %407 = vmatpush.msra.mxu0 %v256
      %408 = vmatpush.msra.mxu0 %v255
      %409 = vmatpush.msra.mxu0 %v254
      %410 = vmatpush.msra.mxu0 %v253
      %411 = vmatpush.msra.mxu0 %v252
      %412 = vmatpush.msra.mxu0 %v251
      %413 = vmatpush.msra.mxu0 %v250
      %414 = vmatpush.msra.mxu0 %v249
      %415 = vmatpush.msra.mxu0 %v248
      %416 = vmatmul.f32.gmra.mxu0 %v224
      %v417 = vpop.f32.mrf.mxu0
      %v418 = vadd.f32 %v398, %v417
      %419 = vdwg.mxu0
      %420 = vmatpush.msra.mxu0 %v279
      %421 = vmatpush.msra.mxu0 %v278
      %422 = vmatpush.msra.mxu0 %v277
      %423 = vmatpush.msra.mxu0 %v276
      %424 = vmatpush.msra.mxu0 %v275
      %425 = vmatpush.msra.mxu0 %v274
      %426 = vmatpush.msra.mxu0 %v273
      %427 = vmatpush.msra.mxu0 %v272
      %428 = vmatpush.msra.mxu0 %v271
      %429 = vmatpush.msra.mxu0 %v270
      %430 = vmatpush.msra.mxu0 %v269
      %431 = vmatpush.msra.mxu0 %v268
      %432 = vmatpush.msra.mxu0 %v267
      %433 = vmatpush.msra.mxu0 %v266
      %434 = vmatpush.msra.mxu0 %v265
      %435 = vmatpush.msra.mxu0 %v264
      %436 = vmatmul.f32.gmra.mxu0 %v225
      %v437 = vpop.f32.mrf.mxu0
      %v438 = vadd.f32 %v418, %v437
      %439 = vdwg.mxu0
      %440 = vmatpush.msra.mxu0 %v295
      %441 = vmatpush.msra.mxu0 %v294
      %442 = vmatpush.msra.mxu0 %v293
      %443 = vmatpush.msra.mxu0 %v292
      %444 = vmatpush.msra.mxu0 %v291
      %445 = vmatpush.msra.mxu0 %v290
      %446 = vmatpush.msra.mxu0 %v289
      %447 = vmatpush.msra.mxu0 %v288
      %448 = vmatpush.msra.mxu0 %v287
      %449 = vmatpush.msra.mxu0 %v286
      %450 = vmatpush.msra.mxu0 %v285
      %451 = vmatpush.msra.mxu0 %v284
      %452 = vmatpush.msra.mxu0 %v283
      %453 = vmatpush.msra.mxu0 %v282
      %454 = vmatpush.msra.mxu0 %v281
      %455 = vmatpush.msra.mxu0 %v280
      %456 = vmatmul.f32.gmra.mxu0 %v226
      %v457 = vpop.f32.mrf.mxu0
      %v458 = vadd.f32 %v438, %v457
      %459 = vdwg.mxu0
      %460 = vmatpush.msra.mxu0 %v311
      %461 = vmatpush.msra.mxu0 %v310
      %462 = vmatpush.msra.mxu0 %v309
      %463 = vmatpush.msra.mxu0 %v308
      %464 = vmatpush.msra.mxu0 %v307
      %465 = vmatpush.msra.mxu0 %v306
      %466 = vmatpush.msra.mxu0 %v305
      %467 = vmatpush.msra.mxu0 %v304
      %468 = vmatpush.msra.mxu0 %v303
      %469 = vmatpush.msra.mxu0 %v302
      %470 = vmatpush.msra.mxu0 %v301
      %471 = vmatpush.msra.mxu0 %v300
      %472 = vmatpush.msra.mxu0 %v299
      %473 = vmatpush.msra.mxu0 %v298
      %474 = vmatpush.msra.mxu0 %v297
      %475 = vmatpush.msra.mxu0 %v296
      %476 = vmatmul.f32.gmra.mxu0 %v227
      %v477 = vpop.f32.mrf.mxu0
      %v478 = vadd.f32 %v458, %v477
      %479 = vdwg.mxu0
      %480 = vmatpush.msra.mxu0 %v327
      %481 = vmatpush.msra.mxu0 %v326
      %482 = vmatpush.msra.mxu0 %v325
      %483 = vmatpush.msra.mxu0 %v324
      %484 = vmatpush.msra.mxu0 %v323
      %485 = vmatpush.msra.mxu0 %v322
      %486 = vmatpush.msra.mxu0 %v321
      %487 = vmatpush.msra.mxu0 %v320
      %488 = vmatpush.msra.mxu0 %v319
      %489 = vmatpush.msra.mxu0 %v318
      %490 = vmatpush.msra.mxu0 %v317
      %491 = vmatpush.msra.mxu0 %v316
      %492 = vmatpush.msra.mxu0 %v315
      %493 = vmatpush.msra.mxu0 %v314
      %494 = vmatpush.msra.mxu0 %v313
      %495 = vmatpush.msra.mxu0 %v312
      %496 = vmatmul.f32.gmra.mxu0 %v228
      %v497 = vpop.f32.mrf.mxu0
      %v498 = vadd.f32 %v478, %v497
      %499 = vdwg.mxu0
      %500 = vmatpush.msra.mxu0 %v343
      %501 = vmatpush.msra.mxu0 %v342
      %502 = vmatpush.msra.mxu0 %v341
      %503 = vmatpush.msra.mxu0 %v340
      %504 = vmatpush.msra.mxu0 %v339
      %505 = vmatpush.msra.mxu0 %v338
      %506 = vmatpush.msra.mxu0 %v337
      %507 = vmatpush.msra.mxu0 %v336
      %508 = vmatpush.msra.mxu0 %v335
      %509 = vmatpush.msra.mxu0 %v334
      %510 = vmatpush.msra.mxu0 %v333
      %511 = vmatpush.msra.mxu0 %v332
      %512 = vmatpush.msra.mxu0 %v331
      %513 = vmatpush.msra.mxu0 %v330
      %514 = vmatpush.msra.mxu0 %v329
      %515 = vmatpush.msra.mxu0 %v328
      %516 = vmatmul.f32.gmra.mxu0 %v229
      %v517 = vpop.f32.mrf.mxu0
      %v518 = vadd.f32 %v498, %v517
      %519 = vdwg.mxu0
      %520 = vmatpush.msra.mxu0 %v359
      %521 = vmatpush.msra.mxu0 %v358
      %522 = vmatpush.msra.mxu0 %v357
      %523 = vmatpush.msra.mxu0 %v356
      %524 = vmatpush.msra.mxu0 %v355
      %525 = vmatpush.msra.mxu0 %v354
      %526 = vmatpush.msra.mxu0 %v353
      %527 = vmatpush.msra.mxu0 %v352
      %528 = vmatpush.msra.mxu0 %v351
      %529 = vmatpush.msra.mxu0 %v350
      %530 = vmatpush.msra.mxu0 %v349
      %531 = vmatpush.msra.mxu0 %v348
      %532 = vmatpush.msra.mxu0 %v347
      %533 = vmatpush.msra.mxu0 %v346
      %534 = vmatpush.msra.mxu0 %v345
      %535 = vmatpush.msra.mxu0 %v344
      %536 = vmatmul.f32.gmra.mxu0 %v230
      %v537 = vpop.f32.mrf.mxu0
      %v538 = vadd.f32 %v518, %v537
      %539 = vdwg.mxu0
      %540 = vmatpush.msra.mxu0 %v375
      %541 = vmatpush.msra.mxu0 %v374
      %542 = vmatpush.msra.mxu0 %v373
      %543 = vmatpush.msra.mxu0 %v372
      %544 = vmatpush.msra.mxu0 %v371
      %545 = vmatpush.msra.mxu0 %v370
      %546 = vmatpush.msra.mxu0 %v369
      %547 = vmatpush.msra.mxu0 %v368
      %548 = vmatpush.msra.mxu0 %v367
      %549 = vmatpush.msra.mxu0 %v366
      %550 = vmatpush.msra.mxu0 %v365
      %551 = vmatpush.msra.mxu0 %v364
      %552 = vmatpush.msra.mxu0 %v363
      %553 = vmatpush.msra.mxu0 %v362
      %554 = vmatpush.msra.mxu0 %v361
      %555 = vmatpush.msra.mxu0 %v360
      %556 = vmatmul.f32.gmra.mxu0 %v231
      %v557 = vpop.f32.mrf.mxu0
      %v558 = vadd.f32 %v538, %v557
      %559 = vdwg.mxu0
      %v560 = vld [vmem:[%s3] sm:$0x1]
      %v561 = vld [vmem:[%s4] sm:$0x1]
      %vm562 = vcmask 64512
      %v564 = vsel %vm562, 1.0, 0
      %566 = vmatpush.msra.mxu0 0.0
      %567 = vmatpush.msra.mxu0 0.0
      %568 = vmatpush.msra.mxu0 0.0
      %569 = vmatpush.msra.mxu0 0.0
      %570 = vmatpush.msra.mxu0 0.0
      %571 = vmatpush.msra.mxu0 0.0
      %572 = vmatpush.msra.mxu0 0.0
      %573 = vmatpush.msra.mxu0 0.0
      %574 = vmatpush.msra.mxu0 0.0
      %575 = vmatpush.msra.mxu0 0.0
      %576 = vmatpush.msra.mxu0 0.0
      %577 = vmatpush.msra.mxu0 0.0
      %578 = vmatpush.msra.mxu0 0.0
      %579 = vmatpush.msra.mxu0 0.0
      %580 = vmatpush.msra.mxu0 0.0
      %581 = vmatpush.msra.mxu0 %v558
      %582 = vmatmul.f32.gmra.mxu0 %v564
      %v583 = vpop.f32.mrf.mxu0
      %v584 = vadd.f32 0.0, %v583
      %585 = vdwg.mxu0
      %v586 = vmul.f32 %v584, 0.125
      %v587 = vperm.slane %v586, 0
      %v588 = vsub.f32 %v558, %v587
      %v589 = vmul.f32 %v588, %v588
      %590 = vmatpush.msra.mxu0 0.0
      %591 = vmatpush.msra.mxu0 0.0
      %592 = vmatpush.msra.mxu0 0.0
      %593 = vmatpush.msra.mxu0 0.0
      %594 = vmatpush.msra.mxu0 0.0
      %595 = vmatpush.msra.mxu0 0.0
      %596 = vmatpush.msra.mxu0 0.0
      %597 = vmatpush.msra.mxu0 0.0
      %598 = vmatpush.msra.mxu0 0.0
      %599 = vmatpush.msra.mxu0 0.0
      %600 = vmatpush.msra.mxu0 0.0
      %601 = vmatpush.msra.mxu0 0.0
      %602 = vmatpush.msra.mxu0 0.0
      %603 = vmatpush.msra.mxu0 0.0
      %604 = vmatpush.msra.mxu0 0.0
      %605 = vmatpush.msra.mxu0 %v589
      %606 = vmatmul.f32.gmra.mxu0 %v564
      %v607 = vpop.f32.mrf.mxu0
      %v608 = vadd.f32 0.0, %v607
      %609 = vdwg.mxu0
      %v610 = vmul.f32 %v608, 0.125
      %v611 = vadd.f32 %v610, 1e-05
      %v612 = vrsqrt.pop %v611
      %v613 = vmul.f32 %v612, %v611
      %v614 = vmul.f32 %v613, %v612
      %v615 = vmul.f32 0.5, %v614
      %v616 = vsub.f32 1.5, %v615
      %v617 = vmul.f32 %v612, %v616
      %vm618 = vweird.f32 %v611
      %vm619 = vweird.f32 %v612
      %vm620 = vmor %vm618, %vm619
      %v621 = vsel %vm620, %v612, %v617
      %v622 = vperm.slane %v621, 0
      %v623 = vmul.f32 %v588, %v622
      %v625 = vperm.slane %v560, 0
      %v627 = vmul.f32 %v623, %v625
      %v629 = vperm.slane %v561, 0
      %v631 = vadd.f32 %v627, %v629
      %v632 = vmax.f32 %v631, 0.0
      %633 = vst [vmem:[%s222] sm:$0xff] %v632
      %p634 = scmp.lt.s32.totalorder %s16, 1
      %s635 = scalar_select %p634, %s16, 1
      %s636 = smul.addr %s635, 8
      %s637 = scalar_lea.vmem %s5, %s636
      // Predicated region
      $region41: #{state_action_predictor.11} parent=39 // pred_check
        %p638 = pneg %p144
      $region42: #{state_action_predictor.11} parent=39 // pred_check_branch
        %640 = sbr.rel (%p638) target = $region44
      $region43: #{state_action_predictor.11} parent=39 // pred_region
        _
      $region44: #{state_action_predictor.11} parent=39 // pred_fallthru
        _
    $region40: #{state_action_predictor.11} parent=5 // pred_fallthru
      _
    %p641 = scmp.le.s32.totalorder 2, %s11
    // Predicated region
    $region45: #{state_action_predictor.11} parent=5 // pred_check
      %p642 = pneg %p641
    $region46: #{state_action_predictor.11} parent=5 // pred_check_branch
      %644 = sbr.rel (%p642) target = $region48
    $region47: #{state_action_predictor.11} parent=5 // pred_region
      %s645 = ssub.s32 %s11, 2
      // Predicated region
      $region49: #{state_action_predictor.11} parent=47 // pred_check
        %p646 = pneg %p150
      $region50: #{state_action_predictor.11} parent=47 // pred_check_branch
        %648 = sbr.rel (%p646) target = $region52
      $region51: #{state_action_predictor.11} parent=47 // pred_region
        %p649 = scmp.lt.s32.totalorder %s17, 1
        %s650 = scalar_select %p649, %s17, 1
        %s651 = smul.addr %s650, 8
        %s652 = scalar_lea.vmem %s5, %s651
      $region52: #{state_action_predictor.11} parent=47 // pred_fallthru
        _
    $region48: #{state_action_predictor.11} parent=5 // pred_fallthru
      _
  $region6: #{state_action_predictor.11} parent=0 // loop_footer
    %s15 = sadd.s32 1, %s11
  $region7: #{state_action_predictor.11} parent=0 // loop_footer_branch
    %10 = sbr.rel target = $region3
  $region8: #{state_action_predictor.11} parent=0 // loop_exit
    _

// kernel: state_action_predictor.12
$region0: #{state_action_predictor.12}
  #allocation0 [shape = 'u32[]', space=smem, size = 0x4, offset = 0x4, fixed_abs, tag = 'smem constant byte address 0x4 - core index']
  #allocation1 [shape = 'u32[72,128]{1,0:T(1,128)}', space=vmem, size = 0x9000, scoped, tag = 'internal scratch']
  %s0 = inlined_call_operand.vmem [shape: f32[16,1152], index: 0, kind: input, shape index: {}]
  %s1 = inlined_call_operand.vmem [shape: f32[1152,128], index: 1, kind: input, shape index: {}]
  %s2 = inlined_call_operand.vmem [shape: f32[1,128], index: 2, kind: input, shape index: {}]
  %s3 = inlined_call_operand.vmem [shape: f32[2,2,128], index: 3, kind: input, shape index: {}]
  %s4 = inlined_call_operand.hbm [shape: f32[128,256], index: 4, kind: input, shape index: {}]
  %s5 = inlined_call_operand.vmem [shape: f32[1,256], index: 5, kind: input, shape index: {}]
  %s6 = inlined_call_operand.vmem [shape: f32[1,128], index: 6, kind: input, shape index: {}]
  %s7 = inlined_call_operand.vmem [shape: f32[1,128], index: 7, kind: input, shape index: {}]
  %s8 = inlined_call_operand.vmem [shape: f32[16,128], index: 8, kind: output, shape index: {}]
  %s9 = sld [smem:[#allocation0]]
  $region69: #{state_action_predictor.12} parent=0
    _
  %s11 = ssub.s32 1, %s9
  %s12 = scalar_select 0, %s11, %s9
  $region1: #{state_action_predictor.12} parent=0
    #allocation2 [shape = 'u8[131072]{0}', space=vmem, size = 0x20000, scoped, tag = 'input window, operand 4, single buffered']
    #allocation3 [shape = 's32[2]{0}', space=sflag, size = 0x8, scoped, tag = 'scoped memory for state_action_predictor.12']
    %13 = vsyncpa [#allocation3], 0
    loop: start=0, step=1, limit=4
    $region2: #{state_action_predictor.12} parent=1 // loop_pre_header
      _
    $region3: #{state_action_predictor.12} parent=1 // loop_header
      %s15 = sphi 0, %s19
      %p16 = scmp.ge.s32.totalorder %s15, 4
      %s25 = sphi 0, %s27
      %s28 = sphi 0, %s25
      %s29 = sphi 0, %s28
      %s45 = sphi 0, %s29
      %s49 = sphi 0, %s49
      %s51 = sphi 0, %s49
      %s52 = sphi 0, %s51
      %s66 = sphi 0, %s52
      %s70 = sphi 0, %s70
      %s72 = sphi 0, %s70
      %s73 = sphi 0, %s72
      %s87 = sphi 0, %s73
      %s93 = sphi 0, %s95
      %s96 = sphi 0, %s93
      %s97 = sphi 0, %s96
      %s113 = sphi 0, %s97
      %s117 = sphi 0, %s117
      %s119 = sphi 0, %s117
      %s120 = sphi 0, %s119
      %s134 = sphi 0, %s120
      %s138 = sphi 0, %s138
      %s140 = sphi 0, %s138
      %s141 = sphi 0, %s140
      %s155 = sphi 0, %s141
      %s159 = sphi 0, %s159
      %s161 = sphi 0, %s159
      %s162 = sphi 0, %s161
      %s176 = sphi 0, %s162
      %s180 = sphi 0, %s180
      %s182 = sphi 0, %s180
      %s183 = sphi 0, %s182
      %s197 = sphi 0, %s183
      %s203 = sphi 0, %s205
      %s206 = sphi 0, %s203
      %s207 = sphi 0, %s206
      %s223 = sphi 0, %s207
    $region4: #{state_action_predictor.12} parent=1 // loop_header_branch
      %18 = sbr.rel (%p16) target = $region8
    $region5: #{state_action_predictor.12} parent=1 // loop_body
      %s20 = ssub.s32 %s15, 1
      %s21 = ssub.s32 %s15, 2
      %s22 = sadd.s32 %s15, 1
      %s23 = ssub.s32 %s15, %s22
      %p24 = scmp.eq.s32.totalorder %s23, 0
      %s26 = sadd.s32 %s25, 1
      %s27 = scalar_select %p24, %s25, %s26
      %p30 = pneg %p24
      %p31 = scmp.eq.s32.totalorder %s15, 1
      %p32 = por %p30, %p31
      %p33 = scmp.ne.s32.totalorder %s25, %s28
      %p34 = scmp.eq.s32.totalorder %s15, 0
      %p35 = por %p33, %p34
      %p36 = scmp.ne.s32.totalorder %s25, %s28
      %p37 = scmp.eq.s32.totalorder %s20, 1
      %p38 = por %p36, %p37
      %p39 = scmp.ne.s32.totalorder %s28, %s29
      %p40 = scmp.eq.s32.totalorder %s20, 0
      %p41 = por %p39, %p40
      %p42 = scmp.ne.s32.totalorder %s28, %s29
      %p43 = scmp.eq.s32.totalorder %s21, 1
      %p44 = por %p42, %p43
      %p46 = scmp.ne.s32.totalorder %s29, %s45
      %p47 = scmp.eq.s32.totalorder %s21, 0
      %p48 = por %p46, %p47
      %s50 = sadd.s32 %s49, 1
      %p53 = scmp.eq.s32.totalorder %s15, 1
      %p54 = scmp.ne.s32.totalorder %s49, %s51
      %p55 = scmp.eq.s32.totalorder %s15, 0
      %p56 = por %p54, %p55
      %p57 = scmp.ne.s32.totalorder %s49, %s51
      %p58 = scmp.eq.s32.totalorder %s20, 1
      %p59 = por %p57, %p58
      %p60 = scmp.ne.s32.totalorder %s51, %s52
      %p61 = scmp.eq.s32.totalorder %s20, 0
      %p62 = por %p60, %p61
      %p63 = scmp.ne.s32.totalorder %s51, %s52
      %p64 = scmp.eq.s32.totalorder %s21, 1
      %p65 = por %p63, %p64
      %p67 = scmp.ne.s32.totalorder %s52, %s66
      %p68 = scmp.eq.s32.totalorder %s21, 0
      %p69 = por %p67, %p68
      %s71 = sadd.s32 %s70, 1
      %p74 = scmp.eq.s32.totalorder %s15, 1
      %p75 = scmp.ne.s32.totalorder %s70, %s72
      %p76 = scmp.eq.s32.totalorder %s15, 0
      %p77 = por %p75, %p76
      %p78 = scmp.ne.s32.totalorder %s70, %s72
      %p79 = scmp.eq.s32.totalorder %s20, 1
      %p80 = por %p78, %p79
      %p81 = scmp.ne.s32.totalorder %s72, %s73
      %p82 = scmp.eq.s32.totalorder %s20, 0
      %p83 = por %p81, %p82
      %p84 = scmp.ne.s32.totalorder %s72, %s73
      %p85 = scmp.eq.s32.totalorder %s21, 1
      %p86 = por %p84, %p85
      %p88 = scmp.ne.s32.totalorder %s73, %s87
      %p89 = scmp.eq.s32.totalorder %s21, 0
      %p90 = por %p88, %p89
      %s91 = ssub.s32 %s15, %s22
      %p92 = scmp.eq.s32.totalorder %s91, 0
      %s94 = sadd.s32 %s93, 1
      %s95 = scalar_select %p92, %s93, %s94
      %p98 = pneg %p92
      %p99 = scmp.eq.s32.totalorder %s15, 1
      %p100 = por %p98, %p99
      %p101 = scmp.ne.s32.totalorder %s93, %s96
      %p102 = scmp.eq.s32.totalorder %s15, 0
      %p103 = por %p101, %p102
      %p104 = scmp.ne.s32.totalorder %s93, %s96
      %p105 = scmp.eq.s32.totalorder %s20, 1
      %p106 = por %p104, %p105
      %p107 = scmp.ne.s32.totalorder %s96, %s97
      %p108 = scmp.eq.s32.totalorder %s20, 0
      %p109 = por %p107, %p108
      %p110 = scmp.ne.s32.totalorder %s96, %s97
      %p111 = scmp.eq.s32.totalorder %s21, 1
      %p112 = por %p110, %p111
      %p114 = scmp.ne.s32.totalorder %s97, %s113
      %p115 = scmp.eq.s32.totalorder %s21, 0
      %p116 = por %p114, %p115
      %s118 = sadd.s32 %s117, 1
      %p121 = scmp.eq.s32.totalorder %s15, 1
      %p122 = scmp.ne.s32.totalorder %s117, %s119
      %p123 = scmp.eq.s32.totalorder %s15, 0
      %p124 = por %p122, %p123
      %p125 = scmp.ne.s32.totalorder %s117, %s119
      %p126 = scmp.eq.s32.totalorder %s20, 1
      %p127 = por %p125, %p126
      %p128 = scmp.ne.s32.totalorder %s119, %s120
      %p129 = scmp.eq.s32.totalorder %s20, 0
      %p130 = por %p128, %p129
      %p131 = scmp.ne.s32.totalorder %s119, %s120
      %p132 = scmp.eq.s32.totalorder %s21, 1
      %p133 = por %p131, %p132
      %p135 = scmp.ne.s32.totalorder %s120, %s134
      %p136 = scmp.eq.s32.totalorder %s21, 0
      %p137 = por %p135, %p136
      %s139 = sadd.s32 %s138, 1
      %p142 = scmp.eq.s32.totalorder %s15, 1
      %p143 = scmp.ne.s32.totalorder %s138, %s140
      %p144 = scmp.eq.s32.totalorder %s15, 0
      %p145 = por %p143, %p144
      %p146 = scmp.ne.s32.totalorder %s138, %s140
      %p147 = scmp.eq.s32.totalorder %s20, 1
      %p148 = por %p146, %p147
      %p149 = scmp.ne.s32.totalorder %s140, %s141
      %p150 = scmp.eq.s32.totalorder %s20, 0
      %p151 = por %p149, %p150
      %p152 = scmp.ne.s32.totalorder %s140, %s141
      %p153 = scmp.eq.s32.totalorder %s21, 1
      %p154 = por %p152, %p153
      %p156 = scmp.ne.s32.totalorder %s141, %s155
      %p157 = scmp.eq.s32.totalorder %s21, 0
      %p158 = por %p156, %p157
      %s160 = sadd.s32 %s159, 1
      %p163 = scmp.eq.s32.totalorder %s15, 1
      %p164 = scmp.ne.s32.totalorder %s159, %s161
      %p165 = scmp.eq.s32.totalorder %s15, 0
      %p166 = por %p164, %p165
      %p167 = scmp.ne.s32.totalorder %s159, %s161
      %p168 = scmp.eq.s32.totalorder %s20, 1
      %p169 = por %p167, %p168
      %p170 = scmp.ne.s32.totalorder %s161, %s162
      %p171 = scmp.eq.s32.totalorder %s20, 0
      %p172 = por %p170, %p171
      %p173 = scmp.ne.s32.totalorder %s161, %s162
      %p174 = scmp.eq.s32.totalorder %s21, 1
      %p175 = por %p173, %p174
      %p177 = scmp.ne.s32.totalorder %s162, %s176
      %p178 = scmp.eq.s32.totalorder %s21, 0
      %p179 = por %p177, %p178
      %s181 = sadd.s32 %s180, 1
      %p184 = scmp.eq.s32.totalorder %s15, 1
      %p185 = scmp.ne.s32.totalorder %s180, %s182
      %p186 = scmp.eq.s32.totalorder %s15, 0
      %p187 = por %p185, %p186
      %p188 = scmp.ne.s32.totalorder %s180, %s182
      %p189 = scmp.eq.s32.totalorder %s20, 1
      %p190 = por %p188, %p189
      %p191 = scmp.ne.s32.totalorder %s182, %s183
      %p192 = scmp.eq.s32.totalorder %s20, 0
      %p193 = por %p191, %p192
      %p194 = scmp.ne.s32.totalorder %s182, %s183
      %p195 = scmp.eq.s32.totalorder %s21, 1
      %p196 = por %p194, %p195
      %p198 = scmp.ne.s32.totalorder %s183, %s197
      %p199 = scmp.eq.s32.totalorder %s21, 0
      %p200 = por %p198, %p199
      %s201 = ssub.s32 %s15, %s22
      %p202 = scmp.eq.s32.totalorder %s201, 0
      %s204 = sadd.s32 %s203, 1
      %s205 = scalar_select %p202, %s203, %s204
      %p208 = pneg %p202
      %p209 = scmp.eq.s32.totalorder %s15, 1
      %p210 = por %p208, %p209
      %p211 = scmp.ne.s32.totalorder %s203, %s206
      %p212 = scmp.eq.s32.totalorder %s15, 0
      %p213 = por %p211, %p212
      %p214 = scmp.ne.s32.totalorder %s203, %s206
      %p215 = scmp.eq.s32.totalorder %s20, 1
      %p216 = por %p214, %p215
      %p217 = scmp.ne.s32.totalorder %s206, %s207
      %p218 = scmp.eq.s32.totalorder %s20, 0
      %p219 = por %p217, %p218
      %p220 = scmp.ne.s32.totalorder %s206, %s207
      %p221 = scmp.eq.s32.totalorder %s21, 1
      %p222 = por %p220, %p221
      %p224 = scmp.ne.s32.totalorder %s207, %s223
      %p225 = scmp.eq.s32.totalorder %s21, 0
      %p226 = por %p224, %p225
      %p227 = scmp.le.s32.totalorder 1, %s15
      %p228 = scmp.lt.s32.totalorder %s15, 3
      %p229 = pnand %p227, %p228
      %p230 = pneg %p229
      // Predicated region
      $region9: #{state_action_predictor.12} parent=5 // pred_check
        _
      $region10: #{state_action_predictor.12} parent=5 // pred_check_branch
        %232 = sbr.rel (%p229) target = $region12
      $region11: #{state_action_predictor.12} parent=5 // pred_region
        %s233 = ssub.s32 %s15, 1
        // Predicated region
        $region13: #{state_action_predictor.12} parent=11 // pred_check
          %p234 = pneg %p62
        $region14: #{state_action_predictor.12} parent=11 // pred_check_branch
          %236 = sbr.rel (%p234) target = $region16
        $region15: #{state_action_predictor.12} parent=11 // pred_region
          _
        $region16: #{state_action_predictor.12} parent=11 // pred_fallthru
          _
        // Predicated region
        $region17: #{state_action_predictor.12} parent=11 // pred_check
          %p237 = pneg %p83
        $region18: #{state_action_predictor.12} parent=11 // pred_check_branch
          %239 = sbr.rel (%p237) target = $region20
        $region19: #{state_action_predictor.12} parent=11 // pred_region
          _
        $region20: #{state_action_predictor.12} parent=11 // pred_fallthru
          _
        // Predicated region
        $region21: #{state_action_predictor.12} parent=11 // pred_check
          %p240 = pneg %p130
        $region22: #{state_action_predictor.12} parent=11 // pred_check_branch
          %242 = sbr.rel (%p240) target = $region24
        $region23: #{state_action_predictor.12} parent=11 // pred_region
          %244 = vsyncadd [#allocation3], 0
          %s245 = sshll.u32 %s4, 4
          %s246 = int_to_ptr.hbm [resolvable:$true] %s245
          %s247 = sshll.u32 [#allocation2], 4
          %s248 = int_to_ptr.vmem [resolvable:$true] %s247
          %253 = dma.hbm_to_vmem [thread:$0]  %s246, 4096, %s248, [#allocation3], 256, 256, 16
        $region24: #{state_action_predictor.12} parent=11 // pred_fallthru
          _
        // Predicated region
        $region25: #{state_action_predictor.12} parent=11 // pred_check
          %p254 = pneg %p151
        $region26: #{state_action_predictor.12} parent=11 // pred_check_branch
          %256 = sbr.rel (%p254) target = $region28
        $region27: #{state_action_predictor.12} parent=11 // pred_region
          _
        $region28: #{state_action_predictor.12} parent=11 // pred_fallthru
          _
        // Predicated region
        $region29: #{state_action_predictor.12} parent=11 // pred_check
          %p257 = pneg %p172
        $region30: #{state_action_predictor.12} parent=11 // pred_check_branch
          %259 = sbr.rel (%p257) target = $region32
        $region31: #{state_action_predictor.12} parent=11 // pred_region
          _
        $region32: #{state_action_predictor.12} parent=11 // pred_fallthru
          _
        // Predicated region
        $region33: #{state_action_predictor.12} parent=11 // pred_check
          %p260 = pneg %p193
        $region34: #{state_action_predictor.12} parent=11 // pred_check_branch
          %262 = sbr.rel (%p260) target = $region36
        $region35: #{state_action_predictor.12} parent=11 // pred_region
          _
        $region36: #{state_action_predictor.12} parent=11 // pred_fallthru
          _
      $region12: #{state_action_predictor.12} parent=5 // pred_fallthru
        _
      %p263 = scmp.lt.s32.totalorder %s15, 2
      // Predicated region
      $region37: #{state_action_predictor.12} parent=5 // pred_check
        %p264 = pneg %p263
      $region38: #{state_action_predictor.12} parent=5 // pred_check_branch
        %266 = sbr.rel (%p264) target = $region40
      $region39: #{state_action_predictor.12} parent=5 // pred_region
        // Predicated region
        $region41: #{state_action_predictor.12} parent=39 // pred_check
          %p267 = pneg %p35
        $region42: #{state_action_predictor.12} parent=39 // pred_check_branch
          %269 = sbr.rel (%p267) target = $region44
        $region43: #{state_action_predictor.12} parent=39 // pred_region
          %p270 = scmp.lt.s32.totalorder %s15, 1
          %s271 = scalar_select %p270, %s15, 1
          %s272 = smul.addr %s271, 9
          %s273 = smul.addr %s272, 8
          %s274 = scalar_lea.vmem %s0, %s273
        $region44: #{state_action_predictor.12} parent=39 // pred_fallthru
          _
        // Predicated region
        $region45: #{state_action_predictor.12} parent=39 // pred_check
          %p275 = pneg %p103
        $region46: #{state_action_predictor.12} parent=39 // pred_check_branch
          %277 = sbr.rel (%p275) target = $region48
        $region47: #{state_action_predictor.12} parent=39 // pred_region
          %p278 = scmp.lt.s32.totalorder %s15, 1
          %s279 = scalar_select %p278, %s15, 1
          %s280 = smul.addr %s279, 2
          %s281 = scalar_lea.vmem %s3, %s280
        $region48: #{state_action_predictor.12} parent=39 // pred_fallthru
          _
      $region40: #{state_action_predictor.12} parent=5 // pred_fallthru
        _
      %p282 = scmp.le.s32.totalorder 1, %s15
      %p283 = scmp.lt.s32.totalorder %s15, 3
      %p284 = pnand %p282, %p283
      %p285 = pneg %p284
      // Predicated region
      $region49: #{state_action_predictor.12} parent=5 // pred_check
        _
      $region50: #{state_action_predictor.12} parent=5 // pred_check_branch
        %287 = sbr.rel (%p284) target = $region52
      $region51: #{state_action_predictor.12} parent=5 // pred_region
        %s288 = ssub.s32 %s15, 1
        // Predicated region
        $region53: #{state_action_predictor.12} parent=51 // pred_check
          %p289 = pneg %p130
        $region54: #{state_action_predictor.12} parent=51 // pred_check_branch
          %291 = sbr.rel (%p289) target = $region56
        $region55: #{state_action_predictor.12} parent=51 // pred_region
          %293 = dma.done [#allocation3], 4096
        $region56: #{state_action_predictor.12} parent=51 // pred_fallthru
          _
        %p294 = scmp.lt.s32.totalorder %s20, 1
        %s295 = scalar_select %p294, %s20, 1
        %s296 = smul.addr %s295, 9
        %s297 = smul.addr %s296, 8
        %s298 = scalar_lea.vmem %s0, %s297
        %p299 = pneg %p41
        %p300 = pneg %p38
        %p301 = pneg %p62
        %p302 = pneg %p59
        %p303 = pneg %p83
        %p304 = pneg %p80
        %p305 = scmp.lt.s32.totalorder %s20, 1
        %s306 = scalar_select %p305, %s20, 1
        %s307 = smul.addr %s306, 2
        %s308 = scalar_lea.vmem %s3, %s307
        %p309 = pneg %p109
        %p310 = pneg %p106
        %p311 = pneg %p130
        %p312 = pneg %p127
        %p313 = pneg %p151
        %p314 = pneg %p148
        %p315 = pneg %p172
        %p316 = pneg %p169
        %p317 = pneg %p193
        %p318 = pneg %p190
        %p319 = pneg %p219
        %p320 = pneg %p216
        %p321 = scmp.lt.s32.totalorder %s20, 1
        %s322 = scalar_select %p321, %s20, 1
        %s323 = smul.addr %s322, 8
        %s324 = scalar_lea.vmem %s8, %s323
        %p325 = scmp.lt.s32.totalorder %s20, 1
        %s326 = scalar_select %p325, %s20, 1
        %s327 = smul.addr %s326, 9
        %s328 = smul.addr %s327, 8
        %s329 = scalar_lea.vmem %s0, %s328
        %p330 = scmp.lt.s32.totalorder %s20, 1
        %s331 = scalar_select %p330, %s20, 1
        %s332 = smul.addr %s331, 2
        %s333 = scalar_lea.vmem %s3, %s332
        %p334 = scmp.lt.s32.totalorder %s20, 1
        %s335 = scalar_select %p334, %s20, 1
        %s336 = smul.addr %s335, 8
        %s337 = scalar_lea.vmem %s8, %s336
        %v338 = vld [vmem:[%s329] sm:$0xff]
        %v339 = vld [vmem:[%s329 + $0x8] sm:$0xff]
        %v340 = vld [vmem:[%s329 + $0x10] sm:$0xff]
        %v341 = vld [vmem:[%s329 + $0x18] sm:$0xff]
        %v342 = vld [vmem:[%s329 + $0x20] sm:$0xff]
        %v343 = vld [vmem:[%s329 + $0x28] sm:$0xff]
        %v344 = vld [vmem:[%s329 + $0x30] sm:$0xff]
        %v345 = vld [vmem:[%s329 + $0x38] sm:$0xff]
        %v346 = vld [vmem:[%s329 + $0x40] sm:$0xff]
        %v347 = vld [vmem:[%s1] sm:$0xff]
        %v348 = vld [vmem:[%s1 + $0x8] sm:$0xff]
        %v349 = vld [vmem:[%s1 + $0x10] sm:$0xff]
        %v350 = vld [vmem:[%s1 + $0x18] sm:$0xff]
        %v351 = vld [vmem:[%s1 + $0x20] sm:$0xff]
        %v352 = vld [vmem:[%s1 + $0x28] sm:$0xff]
        %v353 = vld [vmem:[%s1 + $0x30] sm:$0xff]
        %v354 = vld [vmem:[%s1 + $0x38] sm:$0xff]
        %v355 = vld [vmem:[%s1 + $0x40] sm:$0xff]
        %v356 = vld [vmem:[%s1 + $0x48] sm:$0xff]
        %v357 = vld [vmem:[%s1 + $0x50] sm:$0xff]
        %v358 = vld [vmem:[%s1 + $0x58] sm:$0xff]
        %v359 = vld [vmem:[%s1 + $0x60] sm:$0xff]
        %v360 = vld [vmem:[%s1 + $0x68] sm:$0xff]
        %v361 = vld [vmem:[%s1 + $0x70] sm:$0xff]
        %v362 = vld [vmem:[%s1 + $0x78] sm:$0xff]
        %v363 = vld [vmem:[%s1 + $0x80] sm:$0xff]
        %v364 = vld [vmem:[%s1 + $0x88] sm:$0xff]
        %v365 = vld [vmem:[%s1 + $0x90] sm:$0xff]
        %v366 = vld [vmem:[%s1 + $0x98] sm:$0xff]
        %v367 = vld [vmem:[%s1 + $0xa0] sm:$0xff]
        %v368 = vld [vmem:[%s1 + $0xa8] sm:$0xff]
        %v369 = vld [vmem:[%s1 + $0xb0] sm:$0xff]
        %v370 = vld [vmem:[%s1 + $0xb8] sm:$0xff]
        %v371 = vld [vmem:[%s1 + $0xc0] sm:$0xff]
        %v372 = vld [vmem:[%s1 + $0xc8] sm:$0xff]
        %v373 = vld [vmem:[%s1 + $0xd0] sm:$0xff]
        %v374 = vld [vmem:[%s1 + $0xd8] sm:$0xff]
        %v375 = vld [vmem:[%s1 + $0xe0] sm:$0xff]
        %v376 = vld [vmem:[%s1 + $0xe8] sm:$0xff]
        %v377 = vld [vmem:[%s1 + $0xf0] sm:$0xff]
        %v378 = vld [vmem:[%s1 + $0xf8] sm:$0xff]
        %v379 = vld [vmem:[%s1 + $0x100] sm:$0xff]
        %v380 = vld [vmem:[%s1 + $0x108] sm:$0xff]
        %v381 = vld [vmem:[%s1 + $0x110] sm:$0xff]
        %v382 = vld [vmem:[%s1 + $0x118] sm:$0xff]
        %v383 = vld [vmem:[%s1 + $0x120] sm:$0xff]
        %v384 = vld [vmem:[%s1 + $0x128] sm:$0xff]
        %v385 = vld [vmem:[%s1 + $0x130] sm:$0xff]
        %v386 = vld [vmem:[%s1 + $0x138] sm:$0xff]
        %v387 = vld [vmem:[%s1 + $0x140] sm:$0xff]
        %v388 = vld [vmem:[%s1 + $0x148] sm:$0xff]
        %v389 = vld [vmem:[%s1 + $0x150] sm:$0xff]
        %v390 = vld [vmem:[%s1 + $0x158] sm:$0xff]
        %v391 = vld [vmem:[%s1 + $0x160] sm:$0xff]
        %v392 = vld [vmem:[%s1 + $0x168] sm:$0xff]
        %v393 = vld [vmem:[%s1 + $0x170] sm:$0xff]
        %v394 = vld [vmem:[%s1 + $0x178] sm:$0xff]
        %v395 = vld [vmem:[%s1 + $0x180] sm:$0xff]
        %v396 = vld [vmem:[%s1 + $0x188] sm:$0xff]
        %v397 = vld [vmem:[%s1 + $0x190] sm:$0xff]
        %v398 = vld [vmem:[%s1 + $0x198] sm:$0xff]
        %v399 = vld [vmem:[%s1 + $0x1a0] sm:$0xff]
        %v400 = vld [vmem:[%s1 + $0x1a8] sm:$0xff]
        %v401 = vld [vmem:[%s1 + $0x1b0] sm:$0xff]
        %v402 = vld [vmem:[%s1 + $0x1b8] sm:$0xff]
        %v403 = vld [vmem:[%s1 + $0x1c0] sm:$0xff]
        %v404 = vld [vmem:[%s1 + $0x1c8] sm:$0xff]
        %v405 = vld [vmem:[%s1 + $0x1d0] sm:$0xff]
        %v406 = vld [vmem:[%s1 + $0x1d8] sm:$0xff]
        %v407 = vld [vmem:[%s1 + $0x1e0] sm:$0xff]
        %v408 = vld [vmem:[%s1 + $0x1e8] sm:$0xff]
        %v409 = vld [vmem:[%s1 + $0x1f0] sm:$0xff]
        %v410 = vld [vmem:[%s1 + $0x1f8] sm:$0xff]
        %v411 = vld [vmem:[%s1 + $0x200] sm:$0xff]
        %v412 = vld [vmem:[%s1 + $0x208] sm:$0xff]
        %v413 = vld [vmem:[%s1 + $0x210] sm:$0xff]
        %v414 = vld [vmem:[%s1 + $0x218] sm:$0xff]
        %v415 = vld [vmem:[%s1 + $0x220] sm:$0xff]
        %v416 = vld [vmem:[%s1 + $0x228] sm:$0xff]
        %v417 = vld [vmem:[%s1 + $0x230] sm:$0xff]
        %v418 = vld [vmem:[%s1 + $0x238] sm:$0xff]
        %v419 = vld [vmem:[%s1 + $0x240] sm:$0xff]
        %v420 = vld [vmem:[%s1 + $0x248] sm:$0xff]
        %v421 = vld [vmem:[%s1 + $0x250] sm:$0xff]
        %v422 = vld [vmem:[%s1 + $0x258] sm:$0xff]
        %v423 = vld [vmem:[%s1 + $0x260] sm:$0xff]
        %v424 = vld [vmem:[%s1 + $0x268] sm:$0xff]
        %v425 = vld [vmem:[%s1 + $0x270] sm:$0xff]
        %v426 = vld [vmem:[%s1 + $0x278] sm:$0xff]
        %v427 = vld [vmem:[%s1 + $0x280] sm:$0xff]
        %v428 = vld [vmem:[%s1 + $0x288] sm:$0xff]
        %v429 = vld [vmem:[%s1 + $0x290] sm:$0xff]
        %v430 = vld [vmem:[%s1 + $0x298] sm:$0xff]
        %v431 = vld [vmem:[%s1 + $0x2a0] sm:$0xff]
        %v432 = vld [vmem:[%s1 + $0x2a8] sm:$0xff]
        %v433 = vld [vmem:[%s1 + $0x2b0] sm:$0xff]
        %v434 = vld [vmem:[%s1 + $0x2b8] sm:$0xff]
        %v435 = vld [vmem:[%s1 + $0x2c0] sm:$0xff]
        %v436 = vld [vmem:[%s1 + $0x2c8] sm:$0xff]
        %v437 = vld [vmem:[%s1 + $0x2d0] sm:$0xff]
        %v438 = vld [vmem:[%s1 + $0x2d8] sm:$0xff]
        %v439 = vld [vmem:[%s1 + $0x2e0] sm:$0xff]
        %v440 = vld [vmem:[%s1 + $0x2e8] sm:$0xff]
        %v441 = vld [vmem:[%s1 + $0x2f0] sm:$0xff]
        %v442 = vld [vmem:[%s1 + $0x2f8] sm:$0xff]
        %v443 = vld [vmem:[%s1 + $0x300] sm:$0xff]
        %v444 = vld [vmem:[%s1 + $0x308] sm:$0xff]
        %v445 = vld [vmem:[%s1 + $0x310] sm:$0xff]
        %v446 = vld [vmem:[%s1 + $0x318] sm:$0xff]
        %v447 = vld [vmem:[%s1 + $0x320] sm:$0xff]
        %v448 = vld [vmem:[%s1 + $0x328] sm:$0xff]
        %v449 = vld [vmem:[%s1 + $0x330] sm:$0xff]
        %v450 = vld [vmem:[%s1 + $0x338] sm:$0xff]
        %v451 = vld [vmem:[%s1 + $0x340] sm:$0xff]
        %v452 = vld [vmem:[%s1 + $0x348] sm:$0xff]
        %v453 = vld [vmem:[%s1 + $0x350] sm:$0xff]
        %v454 = vld [vmem:[%s1 + $0x358] sm:$0xff]
        %v455 = vld [vmem:[%s1 + $0x360] sm:$0xff]
        %v456 = vld [vmem:[%s1 + $0x368] sm:$0xff]
        %v457 = vld [vmem:[%s1 + $0x370] sm:$0xff]
        %v458 = vld [vmem:[%s1 + $0x378] sm:$0xff]
        %v459 = vld [vmem:[%s1 + $0x380] sm:$0xff]
        %v460 = vld [vmem:[%s1 + $0x388] sm:$0xff]
        %v461 = vld [vmem:[%s1 + $0x390] sm:$0xff]
        %v462 = vld [vmem:[%s1 + $0x398] sm:$0xff]
        %v463 = vld [vmem:[%s1 + $0x3a0] sm:$0xff]
        %v464 = vld [vmem:[%s1 + $0x3a8] sm:$0xff]
        %v465 = vld [vmem:[%s1 + $0x3b0] sm:$0xff]
        %v466 = vld [vmem:[%s1 + $0x3b8] sm:$0xff]
        %v467 = vld [vmem:[%s1 + $0x3c0] sm:$0xff]
        %v468 = vld [vmem:[%s1 + $0x3c8] sm:$0xff]
        %v469 = vld [vmem:[%s1 + $0x3d0] sm:$0xff]
        %v470 = vld [vmem:[%s1 + $0x3d8] sm:$0xff]
        %v471 = vld [vmem:[%s1 + $0x3e0] sm:$0xff]
        %v472 = vld [vmem:[%s1 + $0x3e8] sm:$0xff]
        %v473 = vld [vmem:[%s1 + $0x3f0] sm:$0xff]
        %v474 = vld [vmem:[%s1 + $0x3f8] sm:$0xff]
        %v475 = vld [vmem:[%s1 + $0x400] sm:$0xff]
        %v476 = vld [vmem:[%s1 + $0x408] sm:$0xff]
        %v477 = vld [vmem:[%s1 + $0x410] sm:$0xff]
        %v478 = vld [vmem:[%s1 + $0x418] sm:$0xff]
        %v479 = vld [vmem:[%s1 + $0x420] sm:$0xff]
        %v480 = vld [vmem:[%s1 + $0x428] sm:$0xff]
        %v481 = vld [vmem:[%s1 + $0x430] sm:$0xff]
        %v482 = vld [vmem:[%s1 + $0x438] sm:$0xff]
        %v483 = vld [vmem:[%s1 + $0x440] sm:$0xff]
        %v484 = vld [vmem:[%s1 + $0x448] sm:$0xff]
        %v485 = vld [vmem:[%s1 + $0x450] sm:$0xff]
        %v486 = vld [vmem:[%s1 + $0x458] sm:$0xff]
        %v487 = vld [vmem:[%s1 + $0x460] sm:$0xff]
        %v488 = vld [vmem:[%s1 + $0x468] sm:$0xff]
        %v489 = vld [vmem:[%s1 + $0x470] sm:$0xff]
        %v490 = vld [vmem:[%s1 + $0x478] sm:$0xff]
        %v491 = vld [vmem:[%s2] sm:$0x1]
        %v493 = vperm.slane %v491, 0
        %495 = vmatpush.msra.mxu0 %v362
        %496 = vmatpush.msra.mxu0 %v361
        %497 = vmatpush.msra.mxu0 %v360
        %498 = vmatpush.msra.mxu0 %v359
        %499 = vmatpush.msra.mxu0 %v358
        %500 = vmatpush.msra.mxu0 %v357
        %501 = vmatpush.msra.mxu0 %v356
        %502 = vmatpush.msra.mxu0 %v355
        %503 = vmatpush.msra.mxu0 %v354
        %504 = vmatpush.msra.mxu0 %v353
        %505 = vmatpush.msra.mxu0 %v352
        %506 = vmatpush.msra.mxu0 %v351
        %507 = vmatpush.msra.mxu0 %v350
        %508 = vmatpush.msra.mxu0 %v349
        %509 = vmatpush.msra.mxu0 %v348
        %510 = vmatpush.msra.mxu0 %v347
        %511 = vmatmul.f32.gmra.mxu0 %v338
        %v512 = vpop.f32.mrf.mxu0
        %v513 = vadd.f32 %v493, %v512
        %514 = vdwg.mxu0
        %515 = vmatpush.msra.mxu0 %v378
        %516 = vmatpush.msra.mxu0 %v377
        %517 = vmatpush.msra.mxu0 %v376
        %518 = vmatpush.msra.mxu0 %v375
        %519 = vmatpush.msra.mxu0 %v374
        %520 = vmatpush.msra.mxu0 %v373
        %521 = vmatpush.msra.mxu0 %v372
        %522 = vmatpush.msra.mxu0 %v371
        %523 = vmatpush.msra.mxu0 %v370
        %524 = vmatpush.msra.mxu0 %v369
        %525 = vmatpush.msra.mxu0 %v368
        %526 = vmatpush.msra.mxu0 %v367
        %527 = vmatpush.msra.mxu0 %v366
        %528 = vmatpush.msra.mxu0 %v365
        %529 = vmatpush.msra.mxu0 %v364
        %530 = vmatpush.msra.mxu0 %v363
        %531 = vmatmul.f32.gmra.mxu0 %v339
        %v532 = vpop.f32.mrf.mxu0
        %v533 = vadd.f32 %v513, %v532
        %534 = vdwg.mxu0
        %535 = vmatpush.msra.mxu0 %v394
        %536 = vmatpush.msra.mxu0 %v393
        %537 = vmatpush.msra.mxu0 %v392
        %538 = vmatpush.msra.mxu0 %v391
        %539 = vmatpush.msra.mxu0 %v390
        %540 = vmatpush.msra.mxu0 %v389
        %541 = vmatpush.msra.mxu0 %v388
        %542 = vmatpush.msra.mxu0 %v387
        %543 = vmatpush.msra.mxu0 %v386
        %544 = vmatpush.msra.mxu0 %v385
        %545 = vmatpush.msra.mxu0 %v384
        %546 = vmatpush.msra.mxu0 %v383
        %547 = vmatpush.msra.mxu0 %v382
        %548 = vmatpush.msra.mxu0 %v381
        %549 = vmatpush.msra.mxu0 %v380
        %550 = vmatpush.msra.mxu0 %v379
        %551 = vmatmul.f32.gmra.mxu0 %v340
        %v552 = vpop.f32.mrf.mxu0
        %v553 = vadd.f32 %v533, %v552
        %554 = vdwg.mxu0
        %555 = vmatpush.msra.mxu0 %v410
        %556 = vmatpush.msra.mxu0 %v409
        %557 = vmatpush.msra.mxu0 %v408
        %558 = vmatpush.msra.mxu0 %v407
        %559 = vmatpush.msra.mxu0 %v406
        %560 = vmatpush.msra.mxu0 %v405
        %561 = vmatpush.msra.mxu0 %v404
        %562 = vmatpush.msra.mxu0 %v403
        %563 = vmatpush.msra.mxu0 %v402
        %564 = vmatpush.msra.mxu0 %v401
        %565 = vmatpush.msra.mxu0 %v400
        %566 = vmatpush.msra.mxu0 %v399
        %567 = vmatpush.msra.mxu0 %v398
        %568 = vmatpush.msra.mxu0 %v397
        %569 = vmatpush.msra.mxu0 %v396
        %570 = vmatpush.msra.mxu0 %v395
        %571 = vmatmul.f32.gmra.mxu0 %v341
        %v572 = vpop.f32.mrf.mxu0
        %v573 = vadd.f32 %v553, %v572
        %574 = vdwg.mxu0
        %575 = vmatpush.msra.mxu0 %v426
        %576 = vmatpush.msra.mxu0 %v425
        %577 = vmatpush.msra.mxu0 %v424
        %578 = vmatpush.msra.mxu0 %v423
        %579 = vmatpush.msra.mxu0 %v422
        %580 = vmatpush.msra.mxu0 %v421
        %581 = vmatpush.msra.mxu0 %v420
        %582 = vmatpush.msra.mxu0 %v419
        %583 = vmatpush.msra.mxu0 %v418
        %584 = vmatpush.msra.mxu0 %v417
        %585 = vmatpush.msra.mxu0 %v416
        %586 = vmatpush.msra.mxu0 %v415
        %587 = vmatpush.msra.mxu0 %v414
        %588 = vmatpush.msra.mxu0 %v413
        %589 = vmatpush.msra.mxu0 %v412
        %590 = vmatpush.msra.mxu0 %v411
        %591 = vmatmul.f32.gmra.mxu0 %v342
        %v592 = vpop.f32.mrf.mxu0
        %v593 = vadd.f32 %v573, %v592
        %594 = vdwg.mxu0
        %595 = vmatpush.msra.mxu0 %v442
        %596 = vmatpush.msra.mxu0 %v441
        %597 = vmatpush.msra.mxu0 %v440
        %598 = vmatpush.msra.mxu0 %v439
        %599 = vmatpush.msra.mxu0 %v438
        %600 = vmatpush.msra.mxu0 %v437
        %601 = vmatpush.msra.mxu0 %v436
        %602 = vmatpush.msra.mxu0 %v435
        %603 = vmatpush.msra.mxu0 %v434
        %604 = vmatpush.msra.mxu0 %v433
        %605 = vmatpush.msra.mxu0 %v432
        %606 = vmatpush.msra.mxu0 %v431
        %607 = vmatpush.msra.mxu0 %v430
        %608 = vmatpush.msra.mxu0 %v429
        %609 = vmatpush.msra.mxu0 %v428
        %610 = vmatpush.msra.mxu0 %v427
        %611 = vmatmul.f32.gmra.mxu0 %v343
        %v612 = vpop.f32.mrf.mxu0
        %v613 = vadd.f32 %v593, %v612
        %614 = vdwg.mxu0
        %615 = vmatpush.msra.mxu0 %v458
        %616 = vmatpush.msra.mxu0 %v457
        %617 = vmatpush.msra.mxu0 %v456
        %618 = vmatpush.msra.mxu0 %v455
        %619 = vmatpush.msra.mxu0 %v454
        %620 = vmatpush.msra.mxu0 %v453
        %621 = vmatpush.msra.mxu0 %v452
        %622 = vmatpush.msra.mxu0 %v451
        %623 = vmatpush.msra.mxu0 %v450
        %624 = vmatpush.msra.mxu0 %v449
        %625 = vmatpush.msra.mxu0 %v448
        %626 = vmatpush.msra.mxu0 %v447
        %627 = vmatpush.msra.mxu0 %v446
        %628 = vmatpush.msra.mxu0 %v445
        %629 = vmatpush.msra.mxu0 %v444
        %630 = vmatpush.msra.mxu0 %v443
        %631 = vmatmul.f32.gmra.mxu0 %v344
        %v632 = vpop.f32.mrf.mxu0
        %v633 = vadd.f32 %v613, %v632
        %634 = vdwg.mxu0
        %635 = vmatpush.msra.mxu0 %v474
        %636 = vmatpush.msra.mxu0 %v473
        %637 = vmatpush.msra.mxu0 %v472
        %638 = vmatpush.msra.mxu0 %v471
        %639 = vmatpush.msra.mxu0 %v470
        %640 = vmatpush.msra.mxu0 %v469
        %641 = vmatpush.msra.mxu0 %v468
        %642 = vmatpush.msra.mxu0 %v467
        %643 = vmatpush.msra.mxu0 %v466
        %644 = vmatpush.msra.mxu0 %v465
        %645 = vmatpush.msra.mxu0 %v464
        %646 = vmatpush.msra.mxu0 %v463
        %647 = vmatpush.msra.mxu0 %v462
        %648 = vmatpush.msra.mxu0 %v461
        %649 = vmatpush.msra.mxu0 %v460
        %650 = vmatpush.msra.mxu0 %v459
        %651 = vmatmul.f32.gmra.mxu0 %v345
        %v652 = vpop.f32.mrf.mxu0
        %v653 = vadd.f32 %v633, %v652
        %654 = vdwg.mxu0
        %655 = vmatpush.msra.mxu0 %v490
        %656 = vmatpush.msra.mxu0 %v489
        %657 = vmatpush.msra.mxu0 %v488
        %658 = vmatpush.msra.mxu0 %v487
        %659 = vmatpush.msra.mxu0 %v486
        %660 = vmatpush.msra.mxu0 %v485
        %661 = vmatpush.msra.mxu0 %v484
        %662 = vmatpush.msra.mxu0 %v483
        %663 = vmatpush.msra.mxu0 %v482
        %664 = vmatpush.msra.mxu0 %v481
        %665 = vmatpush.msra.mxu0 %v480
        %666 = vmatpush.msra.mxu0 %v479
        %667 = vmatpush.msra.mxu0 %v478
        %668 = vmatpush.msra.mxu0 %v477
        %669 = vmatpush.msra.mxu0 %v476
        %670 = vmatpush.msra.mxu0 %v475
        %671 = vmatmul.f32.gmra.mxu0 %v346
        %v672 = vpop.f32.mrf.mxu0
        %v673 = vadd.f32 %v653, %v672
        %674 = vdwg.mxu0
        %v675 = vld [vmem:[%s333] sm:$0x3]
        %v676 = vld [vmem:[#allocation2] sm:$0xff]
        %v677 = vld [vmem:[#allocation2 + $0x8] sm:$0xff]
        %v678 = vld [vmem:[#allocation2 + $0x10] sm:$0xff]
        %v679 = vld [vmem:[#allocation2 + $0x18] sm:$0xff]
        %v680 = vld [vmem:[#allocation2 + $0x20] sm:$0xff]
        %v681 = vld [vmem:[#allocation2 + $0x28] sm:$0xff]
        %v682 = vld [vmem:[#allocation2 + $0x30] sm:$0xff]
        %v683 = vld [vmem:[#allocation2 + $0x38] sm:$0xff]
        %v684 = vld [vmem:[#allocation2 + $0x40] sm:$0xff]
        %v685 = vld [vmem:[#allocation2 + $0x48] sm:$0xff]
        %v686 = vld [vmem:[#allocation2 + $0x50] sm:$0xff]
        %v687 = vld [vmem:[#allocation2 + $0x58] sm:$0xff]
        %v688 = vld [vmem:[#allocation2 + $0x60] sm:$0xff]
        %v689 = vld [vmem:[#allocation2 + $0x68] sm:$0xff]
        %v690 = vld [vmem:[#allocation2 + $0x70] sm:$0xff]
        %v691 = vld [vmem:[#allocation2 + $0x78] sm:$0xff]
        %v692 = vld [vmem:[#allocation2 + $0x80] sm:$0xff]
        %v693 = vld [vmem:[#allocation2 + $0x88] sm:$0xff]
        %v694 = vld [vmem:[#allocation2 + $0x90] sm:$0xff]
        %v695 = vld [vmem:[#allocation2 + $0x98] sm:$0xff]
        %v696 = vld [vmem:[#allocation2 + $0xa0] sm:$0xff]
        %v697 = vld [vmem:[#allocation2 + $0xa8] sm:$0xff]
        %v698 = vld [vmem:[#allocation2 + $0xb0] sm:$0xff]
        %v699 = vld [vmem:[#allocation2 + $0xb8] sm:$0xff]
        %v700 = vld [vmem:[#allocation2 + $0xc0] sm:$0xff]
        %v701 = vld [vmem:[#allocation2 + $0xc8] sm:$0xff]
        %v702 = vld [vmem:[#allocation2 + $0xd0] sm:$0xff]
        %v703 = vld [vmem:[#allocation2 + $0xd8] sm:$0xff]
        %v704 = vld [vmem:[#allocation2 + $0xe0] sm:$0xff]
        %v705 = vld [vmem:[#allocation2 + $0xe8] sm:$0xff]
        %v706 = vld [vmem:[#allocation2 + $0xf0] sm:$0xff]
        %v707 = vld [vmem:[#allocation2 + $0xf8] sm:$0xff]
        %v708 = vld [vmem:[%s5] sm:$0x3]
        %v710 = vperm.slane %v708, 0
        %v711 = vperm.slane %v708, 1
        %714 = vmatpush.msra.mxu0 %v706
        %715 = vmatpush.msra.mxu0 %v704
        %716 = vmatpush.msra.mxu0 %v702
        %717 = vmatpush.msra.mxu0 %v700
        %718 = vmatpush.msra.mxu0 %v698
        %719 = vmatpush.msra.mxu0 %v696
        %720 = vmatpush.msra.mxu0 %v694
        %721 = vmatpush.msra.mxu0 %v692
        %722 = vmatpush.msra.mxu0 %v690
        %723 = vmatpush.msra.mxu0 %v688
        %724 = vmatpush.msra.mxu0 %v686
        %725 = vmatpush.msra.mxu0 %v684
        %726 = vmatpush.msra.mxu0 %v682
        %727 = vmatpush.msra.mxu0 %v680
        %728 = vmatpush.msra.mxu0 %v678
        %729 = vmatpush.msra.mxu0 %v676
        %730 = vmatmul.f32.gmra.mxu0 %v675
        %v731 = vpop.f32.mrf.mxu0
        %v732 = vadd.f32 %v710, %v731
        %733 = vdwg.mxu0
        %734 = vmatpush.msra.mxu0 %v707
        %735 = vmatpush.msra.mxu0 %v705
        %736 = vmatpush.msra.mxu0 %v703
        %737 = vmatpush.msra.mxu0 %v701
        %738 = vmatpush.msra.mxu0 %v699
        %739 = vmatpush.msra.mxu0 %v697
        %740 = vmatpush.msra.mxu0 %v695
        %741 = vmatpush.msra.mxu0 %v693
        %742 = vmatpush.msra.mxu0 %v691
        %743 = vmatpush.msra.mxu0 %v689
        %744 = vmatpush.msra.mxu0 %v687
        %745 = vmatpush.msra.mxu0 %v685
        %746 = vmatpush.msra.mxu0 %v683
        %747 = vmatpush.msra.mxu0 %v681
        %748 = vmatpush.msra.mxu0 %v679
        %749 = vmatpush.msra.mxu0 %v677
        %750 = vmatmul.f32.gmra.mxu0 %v675
        %v751 = vpop.f32.mrf.mxu0
        %v752 = vadd.f32 %v711, %v751
        %753 = vdwg.mxu0
        %v755 = vrot.slane %v732, 7
        %v757 = vrot.slane %v732, 6
        %v759 = vrot.slane %v732, 5
        %v761 = vrot.slane %v732, 4
        %v763 = vrot.slane %v732, 3
        %v765 = vrot.slane %v732, 2
        %vm767 = vcmask 1040384
        %v768 = vsel %vm767, %v732, %v755
        %vm769 = vcmask 1041408
        %v770 = vsel %vm769, %v768, %v757
        %vm771 = vcmask 1042432
        %v772 = vsel %vm771, %v770, %v759
        %vm773 = vcmask 1043456
        %v774 = vsel %vm773, %v772, %v759
        %vm775 = vcmask 1044480
        %v776 = vsel %vm775, %v774, %v761
        %vm777 = vcmask 1045504
        %v778 = vsel %vm777, %v776, %v763
        %vm779 = vcmask 1046528
        %v780 = vsel %vm779, %v778, %v765
        %v782 = vrot.slane %v752, 7
        %v784 = vrot.slane %v752, 6
        %v786 = vrot.slane %v752, 5
        %v788 = vrot.slane %v752, 4
        %v790 = vrot.slane %v752, 3
        %v792 = vrot.slane %v752, 2
        %v794 = vsel %vm767, %v752, %v782
        %v795 = vsel %vm769, %v794, %v784
        %v796 = vsel %vm771, %v795, %v786
        %v797 = vsel %vm773, %v796, %v786
        %v798 = vsel %vm775, %v797, %v788
        %v799 = vsel %vm777, %v798, %v790
        %v800 = vsel %vm779, %v799, %v792
        %v801 = vmul.f32 %v673, %v780
        %v802 = vadd.f32 %v801, %v800
        %v803 = vld [vmem:[%s6] sm:$0x1]
        %v804 = vld [vmem:[%s7] sm:$0x1]
        %vm805 = vcmask 64512
        %v807 = vsel %vm805, 1.0, 0
        %809 = vmatpush.msra.mxu0 0.0
        %810 = vmatpush.msra.mxu0 0.0
        %811 = vmatpush.msra.mxu0 0.0
        %812 = vmatpush.msra.mxu0 0.0
        %813 = vmatpush.msra.mxu0 0.0
        %814 = vmatpush.msra.mxu0 0.0
        %815 = vmatpush.msra.mxu0 0.0
        %816 = vmatpush.msra.mxu0 0.0
        %817 = vmatpush.msra.mxu0 0.0
        %818 = vmatpush.msra.mxu0 0.0
        %819 = vmatpush.msra.mxu0 0.0
        %820 = vmatpush.msra.mxu0 0.0
        %821 = vmatpush.msra.mxu0 0.0
        %822 = vmatpush.msra.mxu0 0.0
        %823 = vmatpush.msra.mxu0 0.0
        %824 = vmatpush.msra.mxu0 %v802
        %825 = vmatmul.f32.gmra.mxu0 %v807
        %v826 = vpop.f32.mrf.mxu0
        %v827 = vadd.f32 0.0, %v826
        %828 = vdwg.mxu0
        %v829 = vmul.f32 %v827, 0.125
        %v830 = vperm.slane %v829, 0
        %v831 = vsub.f32 %v802, %v830
        %v832 = vmul.f32 %v831, %v831
        %833 = vmatpush.msra.mxu0 0.0
        %834 = vmatpush.msra.mxu0 0.0
        %835 = vmatpush.msra.mxu0 0.0
        %836 = vmatpush.msra.mxu0 0.0
        %837 = vmatpush.msra.mxu0 0.0
        %838 = vmatpush.msra.mxu0 0.0
        %839 = vmatpush.msra.mxu0 0.0
        %840 = vmatpush.msra.mxu0 0.0
        %841 = vmatpush.msra.mxu0 0.0
        %842 = vmatpush.msra.mxu0 0.0
        %843 = vmatpush.msra.mxu0 0.0
        %844 = vmatpush.msra.mxu0 0.0
        %845 = vmatpush.msra.mxu0 0.0
        %846 = vmatpush.msra.mxu0 0.0
        %847 = vmatpush.msra.mxu0 0.0
        %848 = vmatpush.msra.mxu0 %v832
        %849 = vmatmul.f32.gmra.mxu0 %v807
        %v850 = vpop.f32.mrf.mxu0
        %v851 = vadd.f32 0.0, %v850
        %852 = vdwg.mxu0
        %v853 = vmul.f32 %v851, 0.125
        %v854 = vadd.f32 %v853, 1e-05
        %v855 = vrsqrt.pop %v854
        %v856 = vmul.f32 %v855, %v854
        %v857 = vmul.f32 %v856, %v855
        %v858 = vmul.f32 0.5, %v857
        %v859 = vsub.f32 1.5, %v858
        %v860 = vmul.f32 %v855, %v859
        %vm861 = vweird.f32 %v854
        %vm862 = vweird.f32 %v855
        %vm863 = vmor %vm861, %vm862
        %v864 = vsel %vm863, %v855, %v860
        %v865 = vperm.slane %v864, 0
        %v866 = vmul.f32 %v831, %v865
        %v868 = vperm.slane %v803, 0
        %v870 = vmul.f32 %v866, %v868
        %v872 = vperm.slane %v804, 0
        %v874 = vadd.f32 %v870, %v872
        %v875 = vmax.f32 %v874, 0.0
        %876 = vst [vmem:[%s337] sm:$0xff] %v875
        %p877 = scmp.lt.s32.totalorder %s20, 1
        %s878 = scalar_select %p877, %s20, 1
        %s879 = smul.addr %s878, 8
        %s880 = scalar_lea.vmem %s8, %s879
        // Predicated region
        $region57: #{state_action_predictor.12} parent=51 // pred_check
          %p881 = pneg %p216
        $region58: #{state_action_predictor.12} parent=51 // pred_check_branch
          %883 = sbr.rel (%p881) target = $region60
        $region59: #{state_action_predictor.12} parent=51 // pred_region
          _
        $region60: #{state_action_predictor.12} parent=51 // pred_fallthru
          _
      $region52: #{state_action_predictor.12} parent=5 // pred_fallthru
        _
      %p884 = scmp.le.s32.totalorder 2, %s15
      // Predicated region
      $region61: #{state_action_predictor.12} parent=5 // pred_check
        %p885 = pneg %p884
      $region62: #{state_action_predictor.12} parent=5 // pred_check_branch
        %887 = sbr.rel (%p885) target = $region64
      $region63: #{state_action_predictor.12} parent=5 // pred_region
        %s888 = ssub.s32 %s15, 2
        // Predicated region
        $region65: #{state_action_predictor.12} parent=63 // pred_check
          %p889 = pneg %p222
        $region66: #{state_action_predictor.12} parent=63 // pred_check_branch
          %891 = sbr.rel (%p889) target = $region68
        $region67: #{state_action_predictor.12} parent=63 // pred_region
          %p892 = scmp.lt.s32.totalorder %s21, 1
          %s893 = scalar_select %p892, %s21, 1
          %s894 = smul.addr %s893, 8
          %s895 = scalar_lea.vmem %s8, %s894
        $region68: #{state_action_predictor.12} parent=63 // pred_fallthru
          _
      $region64: #{state_action_predictor.12} parent=5 // pred_fallthru
        _
    $region6: #{state_action_predictor.12} parent=1 // loop_footer
      %s19 = sadd.s32 1, %s15
    $region7: #{state_action_predictor.12} parent=1 // loop_footer_branch
      %14 = sbr.rel target = $region3
    $region8: #{state_action_predictor.12} parent=1 // loop_exit
      _
    %896 = vsyncpa [#allocation3], 1
    %s897 = scalar_lea.sflag [#allocation3], 1
    %898 = vsyncpa %s897, 1

// kernel: state_action_predictor.14
$region0: #{state_action_predictor.14}
  #allocation0 [shape = 'u32[]', space=smem, size = 0x4, offset = 0x4, fixed_abs, tag = 'smem constant byte address 0x4 - core index']
  #allocation1 [shape = 'u32[72,128]{1,0:T(1,128)}', space=vmem, size = 0x9000, scoped, tag = 'internal scratch']
  %s0 = inlined_call_operand.vmem [shape: f32[16,1152], index: 0, kind: input, shape index: {}]
  %s1 = inlined_call_operand.vmem [shape: f32[1152,128], index: 1, kind: input, shape index: {}]
  %s2 = inlined_call_operand.vmem [shape: f32[1,128], index: 2, kind: input, shape index: {}]
  %s3 = inlined_call_operand.vmem [shape: f32[2,2,128], index: 3, kind: input, shape index: {}]
  %s4 = inlined_call_operand.hbm [shape: f32[128,256], index: 4, kind: input, shape index: {}]
  %s5 = inlined_call_operand.vmem [shape: f32[1,256], index: 5, kind: input, shape index: {}]
  %s6 = inlined_call_operand.vmem [shape: f32[1,128], index: 6, kind: input, shape index: {}]
  %s7 = inlined_call_operand.vmem [shape: f32[1,128], index: 7, kind: input, shape index: {}]
  %s8 = inlined_call_operand.vmem [shape: f32[2,2,128], index: 8, kind: output, shape index: {}]
  %s9 = sld [smem:[#allocation0]]
  $region69: #{state_action_predictor.14} parent=0
    _
  %s11 = ssub.s32 1, %s9
  %s12 = scalar_select 0, %s11, %s9
  $region1: #{state_action_predictor.14} parent=0
    #allocation2 [shape = 'u8[131072]{0}', space=vmem, size = 0x20000, scoped, tag = 'input window, operand 4, single buffered']
    #allocation3 [shape = 's32[2]{0}', space=sflag, size = 0x8, scoped, tag = 'scoped memory for state_action_predictor.14']
    %13 = vsyncpa [#allocation3], 0
    loop: start=0, step=1, limit=4
    $region2: #{state_action_predictor.14} parent=1 // loop_pre_header
      _
    $region3: #{state_action_predictor.14} parent=1 // loop_header
      %s15 = sphi 0, %s19
      %p16 = scmp.ge.s32.totalorder %s15, 4
      %s25 = sphi 0, %s27
      %s28 = sphi 0, %s25
      %s29 = sphi 0, %s28
      %s45 = sphi 0, %s29
      %s49 = sphi 0, %s49
      %s51 = sphi 0, %s49
      %s52 = sphi 0, %s51
      %s66 = sphi 0, %s52
      %s70 = sphi 0, %s70
      %s72 = sphi 0, %s70
      %s73 = sphi 0, %s72
      %s87 = sphi 0, %s73
      %s93 = sphi 0, %s95
      %s96 = sphi 0, %s93
      %s97 = sphi 0, %s96
      %s113 = sphi 0, %s97
      %s117 = sphi 0, %s117
      %s119 = sphi 0, %s117
      %s120 = sphi 0, %s119
      %s134 = sphi 0, %s120
      %s138 = sphi 0, %s138
      %s140 = sphi 0, %s138
      %s141 = sphi 0, %s140
      %s155 = sphi 0, %s141
      %s159 = sphi 0, %s159
      %s161 = sphi 0, %s159
      %s162 = sphi 0, %s161
      %s176 = sphi 0, %s162
      %s180 = sphi 0, %s180
      %s182 = sphi 0, %s180
      %s183 = sphi 0, %s182
      %s197 = sphi 0, %s183
      %s203 = sphi 0, %s205
      %s206 = sphi 0, %s203
      %s207 = sphi 0, %s206
      %s223 = sphi 0, %s207
    $region4: #{state_action_predictor.14} parent=1 // loop_header_branch
      %18 = sbr.rel (%p16) target = $region8
    $region5: #{state_action_predictor.14} parent=1 // loop_body
      %s20 = ssub.s32 %s15, 1
      %s21 = ssub.s32 %s15, 2
      %s22 = sadd.s32 %s15, 1
      %s23 = ssub.s32 %s15, %s22
      %p24 = scmp.eq.s32.totalorder %s23, 0
      %s26 = sadd.s32 %s25, 1
      %s27 = scalar_select %p24, %s25, %s26
      %p30 = pneg %p24
      %p31 = scmp.eq.s32.totalorder %s15, 1
      %p32 = por %p30, %p31
      %p33 = scmp.ne.s32.totalorder %s25, %s28
      %p34 = scmp.eq.s32.totalorder %s15, 0
      %p35 = por %p33, %p34
      %p36 = scmp.ne.s32.totalorder %s25, %s28
      %p37 = scmp.eq.s32.totalorder %s20, 1
      %p38 = por %p36, %p37
      %p39 = scmp.ne.s32.totalorder %s28, %s29
      %p40 = scmp.eq.s32.totalorder %s20, 0
      %p41 = por %p39, %p40
      %p42 = scmp.ne.s32.totalorder %s28, %s29
      %p43 = scmp.eq.s32.totalorder %s21, 1
      %p44 = por %p42, %p43
      %p46 = scmp.ne.s32.totalorder %s29, %s45
      %p47 = scmp.eq.s32.totalorder %s21, 0
      %p48 = por %p46, %p47
      %s50 = sadd.s32 %s49, 1
      %p53 = scmp.eq.s32.totalorder %s15, 1
      %p54 = scmp.ne.s32.totalorder %s49, %s51
      %p55 = scmp.eq.s32.totalorder %s15, 0
      %p56 = por %p54, %p55
      %p57 = scmp.ne.s32.totalorder %s49, %s51
      %p58 = scmp.eq.s32.totalorder %s20, 1
      %p59 = por %p57, %p58
      %p60 = scmp.ne.s32.totalorder %s51, %s52
      %p61 = scmp.eq.s32.totalorder %s20, 0
      %p62 = por %p60, %p61
      %p63 = scmp.ne.s32.totalorder %s51, %s52
      %p64 = scmp.eq.s32.totalorder %s21, 1
      %p65 = por %p63, %p64
      %p67 = scmp.ne.s32.totalorder %s52, %s66
      %p68 = scmp.eq.s32.totalorder %s21, 0
      %p69 = por %p67, %p68
      %s71 = sadd.s32 %s70, 1
      %p74 = scmp.eq.s32.totalorder %s15, 1
      %p75 = scmp.ne.s32.totalorder %s70, %s72
      %p76 = scmp.eq.s32.totalorder %s15, 0
      %p77 = por %p75, %p76
      %p78 = scmp.ne.s32.totalorder %s70, %s72
      %p79 = scmp.eq.s32.totalorder %s20, 1
      %p80 = por %p78, %p79
      %p81 = scmp.ne.s32.totalorder %s72, %s73
      %p82 = scmp.eq.s32.totalorder %s20, 0
      %p83 = por %p81, %p82
      %p84 = scmp.ne.s32.totalorder %s72, %s73
      %p85 = scmp.eq.s32.totalorder %s21, 1
      %p86 = por %p84, %p85
      %p88 = scmp.ne.s32.totalorder %s73, %s87
      %p89 = scmp.eq.s32.totalorder %s21, 0
      %p90 = por %p88, %p89
      %s91 = ssub.s32 %s15, %s22
      %p92 = scmp.eq.s32.totalorder %s91, 0
      %s94 = sadd.s32 %s93, 1
      %s95 = scalar_select %p92, %s93, %s94
      %p98 = pneg %p92
      %p99 = scmp.eq.s32.totalorder %s15, 1
      %p100 = por %p98, %p99
      %p101 = scmp.ne.s32.totalorder %s93, %s96
      %p102 = scmp.eq.s32.totalorder %s15, 0
      %p103 = por %p101, %p102
      %p104 = scmp.ne.s32.totalorder %s93, %s96
      %p105 = scmp.eq.s32.totalorder %s20, 1
      %p106 = por %p104, %p105
      %p107 = scmp.ne.s32.totalorder %s96, %s97
      %p108 = scmp.eq.s32.totalorder %s20, 0
      %p109 = por %p107, %p108
      %p110 = scmp.ne.s32.totalorder %s96, %s97
      %p111 = scmp.eq.s32.totalorder %s21, 1
      %p112 = por %p110, %p111
      %p114 = scmp.ne.s32.totalorder %s97, %s113
      %p115 = scmp.eq.s32.totalorder %s21, 0
      %p116 = por %p114, %p115
      %s118 = sadd.s32 %s117, 1
      %p121 = scmp.eq.s32.totalorder %s15, 1
      %p122 = scmp.ne.s32.totalorder %s117, %s119
      %p123 = scmp.eq.s32.totalorder %s15, 0
      %p124 = por %p122, %p123
      %p125 = scmp.ne.s32.totalorder %s117, %s119
      %p126 = scmp.eq.s32.totalorder %s20, 1
      %p127 = por %p125, %p126
      %p128 = scmp.ne.s32.totalorder %s119, %s120
      %p129 = scmp.eq.s32.totalorder %s20, 0
      %p130 = por %p128, %p129
      %p131 = scmp.ne.s32.totalorder %s119, %s120
      %p132 = scmp.eq.s32.totalorder %s21, 1
      %p133 = por %p131, %p132
      %p135 = scmp.ne.s32.totalorder %s120, %s134
      %p136 = scmp.eq.s32.totalorder %s21, 0
      %p137 = por %p135, %p136
      %s139 = sadd.s32 %s138, 1
      %p142 = scmp.eq.s32.totalorder %s15, 1
      %p143 = scmp.ne.s32.totalorder %s138, %s140
      %p144 = scmp.eq.s32.totalorder %s15, 0
      %p145 = por %p143, %p144
      %p146 = scmp.ne.s32.totalorder %s138, %s140
      %p147 = scmp.eq.s32.totalorder %s20, 1
      %p148 = por %p146, %p147
      %p149 = scmp.ne.s32.totalorder %s140, %s141
      %p150 = scmp.eq.s32.totalorder %s20, 0
      %p151 = por %p149, %p150
      %p152 = scmp.ne.s32.totalorder %s140, %s141
      %p153 = scmp.eq.s32.totalorder %s21, 1
      %p154 = por %p152, %p153
      %p156 = scmp.ne.s32.totalorder %s141, %s155
      %p157 = scmp.eq.s32.totalorder %s21, 0
      %p158 = por %p156, %p157
      %s160 = sadd.s32 %s159, 1
      %p163 = scmp.eq.s32.totalorder %s15, 1
      %p164 = scmp.ne.s32.totalorder %s159, %s161
      %p165 = scmp.eq.s32.totalorder %s15, 0
      %p166 = por %p164, %p165
      %p167 = scmp.ne.s32.totalorder %s159, %s161
      %p168 = scmp.eq.s32.totalorder %s20, 1
      %p169 = por %p167, %p168
      %p170 = scmp.ne.s32.totalorder %s161, %s162
      %p171 = scmp.eq.s32.totalorder %s20, 0
      %p172 = por %p170, %p171
      %p173 = scmp.ne.s32.totalorder %s161, %s162
      %p174 = scmp.eq.s32.totalorder %s21, 1
      %p175 = por %p173, %p174
      %p177 = scmp.ne.s32.totalorder %s162, %s176
      %p178 = scmp.eq.s32.totalorder %s21, 0
      %p179 = por %p177, %p178
      %s181 = sadd.s32 %s180, 1
      %p184 = scmp.eq.s32.totalorder %s15, 1
      %p185 = scmp.ne.s32.totalorder %s180, %s182
      %p186 = scmp.eq.s32.totalorder %s15, 0
      %p187 = por %p185, %p186
      %p188 = scmp.ne.s32.totalorder %s180, %s182
      %p189 = scmp.eq.s32.totalorder %s20, 1
      %p190 = por %p188, %p189
      %p191 = scmp.ne.s32.totalorder %s182, %s183
      %p192 = scmp.eq.s32.totalorder %s20, 0
      %p193 = por %p191, %p192
      %p194 = scmp.ne.s32.totalorder %s182, %s183
      %p195 = scmp.eq.s32.totalorder %s21, 1
      %p196 = por %p194, %p195
      %p198 = scmp.ne.s32.totalorder %s183, %s197
      %p199 = scmp.eq.s32.totalorder %s21, 0
      %p200 = por %p198, %p199
      %s201 = ssub.s32 %s15, %s22
      %p202 = scmp.eq.s32.totalorder %s201, 0
      %s204 = sadd.s32 %s203, 1
      %s205 = scalar_select %p202, %s203, %s204
      %p208 = pneg %p202
      %p209 = scmp.eq.s32.totalorder %s15, 1
      %p210 = por %p208, %p209
      %p211 = scmp.ne.s32.totalorder %s203, %s206
      %p212 = scmp.eq.s32.totalorder %s15, 0
      %p213 = por %p211, %p212
      %p214 = scmp.ne.s32.totalorder %s203, %s206
      %p215 = scmp.eq.s32.totalorder %s20, 1
      %p216 = por %p214, %p215
      %p217 = scmp.ne.s32.totalorder %s206, %s207
      %p218 = scmp.eq.s32.totalorder %s20, 0
      %p219 = por %p217, %p218
      %p220 = scmp.ne.s32.totalorder %s206, %s207
      %p221 = scmp.eq.s32.totalorder %s21, 1
      %p222 = por %p220, %p221
      %p224 = scmp.ne.s32.totalorder %s207, %s223
      %p225 = scmp.eq.s32.totalorder %s21, 0
      %p226 = por %p224, %p225
      %p227 = scmp.le.s32.totalorder 1, %s15
      %p228 = scmp.lt.s32.totalorder %s15, 3
      %p229 = pnand %p227, %p228
      %p230 = pneg %p229
      // Predicated region
      $region9: #{state_action_predictor.14} parent=5 // pred_check
        _
      $region10: #{state_action_predictor.14} parent=5 // pred_check_branch
        %232 = sbr.rel (%p229) target = $region12
      $region11: #{state_action_predictor.14} parent=5 // pred_region
        %s233 = ssub.s32 %s15, 1
        // Predicated region
        $region13: #{state_action_predictor.14} parent=11 // pred_check
          %p234 = pneg %p62
        $region14: #{state_action_predictor.14} parent=11 // pred_check_branch
          %236 = sbr.rel (%p234) target = $region16
        $region15: #{state_action_predictor.14} parent=11 // pred_region
          _
        $region16: #{state_action_predictor.14} parent=11 // pred_fallthru
          _
        // Predicated region
        $region17: #{state_action_predictor.14} parent=11 // pred_check
          %p237 = pneg %p83
        $region18: #{state_action_predictor.14} parent=11 // pred_check_branch
          %239 = sbr.rel (%p237) target = $region20
        $region19: #{state_action_predictor.14} parent=11 // pred_region
          _
        $region20: #{state_action_predictor.14} parent=11 // pred_fallthru
          _
        // Predicated region
        $region21: #{state_action_predictor.14} parent=11 // pred_check
          %p240 = pneg %p130
        $region22: #{state_action_predictor.14} parent=11 // pred_check_branch
          %242 = sbr.rel (%p240) target = $region24
        $region23: #{state_action_predictor.14} parent=11 // pred_region
          %244 = vsyncadd [#allocation3], 0
          %s245 = sshll.u32 %s4, 4
          %s246 = int_to_ptr.hbm [resolvable:$true] %s245
          %s247 = sshll.u32 [#allocation2], 4
          %s248 = int_to_ptr.vmem [resolvable:$true] %s247
          %253 = dma.hbm_to_vmem [thread:$0]  %s246, 4096, %s248, [#allocation3], 256, 256, 16
        $region24: #{state_action_predictor.14} parent=11 // pred_fallthru
          _
        // Predicated region
        $region25: #{state_action_predictor.14} parent=11 // pred_check
          %p254 = pneg %p151
        $region26: #{state_action_predictor.14} parent=11 // pred_check_branch
          %256 = sbr.rel (%p254) target = $region28
        $region27: #{state_action_predictor.14} parent=11 // pred_region
          _
        $region28: #{state_action_predictor.14} parent=11 // pred_fallthru
          _
        // Predicated region
        $region29: #{state_action_predictor.14} parent=11 // pred_check
          %p257 = pneg %p172
        $region30: #{state_action_predictor.14} parent=11 // pred_check_branch
          %259 = sbr.rel (%p257) target = $region32
        $region31: #{state_action_predictor.14} parent=11 // pred_region
          _
        $region32: #{state_action_predictor.14} parent=11 // pred_fallthru
          _
        // Predicated region
        $region33: #{state_action_predictor.14} parent=11 // pred_check
          %p260 = pneg %p193
        $region34: #{state_action_predictor.14} parent=11 // pred_check_branch
          %262 = sbr.rel (%p260) target = $region36
        $region35: #{state_action_predictor.14} parent=11 // pred_region
          _
        $region36: #{state_action_predictor.14} parent=11 // pred_fallthru
          _
      $region12: #{state_action_predictor.14} parent=5 // pred_fallthru
        _
      %p263 = scmp.lt.s32.totalorder %s15, 2
      // Predicated region
      $region37: #{state_action_predictor.14} parent=5 // pred_check
        %p264 = pneg %p263
      $region38: #{state_action_predictor.14} parent=5 // pred_check_branch
        %266 = sbr.rel (%p264) target = $region40
      $region39: #{state_action_predictor.14} parent=5 // pred_region
        // Predicated region
        $region41: #{state_action_predictor.14} parent=39 // pred_check
          %p267 = pneg %p35
        $region42: #{state_action_predictor.14} parent=39 // pred_check_branch
          %269 = sbr.rel (%p267) target = $region44
        $region43: #{state_action_predictor.14} parent=39 // pred_region
          %p270 = scmp.lt.s32.totalorder %s15, 1
          %s271 = scalar_select %p270, %s15, 1
          %s272 = smul.addr %s271, 9
          %s273 = smul.addr %s272, 8
          %s274 = scalar_lea.vmem %s0, %s273
        $region44: #{state_action_predictor.14} parent=39 // pred_fallthru
          _
        // Predicated region
        $region45: #{state_action_predictor.14} parent=39 // pred_check
          %p275 = pneg %p103
        $region46: #{state_action_predictor.14} parent=39 // pred_check_branch
          %277 = sbr.rel (%p275) target = $region48
        $region47: #{state_action_predictor.14} parent=39 // pred_region
          %p278 = scmp.lt.s32.totalorder %s15, 1
          %s279 = scalar_select %p278, %s15, 1
          %s280 = smul.addr %s279, 2
          %s281 = scalar_lea.vmem %s3, %s280
        $region48: #{state_action_predictor.14} parent=39 // pred_fallthru
          _
      $region40: #{state_action_predictor.14} parent=5 // pred_fallthru
        _
      %p282 = scmp.le.s32.totalorder 1, %s15
      %p283 = scmp.lt.s32.totalorder %s15, 3
      %p284 = pnand %p282, %p283
      %p285 = pneg %p284
      // Predicated region
      $region49: #{state_action_predictor.14} parent=5 // pred_check
        _
      $region50: #{state_action_predictor.14} parent=5 // pred_check_branch
        %287 = sbr.rel (%p284) target = $region52
      $region51: #{state_action_predictor.14} parent=5 // pred_region
        %s288 = ssub.s32 %s15, 1
        // Predicated region
        $region53: #{state_action_predictor.14} parent=51 // pred_check
          %p289 = pneg %p130
        $region54: #{state_action_predictor.14} parent=51 // pred_check_branch
          %291 = sbr.rel (%p289) target = $region56
        $region55: #{state_action_predictor.14} parent=51 // pred_region
          %293 = dma.done [#allocation3], 4096
        $region56: #{state_action_predictor.14} parent=51 // pred_fallthru
          _
        %p294 = scmp.lt.s32.totalorder %s20, 1
        %s295 = scalar_select %p294, %s20, 1
        %s296 = smul.addr %s295, 9
        %s297 = smul.addr %s296, 8
        %s298 = scalar_lea.vmem %s0, %s297
        %p299 = pneg %p41
        %p300 = pneg %p38
        %p301 = pneg %p62
        %p302 = pneg %p59
        %p303 = pneg %p83
        %p304 = pneg %p80
        %p305 = scmp.lt.s32.totalorder %s20, 1
        %s306 = scalar_select %p305, %s20, 1
        %s307 = smul.addr %s306, 2
        %s308 = scalar_lea.vmem %s3, %s307
        %p309 = pneg %p109
        %p310 = pneg %p106
        %p311 = pneg %p130
        %p312 = pneg %p127
        %p313 = pneg %p151
        %p314 = pneg %p148
        %p315 = pneg %p172
        %p316 = pneg %p169
        %p317 = pneg %p193
        %p318 = pneg %p190
        %p319 = pneg %p219
        %p320 = pneg %p216
        %p321 = scmp.lt.s32.totalorder %s20, 1
        %s322 = scalar_select %p321, %s20, 1
        %s323 = smul.addr %s322, 2
        %s324 = scalar_lea.vmem %s8, %s323
        %p325 = scmp.lt.s32.totalorder %s20, 1
        %s326 = scalar_select %p325, %s20, 1
        %s327 = smul.addr %s326, 9
        %s328 = smul.addr %s327, 8
        %s329 = scalar_lea.vmem %s0, %s328
        %p330 = scmp.lt.s32.totalorder %s20, 1
        %s331 = scalar_select %p330, %s20, 1
        %s332 = smul.addr %s331, 2
        %s333 = scalar_lea.vmem %s3, %s332
        %p334 = scmp.lt.s32.totalorder %s20, 1
        %s335 = scalar_select %p334, %s20, 1
        %s336 = smul.addr %s335, 2
        %s337 = scalar_lea.vmem %s8, %s336
        %v338 = vld [vmem:[%s329] sm:$0xff]
        %v339 = vld [vmem:[%s329 + $0x8] sm:$0xff]
        %v340 = vld [vmem:[%s329 + $0x10] sm:$0xff]
        %v341 = vld [vmem:[%s329 + $0x18] sm:$0xff]
        %v342 = vld [vmem:[%s329 + $0x20] sm:$0xff]
        %v343 = vld [vmem:[%s329 + $0x28] sm:$0xff]
        %v344 = vld [vmem:[%s329 + $0x30] sm:$0xff]
        %v345 = vld [vmem:[%s329 + $0x38] sm:$0xff]
        %v346 = vld [vmem:[%s329 + $0x40] sm:$0xff]
        %v347 = vld [vmem:[%s1] sm:$0xff]
        %v348 = vld [vmem:[%s1 + $0x8] sm:$0xff]
        %v349 = vld [vmem:[%s1 + $0x10] sm:$0xff]
        %v350 = vld [vmem:[%s1 + $0x18] sm:$0xff]
        %v351 = vld [vmem:[%s1 + $0x20] sm:$0xff]
        %v352 = vld [vmem:[%s1 + $0x28] sm:$0xff]
        %v353 = vld [vmem:[%s1 + $0x30] sm:$0xff]
        %v354 = vld [vmem:[%s1 + $0x38] sm:$0xff]
        %v355 = vld [vmem:[%s1 + $0x40] sm:$0xff]
        %v356 = vld [vmem:[%s1 + $0x48] sm:$0xff]
        %v357 = vld [vmem:[%s1 + $0x50] sm:$0xff]
        %v358 = vld [vmem:[%s1 + $0x58] sm:$0xff]
        %v359 = vld [vmem:[%s1 + $0x60] sm:$0xff]
        %v360 = vld [vmem:[%s1 + $0x68] sm:$0xff]
        %v361 = vld [vmem:[%s1 + $0x70] sm:$0xff]
        %v362 = vld [vmem:[%s1 + $0x78] sm:$0xff]
        %v363 = vld [vmem:[%s1 + $0x80] sm:$0xff]
        %v364 = vld [vmem:[%s1 + $0x88] sm:$0xff]
        %v365 = vld [vmem:[%s1 + $0x90] sm:$0xff]
        %v366 = vld [vmem:[%s1 + $0x98] sm:$0xff]
        %v367 = vld [vmem:[%s1 + $0xa0] sm:$0xff]
        %v368 = vld [vmem:[%s1 + $0xa8] sm:$0xff]
        %v369 = vld [vmem:[%s1 + $0xb0] sm:$0xff]
        %v370 = vld [vmem:[%s1 + $0xb8] sm:$0xff]
        %v371 = vld [vmem:[%s1 + $0xc0] sm:$0xff]
        %v372 = vld [vmem:[%s1 + $0xc8] sm:$0xff]
        %v373 = vld [vmem:[%s1 + $0xd0] sm:$0xff]
        %v374 = vld [vmem:[%s1 + $0xd8] sm:$0xff]
        %v375 = vld [vmem:[%s1 + $0xe0] sm:$0xff]
        %v376 = vld [vmem:[%s1 + $0xe8] sm:$0xff]
        %v377 = vld [vmem:[%s1 + $0xf0] sm:$0xff]
        %v378 = vld [vmem:[%s1 + $0xf8] sm:$0xff]
        %v379 = vld [vmem:[%s1 + $0x100] sm:$0xff]
        %v380 = vld [vmem:[%s1 + $0x108] sm:$0xff]
        %v381 = vld [vmem:[%s1 + $0x110] sm:$0xff]
        %v382 = vld [vmem:[%s1 + $0x118] sm:$0xff]
        %v383 = vld [vmem:[%s1 + $0x120] sm:$0xff]
        %v384 = vld [vmem:[%s1 + $0x128] sm:$0xff]
        %v385 = vld [vmem:[%s1 + $0x130] sm:$0xff]
        %v386 = vld [vmem:[%s1 + $0x138] sm:$0xff]
        %v387 = vld [vmem:[%s1 + $0x140] sm:$0xff]
        %v388 = vld [vmem:[%s1 + $0x148] sm:$0xff]
        %v389 = vld [vmem:[%s1 + $0x150] sm:$0xff]
        %v390 = vld [vmem:[%s1 + $0x158] sm:$0xff]
        %v391 = vld [vmem:[%s1 + $0x160] sm:$0xff]
        %v392 = vld [vmem:[%s1 + $0x168] sm:$0xff]
        %v393 = vld [vmem:[%s1 + $0x170] sm:$0xff]
        %v394 = vld [vmem:[%s1 + $0x178] sm:$0xff]
        %v395 = vld [vmem:[%s1 + $0x180] sm:$0xff]
        %v396 = vld [vmem:[%s1 + $0x188] sm:$0xff]
        %v397 = vld [vmem:[%s1 + $0x190] sm:$0xff]
        %v398 = vld [vmem:[%s1 + $0x198] sm:$0xff]
        %v399 = vld [vmem:[%s1 + $0x1a0] sm:$0xff]
        %v400 = vld [vmem:[%s1 + $0x1a8] sm:$0xff]
        %v401 = vld [vmem:[%s1 + $0x1b0] sm:$0xff]
        %v402 = vld [vmem:[%s1 + $0x1b8] sm:$0xff]
        %v403 = vld [vmem:[%s1 + $0x1c0] sm:$0xff]
        %v404 = vld [vmem:[%s1 + $0x1c8] sm:$0xff]
        %v405 = vld [vmem:[%s1 + $0x1d0] sm:$0xff]
        %v406 = vld [vmem:[%s1 + $0x1d8] sm:$0xff]
        %v407 = vld [vmem:[%s1 + $0x1e0] sm:$0xff]
        %v408 = vld [vmem:[%s1 + $0x1e8] sm:$0xff]
        %v409 = vld [vmem:[%s1 + $0x1f0] sm:$0xff]
        %v410 = vld [vmem:[%s1 + $0x1f8] sm:$0xff]
        %v411 = vld [vmem:[%s1 + $0x200] sm:$0xff]
        %v412 = vld [vmem:[%s1 + $0x208] sm:$0xff]
        %v413 = vld [vmem:[%s1 + $0x210] sm:$0xff]
        %v414 = vld [vmem:[%s1 + $0x218] sm:$0xff]
        %v415 = vld [vmem:[%s1 + $0x220] sm:$0xff]
        %v416 = vld [vmem:[%s1 + $0x228] sm:$0xff]
        %v417 = vld [vmem:[%s1 + $0x230] sm:$0xff]
        %v418 = vld [vmem:[%s1 + $0x238] sm:$0xff]
        %v419 = vld [vmem:[%s1 + $0x240] sm:$0xff]
        %v420 = vld [vmem:[%s1 + $0x248] sm:$0xff]
        %v421 = vld [vmem:[%s1 + $0x250] sm:$0xff]
        %v422 = vld [vmem:[%s1 + $0x258] sm:$0xff]
        %v423 = vld [vmem:[%s1 + $0x260] sm:$0xff]
        %v424 = vld [vmem:[%s1 + $0x268] sm:$0xff]
        %v425 = vld [vmem:[%s1 + $0x270] sm:$0xff]
        %v426 = vld [vmem:[%s1 + $0x278] sm:$0xff]
        %v427 = vld [vmem:[%s1 + $0x280] sm:$0xff]
        %v428 = vld [vmem:[%s1 + $0x288] sm:$0xff]
        %v429 = vld [vmem:[%s1 + $0x290] sm:$0xff]
        %v430 = vld [vmem:[%s1 + $0x298] sm:$0xff]
        %v431 = vld [vmem:[%s1 + $0x2a0] sm:$0xff]
        %v432 = vld [vmem:[%s1 + $0x2a8] sm:$0xff]
        %v433 = vld [vmem:[%s1 + $0x2b0] sm:$0xff]
        %v434 = vld [vmem:[%s1 + $0x2b8] sm:$0xff]
        %v435 = vld [vmem:[%s1 + $0x2c0] sm:$0xff]
        %v436 = vld [vmem:[%s1 + $0x2c8] sm:$0xff]
        %v437 = vld [vmem:[%s1 + $0x2d0] sm:$0xff]
        %v438 = vld [vmem:[%s1 + $0x2d8] sm:$0xff]
        %v439 = vld [vmem:[%s1 + $0x2e0] sm:$0xff]
        %v440 = vld [vmem:[%s1 + $0x2e8] sm:$0xff]
        %v441 = vld [vmem:[%s1 + $0x2f0] sm:$0xff]
        %v442 = vld [vmem:[%s1 + $0x2f8] sm:$0xff]
        %v443 = vld [vmem:[%s1 + $0x300] sm:$0xff]
        %v444 = vld [vmem:[%s1 + $0x308] sm:$0xff]
        %v445 = vld [vmem:[%s1 + $0x310] sm:$0xff]
        %v446 = vld [vmem:[%s1 + $0x318] sm:$0xff]
        %v447 = vld [vmem:[%s1 + $0x320] sm:$0xff]
        %v448 = vld [vmem:[%s1 + $0x328] sm:$0xff]
        %v449 = vld [vmem:[%s1 + $0x330] sm:$0xff]
        %v450 = vld [vmem:[%s1 + $0x338] sm:$0xff]
        %v451 = vld [vmem:[%s1 + $0x340] sm:$0xff]
        %v452 = vld [vmem:[%s1 + $0x348] sm:$0xff]
        %v453 = vld [vmem:[%s1 + $0x350] sm:$0xff]
        %v454 = vld [vmem:[%s1 + $0x358] sm:$0xff]
        %v455 = vld [vmem:[%s1 + $0x360] sm:$0xff]
        %v456 = vld [vmem:[%s1 + $0x368] sm:$0xff]
        %v457 = vld [vmem:[%s1 + $0x370] sm:$0xff]
        %v458 = vld [vmem:[%s1 + $0x378] sm:$0xff]
        %v459 = vld [vmem:[%s1 + $0x380] sm:$0xff]
        %v460 = vld [vmem:[%s1 + $0x388] sm:$0xff]
        %v461 = vld [vmem:[%s1 + $0x390] sm:$0xff]
        %v462 = vld [vmem:[%s1 + $0x398] sm:$0xff]
        %v463 = vld [vmem:[%s1 + $0x3a0] sm:$0xff]
        %v464 = vld [vmem:[%s1 + $0x3a8] sm:$0xff]
        %v465 = vld [vmem:[%s1 + $0x3b0] sm:$0xff]
        %v466 = vld [vmem:[%s1 + $0x3b8] sm:$0xff]
        %v467 = vld [vmem:[%s1 + $0x3c0] sm:$0xff]
        %v468 = vld [vmem:[%s1 + $0x3c8] sm:$0xff]
        %v469 = vld [vmem:[%s1 + $0x3d0] sm:$0xff]
        %v470 = vld [vmem:[%s1 + $0x3d8] sm:$0xff]
        %v471 = vld [vmem:[%s1 + $0x3e0] sm:$0xff]
        %v472 = vld [vmem:[%s1 + $0x3e8] sm:$0xff]
        %v473 = vld [vmem:[%s1 + $0x3f0] sm:$0xff]
        %v474 = vld [vmem:[%s1 + $0x3f8] sm:$0xff]
        %v475 = vld [vmem:[%s1 + $0x400] sm:$0xff]
        %v476 = vld [vmem:[%s1 + $0x408] sm:$0xff]
        %v477 = vld [vmem:[%s1 + $0x410] sm:$0xff]
        %v478 = vld [vmem:[%s1 + $0x418] sm:$0xff]
        %v479 = vld [vmem:[%s1 + $0x420] sm:$0xff]
        %v480 = vld [vmem:[%s1 + $0x428] sm:$0xff]
        %v481 = vld [vmem:[%s1 + $0x430] sm:$0xff]
        %v482 = vld [vmem:[%s1 + $0x438] sm:$0xff]
        %v483 = vld [vmem:[%s1 + $0x440] sm:$0xff]
        %v484 = vld [vmem:[%s1 + $0x448] sm:$0xff]
        %v485 = vld [vmem:[%s1 + $0x450] sm:$0xff]
        %v486 = vld [vmem:[%s1 + $0x458] sm:$0xff]
        %v487 = vld [vmem:[%s1 + $0x460] sm:$0xff]
        %v488 = vld [vmem:[%s1 + $0x468] sm:$0xff]
        %v489 = vld [vmem:[%s1 + $0x470] sm:$0xff]
        %v490 = vld [vmem:[%s1 + $0x478] sm:$0xff]
        %v491 = vld [vmem:[%s2] sm:$0x1]
        %v493 = vperm.slane %v491, 0
        %495 = vmatpush.msra.mxu0 %v362
        %496 = vmatpush.msra.mxu0 %v361
        %497 = vmatpush.msra.mxu0 %v360
        %498 = vmatpush.msra.mxu0 %v359
        %499 = vmatpush.msra.mxu0 %v358
        %500 = vmatpush.msra.mxu0 %v357
        %501 = vmatpush.msra.mxu0 %v356
        %502 = vmatpush.msra.mxu0 %v355
        %503 = vmatpush.msra.mxu0 %v354
        %504 = vmatpush.msra.mxu0 %v353
        %505 = vmatpush.msra.mxu0 %v352
        %506 = vmatpush.msra.mxu0 %v351
        %507 = vmatpush.msra.mxu0 %v350
        %508 = vmatpush.msra.mxu0 %v349
        %509 = vmatpush.msra.mxu0 %v348
        %510 = vmatpush.msra.mxu0 %v347
        %511 = vmatmul.f32.gmra.mxu0 %v338
        %v512 = vpop.f32.mrf.mxu0
        %v513 = vadd.f32 %v493, %v512
        %514 = vdwg.mxu0
        %515 = vmatpush.msra.mxu0 %v378
        %516 = vmatpush.msra.mxu0 %v377
        %517 = vmatpush.msra.mxu0 %v376
        %518 = vmatpush.msra.mxu0 %v375
        %519 = vmatpush.msra.mxu0 %v374
        %520 = vmatpush.msra.mxu0 %v373
        %521 = vmatpush.msra.mxu0 %v372
        %522 = vmatpush.msra.mxu0 %v371
        %523 = vmatpush.msra.mxu0 %v370
        %524 = vmatpush.msra.mxu0 %v369
        %525 = vmatpush.msra.mxu0 %v368
        %526 = vmatpush.msra.mxu0 %v367
        %527 = vmatpush.msra.mxu0 %v366
        %528 = vmatpush.msra.mxu0 %v365
        %529 = vmatpush.msra.mxu0 %v364
        %530 = vmatpush.msra.mxu0 %v363
        %531 = vmatmul.f32.gmra.mxu0 %v339
        %v532 = vpop.f32.mrf.mxu0
        %v533 = vadd.f32 %v513, %v532
        %534 = vdwg.mxu0
        %535 = vmatpush.msra.mxu0 %v394
        %536 = vmatpush.msra.mxu0 %v393
        %537 = vmatpush.msra.mxu0 %v392
        %538 = vmatpush.msra.mxu0 %v391
        %539 = vmatpush.msra.mxu0 %v390
        %540 = vmatpush.msra.mxu0 %v389
        %541 = vmatpush.msra.mxu0 %v388
        %542 = vmatpush.msra.mxu0 %v387
        %543 = vmatpush.msra.mxu0 %v386
        %544 = vmatpush.msra.mxu0 %v385
        %545 = vmatpush.msra.mxu0 %v384
        %546 = vmatpush.msra.mxu0 %v383
        %547 = vmatpush.msra.mxu0 %v382
        %548 = vmatpush.msra.mxu0 %v381
        %549 = vmatpush.msra.mxu0 %v380
        %550 = vmatpush.msra.mxu0 %v379
        %551 = vmatmul.f32.gmra.mxu0 %v340
        %v552 = vpop.f32.mrf.mxu0
        %v553 = vadd.f32 %v533, %v552
        %554 = vdwg.mxu0
        %555 = vmatpush.msra.mxu0 %v410
        %556 = vmatpush.msra.mxu0 %v409
        %557 = vmatpush.msra.mxu0 %v408
        %558 = vmatpush.msra.mxu0 %v407
        %559 = vmatpush.msra.mxu0 %v406
        %560 = vmatpush.msra.mxu0 %v405
        %561 = vmatpush.msra.mxu0 %v404
        %562 = vmatpush.msra.mxu0 %v403
        %563 = vmatpush.msra.mxu0 %v402
        %564 = vmatpush.msra.mxu0 %v401
        %565 = vmatpush.msra.mxu0 %v400
        %566 = vmatpush.msra.mxu0 %v399
        %567 = vmatpush.msra.mxu0 %v398
        %568 = vmatpush.msra.mxu0 %v397
        %569 = vmatpush.msra.mxu0 %v396
        %570 = vmatpush.msra.mxu0 %v395
        %571 = vmatmul.f32.gmra.mxu0 %v341
        %v572 = vpop.f32.mrf.mxu0
        %v573 = vadd.f32 %v553, %v572
        %574 = vdwg.mxu0
        %575 = vmatpush.msra.mxu0 %v426
        %576 = vmatpush.msra.mxu0 %v425
        %577 = vmatpush.msra.mxu0 %v424
        %578 = vmatpush.msra.mxu0 %v423
        %579 = vmatpush.msra.mxu0 %v422
        %580 = vmatpush.msra.mxu0 %v421
        %581 = vmatpush.msra.mxu0 %v420
        %582 = vmatpush.msra.mxu0 %v419
        %583 = vmatpush.msra.mxu0 %v418
        %584 = vmatpush.msra.mxu0 %v417
        %585 = vmatpush.msra.mxu0 %v416
        %586 = vmatpush.msra.mxu0 %v415
        %587 = vmatpush.msra.mxu0 %v414
        %588 = vmatpush.msra.mxu0 %v413
        %589 = vmatpush.msra.mxu0 %v412
        %590 = vmatpush.msra.mxu0 %v411
        %591 = vmatmul.f32.gmra.mxu0 %v342
        %v592 = vpop.f32.mrf.mxu0
        %v593 = vadd.f32 %v573, %v592
        %594 = vdwg.mxu0
        %595 = vmatpush.msra.mxu0 %v442
        %596 = vmatpush.msra.mxu0 %v441
        %597 = vmatpush.msra.mxu0 %v440
        %598 = vmatpush.msra.mxu0 %v439
        %599 = vmatpush.msra.mxu0 %v438
        %600 = vmatpush.msra.mxu0 %v437
        %601 = vmatpush.msra.mxu0 %v436
        %602 = vmatpush.msra.mxu0 %v435
        %603 = vmatpush.msra.mxu0 %v434
        %604 = vmatpush.msra.mxu0 %v433
        %605 = vmatpush.msra.mxu0 %v432
        %606 = vmatpush.msra.mxu0 %v431
        %607 = vmatpush.msra.mxu0 %v430
        %608 = vmatpush.msra.mxu0 %v429
        %609 = vmatpush.msra.mxu0 %v428
        %610 = vmatpush.msra.mxu0 %v427
        %611 = vmatmul.f32.gmra.mxu0 %v343
        %v612 = vpop.f32.mrf.mxu0
        %v613 = vadd.f32 %v593, %v612
        %614 = vdwg.mxu0
        %615 = vmatpush.msra.mxu0 %v458
        %616 = vmatpush.msra.mxu0 %v457
        %617 = vmatpush.msra.mxu0 %v456
        %618 = vmatpush.msra.mxu0 %v455
        %619 = vmatpush.msra.mxu0 %v454
        %620 = vmatpush.msra.mxu0 %v453
        %621 = vmatpush.msra.mxu0 %v452
        %622 = vmatpush.msra.mxu0 %v451
        %623 = vmatpush.msra.mxu0 %v450
        %624 = vmatpush.msra.mxu0 %v449
        %625 = vmatpush.msra.mxu0 %v448
        %626 = vmatpush.msra.mxu0 %v447
        %627 = vmatpush.msra.mxu0 %v446
        %628 = vmatpush.msra.mxu0 %v445
        %629 = vmatpush.msra.mxu0 %v444
        %630 = vmatpush.msra.mxu0 %v443
        %631 = vmatmul.f32.gmra.mxu0 %v344
        %v632 = vpop.f32.mrf.mxu0
        %v633 = vadd.f32 %v613, %v632
        %634 = vdwg.mxu0
        %635 = vmatpush.msra.mxu0 %v474
        %636 = vmatpush.msra.mxu0 %v473
        %637 = vmatpush.msra.mxu0 %v472
        %638 = vmatpush.msra.mxu0 %v471
        %639 = vmatpush.msra.mxu0 %v470
        %640 = vmatpush.msra.mxu0 %v469
        %641 = vmatpush.msra.mxu0 %v468
        %642 = vmatpush.msra.mxu0 %v467
        %643 = vmatpush.msra.mxu0 %v466
        %644 = vmatpush.msra.mxu0 %v465
        %645 = vmatpush.msra.mxu0 %v464
        %646 = vmatpush.msra.mxu0 %v463
        %647 = vmatpush.msra.mxu0 %v462
        %648 = vmatpush.msra.mxu0 %v461
        %649 = vmatpush.msra.mxu0 %v460
        %650 = vmatpush.msra.mxu0 %v459
        %651 = vmatmul.f32.gmra.mxu0 %v345
        %v652 = vpop.f32.mrf.mxu0
        %v653 = vadd.f32 %v633, %v652
        %654 = vdwg.mxu0
        %655 = vmatpush.msra.mxu0 %v490
        %656 = vmatpush.msra.mxu0 %v489
        %657 = vmatpush.msra.mxu0 %v488
        %658 = vmatpush.msra.mxu0 %v487
        %659 = vmatpush.msra.mxu0 %v486
        %660 = vmatpush.msra.mxu0 %v485
        %661 = vmatpush.msra.mxu0 %v484
        %662 = vmatpush.msra.mxu0 %v483
        %663 = vmatpush.msra.mxu0 %v482
        %664 = vmatpush.msra.mxu0 %v481
        %665 = vmatpush.msra.mxu0 %v480
        %666 = vmatpush.msra.mxu0 %v479
        %667 = vmatpush.msra.mxu0 %v478
        %668 = vmatpush.msra.mxu0 %v477
        %669 = vmatpush.msra.mxu0 %v476
        %670 = vmatpush.msra.mxu0 %v475
        %671 = vmatmul.f32.gmra.mxu0 %v346
        %v672 = vpop.f32.mrf.mxu0
        %v673 = vadd.f32 %v653, %v672
        %674 = vdwg.mxu0
        %v675 = vld [vmem:[%s333] sm:$0x3]
        %v676 = vld [vmem:[#allocation2] sm:$0xff]
        %v677 = vld [vmem:[#allocation2 + $0x8] sm:$0xff]
        %v678 = vld [vmem:[#allocation2 + $0x10] sm:$0xff]
        %v679 = vld [vmem:[#allocation2 + $0x18] sm:$0xff]
        %v680 = vld [vmem:[#allocation2 + $0x20] sm:$0xff]
        %v681 = vld [vmem:[#allocation2 + $0x28] sm:$0xff]
        %v682 = vld [vmem:[#allocation2 + $0x30] sm:$0xff]
        %v683 = vld [vmem:[#allocation2 + $0x38] sm:$0xff]
        %v684 = vld [vmem:[#allocation2 + $0x40] sm:$0xff]
        %v685 = vld [vmem:[#allocation2 + $0x48] sm:$0xff]
        %v686 = vld [vmem:[#allocation2 + $0x50] sm:$0xff]
        %v687 = vld [vmem:[#allocation2 + $0x58] sm:$0xff]
        %v688 = vld [vmem:[#allocation2 + $0x60] sm:$0xff]
        %v689 = vld [vmem:[#allocation2 + $0x68] sm:$0xff]
        %v690 = vld [vmem:[#allocation2 + $0x70] sm:$0xff]
        %v691 = vld [vmem:[#allocation2 + $0x78] sm:$0xff]
        %v692 = vld [vmem:[#allocation2 + $0x80] sm:$0xff]
        %v693 = vld [vmem:[#allocation2 + $0x88] sm:$0xff]
        %v694 = vld [vmem:[#allocation2 + $0x90] sm:$0xff]
        %v695 = vld [vmem:[#allocation2 + $0x98] sm:$0xff]
        %v696 = vld [vmem:[#allocation2 + $0xa0] sm:$0xff]
        %v697 = vld [vmem:[#allocation2 + $0xa8] sm:$0xff]
        %v698 = vld [vmem:[#allocation2 + $0xb0] sm:$0xff]
        %v699 = vld [vmem:[#allocation2 + $0xb8] sm:$0xff]
        %v700 = vld [vmem:[#allocation2 + $0xc0] sm:$0xff]
        %v701 = vld [vmem:[#allocation2 + $0xc8] sm:$0xff]
        %v702 = vld [vmem:[#allocation2 + $0xd0] sm:$0xff]
        %v703 = vld [vmem:[#allocation2 + $0xd8] sm:$0xff]
        %v704 = vld [vmem:[#allocation2 + $0xe0] sm:$0xff]
        %v705 = vld [vmem:[#allocation2 + $0xe8] sm:$0xff]
        %v706 = vld [vmem:[#allocation2 + $0xf0] sm:$0xff]
        %v707 = vld [vmem:[#allocation2 + $0xf8] sm:$0xff]
        %v708 = vld [vmem:[%s5] sm:$0x3]
        %v710 = vperm.slane %v708, 0
        %v711 = vperm.slane %v708, 1
        %714 = vmatpush.msra.mxu0 %v706
        %715 = vmatpush.msra.mxu0 %v704
        %716 = vmatpush.msra.mxu0 %v702
        %717 = vmatpush.msra.mxu0 %v700
        %718 = vmatpush.msra.mxu0 %v698
        %719 = vmatpush.msra.mxu0 %v696
        %720 = vmatpush.msra.mxu0 %v694
        %721 = vmatpush.msra.mxu0 %v692
        %722 = vmatpush.msra.mxu0 %v690
        %723 = vmatpush.msra.mxu0 %v688
        %724 = vmatpush.msra.mxu0 %v686
        %725 = vmatpush.msra.mxu0 %v684
        %726 = vmatpush.msra.mxu0 %v682
        %727 = vmatpush.msra.mxu0 %v680
        %728 = vmatpush.msra.mxu0 %v678
        %729 = vmatpush.msra.mxu0 %v676
        %730 = vmatmul.f32.gmra.mxu0 %v675
        %v731 = vpop.f32.mrf.mxu0
        %v732 = vadd.f32 %v710, %v731
        %733 = vdwg.mxu0
        %734 = vmatpush.msra.mxu0 %v707
        %735 = vmatpush.msra.mxu0 %v705
        %736 = vmatpush.msra.mxu0 %v703
        %737 = vmatpush.msra.mxu0 %v701
        %738 = vmatpush.msra.mxu0 %v699
        %739 = vmatpush.msra.mxu0 %v697
        %740 = vmatpush.msra.mxu0 %v695
        %741 = vmatpush.msra.mxu0 %v693
        %742 = vmatpush.msra.mxu0 %v691
        %743 = vmatpush.msra.mxu0 %v689
        %744 = vmatpush.msra.mxu0 %v687
        %745 = vmatpush.msra.mxu0 %v685
        %746 = vmatpush.msra.mxu0 %v683
        %747 = vmatpush.msra.mxu0 %v681
        %748 = vmatpush.msra.mxu0 %v679
        %749 = vmatpush.msra.mxu0 %v677
        %750 = vmatmul.f32.gmra.mxu0 %v675
        %v751 = vpop.f32.mrf.mxu0
        %v752 = vadd.f32 %v711, %v751
        %753 = vdwg.mxu0
        %v755 = vrot.slane %v732, 7
        %v757 = vrot.slane %v732, 6
        %v759 = vrot.slane %v732, 5
        %v761 = vrot.slane %v732, 4
        %v763 = vrot.slane %v732, 3
        %v765 = vrot.slane %v732, 2
        %vm767 = vcmask 1040384
        %v768 = vsel %vm767, %v732, %v755
        %vm769 = vcmask 1041408
        %v770 = vsel %vm769, %v768, %v757
        %vm771 = vcmask 1042432
        %v772 = vsel %vm771, %v770, %v759
        %vm773 = vcmask 1043456
        %v774 = vsel %vm773, %v772, %v759
        %vm775 = vcmask 1044480
        %v776 = vsel %vm775, %v774, %v761
        %vm777 = vcmask 1045504
        %v778 = vsel %vm777, %v776, %v763
        %vm779 = vcmask 1046528
        %v780 = vsel %vm779, %v778, %v765
        %v782 = vrot.slane %v752, 7
        %v784 = vrot.slane %v752, 6
        %v786 = vrot.slane %v752, 5
        %v788 = vrot.slane %v752, 4
        %v790 = vrot.slane %v752, 3
        %v792 = vrot.slane %v752, 2
        %v794 = vsel %vm767, %v752, %v782
        %v795 = vsel %vm769, %v794, %v784
        %v796 = vsel %vm771, %v795, %v786
        %v797 = vsel %vm773, %v796, %v786
        %v798 = vsel %vm775, %v797, %v788
        %v799 = vsel %vm777, %v798, %v790
        %v800 = vsel %vm779, %v799, %v792
        %v801 = vmul.f32 %v673, %v780
        %v802 = vadd.f32 %v801, %v800
        %v803 = vld [vmem:[%s6] sm:$0x1]
        %v804 = vld [vmem:[%s7] sm:$0x1]
        %vm805 = vcmask 64512
        %v807 = vsel %vm805, 1.0, 0
        %809 = vmatpush.msra.mxu0 0.0
        %810 = vmatpush.msra.mxu0 0.0
        %811 = vmatpush.msra.mxu0 0.0
        %812 = vmatpush.msra.mxu0 0.0
        %813 = vmatpush.msra.mxu0 0.0
        %814 = vmatpush.msra.mxu0 0.0
        %815 = vmatpush.msra.mxu0 0.0
        %816 = vmatpush.msra.mxu0 0.0
        %817 = vmatpush.msra.mxu0 0.0
        %818 = vmatpush.msra.mxu0 0.0
        %819 = vmatpush.msra.mxu0 0.0
        %820 = vmatpush.msra.mxu0 0.0
        %821 = vmatpush.msra.mxu0 0.0
        %822 = vmatpush.msra.mxu0 0.0
        %823 = vmatpush.msra.mxu0 0.0
        %824 = vmatpush.msra.mxu0 %v802
        %825 = vmatmul.f32.gmra.mxu0 %v807
        %v826 = vpop.f32.mrf.mxu0
        %v827 = vadd.f32 0.0, %v826
        %828 = vdwg.mxu0
        %v829 = vmul.f32 %v827, 0.125
        %v830 = vperm.slane %v829, 0
        %v831 = vsub.f32 %v802, %v830
        %v832 = vmul.f32 %v831, %v831
        %833 = vmatpush.msra.mxu0 0.0
        %834 = vmatpush.msra.mxu0 0.0
        %835 = vmatpush.msra.mxu0 0.0
        %836 = vmatpush.msra.mxu0 0.0
        %837 = vmatpush.msra.mxu0 0.0
        %838 = vmatpush.msra.mxu0 0.0
        %839 = vmatpush.msra.mxu0 0.0
        %840 = vmatpush.msra.mxu0 0.0
        %841 = vmatpush.msra.mxu0 0.0
        %842 = vmatpush.msra.mxu0 0.0
        %843 = vmatpush.msra.mxu0 0.0
        %844 = vmatpush.msra.mxu0 0.0
        %845 = vmatpush.msra.mxu0 0.0
        %846 = vmatpush.msra.mxu0 0.0
        %847 = vmatpush.msra.mxu0 0.0
        %848 = vmatpush.msra.mxu0 %v832
        %849 = vmatmul.f32.gmra.mxu0 %v807
        %v850 = vpop.f32.mrf.mxu0
        %v851 = vadd.f32 0.0, %v850
        %852 = vdwg.mxu0
        %v853 = vmul.f32 %v851, 0.125
        %v854 = vadd.f32 %v853, 1e-05
        %v855 = vrsqrt.pop %v854
        %v856 = vmul.f32 %v855, %v854
        %v857 = vmul.f32 %v856, %v855
        %v858 = vmul.f32 0.5, %v857
        %v859 = vsub.f32 1.5, %v858
        %v860 = vmul.f32 %v855, %v859
        %vm861 = vweird.f32 %v854
        %vm862 = vweird.f32 %v855
        %vm863 = vmor %vm861, %vm862
        %v864 = vsel %vm863, %v855, %v860
        %v865 = vperm.slane %v864, 0
        %v866 = vmul.f32 %v831, %v865
        %v868 = vperm.slane %v803, 0
        %v870 = vmul.f32 %v866, %v868
        %v872 = vperm.slane %v804, 0
        %v874 = vadd.f32 %v870, %v872
        %v875 = vmax.f32 %v874, 0.0
        %v877 = vrot.slane %v875, 1
        %v879 = vmax.f32 %v875, %v877
        %v880 = vrot.slane %v875, 2
        %v882 = vmax.f32 %v879, %v880
        %v883 = vrot.slane %v875, 3
        %v885 = vmax.f32 %v882, %v883
        %v887 = vrot.slane %v885, 3
        %v889 = vsel %vm767, %v885, %v887
        %v890 = vmax.f32 %v889, 0.0
        %891 = vst [vmem:[%s337] sm:$0x3] %v890
        %p892 = scmp.lt.s32.totalorder %s20, 1
        %s893 = scalar_select %p892, %s20, 1
        %s894 = smul.addr %s893, 2
        %s895 = scalar_lea.vmem %s8, %s894
        // Predicated region
        $region57: #{state_action_predictor.14} parent=51 // pred_check
          %p896 = pneg %p216
        $region58: #{state_action_predictor.14} parent=51 // pred_check_branch
          %898 = sbr.rel (%p896) target = $region60
        $region59: #{state_action_predictor.14} parent=51 // pred_region
          _
        $region60: #{state_action_predictor.14} parent=51 // pred_fallthru
          _
      $region52: #{state_action_predictor.14} parent=5 // pred_fallthru
        _
      %p899 = scmp.le.s32.totalorder 2, %s15
      // Predicated region
      $region61: #{state_action_predictor.14} parent=5 // pred_check
        %p900 = pneg %p899
      $region62: #{state_action_predictor.14} parent=5 // pred_check_branch
        %902 = sbr.rel (%p900) target = $region64
      $region63: #{state_action_predictor.14} parent=5 // pred_region
        %s903 = ssub.s32 %s15, 2
        // Predicated region
        $region65: #{state_action_predictor.14} parent=63 // pred_check
          %p904 = pneg %p222
        $region66: #{state_action_predictor.14} parent=63 // pred_check_branch
          %906 = sbr.rel (%p904) target = $region68
        $region67: #{state_action_predictor.14} parent=63 // pred_region
          %p907 = scmp.lt.s32.totalorder %s21, 1
          %s908 = scalar_select %p907, %s21, 1
          %s909 = smul.addr %s908, 2
          %s910 = scalar_lea.vmem %s8, %s909
        $region68: #{state_action_predictor.14} parent=63 // pred_fallthru
          _
      $region64: #{state_action_predictor.14} parent=5 // pred_fallthru
        _
    $region6: #{state_action_predictor.14} parent=1 // loop_footer
      %s19 = sadd.s32 1, %s15
    $region7: #{state_action_predictor.14} parent=1 // loop_footer_branch
      %14 = sbr.rel target = $region3
    $region8: #{state_action_predictor.14} parent=1 // loop_exit
      _
    %911 = vsyncpa [#allocation3], 1
    %s912 = scalar_lea.sflag [#allocation3], 1
    %913 = vsyncpa %s912, 1

// kernel: state_action_predictor.15
$region0: #{state_action_predictor.15}
  #allocation0 [shape = 'u32[]', space=smem, size = 0x4, offset = 0x4, fixed_abs, tag = 'smem constant byte address 0x4 - core index']
  #allocation1 [shape = 'u32[72,128]{1,0:T(1,128)}', space=vmem, size = 0x9000, scoped, tag = 'internal scratch']
  %s0 = inlined_call_operand.vmem [shape: f32[2,128], index: 0, kind: input, shape index: {}]
  %s1 = inlined_call_operand.vmem [shape: f32[2,128], index: 1, kind: input, shape index: {}]
  %s2 = inlined_call_operand.vmem [shape: f32[2,7], index: 2, kind: input, shape index: {}]
  %s3 = inlined_call_operand.vmem [shape: f32[256,256], index: 3, kind: input, shape index: {}]
  %s4 = inlined_call_operand.vmem [shape: f32[1,256], index: 4, kind: input, shape index: {}]
  %s5 = inlined_call_operand.vmem [shape: f32[256,7], index: 5, kind: input, shape index: {}]
  %s6 = inlined_call_operand.vmem [shape: f32[1,7], index: 6, kind: input, shape index: {}]
  %s7 = inlined_call_operand.vmem [shape: f32[135,256], index: 7, kind: input, shape index: {}]
  %s8 = inlined_call_operand.vmem [shape: f32[1,256], index: 8, kind: input, shape index: {}]
  %s9 = inlined_call_operand.hbm [shape: f32[256,128], index: 9, kind: input, shape index: {}]
  %s10 = inlined_call_operand.vmem [shape: f32[1,128], index: 10, kind: input, shape index: {}]
  %s11 = inlined_call_operand.hbm [shape: f32[2,7], index: 11, kind: output, shape index: {0}]
  %s12 = inlined_call_operand.hbm [shape: f32[2,128], index: 12, kind: output, shape index: {1}]
  %13 = xla_tuple %s11, %s12
  %s14 = sld [smem:[#allocation0]]
  $region66: #{state_action_predictor.15} parent=0
    _
  %s16 = ssub.s32 1, %s14
  %s17 = scalar_select 0, %s16, %s14
  $region1: #{state_action_predictor.15} parent=0
    #allocation2 [shape = 'u8[131072]{0}', space=vmem, size = 0x20000, scoped, tag = 'input window, operand 9, single buffered']
    #allocation3 [shape = 's32[1]{0}', space=sflag, size = 0x4, scoped, tag = 'scoped memory for state_action_predictor.15']
    #allocation4 [shape = 's32[1]{0}', space=sflag, size = 0x4, scoped, tag = 'scoped memory for state_action_predictor.15']
    #allocation5 [shape = 'u8[1024]{0}', space=vmem, size = 0x400, scoped, tag = 'output window, operand 0, single buffered']
    #allocation6 [shape = 'u8[1024]{0}', space=vmem, size = 0x400, scoped, tag = 'output window, operand 1, single buffered']
    #allocation7 [shape = 's32[1]{0}', space=sflag, size = 0x4, scoped, tag = 'scoped memory for state_action_predictor.15']
    %18 = vsyncpa [#allocation3], 0
    %19 = vsyncpa [#allocation4], 0
    %20 = vsyncpa [#allocation7], 0
    // Predicated region
    $region2: #{state_action_predictor.15} parent=1 // pred_check
      _
    $region3: #{state_action_predictor.15} parent=1 // pred_check_branch
      %22 = sbr.rel (0) target = $region5
    $region4: #{state_action_predictor.15} parent=1 // pred_region
      _
    $region5: #{state_action_predictor.15} parent=1 // pred_fallthru
      _
    // Predicated region
    $region6: #{state_action_predictor.15} parent=1 // pred_check
      _
    $region7: #{state_action_predictor.15} parent=1 // pred_check_branch
      %24 = sbr.rel (0) target = $region9
    $region8: #{state_action_predictor.15} parent=1 // pred_region
      _
    $region9: #{state_action_predictor.15} parent=1 // pred_fallthru
      _
    // Predicated region
    $region10: #{state_action_predictor.15} parent=1 // pred_check
      _
    $region11: #{state_action_predictor.15} parent=1 // pred_check_branch
      %26 = sbr.rel (0) target = $region13
    $region12: #{state_action_predictor.15} parent=1 // pred_region
      _
    $region13: #{state_action_predictor.15} parent=1 // pred_fallthru
      _
    // Predicated region
    $region14: #{state_action_predictor.15} parent=1 // pred_check
      _
    $region15: #{state_action_predictor.15} parent=1 // pred_check_branch
      %28 = sbr.rel (0) target = $region17
    $region16: #{state_action_predictor.15} parent=1 // pred_region
      _
    $region17: #{state_action_predictor.15} parent=1 // pred_fallthru
      _
    // Predicated region
    $region18: #{state_action_predictor.15} parent=1 // pred_check
      _
    $region19: #{state_action_predictor.15} parent=1 // pred_check_branch
      %30 = sbr.rel (0) target = $region21
    $region20: #{state_action_predictor.15} parent=1 // pred_region
      _
    $region21: #{state_action_predictor.15} parent=1 // pred_fallthru
      _
    // Predicated region
    $region22: #{state_action_predictor.15} parent=1 // pred_check
      _
    $region23: #{state_action_predictor.15} parent=1 // pred_check_branch
      %32 = sbr.rel (0) target = $region25
    $region24: #{state_action_predictor.15} parent=1 // pred_region
      _
    $region25: #{state_action_predictor.15} parent=1 // pred_fallthru
      _
    // Predicated region
    $region26: #{state_action_predictor.15} parent=1 // pred_check
      _
    $region27: #{state_action_predictor.15} parent=1 // pred_check_branch
      %34 = sbr.rel (0) target = $region29
    $region28: #{state_action_predictor.15} parent=1 // pred_region
      _
    $region29: #{state_action_predictor.15} parent=1 // pred_fallthru
      _
    // Predicated region
    $region30: #{state_action_predictor.15} parent=1 // pred_check
      _
    $region31: #{state_action_predictor.15} parent=1 // pred_check_branch
      %36 = sbr.rel (0) target = $region33
    $region32: #{state_action_predictor.15} parent=1 // pred_region
      _
    $region33: #{state_action_predictor.15} parent=1 // pred_fallthru
      _
    // Predicated region
    $region34: #{state_action_predictor.15} parent=1 // pred_check
      _
    $region35: #{state_action_predictor.15} parent=1 // pred_check_branch
      %38 = sbr.rel (0) target = $region37
    $region36: #{state_action_predictor.15} parent=1 // pred_region
      _
    $region37: #{state_action_predictor.15} parent=1 // pred_fallthru
      _
    // Predicated region
    $region38: #{state_action_predictor.15} parent=1 // pred_check
      _
    $region39: #{state_action_predictor.15} parent=1 // pred_check_branch
      %40 = sbr.rel (0) target = $region41
    $region40: #{state_action_predictor.15} parent=1 // pred_region
      %42 = vsyncadd [#allocation3], 0
      %s43 = sshll.u32 %s9, 4
      %s44 = int_to_ptr.hbm [resolvable:$true] %s43
      %s45 = sshll.u32 [#allocation2], 4
      %s46 = int_to_ptr.vmem [resolvable:$true] %s45
      %51 = dma.hbm_to_vmem [thread:$0]  %s44, 4096, %s46, [#allocation3], 128, 128, 8
    $region41: #{state_action_predictor.15} parent=1 // pred_fallthru
      _
    // Predicated region
    $region42: #{state_action_predictor.15} parent=1 // pred_check
      _
    $region43: #{state_action_predictor.15} parent=1 // pred_check_branch
      %53 = sbr.rel (0) target = $region45
    $region44: #{state_action_predictor.15} parent=1 // pred_region
      _
    $region45: #{state_action_predictor.15} parent=1 // pred_fallthru
      _
    // Predicated region
    $region46: #{state_action_predictor.15} parent=1 // pred_check
      _
    $region47: #{state_action_predictor.15} parent=1 // pred_check_branch
      %55 = sbr.rel (0) target = $region49
    $region48: #{state_action_predictor.15} parent=1 // pred_region
      %57 = dma.done [#allocation3], 4096
    $region49: #{state_action_predictor.15} parent=1 // pred_fallthru
      _
    %v58 = vld [vmem:[%s0] sm:$0x3]
    %v59 = vld [vmem:[%s1] sm:$0x3]
    %v60 = vld [vmem:[%s3] sm:$0xff]
    %v61 = vld [vmem:[%s3 + $0x8] sm:$0xff]
    %v62 = vld [vmem:[%s3 + $0x10] sm:$0xff]
    %v63 = vld [vmem:[%s3 + $0x18] sm:$0xff]
    %v64 = vld [vmem:[%s3 + $0x20] sm:$0xff]
    %v65 = vld [vmem:[%s3 + $0x28] sm:$0xff]
    %v66 = vld [vmem:[%s3 + $0x30] sm:$0xff]
    %v67 = vld [vmem:[%s3 + $0x38] sm:$0xff]
    %v68 = vld [vmem:[%s3 + $0x40] sm:$0xff]
    %v69 = vld [vmem:[%s3 + $0x48] sm:$0xff]
    %v70 = vld [vmem:[%s3 + $0x50] sm:$0xff]
    %v71 = vld [vmem:[%s3 + $0x58] sm:$0xff]
    %v72 = vld [vmem:[%s3 + $0x60] sm:$0xff]
    %v73 = vld [vmem:[%s3 + $0x68] sm:$0xff]
    %v74 = vld [vmem:[%s3 + $0x70] sm:$0xff]
    %v75 = vld [vmem:[%s3 + $0x78] sm:$0xff]
    %v76 = vld [vmem:[%s3 + $0x80] sm:$0xff]
    %v77 = vld [vmem:[%s3 + $0x88] sm:$0xff]
    %v78 = vld [vmem:[%s3 + $0x90] sm:$0xff]
    %v79 = vld [vmem:[%s3 + $0x98] sm:$0xff]
    %v80 = vld [vmem:[%s3 + $0xa0] sm:$0xff]
    %v81 = vld [vmem:[%s3 + $0xa8] sm:$0xff]
    %v82 = vld [vmem:[%s3 + $0xb0] sm:$0xff]
    %v83 = vld [vmem:[%s3 + $0xb8] sm:$0xff]
    %v84 = vld [vmem:[%s3 + $0xc0] sm:$0xff]
    %v85 = vld [vmem:[%s3 + $0xc8] sm:$0xff]
    %v86 = vld [vmem:[%s3 + $0xd0] sm:$0xff]
    %v87 = vld [vmem:[%s3 + $0xd8] sm:$0xff]
    %v88 = vld [vmem:[%s3 + $0xe0] sm:$0xff]
    %v89 = vld [vmem:[%s3 + $0xe8] sm:$0xff]
    %v90 = vld [vmem:[%s3 + $0xf0] sm:$0xff]
    %v91 = vld [vmem:[%s3 + $0xf8] sm:$0xff]
    %v92 = vld [vmem:[%s3 + $0x100] sm:$0xff]
    %v93 = vld [vmem:[%s3 + $0x108] sm:$0xff]
    %v94 = vld [vmem:[%s3 + $0x110] sm:$0xff]
    %v95 = vld [vmem:[%s3 + $0x118] sm:$0xff]
    %v96 = vld [vmem:[%s3 + $0x120] sm:$0xff]
    %v97 = vld [vmem:[%s3 + $0x128] sm:$0xff]
    %v98 = vld [vmem:[%s3 + $0x130] sm:$0xff]
    %v99 = vld [vmem:[%s3 + $0x138] sm:$0xff]
    %v100 = vld [vmem:[%s3 + $0x140] sm:$0xff]
    %v101 = vld [vmem:[%s3 + $0x148] sm:$0xff]
    %v102 = vld [vmem:[%s3 + $0x150] sm:$0xff]
    %v103 = vld [vmem:[%s3 + $0x158] sm:$0xff]
    %v104 = vld [vmem:[%s3 + $0x160] sm:$0xff]
    %v105 = vld [vmem:[%s3 + $0x168] sm:$0xff]
    %v106 = vld [vmem:[%s3 + $0x170] sm:$0xff]
    %v107 = vld [vmem:[%s3 + $0x178] sm:$0xff]
    %v108 = vld [vmem:[%s3 + $0x180] sm:$0xff]
    %v109 = vld [vmem:[%s3 + $0x188] sm:$0xff]
    %v110 = vld [vmem:[%s3 + $0x190] sm:$0xff]
    %v111 = vld [vmem:[%s3 + $0x198] sm:$0xff]
    %v112 = vld [vmem:[%s3 + $0x1a0] sm:$0xff]
    %v113 = vld [vmem:[%s3 + $0x1a8] sm:$0xff]
    %v114 = vld [vmem:[%s3 + $0x1b0] sm:$0xff]
    %v115 = vld [vmem:[%s3 + $0x1b8] sm:$0xff]
    %v116 = vld [vmem:[%s3 + $0x1c0] sm:$0xff]
    %v117 = vld [vmem:[%s3 + $0x1c8] sm:$0xff]
    %v118 = vld [vmem:[%s3 + $0x1d0] sm:$0xff]
    %v119 = vld [vmem:[%s3 + $0x1d8] sm:$0xff]
    %v120 = vld [vmem:[%s3 + $0x1e0] sm:$0xff]
    %v121 = vld [vmem:[%s3 + $0x1e8] sm:$0xff]
    %v122 = vld [vmem:[%s3 + $0x1f0] sm:$0xff]
    %v123 = vld [vmem:[%s3 + $0x1f8] sm:$0xff]
    %124 = vmatpush.msra.mxu0 %v122
    %125 = vmatpush.msra.mxu0 %v120
    %126 = vmatpush.msra.mxu0 %v118
    %127 = vmatpush.msra.mxu0 %v116
    %128 = vmatpush.msra.mxu0 %v114
    %129 = vmatpush.msra.mxu0 %v112
    %130 = vmatpush.msra.mxu0 %v110
    %131 = vmatpush.msra.mxu0 %v108
    %132 = vmatpush.msra.mxu0 %v106
    %133 = vmatpush.msra.mxu0 %v104
    %134 = vmatpush.msra.mxu0 %v102
    %135 = vmatpush.msra.mxu0 %v100
    %136 = vmatpush.msra.mxu0 %v98
    %137 = vmatpush.msra.mxu0 %v96
    %138 = vmatpush.msra.mxu0 %v94
    %139 = vmatpush.msra.mxu0 %v92
    %140 = vmatmul.f32.gmra.mxu0 %v59
    %v141 = vpop.f32.mrf.mxu0
    %v142 = vadd.f32 0.0, %v141
    %143 = vdwg.mxu0
    %144 = vmatpush.msra.mxu0 %v123
    %145 = vmatpush.msra.mxu0 %v121
    %146 = vmatpush.msra.mxu0 %v119
    %147 = vmatpush.msra.mxu0 %v117
    %148 = vmatpush.msra.mxu0 %v115
    %149 = vmatpush.msra.mxu0 %v113
    %150 = vmatpush.msra.mxu0 %v111
    %151 = vmatpush.msra.mxu0 %v109
    %152 = vmatpush.msra.mxu0 %v107
    %153 = vmatpush.msra.mxu0 %v105
    %154 = vmatpush.msra.mxu0 %v103
    %155 = vmatpush.msra.mxu0 %v101
    %156 = vmatpush.msra.mxu0 %v99
    %157 = vmatpush.msra.mxu0 %v97
    %158 = vmatpush.msra.mxu0 %v95
    %159 = vmatpush.msra.mxu0 %v93
    %160 = vmatmul.f32.gmra.mxu0 %v59
    %v161 = vpop.f32.mrf.mxu0
    %v162 = vadd.f32 0.0, %v161
    %163 = vdwg.mxu0
    %164 = vmatpush.msra.mxu0 %v90
    %165 = vmatpush.msra.mxu0 %v88
    %166 = vmatpush.msra.mxu0 %v86
    %167 = vmatpush.msra.mxu0 %v84
    %168 = vmatpush.msra.mxu0 %v82
    %169 = vmatpush.msra.mxu0 %v80
    %170 = vmatpush.msra.mxu0 %v78
    %171 = vmatpush.msra.mxu0 %v76
    %172 = vmatpush.msra.mxu0 %v74
    %173 = vmatpush.msra.mxu0 %v72
    %174 = vmatpush.msra.mxu0 %v70
    %175 = vmatpush.msra.mxu0 %v68
    %176 = vmatpush.msra.mxu0 %v66
    %177 = vmatpush.msra.mxu0 %v64
    %178 = vmatpush.msra.mxu0 %v62
    %179 = vmatpush.msra.mxu0 %v60
    %180 = vmatmul.f32.gmra.mxu0 %v58
    %v181 = vpop.f32.mrf.mxu0
    %v182 = vadd.f32 %v142, %v181
    %183 = vdwg.mxu0
    %184 = vmatpush.msra.mxu0 %v91
    %185 = vmatpush.msra.mxu0 %v89
    %186 = vmatpush.msra.mxu0 %v87
    %187 = vmatpush.msra.mxu0 %v85
    %188 = vmatpush.msra.mxu0 %v83
    %189 = vmatpush.msra.mxu0 %v81
    %190 = vmatpush.msra.mxu0 %v79
    %191 = vmatpush.msra.mxu0 %v77
    %192 = vmatpush.msra.mxu0 %v75
    %193 = vmatpush.msra.mxu0 %v73
    %194 = vmatpush.msra.mxu0 %v71
    %195 = vmatpush.msra.mxu0 %v69
    %196 = vmatpush.msra.mxu0 %v67
    %197 = vmatpush.msra.mxu0 %v65
    %198 = vmatpush.msra.mxu0 %v63
    %199 = vmatpush.msra.mxu0 %v61
    %200 = vmatmul.f32.gmra.mxu0 %v58
    %v201 = vpop.f32.mrf.mxu0
    %v202 = vadd.f32 %v162, %v201
    %203 = vdwg.mxu0
    %v204 = vld [vmem:[%s4] sm:$0x3]
    %v206 = vperm.slane %v204, 0
    %v207 = vperm.slane %v204, 1
    %v210 = vadd.f32 %v182, %v206
    %v211 = vadd.f32 %v202, %v207
    %v212 = vld [vmem:[%s5] sm:$0xff]
    %v213 = vld [vmem:[%s5 + $0x8] sm:$0xff]
    %v214 = vld [vmem:[%s5 + $0x10] sm:$0xff]
    %v215 = vld [vmem:[%s5 + $0x18] sm:$0xff]
    %v216 = vld [vmem:[%s5 + $0x20] sm:$0xff]
    %v217 = vld [vmem:[%s5 + $0x28] sm:$0xff]
    %v218 = vld [vmem:[%s5 + $0x30] sm:$0xff]
    %v219 = vld [vmem:[%s5 + $0x38] sm:$0xff]
    %v220 = vld [vmem:[%s5 + $0x40] sm:$0xff]
    %v221 = vld [vmem:[%s5 + $0x48] sm:$0xff]
    %v222 = vld [vmem:[%s5 + $0x50] sm:$0xff]
    %v223 = vld [vmem:[%s5 + $0x58] sm:$0xff]
    %v224 = vld [vmem:[%s5 + $0x60] sm:$0xff]
    %v225 = vld [vmem:[%s5 + $0x68] sm:$0xff]
    %v226 = vld [vmem:[%s5 + $0x70] sm:$0xff]
    %v227 = vld [vmem:[%s5 + $0x78] sm:$0xff]
    %v228 = vld [vmem:[%s5 + $0x80] sm:$0xff]
    %v229 = vld [vmem:[%s5 + $0x88] sm:$0xff]
    %v230 = vld [vmem:[%s5 + $0x90] sm:$0xff]
    %v231 = vld [vmem:[%s5 + $0x98] sm:$0xff]
    %v232 = vld [vmem:[%s5 + $0xa0] sm:$0xff]
    %v233 = vld [vmem:[%s5 + $0xa8] sm:$0xff]
    %v234 = vld [vmem:[%s5 + $0xb0] sm:$0xff]
    %v235 = vld [vmem:[%s5 + $0xb8] sm:$0xff]
    %v236 = vld [vmem:[%s5 + $0xc0] sm:$0xff]
    %v237 = vld [vmem:[%s5 + $0xc8] sm:$0xff]
    %v238 = vld [vmem:[%s5 + $0xd0] sm:$0xff]
    %v239 = vld [vmem:[%s5 + $0xd8] sm:$0xff]
    %v240 = vld [vmem:[%s5 + $0xe0] sm:$0xff]
    %v241 = vld [vmem:[%s5 + $0xe8] sm:$0xff]
    %v242 = vld [vmem:[%s5 + $0xf0] sm:$0xff]
    %v243 = vld [vmem:[%s5 + $0xf8] sm:$0xff]
    %v244 = vld [vmem:[%s6] sm:$0x1]
    %v246 = vperm.slane %v244, 0
    %248 = vmatpush.msra.mxu0 %v227
    %249 = vmatpush.msra.mxu0 %v226
    %250 = vmatpush.msra.mxu0 %v225
    %251 = vmatpush.msra.mxu0 %v224
    %252 = vmatpush.msra.mxu0 %v223
    %253 = vmatpush.msra.mxu0 %v222
    %254 = vmatpush.msra.mxu0 %v221
    %255 = vmatpush.msra.mxu0 %v220
    %256 = vmatpush.msra.mxu0 %v219
    %257 = vmatpush.msra.mxu0 %v218
    %258 = vmatpush.msra.mxu0 %v217
    %259 = vmatpush.msra.mxu0 %v216
    %260 = vmatpush.msra.mxu0 %v215
    %261 = vmatpush.msra.mxu0 %v214
    %262 = vmatpush.msra.mxu0 %v213
    %263 = vmatpush.msra.mxu0 %v212
    %264 = vmatmul.f32.gmra.mxu0 %v210
    %v265 = vpop.f32.mrf.mxu0
    %v266 = vadd.f32 %v246, %v265
    %267 = vdwg.mxu0
    %268 = vmatpush.msra.mxu0 %v243
    %269 = vmatpush.msra.mxu0 %v242
    %270 = vmatpush.msra.mxu0 %v241
    %271 = vmatpush.msra.mxu0 %v240
    %272 = vmatpush.msra.mxu0 %v239
    %273 = vmatpush.msra.mxu0 %v238
    %274 = vmatpush.msra.mxu0 %v237
    %275 = vmatpush.msra.mxu0 %v236
    %276 = vmatpush.msra.mxu0 %v235
    %277 = vmatpush.msra.mxu0 %v234
    %278 = vmatpush.msra.mxu0 %v233
    %279 = vmatpush.msra.mxu0 %v232
    %280 = vmatpush.msra.mxu0 %v231
    %281 = vmatpush.msra.mxu0 %v230
    %282 = vmatpush.msra.mxu0 %v229
    %283 = vmatpush.msra.mxu0 %v228
    %284 = vmatmul.f32.gmra.mxu0 %v211
    %v285 = vpop.f32.mrf.mxu0
    %v286 = vadd.f32 %v266, %v285
    %287 = vdwg.mxu0
    %vm288 = vcmask 50176
    %289 = vst.msk [vmem:[#allocation5] sm:$0x3] %vm288, %v286
    %v290 = vld [vmem:[%s7] sm:$0xff]
    %v291 = vld [vmem:[%s7 + $0x8] sm:$0xff]
    %v292 = vld [vmem:[%s7 + $0x10] sm:$0xff]
    %v293 = vld [vmem:[%s7 + $0x18] sm:$0xff]
    %v294 = vld [vmem:[%s7 + $0x20] sm:$0xff]
    %v295 = vld [vmem:[%s7 + $0x28] sm:$0xff]
    %v296 = vld [vmem:[%s7 + $0x30] sm:$0xff]
    %v297 = vld [vmem:[%s7 + $0x38] sm:$0xff]
    %v298 = vld [vmem:[%s7 + $0x40] sm:$0xff]
    %v299 = vld [vmem:[%s7 + $0x48] sm:$0xff]
    %v300 = vld [vmem:[%s7 + $0x50] sm:$0xff]
    %v301 = vld [vmem:[%s7 + $0x58] sm:$0xff]
    %v302 = vld [vmem:[%s7 + $0x60] sm:$0xff]
    %v303 = vld [vmem:[%s7 + $0x68] sm:$0xff]
    %v304 = vld [vmem:[%s7 + $0x70] sm:$0xff]
    %v305 = vld [vmem:[%s7 + $0x78] sm:$0xff]
    %v306 = vld [vmem:[%s7 + $0x80] sm:$0xff]
    %v307 = vld [vmem:[%s7 + $0x88] sm:$0xff]
    %v308 = vld [vmem:[%s7 + $0x90] sm:$0xff]
    %v309 = vld [vmem:[%s7 + $0x98] sm:$0xff]
    %v310 = vld [vmem:[%s7 + $0xa0] sm:$0xff]
    %v311 = vld [vmem:[%s7 + $0xa8] sm:$0xff]
    %v312 = vld [vmem:[%s7 + $0xb0] sm:$0xff]
    %v313 = vld [vmem:[%s7 + $0xb8] sm:$0xff]
    %v314 = vld [vmem:[%s7 + $0xc0] sm:$0xff]
    %v315 = vld [vmem:[%s7 + $0xc8] sm:$0xff]
    %v316 = vld [vmem:[%s7 + $0xd0] sm:$0xff]
    %v317 = vld [vmem:[%s7 + $0xd8] sm:$0xff]
    %v318 = vld [vmem:[%s7 + $0xe0] sm:$0xff]
    %v319 = vld [vmem:[%s7 + $0xe8] sm:$0xff]
    %v320 = vld [vmem:[%s7 + $0xf0] sm:$0xff]
    %v321 = vld [vmem:[%s7 + $0xf8] sm:$0xff]
    %v322 = vld [vmem:[%s7 + $0x100] sm:$0x7f]
    %v323 = vld [vmem:[%s7 + $0x108] sm:$0x7f]
    %v324 = vld [vmem:[%s2] sm:$0x3]
    %vm325 = vcmask 56320
    %v327 = vsel %vm325, %v324, 0
    %vm329 = vcmask 1046528
    %v331 = vsel %vm329, %v322, 0
    %v334 = vsel %vm329, %v323, 0
    %336 = vmatpush.msra.mxu0 0.0
    %337 = vmatpush.msra.mxu0 0.0
    %338 = vmatpush.msra.mxu0 0.0
    %339 = vmatpush.msra.mxu0 0.0
    %340 = vmatpush.msra.mxu0 0.0
    %341 = vmatpush.msra.mxu0 0.0
    %342 = vmatpush.msra.mxu0 0.0
    %343 = vmatpush.msra.mxu0 0.0
    %344 = vmatpush.msra.mxu0 0.0
    %345 = vmatpush.msra.mxu0 0.0
    %346 = vmatpush.msra.mxu0 0.0
    %347 = vmatpush.msra.mxu0 0.0
    %348 = vmatpush.msra.mxu0 0.0
    %349 = vmatpush.msra.mxu0 0.0
    %350 = vmatpush.msra.mxu0 0.0
    %351 = vmatpush.msra.mxu0 %v331
    %352 = vmatmul.f32.gmra.mxu0 %v327
    %v353 = vpop.f32.mrf.mxu0
    %v354 = vadd.f32 0.0, %v353
    %355 = vdwg.mxu0
    %356 = vmatpush.msra.mxu0 0.0
    %357 = vmatpush.msra.mxu0 0.0
    %358 = vmatpush.msra.mxu0 0.0
    %359 = vmatpush.msra.mxu0 0.0
    %360 = vmatpush.msra.mxu0 0.0
    %361 = vmatpush.msra.mxu0 0.0
    %362 = vmatpush.msra.mxu0 0.0
    %363 = vmatpush.msra.mxu0 0.0
    %364 = vmatpush.msra.mxu0 0.0
    %365 = vmatpush.msra.mxu0 0.0
    %366 = vmatpush.msra.mxu0 0.0
    %367 = vmatpush.msra.mxu0 0.0
    %368 = vmatpush.msra.mxu0 0.0
    %369 = vmatpush.msra.mxu0 0.0
    %370 = vmatpush.msra.mxu0 0.0
    %371 = vmatpush.msra.mxu0 %v334
    %372 = vmatmul.f32.gmra.mxu0 %v327
    %v373 = vpop.f32.mrf.mxu0
    %v374 = vadd.f32 0.0, %v373
    %375 = vdwg.mxu0
    %376 = vmatpush.msra.mxu0 %v320
    %377 = vmatpush.msra.mxu0 %v318
    %378 = vmatpush.msra.mxu0 %v316
    %379 = vmatpush.msra.mxu0 %v314
    %380 = vmatpush.msra.mxu0 %v312
    %381 = vmatpush.msra.mxu0 %v310
    %382 = vmatpush.msra.mxu0 %v308
    %383 = vmatpush.msra.mxu0 %v306
    %384 = vmatpush.msra.mxu0 %v304
    %385 = vmatpush.msra.mxu0 %v302
    %386 = vmatpush.msra.mxu0 %v300
    %387 = vmatpush.msra.mxu0 %v298
    %388 = vmatpush.msra.mxu0 %v296
    %389 = vmatpush.msra.mxu0 %v294
    %390 = vmatpush.msra.mxu0 %v292
    %391 = vmatpush.msra.mxu0 %v290
    %392 = vmatmul.f32.gmra.mxu0 %v58
    %v393 = vpop.f32.mrf.mxu0
    %v394 = vadd.f32 %v354, %v393
    %395 = vdwg.mxu0
    %396 = vmatpush.msra.mxu0 %v321
    %397 = vmatpush.msra.mxu0 %v319
    %398 = vmatpush.msra.mxu0 %v317
    %399 = vmatpush.msra.mxu0 %v315
    %400 = vmatpush.msra.mxu0 %v313
    %401 = vmatpush.msra.mxu0 %v311
    %402 = vmatpush.msra.mxu0 %v309
    %403 = vmatpush.msra.mxu0 %v307
    %404 = vmatpush.msra.mxu0 %v305
    %405 = vmatpush.msra.mxu0 %v303
    %406 = vmatpush.msra.mxu0 %v301
    %407 = vmatpush.msra.mxu0 %v299
    %408 = vmatpush.msra.mxu0 %v297
    %409 = vmatpush.msra.mxu0 %v295
    %410 = vmatpush.msra.mxu0 %v293
    %411 = vmatpush.msra.mxu0 %v291
    %412 = vmatmul.f32.gmra.mxu0 %v58
    %v413 = vpop.f32.mrf.mxu0
    %v414 = vadd.f32 %v374, %v413
    %415 = vdwg.mxu0
    %v416 = vld [vmem:[%s8] sm:$0x3]
    %v418 = vperm.slane %v416, 0
    %v419 = vperm.slane %v416, 1
    %v422 = vadd.f32 %v394, %v418
    %v423 = vadd.f32 %v414, %v419
    %v424 = vld [vmem:[#allocation2] sm:$0xff]
    %v425 = vld [vmem:[#allocation2 + $0x8] sm:$0xff]
    %v426 = vld [vmem:[#allocation2 + $0x10] sm:$0xff]
    %v427 = vld [vmem:[#allocation2 + $0x18] sm:$0xff]
    %v428 = vld [vmem:[#allocation2 + $0x20] sm:$0xff]
    %v429 = vld [vmem:[#allocation2 + $0x28] sm:$0xff]
    %v430 = vld [vmem:[#allocation2 + $0x30] sm:$0xff]
    %v431 = vld [vmem:[#allocation2 + $0x38] sm:$0xff]
    %v432 = vld [vmem:[#allocation2 + $0x40] sm:$0xff]
    %v433 = vld [vmem:[#allocation2 + $0x48] sm:$0xff]
    %v434 = vld [vmem:[#allocation2 + $0x50] sm:$0xff]
    %v435 = vld [vmem:[#allocation2 + $0x58] sm:$0xff]
    %v436 = vld [vmem:[#allocation2 + $0x60] sm:$0xff]
    %v437 = vld [vmem:[#allocation2 + $0x68] sm:$0xff]
    %v438 = vld [vmem:[#allocation2 + $0x70] sm:$0xff]
    %v439 = vld [vmem:[#allocation2 + $0x78] sm:$0xff]
    %v440 = vld [vmem:[#allocation2 + $0x80] sm:$0xff]
    %v441 = vld [vmem:[#allocation2 + $0x88] sm:$0xff]
    %v442 = vld [vmem:[#allocation2 + $0x90] sm:$0xff]
    %v443 = vld [vmem:[#allocation2 + $0x98] sm:$0xff]
    %v444 = vld [vmem:[#allocation2 + $0xa0] sm:$0xff]
    %v445 = vld [vmem:[#allocation2 + $0xa8] sm:$0xff]
    %v446 = vld [vmem:[#allocation2 + $0xb0] sm:$0xff]
    %v447 = vld [vmem:[#allocation2 + $0xb8] sm:$0xff]
    %v448 = vld [vmem:[#allocation2 + $0xc0] sm:$0xff]
    %v449 = vld [vmem:[#allocation2 + $0xc8] sm:$0xff]
    %v450 = vld [vmem:[#allocation2 + $0xd0] sm:$0xff]
    %v451 = vld [vmem:[#allocation2 + $0xd8] sm:$0xff]
    %v452 = vld [vmem:[#allocation2 + $0xe0] sm:$0xff]
    %v453 = vld [vmem:[#allocation2 + $0xe8] sm:$0xff]
    %v454 = vld [vmem:[#allocation2 + $0xf0] sm:$0xff]
    %v455 = vld [vmem:[#allocation2 + $0xf8] sm:$0xff]
    %v456 = vld [vmem:[%s10] sm:$0x1]
    %v458 = vperm.slane %v456, 0
    %460 = vmatpush.msra.mxu0 %v439
    %461 = vmatpush.msra.mxu0 %v438
    %462 = vmatpush.msra.mxu0 %v437
    %463 = vmatpush.msra.mxu0 %v436
    %464 = vmatpush.msra.mxu0 %v435
    %465 = vmatpush.msra.mxu0 %v434
    %466 = vmatpush.msra.mxu0 %v433
    %467 = vmatpush.msra.mxu0 %v432
    %468 = vmatpush.msra.mxu0 %v431
    %469 = vmatpush.msra.mxu0 %v430
    %470 = vmatpush.msra.mxu0 %v429
    %471 = vmatpush.msra.mxu0 %v428
    %472 = vmatpush.msra.mxu0 %v427
    %473 = vmatpush.msra.mxu0 %v426
    %474 = vmatpush.msra.mxu0 %v425
    %475 = vmatpush.msra.mxu0 %v424
    %476 = vmatmul.f32.gmra.mxu0 %v422
    %v477 = vpop.f32.mrf.mxu0
    %v478 = vadd.f32 %v458, %v477
    %479 = vdwg.mxu0
    %480 = vmatpush.msra.mxu0 %v455
    %481 = vmatpush.msra.mxu0 %v454
    %482 = vmatpush.msra.mxu0 %v453
    %483 = vmatpush.msra.mxu0 %v452
    %484 = vmatpush.msra.mxu0 %v451
    %485 = vmatpush.msra.mxu0 %v450
    %486 = vmatpush.msra.mxu0 %v449
    %487 = vmatpush.msra.mxu0 %v448
    %488 = vmatpush.msra.mxu0 %v447
    %489 = vmatpush.msra.mxu0 %v446
    %490 = vmatpush.msra.mxu0 %v445
    %491 = vmatpush.msra.mxu0 %v444
    %492 = vmatpush.msra.mxu0 %v443
    %493 = vmatpush.msra.mxu0 %v442
    %494 = vmatpush.msra.mxu0 %v441
    %495 = vmatpush.msra.mxu0 %v440
    %496 = vmatmul.f32.gmra.mxu0 %v423
    %v497 = vpop.f32.mrf.mxu0
    %v498 = vadd.f32 %v478, %v497
    %499 = vdwg.mxu0
    %500 = vst [vmem:[#allocation6] sm:$0x3] %v498
    // Predicated region
    $region50: #{state_action_predictor.15} parent=1 // pred_check
      _
    $region51: #{state_action_predictor.15} parent=1 // pred_check_branch
      %502 = sbr.rel (0) target = $region53
    $region52: #{state_action_predictor.15} parent=1 // pred_region
      %504 = vsyncadd [#allocation4], 0
      %s506 = sshll.u32 [#allocation5], 4
      %s507 = int_to_ptr.vmem [resolvable:$true] %s506
      %s508 = sshll.u32 %s11, 4
      %s509 = int_to_ptr.hbm [resolvable:$true] %s508
      %511 = dma.vmem_to_hbm [thread:$0]  %s507, 32, %s509, [#allocation4]
    $region53: #{state_action_predictor.15} parent=1 // pred_fallthru
      _
    // Predicated region
    $region54: #{state_action_predictor.15} parent=1 // pred_check
      _
    $region55: #{state_action_predictor.15} parent=1 // pred_check_branch
      %513 = sbr.rel (0) target = $region57
    $region56: #{state_action_predictor.15} parent=1 // pred_region
      %515 = vsyncadd [#allocation7], 0
      %s517 = sshll.u32 [#allocation6], 4
      %s518 = int_to_ptr.vmem [resolvable:$true] %s517
      %s519 = sshll.u32 %s12, 4
      %s520 = int_to_ptr.hbm [resolvable:$true] %s519
      %522 = dma.vmem_to_hbm [thread:$0]  %s518, 32, %s520, [#allocation7]
    $region57: #{state_action_predictor.15} parent=1 // pred_fallthru
      _
    // Predicated region
    $region58: #{state_action_predictor.15} parent=1 // pred_check
      _
    $region59: #{state_action_predictor.15} parent=1 // pred_check_branch
      %524 = sbr.rel (0) target = $region61
    $region60: #{state_action_predictor.15} parent=1 // pred_region
      %526 = dma.done [#allocation4], 32
    $region61: #{state_action_predictor.15} parent=1 // pred_fallthru
      _
    // Predicated region
    $region62: #{state_action_predictor.15} parent=1 // pred_check
      _
    $region63: #{state_action_predictor.15} parent=1 // pred_check_branch
      %528 = sbr.rel (0) target = $region65
    $region64: #{state_action_predictor.15} parent=1 // pred_region
      %530 = dma.done [#allocation7], 32
    $region65: #{state_action_predictor.15} parent=1 // pred_fallthru
      _
    %531 = vsyncpa [#allocation3], 1
    %532 = vsyncpa [#allocation4], 1
    %533 = vsyncpa [#allocation7], 1

// kernel: state_action_predictor.8
$region0: #{state_action_predictor.8}
  #allocation0 [shape = 'u32[]', space=smem, size = 0x4, offset = 0x4, fixed_abs, tag = 'smem constant byte address 0x4 - core index']
  #allocation1 [shape = 'u32[72,128]{1,0:T(1,128)}', space=vmem, size = 0x9000, scoped, tag = 'internal scratch']
  %s0 = inlined_call_operand.vmem [shape: f32[4,8,128], index: 0, kind: input, shape index: {}]
  %s1 = inlined_call_operand.vmem [shape: f32[128,384], index: 1, kind: input, shape index: {}]
  %s2 = inlined_call_operand.vmem [shape: f32[1,384], index: 2, kind: input, shape index: {}]
  %s3 = inlined_call_operand.vmem [shape: f32[128,384], index: 3, kind: input, shape index: {}]
  %s4 = inlined_call_operand.vmem [shape: f32[1,384], index: 4, kind: input, shape index: {}]
  %s5 = inlined_call_operand.vmem [shape: f32[2,2,128], index: 5, kind: input, shape index: {}]
  %s6 = inlined_call_operand.vmem [shape: f32[2,2,128], index: 6, kind: output, shape index: {}]
  %s7 = sld [smem:[#allocation0]]
  $region57: #{state_action_predictor.8} parent=0
    _
  %s9 = ssub.s32 1, %s7
  %s10 = scalar_select 0, %s9, %s7
  loop: start=0, step=1, limit=4
  $region2: #{state_action_predictor.8} parent=0 // loop_pre_header
    _
  $region3: #{state_action_predictor.8} parent=0 // loop_header
    %s12 = sphi 0, %s16
    %p13 = scmp.ge.s32.totalorder %s12, 4
    %s22 = sphi 0, %s24
    %s25 = sphi 0, %s22
    %s26 = sphi 0, %s25
    %s42 = sphi 0, %s26
    %s46 = sphi 0, %s46
    %s48 = sphi 0, %s46
    %s49 = sphi 0, %s48
    %s63 = sphi 0, %s49
    %s67 = sphi 0, %s67
    %s69 = sphi 0, %s67
    %s70 = sphi 0, %s69
    %s84 = sphi 0, %s70
    %s88 = sphi 0, %s88
    %s90 = sphi 0, %s88
    %s91 = sphi 0, %s90
    %s105 = sphi 0, %s91
    %s109 = sphi 0, %s109
    %s111 = sphi 0, %s109
    %s112 = sphi 0, %s111
    %s126 = sphi 0, %s112
    %s132 = sphi 0, %s134
    %s135 = sphi 0, %s132
    %s136 = sphi 0, %s135
    %s152 = sphi 0, %s136
    %s158 = sphi 0, %s160
    %s161 = sphi 0, %s158
    %s162 = sphi 0, %s161
    %s178 = sphi 0, %s162
  $region4: #{state_action_predictor.8} parent=0 // loop_header_branch
    %15 = sbr.rel (%p13) target = $region8
  $region5: #{state_action_predictor.8} parent=0 // loop_body
    %s17 = ssub.s32 %s12, 1
    %s18 = ssub.s32 %s12, 2
    %s19 = sadd.s32 %s12, 1
    %s20 = ssub.s32 %s12, %s19
    %p21 = scmp.eq.s32.totalorder %s20, 0
    %s23 = sadd.s32 %s22, 1
    %s24 = scalar_select %p21, %s22, %s23
    %p27 = pneg %p21
    %p28 = scmp.eq.s32.totalorder %s12, 1
    %p29 = por %p27, %p28
    %p30 = scmp.ne.s32.totalorder %s22, %s25
    %p31 = scmp.eq.s32.totalorder %s12, 0
    %p32 = por %p30, %p31
    %p33 = scmp.ne.s32.totalorder %s22, %s25
    %p34 = scmp.eq.s32.totalorder %s17, 1
    %p35 = por %p33, %p34
    %p36 = scmp.ne.s32.totalorder %s25, %s26
    %p37 = scmp.eq.s32.totalorder %s17, 0
    %p38 = por %p36, %p37
    %p39 = scmp.ne.s32.totalorder %s25, %s26
    %p40 = scmp.eq.s32.totalorder %s18, 1
    %p41 = por %p39, %p40
    %p43 = scmp.ne.s32.totalorder %s26, %s42
    %p44 = scmp.eq.s32.totalorder %s18, 0
    %p45 = por %p43, %p44
    %s47 = sadd.s32 %s46, 1
    %p50 = scmp.eq.s32.totalorder %s12, 1
    %p51 = scmp.ne.s32.totalorder %s46, %s48
    %p52 = scmp.eq.s32.totalorder %s12, 0
    %p53 = por %p51, %p52
    %p54 = scmp.ne.s32.totalorder %s46, %s48
    %p55 = scmp.eq.s32.totalorder %s17, 1
    %p56 = por %p54, %p55
    %p57 = scmp.ne.s32.totalorder %s48, %s49
    %p58 = scmp.eq.s32.totalorder %s17, 0
    %p59 = por %p57, %p58
    %p60 = scmp.ne.s32.totalorder %s48, %s49
    %p61 = scmp.eq.s32.totalorder %s18, 1
    %p62 = por %p60, %p61
    %p64 = scmp.ne.s32.totalorder %s49, %s63
    %p65 = scmp.eq.s32.totalorder %s18, 0
    %p66 = por %p64, %p65
    %s68 = sadd.s32 %s67, 1
    %p71 = scmp.eq.s32.totalorder %s12, 1
    %p72 = scmp.ne.s32.totalorder %s67, %s69
    %p73 = scmp.eq.s32.totalorder %s12, 0
    %p74 = por %p72, %p73
    %p75 = scmp.ne.s32.totalorder %s67, %s69
    %p76 = scmp.eq.s32.totalorder %s17, 1
    %p77 = por %p75, %p76
    %p78 = scmp.ne.s32.totalorder %s69, %s70
    %p79 = scmp.eq.s32.totalorder %s17, 0
    %p80 = por %p78, %p79
    %p81 = scmp.ne.s32.totalorder %s69, %s70
    %p82 = scmp.eq.s32.totalorder %s18, 1
    %p83 = por %p81, %p82
    %p85 = scmp.ne.s32.totalorder %s70, %s84
    %p86 = scmp.eq.s32.totalorder %s18, 0
    %p87 = por %p85, %p86
    %s89 = sadd.s32 %s88, 1
    %p92 = scmp.eq.s32.totalorder %s12, 1
    %p93 = scmp.ne.s32.totalorder %s88, %s90
    %p94 = scmp.eq.s32.totalorder %s12, 0
    %p95 = por %p93, %p94
    %p96 = scmp.ne.s32.totalorder %s88, %s90
    %p97 = scmp.eq.s32.totalorder %s17, 1
    %p98 = por %p96, %p97
    %p99 = scmp.ne.s32.totalorder %s90, %s91
    %p100 = scmp.eq.s32.totalorder %s17, 0
    %p101 = por %p99, %p100
    %p102 = scmp.ne.s32.totalorder %s90, %s91
    %p103 = scmp.eq.s32.totalorder %s18, 1
    %p104 = por %p102, %p103
    %p106 = scmp.ne.s32.totalorder %s91, %s105
    %p107 = scmp.eq.s32.totalorder %s18, 0
    %p108 = por %p106, %p107
    %s110 = sadd.s32 %s109, 1
    %p113 = scmp.eq.s32.totalorder %s12, 1
    %p114 = scmp.ne.s32.totalorder %s109, %s111
    %p115 = scmp.eq.s32.totalorder %s12, 0
    %p116 = por %p114, %p115
    %p117 = scmp.ne.s32.totalorder %s109, %s111
    %p118 = scmp.eq.s32.totalorder %s17, 1
    %p119 = por %p117, %p118
    %p120 = scmp.ne.s32.totalorder %s111, %s112
    %p121 = scmp.eq.s32.totalorder %s17, 0
    %p122 = por %p120, %p121
    %p123 = scmp.ne.s32.totalorder %s111, %s112
    %p124 = scmp.eq.s32.totalorder %s18, 1
    %p125 = por %p123, %p124
    %p127 = scmp.ne.s32.totalorder %s112, %s126
    %p128 = scmp.eq.s32.totalorder %s18, 0
    %p129 = por %p127, %p128
    %s130 = ssub.s32 %s12, %s19
    %p131 = scmp.eq.s32.totalorder %s130, 0
    %s133 = sadd.s32 %s132, 1
    %s134 = scalar_select %p131, %s132, %s133
    %p137 = pneg %p131
    %p138 = scmp.eq.s32.totalorder %s12, 1
    %p139 = por %p137, %p138
    %p140 = scmp.ne.s32.totalorder %s132, %s135
    %p141 = scmp.eq.s32.totalorder %s12, 0
    %p142 = por %p140, %p141
    %p143 = scmp.ne.s32.totalorder %s132, %s135
    %p144 = scmp.eq.s32.totalorder %s17, 1
    %p145 = por %p143, %p144
    %p146 = scmp.ne.s32.totalorder %s135, %s136
    %p147 = scmp.eq.s32.totalorder %s17, 0
    %p148 = por %p146, %p147
    %p149 = scmp.ne.s32.totalorder %s135, %s136
    %p150 = scmp.eq.s32.totalorder %s18, 1
    %p151 = por %p149, %p150
    %p153 = scmp.ne.s32.totalorder %s136, %s152
    %p154 = scmp.eq.s32.totalorder %s18, 0
    %p155 = por %p153, %p154
    %s156 = ssub.s32 %s12, %s19
    %p157 = scmp.eq.s32.totalorder %s156, 0
    %s159 = sadd.s32 %s158, 1
    %s160 = scalar_select %p157, %s158, %s159
    %p163 = pneg %p157
    %p164 = scmp.eq.s32.totalorder %s12, 1
    %p165 = por %p163, %p164
    %p166 = scmp.ne.s32.totalorder %s158, %s161
    %p167 = scmp.eq.s32.totalorder %s12, 0
    %p168 = por %p166, %p167
    %p169 = scmp.ne.s32.totalorder %s158, %s161
    %p170 = scmp.eq.s32.totalorder %s17, 1
    %p171 = por %p169, %p170
    %p172 = scmp.ne.s32.totalorder %s161, %s162
    %p173 = scmp.eq.s32.totalorder %s17, 0
    %p174 = por %p172, %p173
    %p175 = scmp.ne.s32.totalorder %s161, %s162
    %p176 = scmp.eq.s32.totalorder %s18, 1
    %p177 = por %p175, %p176
    %p179 = scmp.ne.s32.totalorder %s162, %s178
    %p180 = scmp.eq.s32.totalorder %s18, 0
    %p181 = por %p179, %p180
    %p182 = scmp.le.s32.totalorder 1, %s12
    %p183 = scmp.lt.s32.totalorder %s12, 3
    %p184 = pnand %p182, %p183
    %p185 = pneg %p184
    // Predicated region
    $region9: #{state_action_predictor.8} parent=5 // pred_check
      _
    $region10: #{state_action_predictor.8} parent=5 // pred_check_branch
      %187 = sbr.rel (%p184) target = $region12
    $region11: #{state_action_predictor.8} parent=5 // pred_region
      %s188 = ssub.s32 %s12, 1
      // Predicated region
      $region13: #{state_action_predictor.8} parent=11 // pred_check
        %p189 = pneg %p59
      $region14: #{state_action_predictor.8} parent=11 // pred_check_branch
        %191 = sbr.rel (%p189) target = $region16
      $region15: #{state_action_predictor.8} parent=11 // pred_region
        _
      $region16: #{state_action_predictor.8} parent=11 // pred_fallthru
        _
      // Predicated region
      $region17: #{state_action_predictor.8} parent=11 // pred_check
        %p192 = pneg %p80
      $region18: #{state_action_predictor.8} parent=11 // pred_check_branch
        %194 = sbr.rel (%p192) target = $region20
      $region19: #{state_action_predictor.8} parent=11 // pred_region
        _
      $region20: #{state_action_predictor.8} parent=11 // pred_fallthru
        _
      // Predicated region
      $region21: #{state_action_predictor.8} parent=11 // pred_check
        %p195 = pneg %p101
      $region22: #{state_action_predictor.8} parent=11 // pred_check_branch
        %197 = sbr.rel (%p195) target = $region24
      $region23: #{state_action_predictor.8} parent=11 // pred_region
        _
      $region24: #{state_action_predictor.8} parent=11 // pred_fallthru
        _
      // Predicated region
      $region25: #{state_action_predictor.8} parent=11 // pred_check
        %p198 = pneg %p122
      $region26: #{state_action_predictor.8} parent=11 // pred_check_branch
        %200 = sbr.rel (%p198) target = $region28
      $region27: #{state_action_predictor.8} parent=11 // pred_region
        _
      $region28: #{state_action_predictor.8} parent=11 // pred_fallthru
        _
    $region12: #{state_action_predictor.8} parent=5 // pred_fallthru
      _
    %p201 = scmp.lt.s32.totalorder %s12, 2
    // Predicated region
    $region29: #{state_action_predictor.8} parent=5 // pred_check
      %p202 = pneg %p201
    $region30: #{state_action_predictor.8} parent=5 // pred_check_branch
      %204 = sbr.rel (%p202) target = $region32
    $region31: #{state_action_predictor.8} parent=5 // pred_region
      // Predicated region
      $region33: #{state_action_predictor.8} parent=31 // pred_check
        %p205 = pneg %p32
      $region34: #{state_action_predictor.8} parent=31 // pred_check_branch
        %207 = sbr.rel (%p205) target = $region36
      $region35: #{state_action_predictor.8} parent=31 // pred_region
        %s208 = smul.u32 2, %s12
        %p209 = scmp.lt.s32.totalorder %s208, 3
        %s210 = scalar_select %p209, %s208, 3
        %s211 = smul.addr %s210, 8
        %s212 = scalar_lea.vmem %s0, %s211
        %s213 = smul.u32 2, %s12
      $region36: #{state_action_predictor.8} parent=31 // pred_fallthru
        _
      // Predicated region
      $region37: #{state_action_predictor.8} parent=31 // pred_check
        %p214 = pneg %p142
      $region38: #{state_action_predictor.8} parent=31 // pred_check_branch
        %216 = sbr.rel (%p214) target = $region40
      $region39: #{state_action_predictor.8} parent=31 // pred_region
        %p217 = scmp.lt.s32.totalorder %s12, 1
        %s218 = scalar_select %p217, %s12, 1
        %s219 = smul.addr %s218, 2
        %s220 = scalar_lea.vmem %s5, %s219
      $region40: #{state_action_predictor.8} parent=31 // pred_fallthru
        _
    $region32: #{state_action_predictor.8} parent=5 // pred_fallthru
      _
    %p221 = scmp.le.s32.totalorder 1, %s12
    %p222 = scmp.lt.s32.totalorder %s12, 3
    %p223 = pnand %p221, %p222
    %p224 = pneg %p223
    // Predicated region
    $region41: #{state_action_predictor.8} parent=5 // pred_check
      _
    $region42: #{state_action_predictor.8} parent=5 // pred_check_branch
      %226 = sbr.rel (%p223) target = $region44
    $region43: #{state_action_predictor.8} parent=5 // pred_region
      %s227 = ssub.s32 %s12, 1
      %s228 = smul.u32 2, %s17
      %p229 = scmp.lt.s32.totalorder %s228, 3
      %s230 = scalar_select %p229, %s228, 3
      %s231 = smul.addr %s230, 8
      %s232 = scalar_lea.vmem %s0, %s231
      %p233 = pneg %p38
      %p234 = pneg %p35
      %p235 = pneg %p59
      %p236 = pneg %p56
      %p237 = pneg %p80
      %p238 = pneg %p77
      %p239 = pneg %p101
      %p240 = pneg %p98
      %p241 = pneg %p122
      %p242 = pneg %p119
      %p243 = scmp.lt.s32.totalorder %s17, 1
      %s244 = scalar_select %p243, %s17, 1
      %s245 = smul.addr %s244, 2
      %s246 = scalar_lea.vmem %s5, %s245
      %p247 = pneg %p148
      %p248 = pneg %p145
      %p249 = pneg %p174
      %p250 = pneg %p171
      %p251 = scmp.lt.s32.totalorder %s17, 1
      %s252 = scalar_select %p251, %s17, 1
      %s253 = smul.addr %s252, 2
      %s254 = scalar_lea.vmem %s6, %s253
      %s255 = smul.u32 2, %s17
      %p256 = scmp.lt.s32.totalorder %s255, 3
      %s257 = scalar_select %p256, %s255, 3
      %s258 = smul.addr %s257, 8
      %s259 = scalar_lea.vmem %s0, %s258
      %s260 = smul.u32 2, %s17
      %p261 = scmp.lt.s32.totalorder %s17, 1
      %s262 = scalar_select %p261, %s17, 1
      %s263 = smul.addr %s262, 2
      %s264 = scalar_lea.vmem %s5, %s263
      %p265 = scmp.lt.s32.totalorder %s17, 1
      %s266 = scalar_select %p265, %s17, 1
      %s267 = smul.addr %s266, 2
      %s268 = scalar_lea.vmem %s6, %s267
      %v269 = vld [vmem:[%s1] sm:$0xff]
      %v270 = vld [vmem:[%s1 + $0x8] sm:$0xff]
      %v271 = vld [vmem:[%s1 + $0x10] sm:$0xff]
      %v272 = vld [vmem:[%s1 + $0x18] sm:$0xff]
      %v273 = vld [vmem:[%s1 + $0x20] sm:$0xff]
      %v274 = vld [vmem:[%s1 + $0x28] sm:$0xff]
      %v275 = vld [vmem:[%s1 + $0x30] sm:$0xff]
      %v276 = vld [vmem:[%s1 + $0x38] sm:$0xff]
      %v277 = vld [vmem:[%s1 + $0x40] sm:$0xff]
      %v278 = vld [vmem:[%s1 + $0x48] sm:$0xff]
      %v279 = vld [vmem:[%s1 + $0x50] sm:$0xff]
      %v280 = vld [vmem:[%s1 + $0x58] sm:$0xff]
      %v281 = vld [vmem:[%s1 + $0x60] sm:$0xff]
      %v282 = vld [vmem:[%s1 + $0x68] sm:$0xff]
      %v283 = vld [vmem:[%s1 + $0x70] sm:$0xff]
      %v284 = vld [vmem:[%s1 + $0x78] sm:$0xff]
      %v285 = vld [vmem:[%s1 + $0x80] sm:$0xff]
      %v286 = vld [vmem:[%s1 + $0x88] sm:$0xff]
      %v287 = vld [vmem:[%s1 + $0x90] sm:$0xff]
      %v288 = vld [vmem:[%s1 + $0x98] sm:$0xff]
      %v289 = vld [vmem:[%s1 + $0xa0] sm:$0xff]
      %v290 = vld [vmem:[%s1 + $0xa8] sm:$0xff]
      %v291 = vld [vmem:[%s1 + $0xb0] sm:$0xff]
      %v292 = vld [vmem:[%s1 + $0xb8] sm:$0xff]
      %v293 = vld [vmem:[%s1 + $0xc0] sm:$0xff]
      %v294 = vld [vmem:[%s1 + $0xc8] sm:$0xff]
      %v295 = vld [vmem:[%s1 + $0xd0] sm:$0xff]
      %v296 = vld [vmem:[%s1 + $0xd8] sm:$0xff]
      %v297 = vld [vmem:[%s1 + $0xe0] sm:$0xff]
      %v298 = vld [vmem:[%s1 + $0xe8] sm:$0xff]
      %v299 = vld [vmem:[%s1 + $0xf0] sm:$0xff]
      %v300 = vld [vmem:[%s1 + $0xf8] sm:$0xff]
      %v301 = vld [vmem:[%s1 + $0x100] sm:$0xff]
      %v302 = vld [vmem:[%s1 + $0x108] sm:$0xff]
      %v303 = vld [vmem:[%s1 + $0x110] sm:$0xff]
      %v304 = vld [vmem:[%s1 + $0x118] sm:$0xff]
      %v305 = vld [vmem:[%s1 + $0x120] sm:$0xff]
      %v306 = vld [vmem:[%s1 + $0x128] sm:$0xff]
      %v307 = vld [vmem:[%s1 + $0x130] sm:$0xff]
      %v308 = vld [vmem:[%s1 + $0x138] sm:$0xff]
      %v309 = vld [vmem:[%s1 + $0x140] sm:$0xff]
      %v310 = vld [vmem:[%s1 + $0x148] sm:$0xff]
      %v311 = vld [vmem:[%s1 + $0x150] sm:$0xff]
      %v312 = vld [vmem:[%s1 + $0x158] sm:$0xff]
      %v313 = vld [vmem:[%s1 + $0x160] sm:$0xff]
      %v314 = vld [vmem:[%s1 + $0x168] sm:$0xff]
      %v315 = vld [vmem:[%s1 + $0x170] sm:$0xff]
      %v316 = vld [vmem:[%s1 + $0x178] sm:$0xff]
      %v317 = vld [vmem:[%s2] sm:$0x7]
      %v318 = vld [vmem:[%s3] sm:$0xff]
      %v319 = vld [vmem:[%s3 + $0x8] sm:$0xff]
      %v320 = vld [vmem:[%s3 + $0x10] sm:$0xff]
      %v321 = vld [vmem:[%s3 + $0x18] sm:$0xff]
      %v322 = vld [vmem:[%s3 + $0x20] sm:$0xff]
      %v323 = vld [vmem:[%s3 + $0x28] sm:$0xff]
      %v324 = vld [vmem:[%s3 + $0x30] sm:$0xff]
      %v325 = vld [vmem:[%s3 + $0x38] sm:$0xff]
      %v326 = vld [vmem:[%s3 + $0x40] sm:$0xff]
      %v327 = vld [vmem:[%s3 + $0x48] sm:$0xff]
      %v328 = vld [vmem:[%s3 + $0x50] sm:$0xff]
      %v329 = vld [vmem:[%s3 + $0x58] sm:$0xff]
      %v330 = vld [vmem:[%s3 + $0x60] sm:$0xff]
      %v331 = vld [vmem:[%s3 + $0x68] sm:$0xff]
      %v332 = vld [vmem:[%s3 + $0x70] sm:$0xff]
      %v333 = vld [vmem:[%s3 + $0x78] sm:$0xff]
      %v334 = vld [vmem:[%s3 + $0x80] sm:$0xff]
      %v335 = vld [vmem:[%s3 + $0x88] sm:$0xff]
      %v336 = vld [vmem:[%s3 + $0x90] sm:$0xff]
      %v337 = vld [vmem:[%s3 + $0x98] sm:$0xff]
      %v338 = vld [vmem:[%s3 + $0xa0] sm:$0xff]
      %v339 = vld [vmem:[%s3 + $0xa8] sm:$0xff]
      %v340 = vld [vmem:[%s3 + $0xb0] sm:$0xff]
      %v341 = vld [vmem:[%s3 + $0xb8] sm:$0xff]
      %v342 = vld [vmem:[%s3 + $0xc0] sm:$0xff]
      %v343 = vld [vmem:[%s3 + $0xc8] sm:$0xff]
      %v344 = vld [vmem:[%s3 + $0xd0] sm:$0xff]
      %v345 = vld [vmem:[%s3 + $0xd8] sm:$0xff]
      %v346 = vld [vmem:[%s3 + $0xe0] sm:$0xff]
      %v347 = vld [vmem:[%s3 + $0xe8] sm:$0xff]
      %v348 = vld [vmem:[%s3 + $0xf0] sm:$0xff]
      %v349 = vld [vmem:[%s3 + $0xf8] sm:$0xff]
      %v350 = vld [vmem:[%s3 + $0x100] sm:$0xff]
      %v351 = vld [vmem:[%s3 + $0x108] sm:$0xff]
      %v352 = vld [vmem:[%s3 + $0x110] sm:$0xff]
      %v353 = vld [vmem:[%s3 + $0x118] sm:$0xff]
      %v354 = vld [vmem:[%s3 + $0x120] sm:$0xff]
      %v355 = vld [vmem:[%s3 + $0x128] sm:$0xff]
      %v356 = vld [vmem:[%s3 + $0x130] sm:$0xff]
      %v357 = vld [vmem:[%s3 + $0x138] sm:$0xff]
      %v358 = vld [vmem:[%s3 + $0x140] sm:$0xff]
      %v359 = vld [vmem:[%s3 + $0x148] sm:$0xff]
      %v360 = vld [vmem:[%s3 + $0x150] sm:$0xff]
      %v361 = vld [vmem:[%s3 + $0x158] sm:$0xff]
      %v362 = vld [vmem:[%s3 + $0x160] sm:$0xff]
      %v363 = vld [vmem:[%s3 + $0x168] sm:$0xff]
      %v364 = vld [vmem:[%s3 + $0x170] sm:$0xff]
      %v365 = vld [vmem:[%s3 + $0x178] sm:$0xff]
      %v366 = vld [vmem:[%s4] sm:$0x7]
      %v367 = vld [vmem:[%s264] sm:$0x3]
      %v368 = vld [vmem:[%s259] sm:$0x1]
      %v369 = vld [vmem:[%s259 + $0x8] sm:$0x1]
      %v371 = vperm.slane %v317, 0
      %v372 = vperm.slane %v317, 1
      %v373 = vperm.slane %v317, 2
      %v379 = vrot.slane %v369, 7
      %vm380 = vcmask 1041409
      %v381 = vsel %vm380, %v379, %v368
      %383 = vmatpush.msra.mxu0 %v314
      %384 = vmatpush.msra.mxu0 %v311
      %385 = vmatpush.msra.mxu0 %v308
      %386 = vmatpush.msra.mxu0 %v305
      %387 = vmatpush.msra.mxu0 %v302
      %388 = vmatpush.msra.mxu0 %v299
      %389 = vmatpush.msra.mxu0 %v296
      %390 = vmatpush.msra.mxu0 %v293
      %391 = vmatpush.msra.mxu0 %v290
      %392 = vmatpush.msra.mxu0 %v287
      %393 = vmatpush.msra.mxu0 %v284
      %394 = vmatpush.msra.mxu0 %v281
      %395 = vmatpush.msra.mxu0 %v278
      %396 = vmatpush.msra.mxu0 %v275
      %397 = vmatpush.msra.mxu0 %v272
      %398 = vmatpush.msra.mxu0 %v269
      %399 = vmatmul.f32.gmra.mxu0 %v381
      %v400 = vpop.f32.mrf.mxu0
      %v401 = vadd.f32 %v371, %v400
      %402 = vdwg.mxu0
      %403 = vmatpush.msra.mxu0 %v315
      %404 = vmatpush.msra.mxu0 %v312
      %405 = vmatpush.msra.mxu0 %v309
      %406 = vmatpush.msra.mxu0 %v306
      %407 = vmatpush.msra.mxu0 %v303
      %408 = vmatpush.msra.mxu0 %v300
      %409 = vmatpush.msra.mxu0 %v297
      %410 = vmatpush.msra.mxu0 %v294
      %411 = vmatpush.msra.mxu0 %v291
      %412 = vmatpush.msra.mxu0 %v288
      %413 = vmatpush.msra.mxu0 %v285
      %414 = vmatpush.msra.mxu0 %v282
      %415 = vmatpush.msra.mxu0 %v279
      %416 = vmatpush.msra.mxu0 %v276
      %417 = vmatpush.msra.mxu0 %v273
      %418 = vmatpush.msra.mxu0 %v270
      %419 = vmatmul.f32.gmra.mxu0 %v381
      %v420 = vpop.f32.mrf.mxu0
      %v421 = vadd.f32 %v372, %v420
      %422 = vdwg.mxu0
      %423 = vmatpush.msra.mxu0 %v316
      %424 = vmatpush.msra.mxu0 %v313
      %425 = vmatpush.msra.mxu0 %v310
      %426 = vmatpush.msra.mxu0 %v307
      %427 = vmatpush.msra.mxu0 %v304
      %428 = vmatpush.msra.mxu0 %v301
      %429 = vmatpush.msra.mxu0 %v298
      %430 = vmatpush.msra.mxu0 %v295
      %431 = vmatpush.msra.mxu0 %v292
      %432 = vmatpush.msra.mxu0 %v289
      %433 = vmatpush.msra.mxu0 %v286
      %434 = vmatpush.msra.mxu0 %v283
      %435 = vmatpush.msra.mxu0 %v280
      %436 = vmatpush.msra.mxu0 %v277
      %437 = vmatpush.msra.mxu0 %v274
      %438 = vmatpush.msra.mxu0 %v271
      %439 = vmatmul.f32.gmra.mxu0 %v381
      %v440 = vpop.f32.mrf.mxu0
      %v441 = vadd.f32 %v373, %v440
      %442 = vdwg.mxu0
      %v444 = vperm.slane %v366, 0
      %v445 = vperm.slane %v366, 1
      %v446 = vperm.slane %v366, 2
      %450 = vmatpush.msra.mxu0 %v363
      %451 = vmatpush.msra.mxu0 %v360
      %452 = vmatpush.msra.mxu0 %v357
      %453 = vmatpush.msra.mxu0 %v354
      %454 = vmatpush.msra.mxu0 %v351
      %455 = vmatpush.msra.mxu0 %v348
      %456 = vmatpush.msra.mxu0 %v345
      %457 = vmatpush.msra.mxu0 %v342
      %458 = vmatpush.msra.mxu0 %v339
      %459 = vmatpush.msra.mxu0 %v336
      %460 = vmatpush.msra.mxu0 %v333
      %461 = vmatpush.msra.mxu0 %v330
      %462 = vmatpush.msra.mxu0 %v327
      %463 = vmatpush.msra.mxu0 %v324
      %464 = vmatpush.msra.mxu0 %v321
      %465 = vmatpush.msra.mxu0 %v318
      %466 = vmatmul.f32.gmra.mxu0 0.0
      %v467 = vpop.f32.mrf.mxu0
      %v468 = vadd.f32 %v444, %v467
      %469 = vdwg.mxu0
      %470 = vmatpush.msra.mxu0 %v364
      %471 = vmatpush.msra.mxu0 %v361
      %472 = vmatpush.msra.mxu0 %v358
      %473 = vmatpush.msra.mxu0 %v355
      %474 = vmatpush.msra.mxu0 %v352
      %475 = vmatpush.msra.mxu0 %v349
      %476 = vmatpush.msra.mxu0 %v346
      %477 = vmatpush.msra.mxu0 %v343
      %478 = vmatpush.msra.mxu0 %v340
      %479 = vmatpush.msra.mxu0 %v337
      %480 = vmatpush.msra.mxu0 %v334
      %481 = vmatpush.msra.mxu0 %v331
      %482 = vmatpush.msra.mxu0 %v328
      %483 = vmatpush.msra.mxu0 %v325
      %484 = vmatpush.msra.mxu0 %v322
      %485 = vmatpush.msra.mxu0 %v319
      %486 = vmatmul.f32.gmra.mxu0 0.0
      %v487 = vpop.f32.mrf.mxu0
      %v488 = vadd.f32 %v445, %v487
      %489 = vdwg.mxu0
      %490 = vmatpush.msra.mxu0 %v365
      %491 = vmatpush.msra.mxu0 %v362
      %492 = vmatpush.msra.mxu0 %v359
      %493 = vmatpush.msra.mxu0 %v356
      %494 = vmatpush.msra.mxu0 %v353
      %495 = vmatpush.msra.mxu0 %v350
      %496 = vmatpush.msra.mxu0 %v347
      %497 = vmatpush.msra.mxu0 %v344
      %498 = vmatpush.msra.mxu0 %v341
      %499 = vmatpush.msra.mxu0 %v338
      %500 = vmatpush.msra.mxu0 %v335
      %501 = vmatpush.msra.mxu0 %v332
      %502 = vmatpush.msra.mxu0 %v329
      %503 = vmatpush.msra.mxu0 %v326
      %504 = vmatpush.msra.mxu0 %v323
      %505 = vmatpush.msra.mxu0 %v320
      %506 = vmatmul.f32.gmra.mxu0 0.0
      %v507 = vpop.f32.mrf.mxu0
      %v508 = vadd.f32 %v446, %v507
      %509 = vdwg.mxu0
      %v510 = vadd.f32 %v401, %v468
      %v511 = vsub.f32 0.0, %v510
      %v512 = vmul.f32 %v511, 1.442695
      %v513 = vpow.pop %v512
      %v514 = vadd.f32 %v513, 1.0
      %v515 = vrcp.pop %v514
      %v516 = vmul.f32 %v514, %v515
      %v517 = vsub.f32 1.0, %v516
      %v518 = vmul.f32 %v515, %v517
      %v519 = vadd.f32 %v515, %v518
      %vm520 = vweird.f32 %v514
      %vm521 = vweird.f32 %v515
      %vm522 = vmor %vm520, %vm521
      %v523 = vsel %vm522, %v515, %v519
      %v524 = vand.u32 2147483647, %v514
      %vm525 = vcmp.eq.f32.partialorder %v524, 8.507059e+37
      %v526 = vand.u32 %v514, 2147483648
      %v527 = vor.u32 1.1754944e-38, %v526
      %v528 = vsel %vm525, %v527, %v523
      %v529 = vmul.f32 1.0, %v528
      %v530 = vadd.f32 %v421, %v488
      %v531 = vsub.f32 0.0, %v530
      %v532 = vmul.f32 %v531, 1.442695
      %v533 = vpow.pop %v532
      %v534 = vadd.f32 %v533, 1.0
      %v535 = vrcp.pop %v534
      %v536 = vmul.f32 %v534, %v535
      %v537 = vsub.f32 1.0, %v536
      %v538 = vmul.f32 %v535, %v537
      %v539 = vadd.f32 %v535, %v538
      %vm540 = vweird.f32 %v534
      %vm541 = vweird.f32 %v535
      %vm542 = vmor %vm540, %vm541
      %v543 = vsel %vm542, %v535, %v539
      %v544 = vand.u32 2147483647, %v534
      %vm545 = vcmp.eq.f32.partialorder %v544, 8.507059e+37
      %v546 = vand.u32 %v534, 2147483648
      %v547 = vor.u32 1.1754944e-38, %v546
      %v548 = vsel %vm545, %v547, %v543
      %v549 = vmul.f32 1.0, %v548
      %v550 = vmul.f32 %v529, %v508
      %v551 = vadd.f32 %v441, %v550
      %v552 = vtanh.pop %v551
      %v553 = vsub.f32 1.0, %v549
      %v554 = vmul.f32 %v553, %v552
      %v555 = vmul.f32 %v549, 0.0
      %v556 = vadd.f32 %v554, %v555
      %vm557 = vcmp.eq.f32.partialorder %v367, 0.0
      %v558 = vsel %vm557, %v556, 0.0
      %v559 = vld [vmem:[%s259 + $0x1] sm:$0x1]
      %v560 = vld [vmem:[%s259 + $0x9] sm:$0x1]
      %v563 = vrot.slane %v560, 7
      %v564 = vsel %vm380, %v563, %v559
      %566 = vmatpush.msra.mxu0 %v314
      %567 = vmatpush.msra.mxu0 %v311
      %568 = vmatpush.msra.mxu0 %v308
      %569 = vmatpush.msra.mxu0 %v305
      %570 = vmatpush.msra.mxu0 %v302
      %571 = vmatpush.msra.mxu0 %v299
      %572 = vmatpush.msra.mxu0 %v296
      %573 = vmatpush.msra.mxu0 %v293
      %574 = vmatpush.msra.mxu0 %v290
      %575 = vmatpush.msra.mxu0 %v287
      %576 = vmatpush.msra.mxu0 %v284
      %577 = vmatpush.msra.mxu0 %v281
      %578 = vmatpush.msra.mxu0 %v278
      %579 = vmatpush.msra.mxu0 %v275
      %580 = vmatpush.msra.mxu0 %v272
      %581 = vmatpush.msra.mxu0 %v269
      %582 = vmatmul.f32.gmra.mxu0 %v564
      %v583 = vpop.f32.mrf.mxu0
      %v584 = vadd.f32 %v371, %v583
      %585 = vdwg.mxu0
      %586 = vmatpush.msra.mxu0 %v315
      %587 = vmatpush.msra.mxu0 %v312
      %588 = vmatpush.msra.mxu0 %v309
      %589 = vmatpush.msra.mxu0 %v306
      %590 = vmatpush.msra.mxu0 %v303
      %591 = vmatpush.msra.mxu0 %v300
      %592 = vmatpush.msra.mxu0 %v297
      %593 = vmatpush.msra.mxu0 %v294
      %594 = vmatpush.msra.mxu0 %v291
      %595 = vmatpush.msra.mxu0 %v288
      %596 = vmatpush.msra.mxu0 %v285
      %597 = vmatpush.msra.mxu0 %v282
      %598 = vmatpush.msra.mxu0 %v279
      %599 = vmatpush.msra.mxu0 %v276
      %600 = vmatpush.msra.mxu0 %v273
      %601 = vmatpush.msra.mxu0 %v270
      %602 = vmatmul.f32.gmra.mxu0 %v564
      %v603 = vpop.f32.mrf.mxu0
      %v604 = vadd.f32 %v372, %v603
      %605 = vdwg.mxu0
      %606 = vmatpush.msra.mxu0 %v316
      %607 = vmatpush.msra.mxu0 %v313
      %608 = vmatpush.msra.mxu0 %v310
      %609 = vmatpush.msra.mxu0 %v307
      %610 = vmatpush.msra.mxu0 %v304
      %611 = vmatpush.msra.mxu0 %v301
      %612 = vmatpush.msra.mxu0 %v298
      %613 = vmatpush.msra.mxu0 %v295
      %614 = vmatpush.msra.mxu0 %v292
      %615 = vmatpush.msra.mxu0 %v289
      %616 = vmatpush.msra.mxu0 %v286
      %617 = vmatpush.msra.mxu0 %v283
      %618 = vmatpush.msra.mxu0 %v280
      %619 = vmatpush.msra.mxu0 %v277
      %620 = vmatpush.msra.mxu0 %v274
      %621 = vmatpush.msra.mxu0 %v271
      %622 = vmatmul.f32.gmra.mxu0 %v564
      %v623 = vpop.f32.mrf.mxu0
      %v624 = vadd.f32 %v373, %v623
      %625 = vdwg.mxu0
      %626 = vmatpush.msra.mxu0 %v363
      %627 = vmatpush.msra.mxu0 %v360
      %628 = vmatpush.msra.mxu0 %v357
      %629 = vmatpush.msra.mxu0 %v354
      %630 = vmatpush.msra.mxu0 %v351
      %631 = vmatpush.msra.mxu0 %v348
      %632 = vmatpush.msra.mxu0 %v345
      %633 = vmatpush.msra.mxu0 %v342
      %634 = vmatpush.msra.mxu0 %v339
      %635 = vmatpush.msra.mxu0 %v336
      %636 = vmatpush.msra.mxu0 %v333
      %637 = vmatpush.msra.mxu0 %v330
      %638 = vmatpush.msra.mxu0 %v327
      %639 = vmatpush.msra.mxu0 %v324
      %640 = vmatpush.msra.mxu0 %v321
      %641 = vmatpush.msra.mxu0 %v318
      %642 = vmatmul.f32.gmra.mxu0 %v556
      %v643 = vpop.f32.mrf.mxu0
      %v644 = vadd.f32 %v444, %v643
      %645 = vdwg.mxu0
      %646 = vmatpush.msra.mxu0 %v364
      %647 = vmatpush.msra.mxu0 %v361
      %648 = vmatpush.msra.mxu0 %v358
      %649 = vmatpush.msra.mxu0 %v355
      %650 = vmatpush.msra.mxu0 %v352
      %651 = vmatpush.msra.mxu0 %v349
      %652 = vmatpush.msra.mxu0 %v346
      %653 = vmatpush.msra.mxu0 %v343
      %654 = vmatpush.msra.mxu0 %v340
      %655 = vmatpush.msra.mxu0 %v337
      %656 = vmatpush.msra.mxu0 %v334
      %657 = vmatpush.msra.mxu0 %v331
      %658 = vmatpush.msra.mxu0 %v328
      %659 = vmatpush.msra.mxu0 %v325
      %660 = vmatpush.msra.mxu0 %v322
      %661 = vmatpush.msra.mxu0 %v319
      %662 = vmatmul.f32.gmra.mxu0 %v556
      %v663 = vpop.f32.mrf.mxu0
      %v664 = vadd.f32 %v445, %v663
      %665 = vdwg.mxu0
      %666 = vmatpush.msra.mxu0 %v365
      %667 = vmatpush.msra.mxu0 %v362
      %668 = vmatpush.msra.mxu0 %v359
      %669 = vmatpush.msra.mxu0 %v356
      %670 = vmatpush.msra.mxu0 %v353
      %671 = vmatpush.msra.mxu0 %v350
      %672 = vmatpush.msra.mxu0 %v347
      %673 = vmatpush.msra.mxu0 %v344
      %674 = vmatpush.msra.mxu0 %v341
      %675 = vmatpush.msra.mxu0 %v338
      %676 = vmatpush.msra.mxu0 %v335
      %677 = vmatpush.msra.mxu0 %v332
      %678 = vmatpush.msra.mxu0 %v329
      %679 = vmatpush.msra.mxu0 %v326
      %680 = vmatpush.msra.mxu0 %v323
      %681 = vmatpush.msra.mxu0 %v320
      %682 = vmatmul.f32.gmra.mxu0 %v556
      %v683 = vpop.f32.mrf.mxu0
      %v684 = vadd.f32 %v446, %v683
      %685 = vdwg.mxu0
      %v686 = vadd.f32 %v584, %v644
      %v687 = vsub.f32 0.0, %v686
      %v688 = vmul.f32 %v687, 1.442695
      %v689 = vpow.pop %v688
      %v690 = vadd.f32 %v689, 1.0
      %v691 = vrcp.pop %v690
      %v692 = vmul.f32 %v690, %v691
      %v693 = vsub.f32 1.0, %v692
      %v694 = vmul.f32 %v691, %v693
      %v695 = vadd.f32 %v691, %v694
      %vm696 = vweird.f32 %v690
      %vm697 = vweird.f32 %v691
      %vm698 = vmor %vm696, %vm697
      %v699 = vsel %vm698, %v691, %v695
      %v700 = vand.u32 2147483647, %v690
      %vm701 = vcmp.eq.f32.partialorder %v700, 8.507059e+37
      %v702 = vand.u32 %v690, 2147483648
      %v703 = vor.u32 1.1754944e-38, %v702
      %v704 = vsel %vm701, %v703, %v699
      %v705 = vmul.f32 1.0, %v704
      %v706 = vadd.f32 %v604, %v664
      %v707 = vsub.f32 0.0, %v706
      %v708 = vmul.f32 %v707, 1.442695
      %v709 = vpow.pop %v708
      %v710 = vadd.f32 %v709, 1.0
      %v711 = vrcp.pop %v710
      %v712 = vmul.f32 %v710, %v711
      %v713 = vsub.f32 1.0, %v712
      %v714 = vmul.f32 %v711, %v713
      %v715 = vadd.f32 %v711, %v714
      %vm716 = vweird.f32 %v710
      %vm717 = vweird.f32 %v711
      %vm718 = vmor %vm716, %vm717
      %v719 = vsel %vm718, %v711, %v715
      %v720 = vand.u32 2147483647, %v710
      %vm721 = vcmp.eq.f32.partialorder %v720, 8.507059e+37
      %v722 = vand.u32 %v710, 2147483648
      %v723 = vor.u32 1.1754944e-38, %v722
      %v724 = vsel %vm721, %v723, %v719
      %v725 = vmul.f32 1.0, %v724
      %v726 = vmul.f32 %v705, %v684
      %v727 = vadd.f32 %v624, %v726
      %v728 = vtanh.pop %v727
      %v729 = vsub.f32 1.0, %v725
      %v730 = vmul.f32 %v729, %v728
      %v731 = vmul.f32 %v725, %v556
      %v732 = vadd.f32 %v730, %v731
      %vm733 = vcmp.eq.f32.partialorder %v367, 1.0
      %v734 = vsel %vm733, %v732, %v558
      %v735 = vld [vmem:[%s259 + $0x2] sm:$0x1]
      %v736 = vld [vmem:[%s259 + $0xa] sm:$0x1]
      %v739 = vrot.slane %v736, 7
      %v740 = vsel %vm380, %v739, %v735
      %742 = vmatpush.msra.mxu0 %v314
      %743 = vmatpush.msra.mxu0 %v311
      %744 = vmatpush.msra.mxu0 %v308
      %745 = vmatpush.msra.mxu0 %v305
      %746 = vmatpush.msra.mxu0 %v302
      %747 = vmatpush.msra.mxu0 %v299
      %748 = vmatpush.msra.mxu0 %v296
      %749 = vmatpush.msra.mxu0 %v293
      %750 = vmatpush.msra.mxu0 %v290
      %751 = vmatpush.msra.mxu0 %v287
      %752 = vmatpush.msra.mxu0 %v284
      %753 = vmatpush.msra.mxu0 %v281
      %754 = vmatpush.msra.mxu0 %v278
      %755 = vmatpush.msra.mxu0 %v275
      %756 = vmatpush.msra.mxu0 %v272
      %757 = vmatpush.msra.mxu0 %v269
      %758 = vmatmul.f32.gmra.mxu0 %v740
      %v759 = vpop.f32.mrf.mxu0
      %v760 = vadd.f32 %v371, %v759
      %761 = vdwg.mxu0
      %762 = vmatpush.msra.mxu0 %v315
      %763 = vmatpush.msra.mxu0 %v312
      %764 = vmatpush.msra.mxu0 %v309
      %765 = vmatpush.msra.mxu0 %v306
      %766 = vmatpush.msra.mxu0 %v303
      %767 = vmatpush.msra.mxu0 %v300
      %768 = vmatpush.msra.mxu0 %v297
      %769 = vmatpush.msra.mxu0 %v294
      %770 = vmatpush.msra.mxu0 %v291
      %771 = vmatpush.msra.mxu0 %v288
      %772 = vmatpush.msra.mxu0 %v285
      %773 = vmatpush.msra.mxu0 %v282
      %774 = vmatpush.msra.mxu0 %v279
      %775 = vmatpush.msra.mxu0 %v276
      %776 = vmatpush.msra.mxu0 %v273
      %777 = vmatpush.msra.mxu0 %v270
      %778 = vmatmul.f32.gmra.mxu0 %v740
      %v779 = vpop.f32.mrf.mxu0
      %v780 = vadd.f32 %v372, %v779
      %781 = vdwg.mxu0
      %782 = vmatpush.msra.mxu0 %v316
      %783 = vmatpush.msra.mxu0 %v313
      %784 = vmatpush.msra.mxu0 %v310
      %785 = vmatpush.msra.mxu0 %v307
      %786 = vmatpush.msra.mxu0 %v304
      %787 = vmatpush.msra.mxu0 %v301
      %788 = vmatpush.msra.mxu0 %v298
      %789 = vmatpush.msra.mxu0 %v295
      %790 = vmatpush.msra.mxu0 %v292
      %791 = vmatpush.msra.mxu0 %v289
      %792 = vmatpush.msra.mxu0 %v286
      %793 = vmatpush.msra.mxu0 %v283
      %794 = vmatpush.msra.mxu0 %v280
      %795 = vmatpush.msra.mxu0 %v277
      %796 = vmatpush.msra.mxu0 %v274
      %797 = vmatpush.msra.mxu0 %v271
      %798 = vmatmul.f32.gmra.mxu0 %v740
      %v799 = vpop.f32.mrf.mxu0
      %v800 = vadd.f32 %v373, %v799
      %801 = vdwg.mxu0
      %802 = vmatpush.msra.mxu0 %v363
      %803 = vmatpush.msra.mxu0 %v360
      %804 = vmatpush.msra.mxu0 %v357
      %805 = vmatpush.msra.mxu0 %v354
      %806 = vmatpush.msra.mxu0 %v351
      %807 = vmatpush.msra.mxu0 %v348
      %808 = vmatpush.msra.mxu0 %v345
      %809 = vmatpush.msra.mxu0 %v342
      %810 = vmatpush.msra.mxu0 %v339
      %811 = vmatpush.msra.mxu0 %v336
      %812 = vmatpush.msra.mxu0 %v333
      %813 = vmatpush.msra.mxu0 %v330
      %814 = vmatpush.msra.mxu0 %v327
      %815 = vmatpush.msra.mxu0 %v324
      %816 = vmatpush.msra.mxu0 %v321
      %817 = vmatpush.msra.mxu0 %v318
      %818 = vmatmul.f32.gmra.mxu0 %v732
      %v819 = vpop.f32.mrf.mxu0
      %v820 = vadd.f32 %v444, %v819
      %821 = vdwg.mxu0
      %822 = vmatpush.msra.mxu0 %v364
      %823 = vmatpush.msra.mxu0 %v361
      %824 = vmatpush.msra.mxu0 %v358
      %825 = vmatpush.msra.mxu0 %v355
      %826 = vmatpush.msra.mxu0 %v352
      %827 = vmatpush.msra.mxu0 %v349
      %828 = vmatpush.msra.mxu0 %v346
      %829 = vmatpush.msra.mxu0 %v343
      %830 = vmatpush.msra.mxu0 %v340
      %831 = vmatpush.msra.mxu0 %v337
      %832 = vmatpush.msra.mxu0 %v334
      %833 = vmatpush.msra.mxu0 %v331
      %834 = vmatpush.msra.mxu0 %v328
      %835 = vmatpush.msra.mxu0 %v325
      %836 = vmatpush.msra.mxu0 %v322
      %837 = vmatpush.msra.mxu0 %v319
      %838 = vmatmul.f32.gmra.mxu0 %v732
      %v839 = vpop.f32.mrf.mxu0
      %v840 = vadd.f32 %v445, %v839
      %841 = vdwg.mxu0
      %842 = vmatpush.msra.mxu0 %v365
      %843 = vmatpush.msra.mxu0 %v362
      %844 = vmatpush.msra.mxu0 %v359
      %845 = vmatpush.msra.mxu0 %v356
      %846 = vmatpush.msra.mxu0 %v353
      %847 = vmatpush.msra.mxu0 %v350
      %848 = vmatpush.msra.mxu0 %v347
      %849 = vmatpush.msra.mxu0 %v344
      %850 = vmatpush.msra.mxu0 %v341
      %851 = vmatpush.msra.mxu0 %v338
      %852 = vmatpush.msra.mxu0 %v335
      %853 = vmatpush.msra.mxu0 %v332
      %854 = vmatpush.msra.mxu0 %v329
      %855 = vmatpush.msra.mxu0 %v326
      %856 = vmatpush.msra.mxu0 %v323
      %857 = vmatpush.msra.mxu0 %v320
      %858 = vmatmul.f32.gmra.mxu0 %v732
      %v859 = vpop.f32.mrf.mxu0
      %v860 = vadd.f32 %v446, %v859
      %861 = vdwg.mxu0
      %v862 = vadd.f32 %v760, %v820
      %v863 = vsub.f32 0.0, %v862
      %v864 = vmul.f32 %v863, 1.442695
      %v865 = vpow.pop %v864
      %v866 = vadd.f32 %v865, 1.0
      %v867 = vrcp.pop %v866
      %v868 = vmul.f32 %v866, %v867
      %v869 = vsub.f32 1.0, %v868
      %v870 = vmul.f32 %v867, %v869
      %v871 = vadd.f32 %v867, %v870
      %vm872 = vweird.f32 %v866
      %vm873 = vweird.f32 %v867
      %vm874 = vmor %vm872, %vm873
      %v875 = vsel %vm874, %v867, %v871
      %v876 = vand.u32 2147483647, %v866
      %vm877 = vcmp.eq.f32.partialorder %v876, 8.507059e+37
      %v878 = vand.u32 %v866, 2147483648
      %v879 = vor.u32 1.1754944e-38, %v878
      %v880 = vsel %vm877, %v879, %v875
      %v881 = vmul.f32 1.0, %v880
      %v882 = vadd.f32 %v780, %v840
      %v883 = vsub.f32 0.0, %v882
      %v884 = vmul.f32 %v883, 1.442695
      %v885 = vpow.pop %v884
      %v886 = vadd.f32 %v885, 1.0
      %v887 = vrcp.pop %v886
      %v888 = vmul.f32 %v886, %v887
      %v889 = vsub.f32 1.0, %v888
      %v890 = vmul.f32 %v887, %v889
      %v891 = vadd.f32 %v887, %v890
      %vm892 = vweird.f32 %v886
      %vm893 = vweird.f32 %v887
      %vm894 = vmor %vm892, %vm893
      %v895 = vsel %vm894, %v887, %v891
      %v896 = vand.u32 2147483647, %v886
      %vm897 = vcmp.eq.f32.partialorder %v896, 8.507059e+37
      %v898 = vand.u32 %v886, 2147483648
      %v899 = vor.u32 1.1754944e-38, %v898
      %v900 = vsel %vm897, %v899, %v895
      %v901 = vmul.f32 1.0, %v900
      %v902 = vmul.f32 %v881, %v860
      %v903 = vadd.f32 %v800, %v902
      %v904 = vtanh.pop %v903
      %v905 = vsub.f32 1.0, %v901
      %v906 = vmul.f32 %v905, %v904
      %v907 = vmul.f32 %v901, %v732
      %v908 = vadd.f32 %v906, %v907
      %vm909 = vcmp.eq.f32.partialorder %v367, 2.0
      %v910 = vsel %vm909, %v908, %v734
      %v911 = vld [vmem:[%s259 + $0x3] sm:$0x1]
      %v912 = vld [vmem:[%s259 + $0xb] sm:$0x1]
      %v915 = vrot.slane %v912, 7
      %v916 = vsel %vm380, %v915, %v911
      %918 = vmatpush.msra.mxu0 %v314
      %919 = vmatpush.msra.mxu0 %v311
      %920 = vmatpush.msra.mxu0 %v308
      %921 = vmatpush.msra.mxu0 %v305
      %922 = vmatpush.msra.mxu0 %v302
      %923 = vmatpush.msra.mxu0 %v299
      %924 = vmatpush.msra.mxu0 %v296
      %925 = vmatpush.msra.mxu0 %v293
      %926 = vmatpush.msra.mxu0 %v290
      %927 = vmatpush.msra.mxu0 %v287
      %928 = vmatpush.msra.mxu0 %v284
      %929 = vmatpush.msra.mxu0 %v281
      %930 = vmatpush.msra.mxu0 %v278
      %931 = vmatpush.msra.mxu0 %v275
      %932 = vmatpush.msra.mxu0 %v272
      %933 = vmatpush.msra.mxu0 %v269
      %934 = vmatmul.f32.gmra.mxu0 %v916
      %v935 = vpop.f32.mrf.mxu0
      %v936 = vadd.f32 %v371, %v935
      %937 = vdwg.mxu0
      %938 = vmatpush.msra.mxu0 %v315
      %939 = vmatpush.msra.mxu0 %v312
      %940 = vmatpush.msra.mxu0 %v309
      %941 = vmatpush.msra.mxu0 %v306
      %942 = vmatpush.msra.mxu0 %v303
      %943 = vmatpush.msra.mxu0 %v300
      %944 = vmatpush.msra.mxu0 %v297
      %945 = vmatpush.msra.mxu0 %v294
      %946 = vmatpush.msra.mxu0 %v291
      %947 = vmatpush.msra.mxu0 %v288
      %948 = vmatpush.msra.mxu0 %v285
      %949 = vmatpush.msra.mxu0 %v282
      %950 = vmatpush.msra.mxu0 %v279
      %951 = vmatpush.msra.mxu0 %v276
      %952 = vmatpush.msra.mxu0 %v273
      %953 = vmatpush.msra.mxu0 %v270
      %954 = vmatmul.f32.gmra.mxu0 %v916
      %v955 = vpop.f32.mrf.mxu0
      %v956 = vadd.f32 %v372, %v955
      %957 = vdwg.mxu0
      %958 = vmatpush.msra.mxu0 %v316
      %959 = vmatpush.msra.mxu0 %v313
      %960 = vmatpush.msra.mxu0 %v310
      %961 = vmatpush.msra.mxu0 %v307
      %962 = vmatpush.msra.mxu0 %v304
      %963 = vmatpush.msra.mxu0 %v301
      %964 = vmatpush.msra.mxu0 %v298
      %965 = vmatpush.msra.mxu0 %v295
      %966 = vmatpush.msra.mxu0 %v292
      %967 = vmatpush.msra.mxu0 %v289
      %968 = vmatpush.msra.mxu0 %v286
      %969 = vmatpush.msra.mxu0 %v283
      %970 = vmatpush.msra.mxu0 %v280
      %971 = vmatpush.msra.mxu0 %v277
      %972 = vmatpush.msra.mxu0 %v274
      %973 = vmatpush.msra.mxu0 %v271
      %974 = vmatmul.f32.gmra.mxu0 %v916
      %v975 = vpop.f32.mrf.mxu0
      %v976 = vadd.f32 %v373, %v975
      %977 = vdwg.mxu0
      %978 = vmatpush.msra.mxu0 %v363
      %979 = vmatpush.msra.mxu0 %v360
      %980 = vmatpush.msra.mxu0 %v357
      %981 = vmatpush.msra.mxu0 %v354
      %982 = vmatpush.msra.mxu0 %v351
      %983 = vmatpush.msra.mxu0 %v348
      %984 = vmatpush.msra.mxu0 %v345
      %985 = vmatpush.msra.mxu0 %v342
      %986 = vmatpush.msra.mxu0 %v339
      %987 = vmatpush.msra.mxu0 %v336
      %988 = vmatpush.msra.mxu0 %v333
      %989 = vmatpush.msra.mxu0 %v330
      %990 = vmatpush.msra.mxu0 %v327
      %991 = vmatpush.msra.mxu0 %v324
      %992 = vmatpush.msra.mxu0 %v321
      %993 = vmatpush.msra.mxu0 %v318
      %994 = vmatmul.f32.gmra.mxu0 %v908
      %v995 = vpop.f32.mrf.mxu0
      %v996 = vadd.f32 %v444, %v995
      %997 = vdwg.mxu0
      %998 = vmatpush.msra.mxu0 %v364
      %999 = vmatpush.msra.mxu0 %v361
      %1000 = vmatpush.msra.mxu0 %v358
      %1001 = vmatpush.msra.mxu0 %v355
      %1002 = vmatpush.msra.mxu0 %v352
      %1003 = vmatpush.msra.mxu0 %v349
      %1004 = vmatpush.msra.mxu0 %v346
      %1005 = vmatpush.msra.mxu0 %v343
      %1006 = vmatpush.msra.mxu0 %v340
      %1007 = vmatpush.msra.mxu0 %v337
      %1008 = vmatpush.msra.mxu0 %v334
      %1009 = vmatpush.msra.mxu0 %v331
      %1010 = vmatpush.msra.mxu0 %v328
      %1011 = vmatpush.msra.mxu0 %v325
      %1012 = vmatpush.msra.mxu0 %v322
      %1013 = vmatpush.msra.mxu0 %v319
      %1014 = vmatmul.f32.gmra.mxu0 %v908
      %v1015 = vpop.f32.mrf.mxu0
      %v1016 = vadd.f32 %v445, %v1015
      %1017 = vdwg.mxu0
      %1018 = vmatpush.msra.mxu0 %v365
      %1019 = vmatpush.msra.mxu0 %v362
      %1020 = vmatpush.msra.mxu0 %v359
      %1021 = vmatpush.msra.mxu0 %v356
      %1022 = vmatpush.msra.mxu0 %v353
      %1023 = vmatpush.msra.mxu0 %v350
      %1024 = vmatpush.msra.mxu0 %v347
      %1025 = vmatpush.msra.mxu0 %v344
      %1026 = vmatpush.msra.mxu0 %v341
      %1027 = vmatpush.msra.mxu0 %v338
      %1028 = vmatpush.msra.mxu0 %v335
      %1029 = vmatpush.msra.mxu0 %v332
      %1030 = vmatpush.msra.mxu0 %v329
      %1031 = vmatpush.msra.mxu0 %v326
      %1032 = vmatpush.msra.mxu0 %v323
      %1033 = vmatpush.msra.mxu0 %v320
      %1034 = vmatmul.f32.gmra.mxu0 %v908
      %v1035 = vpop.f32.mrf.mxu0
      %v1036 = vadd.f32 %v446, %v1035
      %1037 = vdwg.mxu0
      %v1038 = vadd.f32 %v936, %v996
      %v1039 = vsub.f32 0.0, %v1038
      %v1040 = vmul.f32 %v1039, 1.442695
      %v1041 = vpow.pop %v1040
      %v1042 = vadd.f32 %v1041, 1.0
      %v1043 = vrcp.pop %v1042
      %v1044 = vmul.f32 %v1042, %v1043
      %v1045 = vsub.f32 1.0, %v1044
      %v1046 = vmul.f32 %v1043, %v1045
      %v1047 = vadd.f32 %v1043, %v1046
      %vm1048 = vweird.f32 %v1042
      %vm1049 = vweird.f32 %v1043
      %vm1050 = vmor %vm1048, %vm1049
      %v1051 = vsel %vm1050, %v1043, %v1047
      %v1052 = vand.u32 2147483647, %v1042
      %vm1053 = vcmp.eq.f32.partialorder %v1052, 8.507059e+37
      %v1054 = vand.u32 %v1042, 2147483648
      %v1055 = vor.u32 1.1754944e-38, %v1054
      %v1056 = vsel %vm1053, %v1055, %v1051
      %v1057 = vmul.f32 1.0, %v1056
      %v1058 = vadd.f32 %v956, %v1016
      %v1059 = vsub.f32 0.0, %v1058
      %v1060 = vmul.f32 %v1059, 1.442695
      %v1061 = vpow.pop %v1060
      %v1062 = vadd.f32 %v1061, 1.0
      %v1063 = vrcp.pop %v1062
      %v1064 = vmul.f32 %v1062, %v1063
      %v1065 = vsub.f32 1.0, %v1064
      %v1066 = vmul.f32 %v1063, %v1065
      %v1067 = vadd.f32 %v1063, %v1066
      %vm1068 = vweird.f32 %v1062
      %vm1069 = vweird.f32 %v1063
      %vm1070 = vmor %vm1068, %vm1069
      %v1071 = vsel %vm1070, %v1063, %v1067
      %v1072 = vand.u32 2147483647, %v1062
      %vm1073 = vcmp.eq.f32.partialorder %v1072, 8.507059e+37
      %v1074 = vand.u32 %v1062, 2147483648
      %v1075 = vor.u32 1.1754944e-38, %v1074
      %v1076 = vsel %vm1073, %v1075, %v1071
      %v1077 = vmul.f32 1.0, %v1076
      %v1078 = vmul.f32 %v1057, %v1036
      %v1079 = vadd.f32 %v976, %v1078
      %v1080 = vtanh.pop %v1079
      %v1081 = vsub.f32 1.0, %v1077
      %v1082 = vmul.f32 %v1081, %v1080
      %v1083 = vmul.f32 %v1077, %v908
      %v1084 = vadd.f32 %v1082, %v1083
      %vm1085 = vcmp.eq.f32.partialorder %v367, 3.0
      %v1086 = vsel %vm1085, %v1084, %v910
      %v1087 = vld [vmem:[%s259 + $0x4] sm:$0x1]
      %v1088 = vld [vmem:[%s259 + $0xc] sm:$0x1]
      %v1091 = vrot.slane %v1088, 7
      %v1092 = vsel %vm380, %v1091, %v1087
      %1094 = vmatpush.msra.mxu0 %v314
      %1095 = vmatpush.msra.mxu0 %v311
      %1096 = vmatpush.msra.mxu0 %v308
      %1097 = vmatpush.msra.mxu0 %v305
      %1098 = vmatpush.msra.mxu0 %v302
      %1099 = vmatpush.msra.mxu0 %v299
      %1100 = vmatpush.msra.mxu0 %v296
      %1101 = vmatpush.msra.mxu0 %v293
      %1102 = vmatpush.msra.mxu0 %v290
      %1103 = vmatpush.msra.mxu0 %v287
      %1104 = vmatpush.msra.mxu0 %v284
      %1105 = vmatpush.msra.mxu0 %v281
      %1106 = vmatpush.msra.mxu0 %v278
      %1107 = vmatpush.msra.mxu0 %v275
      %1108 = vmatpush.msra.mxu0 %v272
      %1109 = vmatpush.msra.mxu0 %v269
      %1110 = vmatmul.f32.gmra.mxu0 %v1092
      %v1111 = vpop.f32.mrf.mxu0
      %v1112 = vadd.f32 %v371, %v1111
      %1113 = vdwg.mxu0
      %1114 = vmatpush.msra.mxu0 %v315
      %1115 = vmatpush.msra.mxu0 %v312
      %1116 = vmatpush.msra.mxu0 %v309
      %1117 = vmatpush.msra.mxu0 %v306
      %1118 = vmatpush.msra.mxu0 %v303
      %1119 = vmatpush.msra.mxu0 %v300
      %1120 = vmatpush.msra.mxu0 %v297
      %1121 = vmatpush.msra.mxu0 %v294
      %1122 = vmatpush.msra.mxu0 %v291
      %1123 = vmatpush.msra.mxu0 %v288
      %1124 = vmatpush.msra.mxu0 %v285
      %1125 = vmatpush.msra.mxu0 %v282
      %1126 = vmatpush.msra.mxu0 %v279
      %1127 = vmatpush.msra.mxu0 %v276
      %1128 = vmatpush.msra.mxu0 %v273
      %1129 = vmatpush.msra.mxu0 %v270
      %1130 = vmatmul.f32.gmra.mxu0 %v1092
      %v1131 = vpop.f32.mrf.mxu0
      %v1132 = vadd.f32 %v372, %v1131
      %1133 = vdwg.mxu0
      %1134 = vmatpush.msra.mxu0 %v316
      %1135 = vmatpush.msra.mxu0 %v313
      %1136 = vmatpush.msra.mxu0 %v310
      %1137 = vmatpush.msra.mxu0 %v307
      %1138 = vmatpush.msra.mxu0 %v304
      %1139 = vmatpush.msra.mxu0 %v301
      %1140 = vmatpush.msra.mxu0 %v298
      %1141 = vmatpush.msra.mxu0 %v295
      %1142 = vmatpush.msra.mxu0 %v292
      %1143 = vmatpush.msra.mxu0 %v289
      %1144 = vmatpush.msra.mxu0 %v286
      %1145 = vmatpush.msra.mxu0 %v283
      %1146 = vmatpush.msra.mxu0 %v280
      %1147 = vmatpush.msra.mxu0 %v277
      %1148 = vmatpush.msra.mxu0 %v274
      %1149 = vmatpush.msra.mxu0 %v271
      %1150 = vmatmul.f32.gmra.mxu0 %v1092
      %v1151 = vpop.f32.mrf.mxu0
      %v1152 = vadd.f32 %v373, %v1151
      %1153 = vdwg.mxu0
      %1154 = vmatpush.msra.mxu0 %v363
      %1155 = vmatpush.msra.mxu0 %v360
      %1156 = vmatpush.msra.mxu0 %v357
      %1157 = vmatpush.msra.mxu0 %v354
      %1158 = vmatpush.msra.mxu0 %v351
      %1159 = vmatpush.msra.mxu0 %v348
      %1160 = vmatpush.msra.mxu0 %v345
      %1161 = vmatpush.msra.mxu0 %v342
      %1162 = vmatpush.msra.mxu0 %v339
      %1163 = vmatpush.msra.mxu0 %v336
      %1164 = vmatpush.msra.mxu0 %v333
      %1165 = vmatpush.msra.mxu0 %v330
      %1166 = vmatpush.msra.mxu0 %v327
      %1167 = vmatpush.msra.mxu0 %v324
      %1168 = vmatpush.msra.mxu0 %v321
      %1169 = vmatpush.msra.mxu0 %v318
      %1170 = vmatmul.f32.gmra.mxu0 %v1084
      %v1171 = vpop.f32.mrf.mxu0
      %v1172 = vadd.f32 %v444, %v1171
      %1173 = vdwg.mxu0
      %1174 = vmatpush.msra.mxu0 %v364
      %1175 = vmatpush.msra.mxu0 %v361
      %1176 = vmatpush.msra.mxu0 %v358
      %1177 = vmatpush.msra.mxu0 %v355
      %1178 = vmatpush.msra.mxu0 %v352
      %1179 = vmatpush.msra.mxu0 %v349
      %1180 = vmatpush.msra.mxu0 %v346
      %1181 = vmatpush.msra.mxu0 %v343
      %1182 = vmatpush.msra.mxu0 %v340
      %1183 = vmatpush.msra.mxu0 %v337
      %1184 = vmatpush.msra.mxu0 %v334
      %1185 = vmatpush.msra.mxu0 %v331
      %1186 = vmatpush.msra.mxu0 %v328
      %1187 = vmatpush.msra.mxu0 %v325
      %1188 = vmatpush.msra.mxu0 %v322
      %1189 = vmatpush.msra.mxu0 %v319
      %1190 = vmatmul.f32.gmra.mxu0 %v1084
      %v1191 = vpop.f32.mrf.mxu0
      %v1192 = vadd.f32 %v445, %v1191
      %1193 = vdwg.mxu0
      %1194 = vmatpush.msra.mxu0 %v365
      %1195 = vmatpush.msra.mxu0 %v362
      %1196 = vmatpush.msra.mxu0 %v359
      %1197 = vmatpush.msra.mxu0 %v356
      %1198 = vmatpush.msra.mxu0 %v353
      %1199 = vmatpush.msra.mxu0 %v350
      %1200 = vmatpush.msra.mxu0 %v347
      %1201 = vmatpush.msra.mxu0 %v344
      %1202 = vmatpush.msra.mxu0 %v341
      %1203 = vmatpush.msra.mxu0 %v338
      %1204 = vmatpush.msra.mxu0 %v335
      %1205 = vmatpush.msra.mxu0 %v332
      %1206 = vmatpush.msra.mxu0 %v329
      %1207 = vmatpush.msra.mxu0 %v326
      %1208 = vmatpush.msra.mxu0 %v323
      %1209 = vmatpush.msra.mxu0 %v320
      %1210 = vmatmul.f32.gmra.mxu0 %v1084
      %v1211 = vpop.f32.mrf.mxu0
      %v1212 = vadd.f32 %v446, %v1211
      %1213 = vdwg.mxu0
      %v1214 = vadd.f32 %v1112, %v1172
      %v1215 = vsub.f32 0.0, %v1214
      %v1216 = vmul.f32 %v1215, 1.442695
      %v1217 = vpow.pop %v1216
      %v1218 = vadd.f32 %v1217, 1.0
      %v1219 = vrcp.pop %v1218
      %v1220 = vmul.f32 %v1218, %v1219
      %v1221 = vsub.f32 1.0, %v1220
      %v1222 = vmul.f32 %v1219, %v1221
      %v1223 = vadd.f32 %v1219, %v1222
      %vm1224 = vweird.f32 %v1218
      %vm1225 = vweird.f32 %v1219
      %vm1226 = vmor %vm1224, %vm1225
      %v1227 = vsel %vm1226, %v1219, %v1223
      %v1228 = vand.u32 2147483647, %v1218
      %vm1229 = vcmp.eq.f32.partialorder %v1228, 8.507059e+37
      %v1230 = vand.u32 %v1218, 2147483648
      %v1231 = vor.u32 1.1754944e-38, %v1230
      %v1232 = vsel %vm1229, %v1231, %v1227
      %v1233 = vmul.f32 1.0, %v1232
      %v1234 = vadd.f32 %v1132, %v1192
      %v1235 = vsub.f32 0.0, %v1234
      %v1236 = vmul.f32 %v1235, 1.442695
      %v1237 = vpow.pop %v1236
      %v1238 = vadd.f32 %v1237, 1.0
      %v1239 = vrcp.pop %v1238
      %v1240 = vmul.f32 %v1238, %v1239
      %v1241 = vsub.f32 1.0, %v1240
      %v1242 = vmul.f32 %v1239, %v1241
      %v1243 = vadd.f32 %v1239, %v1242
      %vm1244 = vweird.f32 %v1238
      %vm1245 = vweird.f32 %v1239
      %vm1246 = vmor %vm1244, %vm1245
      %v1247 = vsel %vm1246, %v1239, %v1243
      %v1248 = vand.u32 2147483647, %v1238
      %vm1249 = vcmp.eq.f32.partialorder %v1248, 8.507059e+37
      %v1250 = vand.u32 %v1238, 2147483648
      %v1251 = vor.u32 1.1754944e-38, %v1250
      %v1252 = vsel %vm1249, %v1251, %v1247
      %v1253 = vmul.f32 1.0, %v1252
      %v1254 = vmul.f32 %v1233, %v1212
      %v1255 = vadd.f32 %v1152, %v1254
      %v1256 = vtanh.pop %v1255
      %v1257 = vsub.f32 1.0, %v1253
      %v1258 = vmul.f32 %v1257, %v1256
      %v1259 = vmul.f32 %v1253, %v1084
      %v1260 = vadd.f32 %v1258, %v1259
      %vm1261 = vcmp.eq.f32.partialorder %v367, 4.0
      %v1262 = vsel %vm1261, %v1260, %v1086
      %v1263 = vld [vmem:[%s259 + $0x5] sm:$0x1]
      %v1264 = vld [vmem:[%s259 + $0xd] sm:$0x1]
      %v1267 = vrot.slane %v1264, 7
      %v1268 = vsel %vm380, %v1267, %v1263
      %1270 = vmatpush.msra.mxu0 %v314
      %1271 = vmatpush.msra.mxu0 %v311
      %1272 = vmatpush.msra.mxu0 %v308
      %1273 = vmatpush.msra.mxu0 %v305
      %1274 = vmatpush.msra.mxu0 %v302
      %1275 = vmatpush.msra.mxu0 %v299
      %1276 = vmatpush.msra.mxu0 %v296
      %1277 = vmatpush.msra.mxu0 %v293
      %1278 = vmatpush.msra.mxu0 %v290
      %1279 = vmatpush.msra.mxu0 %v287
      %1280 = vmatpush.msra.mxu0 %v284
      %1281 = vmatpush.msra.mxu0 %v281
      %1282 = vmatpush.msra.mxu0 %v278
      %1283 = vmatpush.msra.mxu0 %v275
      %1284 = vmatpush.msra.mxu0 %v272
      %1285 = vmatpush.msra.mxu0 %v269
      %1286 = vmatmul.f32.gmra.mxu0 %v1268
      %v1287 = vpop.f32.mrf.mxu0
      %v1288 = vadd.f32 %v371, %v1287
      %1289 = vdwg.mxu0
      %1290 = vmatpush.msra.mxu0 %v315
      %1291 = vmatpush.msra.mxu0 %v312
      %1292 = vmatpush.msra.mxu0 %v309
      %1293 = vmatpush.msra.mxu0 %v306
      %1294 = vmatpush.msra.mxu0 %v303
      %1295 = vmatpush.msra.mxu0 %v300
      %1296 = vmatpush.msra.mxu0 %v297
      %1297 = vmatpush.msra.mxu0 %v294
      %1298 = vmatpush.msra.mxu0 %v291
      %1299 = vmatpush.msra.mxu0 %v288
      %1300 = vmatpush.msra.mxu0 %v285
      %1301 = vmatpush.msra.mxu0 %v282
      %1302 = vmatpush.msra.mxu0 %v279
      %1303 = vmatpush.msra.mxu0 %v276
      %1304 = vmatpush.msra.mxu0 %v273
      %1305 = vmatpush.msra.mxu0 %v270
      %1306 = vmatmul.f32.gmra.mxu0 %v1268
      %v1307 = vpop.f32.mrf.mxu0
      %v1308 = vadd.f32 %v372, %v1307
      %1309 = vdwg.mxu0
      %1310 = vmatpush.msra.mxu0 %v316
      %1311 = vmatpush.msra.mxu0 %v313
      %1312 = vmatpush.msra.mxu0 %v310
      %1313 = vmatpush.msra.mxu0 %v307
      %1314 = vmatpush.msra.mxu0 %v304
      %1315 = vmatpush.msra.mxu0 %v301
      %1316 = vmatpush.msra.mxu0 %v298
      %1317 = vmatpush.msra.mxu0 %v295
      %1318 = vmatpush.msra.mxu0 %v292
      %1319 = vmatpush.msra.mxu0 %v289
      %1320 = vmatpush.msra.mxu0 %v286
      %1321 = vmatpush.msra.mxu0 %v283
      %1322 = vmatpush.msra.mxu0 %v280
      %1323 = vmatpush.msra.mxu0 %v277
      %1324 = vmatpush.msra.mxu0 %v274
      %1325 = vmatpush.msra.mxu0 %v271
      %1326 = vmatmul.f32.gmra.mxu0 %v1268
      %v1327 = vpop.f32.mrf.mxu0
      %v1328 = vadd.f32 %v373, %v1327
      %1329 = vdwg.mxu0
      %1330 = vmatpush.msra.mxu0 %v363
      %1331 = vmatpush.msra.mxu0 %v360
      %1332 = vmatpush.msra.mxu0 %v357
      %1333 = vmatpush.msra.mxu0 %v354
      %1334 = vmatpush.msra.mxu0 %v351
      %1335 = vmatpush.msra.mxu0 %v348
      %1336 = vmatpush.msra.mxu0 %v345
      %1337 = vmatpush.msra.mxu0 %v342
      %1338 = vmatpush.msra.mxu0 %v339
      %1339 = vmatpush.msra.mxu0 %v336
      %1340 = vmatpush.msra.mxu0 %v333
      %1341 = vmatpush.msra.mxu0 %v330
      %1342 = vmatpush.msra.mxu0 %v327
      %1343 = vmatpush.msra.mxu0 %v324
      %1344 = vmatpush.msra.mxu0 %v321
      %1345 = vmatpush.msra.mxu0 %v318
      %1346 = vmatmul.f32.gmra.mxu0 %v1260
      %v1347 = vpop.f32.mrf.mxu0
      %v1348 = vadd.f32 %v444, %v1347
      %1349 = vdwg.mxu0
      %1350 = vmatpush.msra.mxu0 %v364
      %1351 = vmatpush.msra.mxu0 %v361
      %1352 = vmatpush.msra.mxu0 %v358
      %1353 = vmatpush.msra.mxu0 %v355
      %1354 = vmatpush.msra.mxu0 %v352
      %1355 = vmatpush.msra.mxu0 %v349
      %1356 = vmatpush.msra.mxu0 %v346
      %1357 = vmatpush.msra.mxu0 %v343
      %1358 = vmatpush.msra.mxu0 %v340
      %1359 = vmatpush.msra.mxu0 %v337
      %1360 = vmatpush.msra.mxu0 %v334
      %1361 = vmatpush.msra.mxu0 %v331
      %1362 = vmatpush.msra.mxu0 %v328
      %1363 = vmatpush.msra.mxu0 %v325
      %1364 = vmatpush.msra.mxu0 %v322
      %1365 = vmatpush.msra.mxu0 %v319
      %1366 = vmatmul.f32.gmra.mxu0 %v1260
      %v1367 = vpop.f32.mrf.mxu0
      %v1368 = vadd.f32 %v445, %v1367
      %1369 = vdwg.mxu0
      %1370 = vmatpush.msra.mxu0 %v365
      %1371 = vmatpush.msra.mxu0 %v362
      %1372 = vmatpush.msra.mxu0 %v359
      %1373 = vmatpush.msra.mxu0 %v356
      %1374 = vmatpush.msra.mxu0 %v353
      %1375 = vmatpush.msra.mxu0 %v350
      %1376 = vmatpush.msra.mxu0 %v347
      %1377 = vmatpush.msra.mxu0 %v344
      %1378 = vmatpush.msra.mxu0 %v341
      %1379 = vmatpush.msra.mxu0 %v338
      %1380 = vmatpush.msra.mxu0 %v335
      %1381 = vmatpush.msra.mxu0 %v332
      %1382 = vmatpush.msra.mxu0 %v329
      %1383 = vmatpush.msra.mxu0 %v326
      %1384 = vmatpush.msra.mxu0 %v323
      %1385 = vmatpush.msra.mxu0 %v320
      %1386 = vmatmul.f32.gmra.mxu0 %v1260
      %v1387 = vpop.f32.mrf.mxu0
      %v1388 = vadd.f32 %v446, %v1387
      %1389 = vdwg.mxu0
      %v1390 = vadd.f32 %v1288, %v1348
      %v1391 = vsub.f32 0.0, %v1390
      %v1392 = vmul.f32 %v1391, 1.442695
      %v1393 = vpow.pop %v1392
      %v1394 = vadd.f32 %v1393, 1.0
      %v1395 = vrcp.pop %v1394
      %v1396 = vmul.f32 %v1394, %v1395
      %v1397 = vsub.f32 1.0, %v1396
      %v1398 = vmul.f32 %v1395, %v1397
      %v1399 = vadd.f32 %v1395, %v1398
      %vm1400 = vweird.f32 %v1394
      %vm1401 = vweird.f32 %v1395
      %vm1402 = vmor %vm1400, %vm1401
      %v1403 = vsel %vm1402, %v1395, %v1399
      %v1404 = vand.u32 2147483647, %v1394
      %vm1405 = vcmp.eq.f32.partialorder %v1404, 8.507059e+37
      %v1406 = vand.u32 %v1394, 2147483648
      %v1407 = vor.u32 1.1754944e-38, %v1406
      %v1408 = vsel %vm1405, %v1407, %v1403
      %v1409 = vmul.f32 1.0, %v1408
      %v1410 = vadd.f32 %v1308, %v1368
      %v1411 = vsub.f32 0.0, %v1410
      %v1412 = vmul.f32 %v1411, 1.442695
      %v1413 = vpow.pop %v1412
      %v1414 = vadd.f32 %v1413, 1.0
      %v1415 = vrcp.pop %v1414
      %v1416 = vmul.f32 %v1414, %v1415
      %v1417 = vsub.f32 1.0, %v1416
      %v1418 = vmul.f32 %v1415, %v1417
      %v1419 = vadd.f32 %v1415, %v1418
      %vm1420 = vweird.f32 %v1414
      %vm1421 = vweird.f32 %v1415
      %vm1422 = vmor %vm1420, %vm1421
      %v1423 = vsel %vm1422, %v1415, %v1419
      %v1424 = vand.u32 2147483647, %v1414
      %vm1425 = vcmp.eq.f32.partialorder %v1424, 8.507059e+37
      %v1426 = vand.u32 %v1414, 2147483648
      %v1427 = vor.u32 1.1754944e-38, %v1426
      %v1428 = vsel %vm1425, %v1427, %v1423
      %v1429 = vmul.f32 1.0, %v1428
      %v1430 = vmul.f32 %v1409, %v1388
      %v1431 = vadd.f32 %v1328, %v1430
      %v1432 = vtanh.pop %v1431
      %v1433 = vsub.f32 1.0, %v1429
      %v1434 = vmul.f32 %v1433, %v1432
      %v1435 = vmul.f32 %v1429, %v1260
      %v1436 = vadd.f32 %v1434, %v1435
      %vm1437 = vcmp.eq.f32.partialorder %v367, 5.0
      %v1438 = vsel %vm1437, %v1436, %v1262
      %v1439 = vld [vmem:[%s259 + $0x6] sm:$0x1]
      %v1440 = vld [vmem:[%s259 + $0xe] sm:$0x1]
      %v1443 = vrot.slane %v1440, 7
      %v1444 = vsel %vm380, %v1443, %v1439
      %1446 = vmatpush.msra.mxu0 %v314
      %1447 = vmatpush.msra.mxu0 %v311
      %1448 = vmatpush.msra.mxu0 %v308
      %1449 = vmatpush.msra.mxu0 %v305
      %1450 = vmatpush.msra.mxu0 %v302
      %1451 = vmatpush.msra.mxu0 %v299
      %1452 = vmatpush.msra.mxu0 %v296
      %1453 = vmatpush.msra.mxu0 %v293
      %1454 = vmatpush.msra.mxu0 %v290
      %1455 = vmatpush.msra.mxu0 %v287
      %1456 = vmatpush.msra.mxu0 %v284
      %1457 = vmatpush.msra.mxu0 %v281
      %1458 = vmatpush.msra.mxu0 %v278
      %1459 = vmatpush.msra.mxu0 %v275
      %1460 = vmatpush.msra.mxu0 %v272
      %1461 = vmatpush.msra.mxu0 %v269
      %1462 = vmatmul.f32.gmra.mxu0 %v1444
      %v1463 = vpop.f32.mrf.mxu0
      %v1464 = vadd.f32 %v371, %v1463
      %1465 = vdwg.mxu0
      %1466 = vmatpush.msra.mxu0 %v315
      %1467 = vmatpush.msra.mxu0 %v312
      %1468 = vmatpush.msra.mxu0 %v309
      %1469 = vmatpush.msra.mxu0 %v306
      %1470 = vmatpush.msra.mxu0 %v303
      %1471 = vmatpush.msra.mxu0 %v300
      %1472 = vmatpush.msra.mxu0 %v297
      %1473 = vmatpush.msra.mxu0 %v294
      %1474 = vmatpush.msra.mxu0 %v291
      %1475 = vmatpush.msra.mxu0 %v288
      %1476 = vmatpush.msra.mxu0 %v285
      %1477 = vmatpush.msra.mxu0 %v282
      %1478 = vmatpush.msra.mxu0 %v279
      %1479 = vmatpush.msra.mxu0 %v276
      %1480 = vmatpush.msra.mxu0 %v273
      %1481 = vmatpush.msra.mxu0 %v270
      %1482 = vmatmul.f32.gmra.mxu0 %v1444
      %v1483 = vpop.f32.mrf.mxu0
      %v1484 = vadd.f32 %v372, %v1483
      %1485 = vdwg.mxu0
      %1486 = vmatpush.msra.mxu0 %v316
      %1487 = vmatpush.msra.mxu0 %v313
      %1488 = vmatpush.msra.mxu0 %v310
      %1489 = vmatpush.msra.mxu0 %v307
      %1490 = vmatpush.msra.mxu0 %v304
      %1491 = vmatpush.msra.mxu0 %v301
      %1492 = vmatpush.msra.mxu0 %v298
      %1493 = vmatpush.msra.mxu0 %v295
      %1494 = vmatpush.msra.mxu0 %v292
      %1495 = vmatpush.msra.mxu0 %v289
      %1496 = vmatpush.msra.mxu0 %v286
      %1497 = vmatpush.msra.mxu0 %v283
      %1498 = vmatpush.msra.mxu0 %v280
      %1499 = vmatpush.msra.mxu0 %v277
      %1500 = vmatpush.msra.mxu0 %v274
      %1501 = vmatpush.msra.mxu0 %v271
      %1502 = vmatmul.f32.gmra.mxu0 %v1444
      %v1503 = vpop.f32.mrf.mxu0
      %v1504 = vadd.f32 %v373, %v1503
      %1505 = vdwg.mxu0
      %1506 = vmatpush.msra.mxu0 %v363
      %1507 = vmatpush.msra.mxu0 %v360
      %1508 = vmatpush.msra.mxu0 %v357
      %1509 = vmatpush.msra.mxu0 %v354
      %1510 = vmatpush.msra.mxu0 %v351
      %1511 = vmatpush.msra.mxu0 %v348
      %1512 = vmatpush.msra.mxu0 %v345
      %1513 = vmatpush.msra.mxu0 %v342
      %1514 = vmatpush.msra.mxu0 %v339
      %1515 = vmatpush.msra.mxu0 %v336
      %1516 = vmatpush.msra.mxu0 %v333
      %1517 = vmatpush.msra.mxu0 %v330
      %1518 = vmatpush.msra.mxu0 %v327
      %1519 = vmatpush.msra.mxu0 %v324
      %1520 = vmatpush.msra.mxu0 %v321
      %1521 = vmatpush.msra.mxu0 %v318
      %1522 = vmatmul.f32.gmra.mxu0 %v1436
      %v1523 = vpop.f32.mrf.mxu0
      %v1524 = vadd.f32 %v444, %v1523
      %1525 = vdwg.mxu0
      %1526 = vmatpush.msra.mxu0 %v364
      %1527 = vmatpush.msra.mxu0 %v361
      %1528 = vmatpush.msra.mxu0 %v358
      %1529 = vmatpush.msra.mxu0 %v355
      %1530 = vmatpush.msra.mxu0 %v352
      %1531 = vmatpush.msra.mxu0 %v349
      %1532 = vmatpush.msra.mxu0 %v346
      %1533 = vmatpush.msra.mxu0 %v343
      %1534 = vmatpush.msra.mxu0 %v340
      %1535 = vmatpush.msra.mxu0 %v337
      %1536 = vmatpush.msra.mxu0 %v334
      %1537 = vmatpush.msra.mxu0 %v331
      %1538 = vmatpush.msra.mxu0 %v328
      %1539 = vmatpush.msra.mxu0 %v325
      %1540 = vmatpush.msra.mxu0 %v322
      %1541 = vmatpush.msra.mxu0 %v319
      %1542 = vmatmul.f32.gmra.mxu0 %v1436
      %v1543 = vpop.f32.mrf.mxu0
      %v1544 = vadd.f32 %v445, %v1543
      %1545 = vdwg.mxu0
      %1546 = vmatpush.msra.mxu0 %v365
      %1547 = vmatpush.msra.mxu0 %v362
      %1548 = vmatpush.msra.mxu0 %v359
      %1549 = vmatpush.msra.mxu0 %v356
      %1550 = vmatpush.msra.mxu0 %v353
      %1551 = vmatpush.msra.mxu0 %v350
      %1552 = vmatpush.msra.mxu0 %v347
      %1553 = vmatpush.msra.mxu0 %v344
      %1554 = vmatpush.msra.mxu0 %v341
      %1555 = vmatpush.msra.mxu0 %v338
      %1556 = vmatpush.msra.mxu0 %v335
      %1557 = vmatpush.msra.mxu0 %v332
      %1558 = vmatpush.msra.mxu0 %v329
      %1559 = vmatpush.msra.mxu0 %v326
      %1560 = vmatpush.msra.mxu0 %v323
      %1561 = vmatpush.msra.mxu0 %v320
      %1562 = vmatmul.f32.gmra.mxu0 %v1436
      %v1563 = vpop.f32.mrf.mxu0
      %v1564 = vadd.f32 %v446, %v1563
      %1565 = vdwg.mxu0
      %v1566 = vadd.f32 %v1464, %v1524
      %v1567 = vsub.f32 0.0, %v1566
      %v1568 = vmul.f32 %v1567, 1.442695
      %v1569 = vpow.pop %v1568
      %v1570 = vadd.f32 %v1569, 1.0
      %v1571 = vrcp.pop %v1570
      %v1572 = vmul.f32 %v1570, %v1571
      %v1573 = vsub.f32 1.0, %v1572
      %v1574 = vmul.f32 %v1571, %v1573
      %v1575 = vadd.f32 %v1571, %v1574
      %vm1576 = vweird.f32 %v1570
      %vm1577 = vweird.f32 %v1571
      %vm1578 = vmor %vm1576, %vm1577
      %v1579 = vsel %vm1578, %v1571, %v1575
      %v1580 = vand.u32 2147483647, %v1570
      %vm1581 = vcmp.eq.f32.partialorder %v1580, 8.507059e+37
      %v1582 = vand.u32 %v1570, 2147483648
      %v1583 = vor.u32 1.1754944e-38, %v1582
      %v1584 = vsel %vm1581, %v1583, %v1579
      %v1585 = vmul.f32 1.0, %v1584
      %v1586 = vadd.f32 %v1484, %v1544
      %v1587 = vsub.f32 0.0, %v1586
      %v1588 = vmul.f32 %v1587, 1.442695
      %v1589 = vpow.pop %v1588
      %v1590 = vadd.f32 %v1589, 1.0
      %v1591 = vrcp.pop %v1590
      %v1592 = vmul.f32 %v1590, %v1591
      %v1593 = vsub.f32 1.0, %v1592
      %v1594 = vmul.f32 %v1591, %v1593
      %v1595 = vadd.f32 %v1591, %v1594
      %vm1596 = vweird.f32 %v1590
      %vm1597 = vweird.f32 %v1591
      %vm1598 = vmor %vm1596, %vm1597
      %v1599 = vsel %vm1598, %v1591, %v1595
      %v1600 = vand.u32 2147483647, %v1590
      %vm1601 = vcmp.eq.f32.partialorder %v1600, 8.507059e+37
      %v1602 = vand.u32 %v1590, 2147483648
      %v1603 = vor.u32 1.1754944e-38, %v1602
      %v1604 = vsel %vm1601, %v1603, %v1599
      %v1605 = vmul.f32 1.0, %v1604
      %v1606 = vmul.f32 %v1585, %v1564
      %v1607 = vadd.f32 %v1504, %v1606
      %v1608 = vtanh.pop %v1607
      %v1609 = vsub.f32 1.0, %v1605
      %v1610 = vmul.f32 %v1609, %v1608
      %v1611 = vmul.f32 %v1605, %v1436
      %v1612 = vadd.f32 %v1610, %v1611
      %vm1613 = vcmp.eq.f32.partialorder %v367, 6.0
      %v1614 = vsel %vm1613, %v1612, %v1438
      %v1615 = vld [vmem:[%s259 + $0x7] sm:$0x1]
      %v1616 = vld [vmem:[%s259 + $0xf] sm:$0x1]
      %v1619 = vrot.slane %v1616, 7
      %v1620 = vsel %vm380, %v1619, %v1615
      %1622 = vmatpush.msra.mxu0 %v314
      %1623 = vmatpush.msra.mxu0 %v311
      %1624 = vmatpush.msra.mxu0 %v308
      %1625 = vmatpush.msra.mxu0 %v305
      %1626 = vmatpush.msra.mxu0 %v302
      %1627 = vmatpush.msra.mxu0 %v299
      %1628 = vmatpush.msra.mxu0 %v296
      %1629 = vmatpush.msra.mxu0 %v293
      %1630 = vmatpush.msra.mxu0 %v290
      %1631 = vmatpush.msra.mxu0 %v287
      %1632 = vmatpush.msra.mxu0 %v284
      %1633 = vmatpush.msra.mxu0 %v281
      %1634 = vmatpush.msra.mxu0 %v278
      %1635 = vmatpush.msra.mxu0 %v275
      %1636 = vmatpush.msra.mxu0 %v272
      %1637 = vmatpush.msra.mxu0 %v269
      %1638 = vmatmul.f32.gmra.mxu0 %v1620
      %v1639 = vpop.f32.mrf.mxu0
      %v1640 = vadd.f32 %v371, %v1639
      %1641 = vdwg.mxu0
      %1642 = vmatpush.msra.mxu0 %v315
      %1643 = vmatpush.msra.mxu0 %v312
      %1644 = vmatpush.msra.mxu0 %v309
      %1645 = vmatpush.msra.mxu0 %v306
      %1646 = vmatpush.msra.mxu0 %v303
      %1647 = vmatpush.msra.mxu0 %v300
      %1648 = vmatpush.msra.mxu0 %v297
      %1649 = vmatpush.msra.mxu0 %v294
      %1650 = vmatpush.msra.mxu0 %v291
      %1651 = vmatpush.msra.mxu0 %v288
      %1652 = vmatpush.msra.mxu0 %v285
      %1653 = vmatpush.msra.mxu0 %v282
      %1654 = vmatpush.msra.mxu0 %v279
      %1655 = vmatpush.msra.mxu0 %v276
      %1656 = vmatpush.msra.mxu0 %v273
      %1657 = vmatpush.msra.mxu0 %v270
      %1658 = vmatmul.f32.gmra.mxu0 %v1620
      %v1659 = vpop.f32.mrf.mxu0
      %v1660 = vadd.f32 %v372, %v1659
      %1661 = vdwg.mxu0
      %1662 = vmatpush.msra.mxu0 %v316
      %1663 = vmatpush.msra.mxu0 %v313
      %1664 = vmatpush.msra.mxu0 %v310
      %1665 = vmatpush.msra.mxu0 %v307
      %1666 = vmatpush.msra.mxu0 %v304
      %1667 = vmatpush.msra.mxu0 %v301
      %1668 = vmatpush.msra.mxu0 %v298
      %1669 = vmatpush.msra.mxu0 %v295
      %1670 = vmatpush.msra.mxu0 %v292
      %1671 = vmatpush.msra.mxu0 %v289
      %1672 = vmatpush.msra.mxu0 %v286
      %1673 = vmatpush.msra.mxu0 %v283
      %1674 = vmatpush.msra.mxu0 %v280
      %1675 = vmatpush.msra.mxu0 %v277
      %1676 = vmatpush.msra.mxu0 %v274
      %1677 = vmatpush.msra.mxu0 %v271
      %1678 = vmatmul.f32.gmra.mxu0 %v1620
      %v1679 = vpop.f32.mrf.mxu0
      %v1680 = vadd.f32 %v373, %v1679
      %1681 = vdwg.mxu0
      %1682 = vmatpush.msra.mxu0 %v363
      %1683 = vmatpush.msra.mxu0 %v360
      %1684 = vmatpush.msra.mxu0 %v357
      %1685 = vmatpush.msra.mxu0 %v354
      %1686 = vmatpush.msra.mxu0 %v351
      %1687 = vmatpush.msra.mxu0 %v348
      %1688 = vmatpush.msra.mxu0 %v345
      %1689 = vmatpush.msra.mxu0 %v342
      %1690 = vmatpush.msra.mxu0 %v339
      %1691 = vmatpush.msra.mxu0 %v336
      %1692 = vmatpush.msra.mxu0 %v333
      %1693 = vmatpush.msra.mxu0 %v330
      %1694 = vmatpush.msra.mxu0 %v327
      %1695 = vmatpush.msra.mxu0 %v324
      %1696 = vmatpush.msra.mxu0 %v321
      %1697 = vmatpush.msra.mxu0 %v318
      %1698 = vmatmul.f32.gmra.mxu0 %v1612
      %v1699 = vpop.f32.mrf.mxu0
      %v1700 = vadd.f32 %v444, %v1699
      %1701 = vdwg.mxu0
      %1702 = vmatpush.msra.mxu0 %v364
      %1703 = vmatpush.msra.mxu0 %v361
      %1704 = vmatpush.msra.mxu0 %v358
      %1705 = vmatpush.msra.mxu0 %v355
      %1706 = vmatpush.msra.mxu0 %v352
      %1707 = vmatpush.msra.mxu0 %v349
      %1708 = vmatpush.msra.mxu0 %v346
      %1709 = vmatpush.msra.mxu0 %v343
      %1710 = vmatpush.msra.mxu0 %v340
      %1711 = vmatpush.msra.mxu0 %v337
      %1712 = vmatpush.msra.mxu0 %v334
      %1713 = vmatpush.msra.mxu0 %v331
      %1714 = vmatpush.msra.mxu0 %v328
      %1715 = vmatpush.msra.mxu0 %v325
      %1716 = vmatpush.msra.mxu0 %v322
      %1717 = vmatpush.msra.mxu0 %v319
      %1718 = vmatmul.f32.gmra.mxu0 %v1612
      %v1719 = vpop.f32.mrf.mxu0
      %v1720 = vadd.f32 %v445, %v1719
      %1721 = vdwg.mxu0
      %1722 = vmatpush.msra.mxu0 %v365
      %1723 = vmatpush.msra.mxu0 %v362
      %1724 = vmatpush.msra.mxu0 %v359
      %1725 = vmatpush.msra.mxu0 %v356
      %1726 = vmatpush.msra.mxu0 %v353
      %1727 = vmatpush.msra.mxu0 %v350
      %1728 = vmatpush.msra.mxu0 %v347
      %1729 = vmatpush.msra.mxu0 %v344
      %1730 = vmatpush.msra.mxu0 %v341
      %1731 = vmatpush.msra.mxu0 %v338
      %1732 = vmatpush.msra.mxu0 %v335
      %1733 = vmatpush.msra.mxu0 %v332
      %1734 = vmatpush.msra.mxu0 %v329
      %1735 = vmatpush.msra.mxu0 %v326
      %1736 = vmatpush.msra.mxu0 %v323
      %1737 = vmatpush.msra.mxu0 %v320
      %1738 = vmatmul.f32.gmra.mxu0 %v1612
      %v1739 = vpop.f32.mrf.mxu0
      %v1740 = vadd.f32 %v446, %v1739
      %1741 = vdwg.mxu0
      %v1742 = vadd.f32 %v1640, %v1700
      %v1743 = vsub.f32 0.0, %v1742
      %v1744 = vmul.f32 %v1743, 1.442695
      %v1745 = vpow.pop %v1744
      %v1746 = vadd.f32 %v1745, 1.0
      %v1747 = vrcp.pop %v1746
      %v1748 = vmul.f32 %v1746, %v1747
      %v1749 = vsub.f32 1.0, %v1748
      %v1750 = vmul.f32 %v1747, %v1749
      %v1751 = vadd.f32 %v1747, %v1750
      %vm1752 = vweird.f32 %v1746
      %vm1753 = vweird.f32 %v1747
      %vm1754 = vmor %vm1752, %vm1753
      %v1755 = vsel %vm1754, %v1747, %v1751
      %v1756 = vand.u32 2147483647, %v1746
      %vm1757 = vcmp.eq.f32.partialorder %v1756, 8.507059e+37
      %v1758 = vand.u32 %v1746, 2147483648
      %v1759 = vor.u32 1.1754944e-38, %v1758
      %v1760 = vsel %vm1757, %v1759, %v1755
      %v1761 = vmul.f32 1.0, %v1760
      %v1762 = vadd.f32 %v1660, %v1720
      %v1763 = vsub.f32 0.0, %v1762
      %v1764 = vmul.f32 %v1763, 1.442695
      %v1765 = vpow.pop %v1764
      %v1766 = vadd.f32 %v1765, 1.0
      %v1767 = vrcp.pop %v1766
      %v1768 = vmul.f32 %v1766, %v1767
      %v1769 = vsub.f32 1.0, %v1768
      %v1770 = vmul.f32 %v1767, %v1769
      %v1771 = vadd.f32 %v1767, %v1770
      %vm1772 = vweird.f32 %v1766
      %vm1773 = vweird.f32 %v1767
      %vm1774 = vmor %vm1772, %vm1773
      %v1775 = vsel %vm1774, %v1767, %v1771
      %v1776 = vand.u32 2147483647, %v1766
      %vm1777 = vcmp.eq.f32.partialorder %v1776, 8.507059e+37
      %v1778 = vand.u32 %v1766, 2147483648
      %v1779 = vor.u32 1.1754944e-38, %v1778
      %v1780 = vsel %vm1777, %v1779, %v1775
      %v1781 = vmul.f32 1.0, %v1780
      %v1782 = vmul.f32 %v1761, %v1740
      %v1783 = vadd.f32 %v1680, %v1782
      %v1784 = vtanh.pop %v1783
      %v1785 = vsub.f32 1.0, %v1781
      %v1786 = vmul.f32 %v1785, %v1784
      %v1787 = vmul.f32 %v1781, %v1612
      %v1788 = vadd.f32 %v1786, %v1787
      %vm1789 = vcmp.eq.f32.partialorder %v367, 7.0
      %v1790 = vsel %vm1789, %v1788, %v1614
      %1791 = vst [vmem:[%s268] sm:$0x3] %v1790
      %p1792 = scmp.lt.s32.totalorder %s17, 1
      %s1793 = scalar_select %p1792, %s17, 1
      %s1794 = smul.addr %s1793, 2
      %s1795 = scalar_lea.vmem %s6, %s1794
      // Predicated region
      $region45: #{state_action_predictor.8} parent=43 // pred_check
        %p1796 = pneg %p171
      $region46: #{state_action_predictor.8} parent=43 // pred_check_branch
        %1798 = sbr.rel (%p1796) target = $region48
      $region47: #{state_action_predictor.8} parent=43 // pred_region
        _
      $region48: #{state_action_predictor.8} parent=43 // pred_fallthru
        _
    $region44: #{state_action_predictor.8} parent=5 // pred_fallthru
      _
    %p1799 = scmp.le.s32.totalorder 2, %s12
    // Predicated region
    $region49: #{state_action_predictor.8} parent=5 // pred_check
      %p1800 = pneg %p1799
    $region50: #{state_action_predictor.8} parent=5 // pred_check_branch
      %1802 = sbr.rel (%p1800) target = $region52
    $region51: #{state_action_predictor.8} parent=5 // pred_region
      %s1803 = ssub.s32 %s12, 2
      // Predicated region
      $region53: #{state_action_predictor.8} parent=51 // pred_check
        %p1804 = pneg %p177
      $region54: #{state_action_predictor.8} parent=51 // pred_check_branch
        %1806 = sbr.rel (%p1804) target = $region56
      $region55: #{state_action_predictor.8} parent=51 // pred_region
        %p1807 = scmp.lt.s32.totalorder %s18, 1
        %s1808 = scalar_select %p1807, %s18, 1
        %s1809 = smul.addr %s1808, 2
        %s1810 = scalar_lea.vmem %s6, %s1809
      $region56: #{state_action_predictor.8} parent=51 // pred_fallthru
        _
    $region52: #{state_action_predictor.8} parent=5 // pred_fallthru
      _
  $region6: #{state_action_predictor.8} parent=0 // loop_footer
    %s16 = sadd.s32 1, %s12
  $region7: #{state_action_predictor.8} parent=0 // loop_footer_branch
    %11 = sbr.rel target = $region3
  $region8: #{state_action_predictor.8} parent=0 // loop_exit
    _

</llo_original>
